<compile_context>
chip_gen: v7x
topology: tpu7x:2x2x1
jax: 0.10.0
libtpu: 0.0.40
codegen_flags: <defaults>
</compile_context>

<pallas_src>
import math

import jax
import jax.numpy as jnp
from jax.experimental import pallas as pl
from jax.experimental.pallas import tpu as pltpu

# ---------------- model hyper-parameters (small, self-consistent) -----------
D_IN        = 3
HIDDEN      = 128
DIMS        = (D_IN, HIDDEN, HIDDEN, HIDDEN, 1)   # 4 Linear layers
SKIP_IN     = (2,)                                # skip concat before layer 2
NUM_LAYERS  = len(DIMS)
BETA        = 100.0
RADIUS_INIT = 1.5
OUT_PAD     = 128                                 # lane-dense padded output
TB          = 1024                                # row tile (multiple of 8)
INV_SQRT2   = 1.0 / math.sqrt(2.0)


# ----------------------------- shared math -----------------------------------
def _softplus_beta(x):
    """Softplus(beta=100): (1/beta) * log(1 + exp(beta*x)), numerically stable.

    # TODO(synk): PyTorch's nn.Softplus also applies a hard threshold (returns
    # x exactly when beta*x > 20); the stable formula below differs from that
    # by < 1e-10 in f32, so the branch is omitted.
    """
    z = BETA * x
    return (jnp.maximum(z, 0.0) + jnp.log(1.0 + jnp.exp(-jnp.abs(z)))) * (1.0 / BETA)


def _input_proj(x_in, w):
    """(TB, D_IN) @ (D_IN, HIDDEN) as D_IN broadcast mul-adds (pure VPU)."""
    acc = x_in[:, 0:1] * w[0:1, :]
    for d in range(1, D_IN):
        acc = acc + x_in[:, d:d + 1] * w[d:d + 1, :]
    return acc


# ------------------------------- the kernel ---------------------------------
def implicit_net_kernel(x_ref, w_in_ref, w_hid_ref, w_skip_ref, b_ref, out_ref):
    x_in = x_ref[...]                       # (TB, D_IN) f32
    b = b_ref[...]                          # (4, 128)   f32
    w_in = w_in_ref[...]                    # (D_IN, 128)
    w_skip = w_skip_ref[...]                # (D_IN, 128)

    # layer 0: Linear(D_IN, HIDDEN) + Softplus
    h = _softplus_beta(_input_proj(x_in, w_in) + b[0:1, :])

    # layer 1: Linear(HIDDEN, HIDDEN - D_IN) + Softplus
    # (output columns padded HIDDEN-D_IN -> HIDDEN with zero weights/biases)
    h = jnp.dot(h, w_hid_ref[0], preferred_element_type=jnp.float32) + b[1:2, :]
    h = _softplus_beta(h)

    # layer 2 (skip): cat([h, x_in], -1)/sqrt(2) @ W2.T folded into two matmuls.
    # Rows of w_hid[1] that correspond to the zero-padded lanes of h are zero,
    # so the padded (softplus(0)) lanes contribute nothing.
    pre = (jnp.dot(h, w_hid_ref[1], preferred_element_type=jnp.float32)
           + _input_proj(x_in, w_skip))
    h = _softplus_beta(pre * INV_SQRT2 + b[2:3, :])

    # layer 3: Linear(HIDDEN, 1), no activation; output padded to 128 lanes so
    # the store is an unmasked lane-dense (TB, 128) block.
    out_ref[...] = (jnp.dot(h, w_hid_ref[2], preferred_element_type=jnp.float32)
                    + b[3:4, :])


# ----------------------------- wrapper / glue --------------------------------
@jax.jit
def implicit_net_forward(points, packed):
    """points: (B, D_IN, N) -> (B, 1, N), matching ImplicitNet.forward."""
    w_in, w_hid, w_skip, biases = packed
    B, C, N = points.shape

    # input.transpose(1, 2) -> (B, N, C), then flatten points onto the row axis.
    x = jnp.transpose(points, (0, 2, 1)).reshape(B * N, C).astype(jnp.float32)

    total = B * N
    padded = pl.cdiv(total, TB) * TB
    if padded != total:                      # pad rows so the grid tiles evenly
        x = jnp.pad(x, ((0, padded - total), (0, 0)))

    grid = (padded // TB,)
    out = pl.pallas_call(
        implicit_net_kernel,
        out_shape=jax.ShapeDtypeStruct((padded, OUT_PAD), jnp.float32),
        grid=grid,
        in_specs=[
            pl.BlockSpec((TB, D_IN), lambda i: (i, 0)),
            pl.BlockSpec(w_in.shape, lambda i: (0, 0)),
            pl.BlockSpec(w_hid.shape, lambda i: (0, 0, 0)),
            pl.BlockSpec(w_skip.shape, lambda i: (0, 0)),
            pl.BlockSpec(biases.shape, lambda i: (0, 0)),
        ],
        out_specs=pl.BlockSpec((TB, OUT_PAD), lambda i: (i, 0)),
        compiler_params=pltpu.CompilerParams(
            dimension_semantics=("parallel",),
            vmem_limit_bytes=32 * 1024 * 1024,
        ),
    )(x, w_in, w_hid, w_skip, biases)

    sdf = out[:total, :DIMS[-1]]                              # (B*N, 1)
    # x.transpose(1, 2) back to channel-major: (B, 1, N)
    return sdf.reshape(B, N, DIMS[-1]).transpose(0, 2, 1)


# -------------------------- parameters & packing -----------------------------
def init_raw_params(key):
    """Per-layer (W, b) in PyTorch Linear layout (out_dim, in_dim) with the
    module's geometric initialization (radius_init=1.5)."""
    raws = []
    keys = jax.random.split(key, NUM_LAYERS - 1)
    for layer in range(NUM_LAYERS - 1):
        in_dim = DIMS[layer]
        out_dim = (DIMS[layer + 1] - D_IN) if (layer + 1) in SKIP_IN else DIMS[layer + 1]
        if layer == NUM_LAYERS - 2:
            w = (math.sqrt(math.pi) / math.sqrt(in_dim)
                 + 1e-5 * jax.random.normal(keys[layer], (out_dim, in_dim)))
            b = jnp.full((out_dim,), -RADIUS_INIT)
        else:
            w = (math.sqrt(2.0) / math.sqrt(out_dim)
                 * jax.random.normal(keys[layer], (out_dim, in_dim)))
            b = jnp.zeros((out_dim,))
        raws.append((w.astype(jnp.float32), b.astype(jnp.float32)))
    return raws


def pack_params(raw):
    """Convert PyTorch-layout weights into the padded, stacked kernel layout."""
    (w0, b0), (w1, b1), (w2, b2), (w3, b3) = raw
    hm = HIDDEN - D_IN                                        # 125: layer-1 true width

    w_in = w0.T                                               # (D_IN, HIDDEN)

    # layer 1: pad out dim 125 -> 128 with zero columns / biases
    w1p = jnp.zeros((HIDDEN, HIDDEN), jnp.float32).at[:, :hm].set(w1.T)
    b1p = jnp.zeros((HIDDEN,), jnp.float32).at[:hm].set(b1)

    # layer 2 (skip): cat([h, x], -1) @ W2.T == h @ W2[:, :hm].T + x @ W2[:, hm:].T
    # zero the rows matching h's padded lanes so they contribute nothing.
    w2h = jnp.zeros((HIDDEN, HIDDEN), jnp.float32).at[:hm, :].set(w2[:, :hm].T)
    w_skip = w2[:, hm:].T                                     # (D_IN, HIDDEN)

    # layer 3: pad out dim 1 -> 128 (lane-dense output)
    w3p = jnp.zeros((HIDDEN, OUT_PAD), jnp.float32).at[:, :DIMS[-1]].set(w3.T)
    b3p = jnp.zeros((OUT_PAD,), jnp.float32).at[:DIMS[-1]].set(b3)

    w_hid = jnp.stack([w1p, w2h, w3p])                        # (3, 128, 128)
    biases = jnp.stack([b0, b1p, b2, b3p])                    # (4, 128)
    return w_in, w_hid, w_skip, biases


# --------------------------- pure-JAX reference ------------------------------
def reference_forward(points, raw):
    """Direct replica of ImplicitNet.forward (validation only)."""
    x = jnp.swapaxes(points, 1, 2)
    inp = x
    for layer in range(NUM_LAYERS - 1):
        w, b = raw[layer]
        if layer in SKIP_IN:
            x = jnp.concatenate([x, inp], axis=-1) / math.sqrt(2.0)
        x = jnp.dot(x, w.T, precision=jax.lax.Precision.HIGHEST) + b
        if layer < NUM_LAYERS - 2:
            x = _softplus_beta(x)
    return jnp.swapaxes(x, 1, 2)


# ------------------------------------ main -----------------------------------
if __name__ == "__main__":
    key = jax.random.PRNGKey(0)
    pkey, xkey = jax.random.split(key)

    raw = init_raw_params(pkey)
    packed = pack_params(raw)

    B, N = 2, 1024                                   # points: (2, 3, 1024)
    points = jax.random.normal(xkey, (B, D_IN, N), dtype=jnp.float32)

    out = implicit_net_forward(points, packed)
    out = jax.block_until_ready(out)

    assert out.shape == (B, DIMS[-1], N), out.shape
    assert bool(jnp.all(jnp.isfinite(out)))

    ref = reference_forward(points, raw)
    max_err = float(jnp.max(jnp.abs(out - ref)))
    assert max_err < 5e-3, f"max abs error vs reference: {max_err}"

    print("KERNEL_OK")
</pallas_src>

<mosaic_0001>
module attributes {stable_mosaic.version = 11 : i64} {
  func.func @implicit_net_kernel(%arg0: i32, %arg1: memref<1024x3xf32, #tpu.memory_space<vmem>>, %arg2: memref<3x128xf32, #tpu.memory_space<vmem>>, %arg3: memref<3x128x128xf32, #tpu.memory_space<vmem>>, %arg4: memref<3x128xf32, #tpu.memory_space<vmem>>, %arg5: memref<4x128xf32, #tpu.memory_space<vmem>>, %arg6: memref<1024x128xf32, #tpu.memory_space<vmem>>) attributes {dimension_semantics = [#tpu.dimension_semantics<parallel>], iteration_bounds = array<i64: 2>, scalar_prefetch = 0 : i64, scratch_operands = 0 : i64, tpu.core_type = #tpu.core_type<tc>, window_params = [{transform_indices = @transform_0, window_bounds = array<i64: 1024, 3>}, {pipeline_mode = #tpu.pipeline_mode<synchronous>, transform_indices = @transform_1, window_bounds = array<i64: 3, 128>}, {pipeline_mode = #tpu.pipeline_mode<synchronous>, transform_indices = @transform_2, window_bounds = array<i64: 3, 128, 128>}, {pipeline_mode = #tpu.pipeline_mode<synchronous>, transform_indices = @transform_3, window_bounds = array<i64: 3, 128>}, {pipeline_mode = #tpu.pipeline_mode<synchronous>, transform_indices = @transform_4, window_bounds = array<i64: 4, 128>}, {transform_indices = @transform_5, window_bounds = array<i64: 1024, 128>}]} {
    %c0 = arith.constant 0 : index
    %c0_0 = arith.constant 0 : index
    %0 = vector.load %arg1[%c0, %c0_0] : memref<1024x3xf32, #tpu.memory_space<vmem>>, vector<1024x3xf32>
    %c0_1 = arith.constant 0 : index
    %c0_2 = arith.constant 0 : index
    %1 = vector.load %arg5[%c0_1, %c0_2] : memref<4x128xf32, #tpu.memory_space<vmem>>, vector<4x128xf32>
    %c0_3 = arith.constant 0 : index
    %c0_4 = arith.constant 0 : index
    %2 = vector.load %arg2[%c0_3, %c0_4] : memref<3x128xf32, #tpu.memory_space<vmem>>, vector<3x128xf32>
    %c0_5 = arith.constant 0 : index
    %c0_6 = arith.constant 0 : index
    %3 = vector.load %arg4[%c0_5, %c0_6] : memref<3x128xf32, #tpu.memory_space<vmem>>, vector<3x128xf32>
    %4 = vector.extract_strided_slice %0 {offsets = [0, 0], sizes = [1024, 1], strides = [1, 1]} : vector<1024x3xf32> to vector<1024x1xf32>
    %5 = vector.extract_strided_slice %2 {offsets = [0, 0], sizes = [1, 128], strides = [1, 1]} : vector<3x128xf32> to vector<1x128xf32>
    %6 = vector.broadcast %4 : vector<1024x1xf32> to vector<1024x128xf32>
    %7 = vector.broadcast %5 : vector<1x128xf32> to vector<1024x128xf32>
    %8 = arith.mulf %6, %7 : vector<1024x128xf32>
    %9 = vector.extract_strided_slice %0 {offsets = [0, 1], sizes = [1024, 1], strides = [1, 1]} : vector<1024x3xf32> to vector<1024x1xf32>
    %10 = vector.extract_strided_slice %2 {offsets = [1, 0], sizes = [1, 128], strides = [1, 1]} : vector<3x128xf32> to vector<1x128xf32>
    %11 = vector.broadcast %9 : vector<1024x1xf32> to vector<1024x128xf32>
    %12 = vector.broadcast %10 : vector<1x128xf32> to vector<1024x128xf32>
    %13 = arith.mulf %11, %12 : vector<1024x128xf32>
    %14 = arith.addf %8, %13 : vector<1024x128xf32>
    %15 = vector.extract_strided_slice %0 {offsets = [0, 2], sizes = [1024, 1], strides = [1, 1]} : vector<1024x3xf32> to vector<1024x1xf32>
    %16 = vector.extract_strided_slice %2 {offsets = [2, 0], sizes = [1, 128], strides = [1, 1]} : vector<3x128xf32> to vector<1x128xf32>
    %17 = vector.broadcast %15 : vector<1024x1xf32> to vector<1024x128xf32>
    %18 = vector.broadcast %16 : vector<1x128xf32> to vector<1024x128xf32>
    %19 = arith.mulf %17, %18 : vector<1024x128xf32>
    %20 = arith.addf %14, %19 : vector<1024x128xf32>
    %21 = vector.extract_strided_slice %1 {offsets = [0, 0], sizes = [1, 128], strides = [1, 1]} : vector<4x128xf32> to vector<1x128xf32>
    %22 = vector.broadcast %21 : vector<1x128xf32> to vector<1024x128xf32>
    %23 = arith.addf %20, %22 : vector<1024x128xf32>
    %cst = arith.constant 1.000000e+02 : f32
    %24 = vector.broadcast %cst : f32 to vector<1024x128xf32>
    %25 = arith.mulf %24, %23 : vector<1024x128xf32>
    %cst_7 = arith.constant 0.000000e+00 : f32
    %26 = vector.broadcast %cst_7 : f32 to vector<1024x128xf32>
    %27 = arith.maximumf %25, %26 : vector<1024x128xf32>
    %28 = math.absf %25 : vector<1024x128xf32>
    %cst_8 = arith.constant 0.000000e+00 : f32
    %29 = vector.broadcast %cst_8 : f32 to vector<1024x128xf32>
    %30 = arith.subf %29, %28 : vector<1024x128xf32>
    %31 = math.exp %30 : vector<1024x128xf32>
    %cst_9 = arith.constant 1.000000e+00 : f32
    %32 = vector.broadcast %cst_9 : f32 to vector<1024x128xf32>
    %33 = arith.addf %32, %31 : vector<1024x128xf32>
    %34 = math.log %33 : vector<1024x128xf32>
    %35 = arith.addf %27, %34 : vector<1024x128xf32>
    %cst_10 = arith.constant 0.00999999977 : f32
    %36 = vector.broadcast %cst_10 : f32 to vector<1024x128xf32>
    %37 = arith.mulf %35, %36 : vector<1024x128xf32>
    %c0_11 = arith.constant 0 : index
    %c0_12 = arith.constant 0 : index
    %c0_13 = arith.constant 0 : index
    %38 = vector.load %arg3[%c0_11, %c0_12, %c0_13] : memref<3x128x128xf32, #tpu.memory_space<vmem>>, vector<1x128x128xf32>
    %39 = vector.shape_cast %38 : vector<1x128x128xf32> to vector<128x128xf32>
    %cst_14 = arith.constant dense<0.000000e+00> : vector<1024x128xf32>
    %40 = tpu.matmul %37, %39, %cst_14 {dimension_numbers = #tpu.dot_dimension_numbers<[1], [0], [0], [1], [0, 0, 1, 1], [], []>} : vector<1024x128xf32>, vector<128x128xf32>, vector<1024x128xf32> -> vector<1024x128xf32>
    %41 = vector.extract_strided_slice %1 {offsets = [1, 0], sizes = [1, 128], strides = [1, 1]} : vector<4x128xf32> to vector<1x128xf32>
    %42 = vector.broadcast %41 : vector<1x128xf32> to vector<1024x128xf32>
    %43 = arith.addf %40, %42 : vector<1024x128xf32>
    %cst_15 = arith.constant 1.000000e+02 : f32
    %44 = vector.broadcast %cst_15 : f32 to vector<1024x128xf32>
    %45 = arith.mulf %44, %43 : vector<1024x128xf32>
    %cst_16 = arith.constant 0.000000e+00 : f32
    %46 = vector.broadcast %cst_16 : f32 to vector<1024x128xf32>
    %47 = arith.maximumf %45, %46 : vector<1024x128xf32>
    %48 = math.absf %45 : vector<1024x128xf32>
    %cst_17 = arith.constant 0.000000e+00 : f32
    %49 = vector.broadcast %cst_17 : f32 to vector<1024x128xf32>
    %50 = arith.subf %49, %48 : vector<1024x128xf32>
    %51 = math.exp %50 : vector<1024x128xf32>
    %cst_18 = arith.constant 1.000000e+00 : f32
    %52 = vector.broadcast %cst_18 : f32 to vector<1024x128xf32>
    %53 = arith.addf %52, %51 : vector<1024x128xf32>
    %54 = math.log %53 : vector<1024x128xf32>
    %55 = arith.addf %47, %54 : vector<1024x128xf32>
    %cst_19 = arith.constant 0.00999999977 : f32
    %56 = vector.broadcast %cst_19 : f32 to vector<1024x128xf32>
    %57 = arith.mulf %55, %56 : vector<1024x128xf32>
    %c1 = arith.constant 1 : index
    %c0_20 = arith.constant 0 : index
    %c0_21 = arith.constant 0 : index
    %58 = vector.load %arg3[%c1, %c0_20, %c0_21] : memref<3x128x128xf32, #tpu.memory_space<vmem>>, vector<1x128x128xf32>
    %59 = vector.shape_cast %58 : vector<1x128x128xf32> to vector<128x128xf32>
    %cst_22 = arith.constant dense<0.000000e+00> : vector<1024x128xf32>
    %60 = tpu.matmul %57, %59, %cst_22 {dimension_numbers = #tpu.dot_dimension_numbers<[1], [0], [0], [1], [0, 0, 1, 1], [], []>} : vector<1024x128xf32>, vector<128x128xf32>, vector<1024x128xf32> -> vector<1024x128xf32>
    %61 = vector.extract_strided_slice %0 {offsets = [0, 0], sizes = [1024, 1], strides = [1, 1]} : vector<1024x3xf32> to vector<1024x1xf32>
    %62 = vector.extract_strided_slice %3 {offsets = [0, 0], sizes = [1, 128], strides = [1, 1]} : vector<3x128xf32> to vector<1x128xf32>
    %63 = vector.broadcast %61 : vector<1024x1xf32> to vector<1024x128xf32>
    %64 = vector.broadcast %62 : vector<1x128xf32> to vector<1024x128xf32>
    %65 = arith.mulf %63, %64 : vector<1024x128xf32>
    %66 = vector.extract_strided_slice %0 {offsets = [0, 1], sizes = [1024, 1], strides = [1, 1]} : vector<1024x3xf32> to vector<1024x1xf32>
    %67 = vector.extract_strided_slice %3 {offsets = [1, 0], sizes = [1, 128], strides = [1, 1]} : vector<3x128xf32> to vector<1x128xf32>
    %68 = vector.broadcast %66 : vector<1024x1xf32> to vector<1024x128xf32>
    %69 = vector.broadcast %67 : vector<1x128xf32> to vector<1024x128xf32>
    %70 = arith.mulf %68, %69 : vector<1024x128xf32>
    %71 = arith.addf %65, %70 : vector<1024x128xf32>
    %72 = vector.extract_strided_slice %0 {offsets = [0, 2], sizes = [1024, 1], strides = [1, 1]} : vector<1024x3xf32> to vector<1024x1xf32>
    %73 = vector.extract_strided_slice %3 {offsets = [2, 0], sizes = [1, 128], strides = [1, 1]} : vector<3x128xf32> to vector<1x128xf32>
    %74 = vector.broadcast %72 : vector<1024x1xf32> to vector<1024x128xf32>
    %75 = vector.broadcast %73 : vector<1x128xf32> to vector<1024x128xf32>
    %76 = arith.mulf %74, %75 : vector<1024x128xf32>
    %77 = arith.addf %71, %76 : vector<1024x128xf32>
    %78 = arith.addf %60, %77 : vector<1024x128xf32>
    %cst_23 = arith.constant 0.707106769 : f32
    %79 = vector.broadcast %cst_23 : f32 to vector<1024x128xf32>
    %80 = arith.mulf %78, %79 : vector<1024x128xf32>
    %81 = vector.extract_strided_slice %1 {offsets = [2, 0], sizes = [1, 128], strides = [1, 1]} : vector<4x128xf32> to vector<1x128xf32>
    %82 = vector.broadcast %81 : vector<1x128xf32> to vector<1024x128xf32>
    %83 = arith.addf %80, %82 : vector<1024x128xf32>
    %cst_24 = arith.constant 1.000000e+02 : f32
    %84 = vector.broadcast %cst_24 : f32 to vector<1024x128xf32>
    %85 = arith.mulf %84, %83 : vector<1024x128xf32>
    %cst_25 = arith.constant 0.000000e+00 : f32
    %86 = vector.broadcast %cst_25 : f32 to vector<1024x128xf32>
    %87 = arith.maximumf %85, %86 : vector<1024x128xf32>
    %88 = math.absf %85 : vector<1024x128xf32>
    %cst_26 = arith.constant 0.000000e+00 : f32
    %89 = vector.broadcast %cst_26 : f32 to vector<1024x128xf32>
    %90 = arith.subf %89, %88 : vector<1024x128xf32>
    %91 = math.exp %90 : vector<1024x128xf32>
    %cst_27 = arith.constant 1.000000e+00 : f32
    %92 = vector.broadcast %cst_27 : f32 to vector<1024x128xf32>
    %93 = arith.addf %92, %91 : vector<1024x128xf32>
    %94 = math.log %93 : vector<1024x128xf32>
    %95 = arith.addf %87, %94 : vector<1024x128xf32>
    %cst_28 = arith.constant 0.00999999977 : f32
    %96 = vector.broadcast %cst_28 : f32 to vector<1024x128xf32>
    %97 = arith.mulf %95, %96 : vector<1024x128xf32>
    %c2 = arith.constant 2 : index
    %c0_29 = arith.constant 0 : index
    %c0_30 = arith.constant 0 : index
    %98 = vector.load %arg3[%c2, %c0_29, %c0_30] : memref<3x128x128xf32, #tpu.memory_space<vmem>>, vector<1x128x128xf32>
    %99 = vector.shape_cast %98 : vector<1x128x128xf32> to vector<128x128xf32>
    %cst_31 = arith.constant dense<0.000000e+00> : vector<1024x128xf32>
    %100 = tpu.matmul %97, %99, %cst_31 {dimension_numbers = #tpu.dot_dimension_numbers<[1], [0], [0], [1], [0, 0, 1, 1], [], []>} : vector<1024x128xf32>, vector<128x128xf32>, vector<1024x128xf32> -> vector<1024x128xf32>
    %101 = vector.extract_strided_slice %1 {offsets = [3, 0], sizes = [1, 128], strides = [1, 1]} : vector<4x128xf32> to vector<1x128xf32>
    %102 = vector.broadcast %101 : vector<1x128xf32> to vector<1024x128xf32>
    %103 = arith.addf %100, %102 : vector<1024x128xf32>
    %c0_32 = arith.constant 0 : index
    %c0_33 = arith.constant 0 : index
    %104 = vector.load %arg6[%c0_32, %c0_33] : memref<1024x128xf32, #tpu.memory_space<vmem>>, vector<1024x128xf32>
    tpu.vector_store %arg6[%c0_32, %c0_33], %103 {strides = array<i32>} : memref<1024x128xf32, #tpu.memory_space<vmem>>, vector<1024x128xf32>,
    return
  }
  func.func @transform_0(%arg0: i32) -> (i32, i32) {
    %c0_i32 = arith.constant 0 : i32
    %c0_i32_0 = arith.constant 0 : i32
    return %arg0, %c0_i32 : i32, i32
  }
  func.func @transform_1(%arg0: i32) -> (i32, i32) {
    %c0_i32 = arith.constant 0 : i32
    %c0_i32_0 = arith.constant 0 : i32
    %c0_i32_1 = arith.constant 0 : i32
    return %c0_i32, %c0_i32_0 : i32, i32
  }
  func.func @transform_2(%arg0: i32) -> (i32, i32, i32) {
    %c0_i32 = arith.constant 0 : i32
    %c0_i32_0 = arith.constant 0 : i32
    %c0_i32_1 = arith.constant 0 : i32
    %c0_i32_2 = arith.constant 0 : i32
    return %c0_i32, %c0_i32_0, %c0_i32_1 : i32, i32, i32
  }
  func.func @transform_3(%arg0: i32) -> (i32, i32) {
    %c0_i32 = arith.constant 0 : i32
    %c0_i32_0 = arith.constant 0 : i32
    %c0_i32_1 = arith.constant 0 : i32
    return %c0_i32, %c0_i32_0 : i32, i32
  }
  func.func @transform_4(%arg0: i32) -> (i32, i32) {
    %c0_i32 = arith.constant 0 : i32
    %c0_i32_0 = arith.constant 0 : i32
    %c0_i32_1 = arith.constant 0 : i32
    return %c0_i32, %c0_i32_0 : i32, i32
  }
  func.func @transform_5(%arg0: i32) -> (i32, i32) {
    %c0_i32 = arith.constant 0 : i32
    %c0_i32_0 = arith.constant 0 : i32
    return %arg0, %c0_i32 : i32, i32
  }
}

</mosaic_0001>

<llo_original>
// kernel: implicit_net_forward.1
$region0: #{implicit_net_forward.1}
  #allocation0 [shape = 'u32[]', space=smem, size = 0x4, offset = 0x4, fixed_abs, tag = 'smem constant byte address 0x4 - core index']
  #allocation1 [shape = 'u32[144,128]{1,0:T(1,128)}', space=vmem, size = 0x12000, scoped, tag = 'internal scratch']
  %s0 = inlined_call_operand.vmem [shape: f32[2048,3], index: 0, kind: input, shape index: {}]
  %s1 = inlined_call_operand.vmem [shape: f32[3,128], index: 1, kind: input, shape index: {}]
  %s2 = inlined_call_operand.vmem [shape: f32[3,128,128], index: 2, kind: input, shape index: {}]
  %s3 = inlined_call_operand.vmem [shape: f32[3,128], index: 3, kind: input, shape index: {}]
  %s4 = inlined_call_operand.vmem [shape: f32[4,128], index: 4, kind: input, shape index: {}]
  %s5 = inlined_call_operand.vmem [shape: f32[2048,128], index: 5, kind: output, shape index: {}]
  %s6 = sld [smem:[#allocation0]]
  $region53: #{implicit_net_forward.1} parent=0
    _
  %s8 = ssub.s32 1, %s6
  %s9 = scalar_select 0, %s8, %s6
  loop: start=0, step=1, limit=4
  $region2: #{implicit_net_forward.1} parent=0 // loop_pre_header
    _
  $region3: #{implicit_net_forward.1} parent=0 // loop_header
    %s11 = sphi 0, %s15
    %p12 = scmp.ge.s32.totalorder %s11, 4
    %s21 = sphi 0, %s23
    %s24 = sphi 0, %s21
    %s25 = sphi 0, %s24
    %s41 = sphi 0, %s25
    %s45 = sphi 0, %s45
    %s47 = sphi 0, %s45
    %s48 = sphi 0, %s47
    %s62 = sphi 0, %s48
    %s66 = sphi 0, %s66
    %s68 = sphi 0, %s66
    %s69 = sphi 0, %s68
    %s83 = sphi 0, %s69
    %s87 = sphi 0, %s87
    %s89 = sphi 0, %s87
    %s90 = sphi 0, %s89
    %s104 = sphi 0, %s90
    %s108 = sphi 0, %s108
    %s110 = sphi 0, %s108
    %s111 = sphi 0, %s110
    %s125 = sphi 0, %s111
    %s131 = sphi 0, %s133
    %s134 = sphi 0, %s131
    %s135 = sphi 0, %s134
    %s151 = sphi 0, %s135
  $region4: #{implicit_net_forward.1} parent=0 // loop_header_branch
    %14 = sbr.rel (%p12) target = $region8
  $region5: #{implicit_net_forward.1} parent=0 // loop_body
    %s16 = ssub.s32 %s11, 1
    %s17 = ssub.s32 %s11, 2
    %s18 = sadd.s32 %s11, 1
    %s19 = ssub.s32 %s11, %s18
    %p20 = scmp.eq.s32.totalorder %s19, 0
    %s22 = sadd.s32 %s21, 1
    %s23 = scalar_select %p20, %s21, %s22
    %p26 = pneg %p20
    %p27 = scmp.eq.s32.totalorder %s11, 1
    %p28 = por %p26, %p27
    %p29 = scmp.ne.s32.totalorder %s21, %s24
    %p30 = scmp.eq.s32.totalorder %s11, 0
    %p31 = por %p29, %p30
    %p32 = scmp.ne.s32.totalorder %s21, %s24
    %p33 = scmp.eq.s32.totalorder %s16, 1
    %p34 = por %p32, %p33
    %p35 = scmp.ne.s32.totalorder %s24, %s25
    %p36 = scmp.eq.s32.totalorder %s16, 0
    %p37 = por %p35, %p36
    %p38 = scmp.ne.s32.totalorder %s24, %s25
    %p39 = scmp.eq.s32.totalorder %s17, 1
    %p40 = por %p38, %p39
    %p42 = scmp.ne.s32.totalorder %s25, %s41
    %p43 = scmp.eq.s32.totalorder %s17, 0
    %p44 = por %p42, %p43
    %s46 = sadd.s32 %s45, 1
    %p49 = scmp.eq.s32.totalorder %s11, 1
    %p50 = scmp.ne.s32.totalorder %s45, %s47
    %p51 = scmp.eq.s32.totalorder %s11, 0
    %p52 = por %p50, %p51
    %p53 = scmp.ne.s32.totalorder %s45, %s47
    %p54 = scmp.eq.s32.totalorder %s16, 1
    %p55 = por %p53, %p54
    %p56 = scmp.ne.s32.totalorder %s47, %s48
    %p57 = scmp.eq.s32.totalorder %s16, 0
    %p58 = por %p56, %p57
    %p59 = scmp.ne.s32.totalorder %s47, %s48
    %p60 = scmp.eq.s32.totalorder %s17, 1
    %p61 = por %p59, %p60
    %p63 = scmp.ne.s32.totalorder %s48, %s62
    %p64 = scmp.eq.s32.totalorder %s17, 0
    %p65 = por %p63, %p64
    %s67 = sadd.s32 %s66, 1
    %p70 = scmp.eq.s32.totalorder %s11, 1
    %p71 = scmp.ne.s32.totalorder %s66, %s68
    %p72 = scmp.eq.s32.totalorder %s11, 0
    %p73 = por %p71, %p72
    %p74 = scmp.ne.s32.totalorder %s66, %s68
    %p75 = scmp.eq.s32.totalorder %s16, 1
    %p76 = por %p74, %p75
    %p77 = scmp.ne.s32.totalorder %s68, %s69
    %p78 = scmp.eq.s32.totalorder %s16, 0
    %p79 = por %p77, %p78
    %p80 = scmp.ne.s32.totalorder %s68, %s69
    %p81 = scmp.eq.s32.totalorder %s17, 1
    %p82 = por %p80, %p81
    %p84 = scmp.ne.s32.totalorder %s69, %s83
    %p85 = scmp.eq.s32.totalorder %s17, 0
    %p86 = por %p84, %p85
    %s88 = sadd.s32 %s87, 1
    %p91 = scmp.eq.s32.totalorder %s11, 1
    %p92 = scmp.ne.s32.totalorder %s87, %s89
    %p93 = scmp.eq.s32.totalorder %s11, 0
    %p94 = por %p92, %p93
    %p95 = scmp.ne.s32.totalorder %s87, %s89
    %p96 = scmp.eq.s32.totalorder %s16, 1
    %p97 = por %p95, %p96
    %p98 = scmp.ne.s32.totalorder %s89, %s90
    %p99 = scmp.eq.s32.totalorder %s16, 0
    %p100 = por %p98, %p99
    %p101 = scmp.ne.s32.totalorder %s89, %s90
    %p102 = scmp.eq.s32.totalorder %s17, 1
    %p103 = por %p101, %p102
    %p105 = scmp.ne.s32.totalorder %s90, %s104
    %p106 = scmp.eq.s32.totalorder %s17, 0
    %p107 = por %p105, %p106
    %s109 = sadd.s32 %s108, 1
    %p112 = scmp.eq.s32.totalorder %s11, 1
    %p113 = scmp.ne.s32.totalorder %s108, %s110
    %p114 = scmp.eq.s32.totalorder %s11, 0
    %p115 = por %p113, %p114
    %p116 = scmp.ne.s32.totalorder %s108, %s110
    %p117 = scmp.eq.s32.totalorder %s16, 1
    %p118 = por %p116, %p117
    %p119 = scmp.ne.s32.totalorder %s110, %s111
    %p120 = scmp.eq.s32.totalorder %s16, 0
    %p121 = por %p119, %p120
    %p122 = scmp.ne.s32.totalorder %s110, %s111
    %p123 = scmp.eq.s32.totalorder %s17, 1
    %p124 = por %p122, %p123
    %p126 = scmp.ne.s32.totalorder %s111, %s125
    %p127 = scmp.eq.s32.totalorder %s17, 0
    %p128 = por %p126, %p127
    %s129 = ssub.s32 %s11, %s18
    %p130 = scmp.eq.s32.totalorder %s129, 0
    %s132 = sadd.s32 %s131, 1
    %s133 = scalar_select %p130, %s131, %s132
    %p136 = pneg %p130
    %p137 = scmp.eq.s32.totalorder %s11, 1
    %p138 = por %p136, %p137
    %p139 = scmp.ne.s32.totalorder %s131, %s134
    %p140 = scmp.eq.s32.totalorder %s11, 0
    %p141 = por %p139, %p140
    %p142 = scmp.ne.s32.totalorder %s131, %s134
    %p143 = scmp.eq.s32.totalorder %s16, 1
    %p144 = por %p142, %p143
    %p145 = scmp.ne.s32.totalorder %s134, %s135
    %p146 = scmp.eq.s32.totalorder %s16, 0
    %p147 = por %p145, %p146
    %p148 = scmp.ne.s32.totalorder %s134, %s135
    %p149 = scmp.eq.s32.totalorder %s17, 1
    %p150 = por %p148, %p149
    %p152 = scmp.ne.s32.totalorder %s135, %s151
    %p153 = scmp.eq.s32.totalorder %s17, 0
    %p154 = por %p152, %p153
    %p155 = scmp.le.s32.totalorder 1, %s11
    %p156 = scmp.lt.s32.totalorder %s11, 3
    %p157 = pnand %p155, %p156
    %p158 = pneg %p157
    // Predicated region
    $region9: #{implicit_net_forward.1} parent=5 // pred_check
      _
    $region10: #{implicit_net_forward.1} parent=5 // pred_check_branch
      %160 = sbr.rel (%p157) target = $region12
    $region11: #{implicit_net_forward.1} parent=5 // pred_region
      %s161 = ssub.s32 %s11, 1
      // Predicated region
      $region13: #{implicit_net_forward.1} parent=11 // pred_check
        %p162 = pneg %p58
      $region14: #{implicit_net_forward.1} parent=11 // pred_check_branch
        %164 = sbr.rel (%p162) target = $region16
      $region15: #{implicit_net_forward.1} parent=11 // pred_region
        _
      $region16: #{implicit_net_forward.1} parent=11 // pred_fallthru
        _
      // Predicated region
      $region17: #{implicit_net_forward.1} parent=11 // pred_check
        %p165 = pneg %p79
      $region18: #{implicit_net_forward.1} parent=11 // pred_check_branch
        %167 = sbr.rel (%p165) target = $region20
      $region19: #{implicit_net_forward.1} parent=11 // pred_region
        _
      $region20: #{implicit_net_forward.1} parent=11 // pred_fallthru
        _
      // Predicated region
      $region21: #{implicit_net_forward.1} parent=11 // pred_check
        %p168 = pneg %p100
      $region22: #{implicit_net_forward.1} parent=11 // pred_check_branch
        %170 = sbr.rel (%p168) target = $region24
      $region23: #{implicit_net_forward.1} parent=11 // pred_region
        _
      $region24: #{implicit_net_forward.1} parent=11 // pred_fallthru
        _
      // Predicated region
      $region25: #{implicit_net_forward.1} parent=11 // pred_check
        %p171 = pneg %p121
      $region26: #{implicit_net_forward.1} parent=11 // pred_check_branch
        %173 = sbr.rel (%p171) target = $region28
      $region27: #{implicit_net_forward.1} parent=11 // pred_region
        _
      $region28: #{implicit_net_forward.1} parent=11 // pred_fallthru
        _
    $region12: #{implicit_net_forward.1} parent=5 // pred_fallthru
      _
    %p174 = scmp.lt.s32.totalorder %s11, 2
    // Predicated region
    $region29: #{implicit_net_forward.1} parent=5 // pred_check
      %p175 = pneg %p174
    $region30: #{implicit_net_forward.1} parent=5 // pred_check_branch
      %177 = sbr.rel (%p175) target = $region32
    $region31: #{implicit_net_forward.1} parent=5 // pred_region
      // Predicated region
      $region33: #{implicit_net_forward.1} parent=31 // pred_check
        %p178 = pneg %p31
      $region34: #{implicit_net_forward.1} parent=31 // pred_check_branch
        %180 = sbr.rel (%p178) target = $region36
      $region35: #{implicit_net_forward.1} parent=31 // pred_region
        %s181 = smul.u32 128, %s11
        %p182 = scmp.lt.s32.totalorder %s181, 255
        %s183 = scalar_select %p182, %s181, 255
        %s184 = smul.addr %s183, 8
        %s185 = scalar_lea.vmem %s0, %s184
        %s186 = smul.u32 128, %s11
      $region36: #{implicit_net_forward.1} parent=31 // pred_fallthru
        _
    $region32: #{implicit_net_forward.1} parent=5 // pred_fallthru
      _
    %p187 = scmp.le.s32.totalorder 1, %s11
    %p188 = scmp.lt.s32.totalorder %s11, 3
    %p189 = pnand %p187, %p188
    %p190 = pneg %p189
    // Predicated region
    $region37: #{implicit_net_forward.1} parent=5 // pred_check
      _
    $region38: #{implicit_net_forward.1} parent=5 // pred_check_branch
      %192 = sbr.rel (%p189) target = $region40
    $region39: #{implicit_net_forward.1} parent=5 // pred_region
      %s193 = ssub.s32 %s11, 1
      %s194 = smul.u32 128, %s16
      %p195 = scmp.lt.s32.totalorder %s194, 255
      %s196 = scalar_select %p195, %s194, 255
      %s197 = smul.addr %s196, 8
      %s198 = scalar_lea.vmem %s0, %s197
      %p199 = pneg %p37
      %p200 = pneg %p34
      %p201 = pneg %p58
      %p202 = pneg %p55
      %p203 = pneg %p79
      %p204 = pneg %p76
      %p205 = pneg %p100
      %p206 = pneg %p97
      %p207 = pneg %p121
      %p208 = pneg %p118
      %p209 = pneg %p147
      %p210 = pneg %p144
      %s211 = smul.u32 128, %s16
      %p212 = scmp.lt.s32.totalorder %s211, 255
      %s213 = scalar_select %p212, %s211, 255
      %s214 = smul.addr %s213, 8
      %s215 = scalar_lea.vmem %s5, %s214
      %s216 = smul.u32 128, %s16
      %p217 = scmp.lt.s32.totalorder %s216, 255
      %s218 = scalar_select %p217, %s216, 255
      %s219 = smul.addr %s218, 8
      %s220 = scalar_lea.vmem %s0, %s219
      %s221 = smul.u32 128, %s16
      %s222 = smul.u32 128, %s16
      %p223 = scmp.lt.s32.totalorder %s222, 255
      %s224 = scalar_select %p223, %s222, 255
      %s225 = smul.addr %s224, 8
      %s226 = scalar_lea.vmem %s5, %s225
      %s227 = smul.u32 128, %s16
      %v228 = vld [vmem:[%s220] sm:$0xff]
      %v229 = vld [vmem:[%s220 + $0x8] sm:$0xff]
      %v230 = vld [vmem:[%s220 + $0x10] sm:$0xff]
      %v231 = vld [vmem:[%s220 + $0x18] sm:$0xff]
      %v232 = vld [vmem:[%s220 + $0x20] sm:$0xff]
      %v233 = vld [vmem:[%s220 + $0x28] sm:$0xff]
      %v234 = vld [vmem:[%s220 + $0x30] sm:$0xff]
      %v235 = vld [vmem:[%s220 + $0x38] sm:$0xff]
      %v236 = vld [vmem:[%s220 + $0x40] sm:$0xff]
      %v237 = vld [vmem:[%s220 + $0x48] sm:$0xff]
      %v238 = vld [vmem:[%s220 + $0x50] sm:$0xff]
      %v239 = vld [vmem:[%s220 + $0x58] sm:$0xff]
      %v240 = vld [vmem:[%s220 + $0x60] sm:$0xff]
      %v241 = vld [vmem:[%s220 + $0x68] sm:$0xff]
      %v242 = vld [vmem:[%s220 + $0x70] sm:$0xff]
      %v243 = vld [vmem:[%s220 + $0x78] sm:$0xff]
      %v244 = vld [vmem:[%s220 + $0x80] sm:$0xff]
      %v245 = vld [vmem:[%s220 + $0x88] sm:$0xff]
      %v246 = vld [vmem:[%s220 + $0x90] sm:$0xff]
      %v247 = vld [vmem:[%s220 + $0x98] sm:$0xff]
      %v248 = vld [vmem:[%s220 + $0xa0] sm:$0xff]
      %v249 = vld [vmem:[%s220 + $0xa8] sm:$0xff]
      %v250 = vld [vmem:[%s220 + $0xb0] sm:$0xff]
      %v251 = vld [vmem:[%s220 + $0xb8] sm:$0xff]
      %v252 = vld [vmem:[%s220 + $0xc0] sm:$0xff]
      %v253 = vld [vmem:[%s220 + $0xc8] sm:$0xff]
      %v254 = vld [vmem:[%s220 + $0xd0] sm:$0xff]
      %v255 = vld [vmem:[%s220 + $0xd8] sm:$0xff]
      %v256 = vld [vmem:[%s220 + $0xe0] sm:$0xff]
      %v257 = vld [vmem:[%s220 + $0xe8] sm:$0xff]
      %v258 = vld [vmem:[%s220 + $0xf0] sm:$0xff]
      %v259 = vld [vmem:[%s220 + $0xf8] sm:$0xff]
      %v260 = vld [vmem:[%s220 + $0x100] sm:$0xff]
      %v261 = vld [vmem:[%s220 + $0x108] sm:$0xff]
      %v262 = vld [vmem:[%s220 + $0x110] sm:$0xff]
      %v263 = vld [vmem:[%s220 + $0x118] sm:$0xff]
      %v264 = vld [vmem:[%s220 + $0x120] sm:$0xff]
      %v265 = vld [vmem:[%s220 + $0x128] sm:$0xff]
      %v266 = vld [vmem:[%s220 + $0x130] sm:$0xff]
      %v267 = vld [vmem:[%s220 + $0x138] sm:$0xff]
      %v268 = vld [vmem:[%s220 + $0x140] sm:$0xff]
      %v269 = vld [vmem:[%s220 + $0x148] sm:$0xff]
      %v270 = vld [vmem:[%s220 + $0x150] sm:$0xff]
      %v271 = vld [vmem:[%s220 + $0x158] sm:$0xff]
      %v272 = vld [vmem:[%s220 + $0x160] sm:$0xff]
      %v273 = vld [vmem:[%s220 + $0x168] sm:$0xff]
      %v274 = vld [vmem:[%s220 + $0x170] sm:$0xff]
      %v275 = vld [vmem:[%s220 + $0x178] sm:$0xff]
      %v276 = vld [vmem:[%s220 + $0x180] sm:$0xff]
      %v277 = vld [vmem:[%s220 + $0x188] sm:$0xff]
      %v278 = vld [vmem:[%s220 + $0x190] sm:$0xff]
      %v279 = vld [vmem:[%s220 + $0x198] sm:$0xff]
      %v280 = vld [vmem:[%s220 + $0x1a0] sm:$0xff]
      %v281 = vld [vmem:[%s220 + $0x1a8] sm:$0xff]
      %v282 = vld [vmem:[%s220 + $0x1b0] sm:$0xff]
      %v283 = vld [vmem:[%s220 + $0x1b8] sm:$0xff]
      %v284 = vld [vmem:[%s220 + $0x1c0] sm:$0xff]
      %v285 = vld [vmem:[%s220 + $0x1c8] sm:$0xff]
      %v286 = vld [vmem:[%s220 + $0x1d0] sm:$0xff]
      %v287 = vld [vmem:[%s220 + $0x1d8] sm:$0xff]
      %v288 = vld [vmem:[%s220 + $0x1e0] sm:$0xff]
      %v289 = vld [vmem:[%s220 + $0x1e8] sm:$0xff]
      %v290 = vld [vmem:[%s220 + $0x1f0] sm:$0xff]
      %v291 = vld [vmem:[%s220 + $0x1f8] sm:$0xff]
      %v292 = vld [vmem:[%s220 + $0x200] sm:$0xff]
      %v293 = vld [vmem:[%s220 + $0x208] sm:$0xff]
      %v294 = vld [vmem:[%s220 + $0x210] sm:$0xff]
      %v295 = vld [vmem:[%s220 + $0x218] sm:$0xff]
      %v296 = vld [vmem:[%s220 + $0x220] sm:$0xff]
      %v297 = vld [vmem:[%s220 + $0x228] sm:$0xff]
      %v298 = vld [vmem:[%s220 + $0x230] sm:$0xff]
      %v299 = vld [vmem:[%s220 + $0x238] sm:$0xff]
      %v300 = vld [vmem:[%s220 + $0x240] sm:$0xff]
      %v301 = vld [vmem:[%s220 + $0x248] sm:$0xff]
      %v302 = vld [vmem:[%s220 + $0x250] sm:$0xff]
      %v303 = vld [vmem:[%s220 + $0x258] sm:$0xff]
      %v304 = vld [vmem:[%s220 + $0x260] sm:$0xff]
      %v305 = vld [vmem:[%s220 + $0x268] sm:$0xff]
      %v306 = vld [vmem:[%s220 + $0x270] sm:$0xff]
      %v307 = vld [vmem:[%s220 + $0x278] sm:$0xff]
      %v308 = vld [vmem:[%s220 + $0x280] sm:$0xff]
      %v309 = vld [vmem:[%s220 + $0x288] sm:$0xff]
      %v310 = vld [vmem:[%s220 + $0x290] sm:$0xff]
      %v311 = vld [vmem:[%s220 + $0x298] sm:$0xff]
      %v312 = vld [vmem:[%s220 + $0x2a0] sm:$0xff]
      %v313 = vld [vmem:[%s220 + $0x2a8] sm:$0xff]
      %v314 = vld [vmem:[%s220 + $0x2b0] sm:$0xff]
      %v315 = vld [vmem:[%s220 + $0x2b8] sm:$0xff]
      %v316 = vld [vmem:[%s220 + $0x2c0] sm:$0xff]
      %v317 = vld [vmem:[%s220 + $0x2c8] sm:$0xff]
      %v318 = vld [vmem:[%s220 + $0x2d0] sm:$0xff]
      %v319 = vld [vmem:[%s220 + $0x2d8] sm:$0xff]
      %v320 = vld [vmem:[%s220 + $0x2e0] sm:$0xff]
      %v321 = vld [vmem:[%s220 + $0x2e8] sm:$0xff]
      %v322 = vld [vmem:[%s220 + $0x2f0] sm:$0xff]
      %v323 = vld [vmem:[%s220 + $0x2f8] sm:$0xff]
      %v324 = vld [vmem:[%s220 + $0x300] sm:$0xff]
      %v325 = vld [vmem:[%s220 + $0x308] sm:$0xff]
      %v326 = vld [vmem:[%s220 + $0x310] sm:$0xff]
      %v327 = vld [vmem:[%s220 + $0x318] sm:$0xff]
      %v328 = vld [vmem:[%s220 + $0x320] sm:$0xff]
      %v329 = vld [vmem:[%s220 + $0x328] sm:$0xff]
      %v330 = vld [vmem:[%s220 + $0x330] sm:$0xff]
      %v331 = vld [vmem:[%s220 + $0x338] sm:$0xff]
      %v332 = vld [vmem:[%s220 + $0x340] sm:$0xff]
      %v333 = vld [vmem:[%s220 + $0x348] sm:$0xff]
      %v334 = vld [vmem:[%s220 + $0x350] sm:$0xff]
      %v335 = vld [vmem:[%s220 + $0x358] sm:$0xff]
      %v336 = vld [vmem:[%s220 + $0x360] sm:$0xff]
      %v337 = vld [vmem:[%s220 + $0x368] sm:$0xff]
      %v338 = vld [vmem:[%s220 + $0x370] sm:$0xff]
      %v339 = vld [vmem:[%s220 + $0x378] sm:$0xff]
      %v340 = vld [vmem:[%s220 + $0x380] sm:$0xff]
      %v341 = vld [vmem:[%s220 + $0x388] sm:$0xff]
      %v342 = vld [vmem:[%s220 + $0x390] sm:$0xff]
      %v343 = vld [vmem:[%s220 + $0x398] sm:$0xff]
      %v344 = vld [vmem:[%s220 + $0x3a0] sm:$0xff]
      %v345 = vld [vmem:[%s220 + $0x3a8] sm:$0xff]
      %v346 = vld [vmem:[%s220 + $0x3b0] sm:$0xff]
      %v347 = vld [vmem:[%s220 + $0x3b8] sm:$0xff]
      %v348 = vld [vmem:[%s220 + $0x3c0] sm:$0xff]
      %v349 = vld [vmem:[%s220 + $0x3c8] sm:$0xff]
      %v350 = vld [vmem:[%s220 + $0x3d0] sm:$0xff]
      %v351 = vld [vmem:[%s220 + $0x3d8] sm:$0xff]
      %v352 = vld [vmem:[%s220 + $0x3e0] sm:$0xff]
      %v353 = vld [vmem:[%s220 + $0x3e8] sm:$0xff]
      %v354 = vld [vmem:[%s220 + $0x3f0] sm:$0xff]
      %v355 = vld [vmem:[%s220 + $0x3f8] sm:$0xff]
      %v356 = vld [vmem:[%s4] sm:$0xf]
      %v357 = vld [vmem:[%s1] sm:$0x7]
      %v358 = vld [vmem:[%s3] sm:$0x7]
      %360 = vset.pattern.permute.xlu0 0
      %361 = vperm.xlu0 %360, %v228
      %v362 = vpop.permute.xlu0 %361
      %365 = vset.pattern.permute.xlu0 0
      %366 = vperm.xlu0 %365, %v229
      %v367 = vpop.permute.xlu0 %366
      %370 = vset.pattern.permute.xlu0 0
      %371 = vperm.xlu0 %370, %v230
      %v372 = vpop.permute.xlu0 %371
      %375 = vset.pattern.permute.xlu0 0
      %376 = vperm.xlu0 %375, %v231
      %v377 = vpop.permute.xlu0 %376
      %380 = vset.pattern.permute.xlu0 0
      %381 = vperm.xlu0 %380, %v232
      %v382 = vpop.permute.xlu0 %381
      %385 = vset.pattern.permute.xlu0 0
      %386 = vperm.xlu0 %385, %v233
      %v387 = vpop.permute.xlu0 %386
      %390 = vset.pattern.permute.xlu0 0
      %391 = vperm.xlu0 %390, %v234
      %v392 = vpop.permute.xlu0 %391
      %395 = vset.pattern.permute.xlu0 0
      %396 = vperm.xlu0 %395, %v235
      %v397 = vpop.permute.xlu0 %396
      %400 = vset.pattern.permute.xlu0 0
      %401 = vperm.xlu0 %400, %v236
      %v402 = vpop.permute.xlu0 %401
      %405 = vset.pattern.permute.xlu0 0
      %406 = vperm.xlu0 %405, %v237
      %v407 = vpop.permute.xlu0 %406
      %410 = vset.pattern.permute.xlu0 0
      %411 = vperm.xlu0 %410, %v238
      %v412 = vpop.permute.xlu0 %411
      %415 = vset.pattern.permute.xlu0 0
      %416 = vperm.xlu0 %415, %v239
      %v417 = vpop.permute.xlu0 %416
      %420 = vset.pattern.permute.xlu0 0
      %421 = vperm.xlu0 %420, %v240
      %v422 = vpop.permute.xlu0 %421
      %425 = vset.pattern.permute.xlu0 0
      %426 = vperm.xlu0 %425, %v241
      %v427 = vpop.permute.xlu0 %426
      %430 = vset.pattern.permute.xlu0 0
      %431 = vperm.xlu0 %430, %v242
      %v432 = vpop.permute.xlu0 %431
      %435 = vset.pattern.permute.xlu0 0
      %436 = vperm.xlu0 %435, %v243
      %v437 = vpop.permute.xlu0 %436
      %440 = vset.pattern.permute.xlu0 0
      %441 = vperm.xlu0 %440, %v244
      %v442 = vpop.permute.xlu0 %441
      %445 = vset.pattern.permute.xlu0 0
      %446 = vperm.xlu0 %445, %v245
      %v447 = vpop.permute.xlu0 %446
      %450 = vset.pattern.permute.xlu0 0
      %451 = vperm.xlu0 %450, %v246
      %v452 = vpop.permute.xlu0 %451
      %455 = vset.pattern.permute.xlu0 0
      %456 = vperm.xlu0 %455, %v247
      %v457 = vpop.permute.xlu0 %456
      %460 = vset.pattern.permute.xlu0 0
      %461 = vperm.xlu0 %460, %v248
      %v462 = vpop.permute.xlu0 %461
      %465 = vset.pattern.permute.xlu0 0
      %466 = vperm.xlu0 %465, %v249
      %v467 = vpop.permute.xlu0 %466
      %470 = vset.pattern.permute.xlu0 0
      %471 = vperm.xlu0 %470, %v250
      %v472 = vpop.permute.xlu0 %471
      %475 = vset.pattern.permute.xlu0 0
      %476 = vperm.xlu0 %475, %v251
      %v477 = vpop.permute.xlu0 %476
      %480 = vset.pattern.permute.xlu0 0
      %481 = vperm.xlu0 %480, %v252
      %v482 = vpop.permute.xlu0 %481
      %485 = vset.pattern.permute.xlu0 0
      %486 = vperm.xlu0 %485, %v253
      %v487 = vpop.permute.xlu0 %486
      %490 = vset.pattern.permute.xlu0 0
      %491 = vperm.xlu0 %490, %v254
      %v492 = vpop.permute.xlu0 %491
      %495 = vset.pattern.permute.xlu0 0
      %496 = vperm.xlu0 %495, %v255
      %v497 = vpop.permute.xlu0 %496
      %500 = vset.pattern.permute.xlu0 0
      %501 = vperm.xlu0 %500, %v256
      %v502 = vpop.permute.xlu0 %501
      %505 = vset.pattern.permute.xlu0 0
      %506 = vperm.xlu0 %505, %v257
      %v507 = vpop.permute.xlu0 %506
      %510 = vset.pattern.permute.xlu0 0
      %511 = vperm.xlu0 %510, %v258
      %v512 = vpop.permute.xlu0 %511
      %515 = vset.pattern.permute.xlu0 0
      %516 = vperm.xlu0 %515, %v259
      %v517 = vpop.permute.xlu0 %516
      %520 = vset.pattern.permute.xlu0 0
      %521 = vperm.xlu0 %520, %v260
      %v522 = vpop.permute.xlu0 %521
      %525 = vset.pattern.permute.xlu0 0
      %526 = vperm.xlu0 %525, %v261
      %v527 = vpop.permute.xlu0 %526
      %530 = vset.pattern.permute.xlu0 0
      %531 = vperm.xlu0 %530, %v262
      %v532 = vpop.permute.xlu0 %531
      %535 = vset.pattern.permute.xlu0 0
      %536 = vperm.xlu0 %535, %v263
      %v537 = vpop.permute.xlu0 %536
      %540 = vset.pattern.permute.xlu0 0
      %541 = vperm.xlu0 %540, %v264
      %v542 = vpop.permute.xlu0 %541
      %545 = vset.pattern.permute.xlu0 0
      %546 = vperm.xlu0 %545, %v265
      %v547 = vpop.permute.xlu0 %546
      %550 = vset.pattern.permute.xlu0 0
      %551 = vperm.xlu0 %550, %v266
      %v552 = vpop.permute.xlu0 %551
      %555 = vset.pattern.permute.xlu0 0
      %556 = vperm.xlu0 %555, %v267
      %v557 = vpop.permute.xlu0 %556
      %560 = vset.pattern.permute.xlu0 0
      %561 = vperm.xlu0 %560, %v268
      %v562 = vpop.permute.xlu0 %561
      %565 = vset.pattern.permute.xlu0 0
      %566 = vperm.xlu0 %565, %v269
      %v567 = vpop.permute.xlu0 %566
      %570 = vset.pattern.permute.xlu0 0
      %571 = vperm.xlu0 %570, %v270
      %v572 = vpop.permute.xlu0 %571
      %575 = vset.pattern.permute.xlu0 0
      %576 = vperm.xlu0 %575, %v271
      %v577 = vpop.permute.xlu0 %576
      %580 = vset.pattern.permute.xlu0 0
      %581 = vperm.xlu0 %580, %v272
      %v582 = vpop.permute.xlu0 %581
      %585 = vset.pattern.permute.xlu0 0
      %586 = vperm.xlu0 %585, %v273
      %v587 = vpop.permute.xlu0 %586
      %590 = vset.pattern.permute.xlu0 0
      %591 = vperm.xlu0 %590, %v274
      %v592 = vpop.permute.xlu0 %591
      %595 = vset.pattern.permute.xlu0 0
      %596 = vperm.xlu0 %595, %v275
      %v597 = vpop.permute.xlu0 %596
      %600 = vset.pattern.permute.xlu0 0
      %601 = vperm.xlu0 %600, %v276
      %v602 = vpop.permute.xlu0 %601
      %605 = vset.pattern.permute.xlu0 0
      %606 = vperm.xlu0 %605, %v277
      %v607 = vpop.permute.xlu0 %606
      %610 = vset.pattern.permute.xlu0 0
      %611 = vperm.xlu0 %610, %v278
      %v612 = vpop.permute.xlu0 %611
      %615 = vset.pattern.permute.xlu0 0
      %616 = vperm.xlu0 %615, %v279
      %v617 = vpop.permute.xlu0 %616
      %620 = vset.pattern.permute.xlu0 0
      %621 = vperm.xlu0 %620, %v280
      %v622 = vpop.permute.xlu0 %621
      %625 = vset.pattern.permute.xlu0 0
      %626 = vperm.xlu0 %625, %v281
      %v627 = vpop.permute.xlu0 %626
      %630 = vset.pattern.permute.xlu0 0
      %631 = vperm.xlu0 %630, %v282
      %v632 = vpop.permute.xlu0 %631
      %635 = vset.pattern.permute.xlu0 0
      %636 = vperm.xlu0 %635, %v283
      %v637 = vpop.permute.xlu0 %636
      %640 = vset.pattern.permute.xlu0 0
      %641 = vperm.xlu0 %640, %v284
      %v642 = vpop.permute.xlu0 %641
      %645 = vset.pattern.permute.xlu0 0
      %646 = vperm.xlu0 %645, %v285
      %v647 = vpop.permute.xlu0 %646
      %650 = vset.pattern.permute.xlu0 0
      %651 = vperm.xlu0 %650, %v286
      %v652 = vpop.permute.xlu0 %651
      %655 = vset.pattern.permute.xlu0 0
      %656 = vperm.xlu0 %655, %v287
      %v657 = vpop.permute.xlu0 %656
      %660 = vset.pattern.permute.xlu0 0
      %661 = vperm.xlu0 %660, %v288
      %v662 = vpop.permute.xlu0 %661
      %665 = vset.pattern.permute.xlu0 0
      %666 = vperm.xlu0 %665, %v289
      %v667 = vpop.permute.xlu0 %666
      %670 = vset.pattern.permute.xlu0 0
      %671 = vperm.xlu0 %670, %v290
      %v672 = vpop.permute.xlu0 %671
      %675 = vset.pattern.permute.xlu0 0
      %676 = vperm.xlu0 %675, %v291
      %v677 = vpop.permute.xlu0 %676
      %680 = vset.pattern.permute.xlu0 0
      %681 = vperm.xlu0 %680, %v292
      %v682 = vpop.permute.xlu0 %681
      %685 = vset.pattern.permute.xlu0 0
      %686 = vperm.xlu0 %685, %v293
      %v687 = vpop.permute.xlu0 %686
      %690 = vset.pattern.permute.xlu0 0
      %691 = vperm.xlu0 %690, %v294
      %v692 = vpop.permute.xlu0 %691
      %695 = vset.pattern.permute.xlu0 0
      %696 = vperm.xlu0 %695, %v295
      %v697 = vpop.permute.xlu0 %696
      %700 = vset.pattern.permute.xlu0 0
      %701 = vperm.xlu0 %700, %v296
      %v702 = vpop.permute.xlu0 %701
      %705 = vset.pattern.permute.xlu0 0
      %706 = vperm.xlu0 %705, %v297
      %v707 = vpop.permute.xlu0 %706
      %710 = vset.pattern.permute.xlu0 0
      %711 = vperm.xlu0 %710, %v298
      %v712 = vpop.permute.xlu0 %711
      %715 = vset.pattern.permute.xlu0 0
      %716 = vperm.xlu0 %715, %v299
      %v717 = vpop.permute.xlu0 %716
      %720 = vset.pattern.permute.xlu0 0
      %721 = vperm.xlu0 %720, %v300
      %v722 = vpop.permute.xlu0 %721
      %725 = vset.pattern.permute.xlu0 0
      %726 = vperm.xlu0 %725, %v301
      %v727 = vpop.permute.xlu0 %726
      %730 = vset.pattern.permute.xlu0 0
      %731 = vperm.xlu0 %730, %v302
      %v732 = vpop.permute.xlu0 %731
      %735 = vset.pattern.permute.xlu0 0
      %736 = vperm.xlu0 %735, %v303
      %v737 = vpop.permute.xlu0 %736
      %740 = vset.pattern.permute.xlu0 0
      %741 = vperm.xlu0 %740, %v304
      %v742 = vpop.permute.xlu0 %741
      %745 = vset.pattern.permute.xlu0 0
      %746 = vperm.xlu0 %745, %v305
      %v747 = vpop.permute.xlu0 %746
      %750 = vset.pattern.permute.xlu0 0
      %751 = vperm.xlu0 %750, %v306
      %v752 = vpop.permute.xlu0 %751
      %755 = vset.pattern.permute.xlu0 0
      %756 = vperm.xlu0 %755, %v307
      %v757 = vpop.permute.xlu0 %756
      %760 = vset.pattern.permute.xlu0 0
      %761 = vperm.xlu0 %760, %v308
      %v762 = vpop.permute.xlu0 %761
      %765 = vset.pattern.permute.xlu0 0
      %766 = vperm.xlu0 %765, %v309
      %v767 = vpop.permute.xlu0 %766
      %770 = vset.pattern.permute.xlu0 0
      %771 = vperm.xlu0 %770, %v310
      %v772 = vpop.permute.xlu0 %771
      %775 = vset.pattern.permute.xlu0 0
      %776 = vperm.xlu0 %775, %v311
      %v777 = vpop.permute.xlu0 %776
      %780 = vset.pattern.permute.xlu0 0
      %781 = vperm.xlu0 %780, %v312
      %v782 = vpop.permute.xlu0 %781
      %785 = vset.pattern.permute.xlu0 0
      %786 = vperm.xlu0 %785, %v313
      %v787 = vpop.permute.xlu0 %786
      %790 = vset.pattern.permute.xlu0 0
      %791 = vperm.xlu0 %790, %v314
      %v792 = vpop.permute.xlu0 %791
      %795 = vset.pattern.permute.xlu0 0
      %796 = vperm.xlu0 %795, %v315
      %v797 = vpop.permute.xlu0 %796
      %800 = vset.pattern.permute.xlu0 0
      %801 = vperm.xlu0 %800, %v316
      %v802 = vpop.permute.xlu0 %801
      %805 = vset.pattern.permute.xlu0 0
      %806 = vperm.xlu0 %805, %v317
      %v807 = vpop.permute.xlu0 %806
      %810 = vset.pattern.permute.xlu0 0
      %811 = vperm.xlu0 %810, %v318
      %v812 = vpop.permute.xlu0 %811
      %815 = vset.pattern.permute.xlu0 0
      %816 = vperm.xlu0 %815, %v319
      %v817 = vpop.permute.xlu0 %816
      %820 = vset.pattern.permute.xlu0 0
      %821 = vperm.xlu0 %820, %v320
      %v822 = vpop.permute.xlu0 %821
      %825 = vset.pattern.permute.xlu0 0
      %826 = vperm.xlu0 %825, %v321
      %v827 = vpop.permute.xlu0 %826
      %830 = vset.pattern.permute.xlu0 0
      %831 = vperm.xlu0 %830, %v322
      %v832 = vpop.permute.xlu0 %831
      %835 = vset.pattern.permute.xlu0 0
      %836 = vperm.xlu0 %835, %v323
      %v837 = vpop.permute.xlu0 %836
      %840 = vset.pattern.permute.xlu0 0
      %841 = vperm.xlu0 %840, %v324
      %v842 = vpop.permute.xlu0 %841
      %845 = vset.pattern.permute.xlu0 0
      %846 = vperm.xlu0 %845, %v325
      %v847 = vpop.permute.xlu0 %846
      %850 = vset.pattern.permute.xlu0 0
      %851 = vperm.xlu0 %850, %v326
      %v852 = vpop.permute.xlu0 %851
      %855 = vset.pattern.permute.xlu0 0
      %856 = vperm.xlu0 %855, %v327
      %v857 = vpop.permute.xlu0 %856
      %860 = vset.pattern.permute.xlu0 0
      %861 = vperm.xlu0 %860, %v328
      %v862 = vpop.permute.xlu0 %861
      %865 = vset.pattern.permute.xlu0 0
      %866 = vperm.xlu0 %865, %v329
      %v867 = vpop.permute.xlu0 %866
      %870 = vset.pattern.permute.xlu0 0
      %871 = vperm.xlu0 %870, %v330
      %v872 = vpop.permute.xlu0 %871
      %875 = vset.pattern.permute.xlu0 0
      %876 = vperm.xlu0 %875, %v331
      %v877 = vpop.permute.xlu0 %876
      %880 = vset.pattern.permute.xlu0 0
      %881 = vperm.xlu0 %880, %v332
      %v882 = vpop.permute.xlu0 %881
      %885 = vset.pattern.permute.xlu0 0
      %886 = vperm.xlu0 %885, %v333
      %v887 = vpop.permute.xlu0 %886
      %890 = vset.pattern.permute.xlu0 0
      %891 = vperm.xlu0 %890, %v334
      %v892 = vpop.permute.xlu0 %891
      %895 = vset.pattern.permute.xlu0 0
      %896 = vperm.xlu0 %895, %v335
      %v897 = vpop.permute.xlu0 %896
      %900 = vset.pattern.permute.xlu0 0
      %901 = vperm.xlu0 %900, %v336
      %v902 = vpop.permute.xlu0 %901
      %905 = vset.pattern.permute.xlu0 0
      %906 = vperm.xlu0 %905, %v337
      %v907 = vpop.permute.xlu0 %906
      %910 = vset.pattern.permute.xlu0 0
      %911 = vperm.xlu0 %910, %v338
      %v912 = vpop.permute.xlu0 %911
      %915 = vset.pattern.permute.xlu0 0
      %916 = vperm.xlu0 %915, %v339
      %v917 = vpop.permute.xlu0 %916
      %920 = vset.pattern.permute.xlu0 0
      %921 = vperm.xlu0 %920, %v340
      %v922 = vpop.permute.xlu0 %921
      %925 = vset.pattern.permute.xlu0 0
      %926 = vperm.xlu0 %925, %v341
      %v927 = vpop.permute.xlu0 %926
      %930 = vset.pattern.permute.xlu0 0
      %931 = vperm.xlu0 %930, %v342
      %v932 = vpop.permute.xlu0 %931
      %935 = vset.pattern.permute.xlu0 0
      %936 = vperm.xlu0 %935, %v343
      %v937 = vpop.permute.xlu0 %936
      %940 = vset.pattern.permute.xlu0 0
      %941 = vperm.xlu0 %940, %v344
      %v942 = vpop.permute.xlu0 %941
      %945 = vset.pattern.permute.xlu0 0
      %946 = vperm.xlu0 %945, %v345
      %v947 = vpop.permute.xlu0 %946
      %950 = vset.pattern.permute.xlu0 0
      %951 = vperm.xlu0 %950, %v346
      %v952 = vpop.permute.xlu0 %951
      %955 = vset.pattern.permute.xlu0 0
      %956 = vperm.xlu0 %955, %v347
      %v957 = vpop.permute.xlu0 %956
      %960 = vset.pattern.permute.xlu0 0
      %961 = vperm.xlu0 %960, %v348
      %v962 = vpop.permute.xlu0 %961
      %965 = vset.pattern.permute.xlu0 0
      %966 = vperm.xlu0 %965, %v349
      %v967 = vpop.permute.xlu0 %966
      %970 = vset.pattern.permute.xlu0 0
      %971 = vperm.xlu0 %970, %v350
      %v972 = vpop.permute.xlu0 %971
      %975 = vset.pattern.permute.xlu0 0
      %976 = vperm.xlu0 %975, %v351
      %v977 = vpop.permute.xlu0 %976
      %980 = vset.pattern.permute.xlu0 0
      %981 = vperm.xlu0 %980, %v352
      %v982 = vpop.permute.xlu0 %981
      %985 = vset.pattern.permute.xlu0 0
      %986 = vperm.xlu0 %985, %v353
      %v987 = vpop.permute.xlu0 %986
      %990 = vset.pattern.permute.xlu0 0
      %991 = vperm.xlu0 %990, %v354
      %v992 = vpop.permute.xlu0 %991
      %995 = vset.pattern.permute.xlu0 0
      %996 = vperm.xlu0 %995, %v355
      %v997 = vpop.permute.xlu0 %996
      %v999 = vlaneseq
      %v1000 = vshrl.u32 %v999, 7
      %v1001 = vsub.s32 0, %v1000
      %v1002 = vrot.slane %v357, %v1001
      %v1003 = vmul.f32 %v362, %v1002
      %v1004 = vmul.f32 %v367, %v1002
      %v1005 = vmul.f32 %v372, %v1002
      %v1006 = vmul.f32 %v377, %v1002
      %v1007 = vmul.f32 %v382, %v1002
      %v1008 = vmul.f32 %v387, %v1002
      %v1009 = vmul.f32 %v392, %v1002
      %v1010 = vmul.f32 %v397, %v1002
      %v1011 = vmul.f32 %v402, %v1002
      %v1012 = vmul.f32 %v407, %v1002
      %v1013 = vmul.f32 %v412, %v1002
      %v1014 = vmul.f32 %v417, %v1002
      %v1015 = vmul.f32 %v422, %v1002
      %v1016 = vmul.f32 %v427, %v1002
      %v1017 = vmul.f32 %v432, %v1002
      %v1018 = vmul.f32 %v437, %v1002
      %v1019 = vmul.f32 %v442, %v1002
      %v1020 = vmul.f32 %v447, %v1002
      %v1021 = vmul.f32 %v452, %v1002
      %v1022 = vmul.f32 %v457, %v1002
      %v1023 = vmul.f32 %v462, %v1002
      %v1024 = vmul.f32 %v467, %v1002
      %v1025 = vmul.f32 %v472, %v1002
      %v1026 = vmul.f32 %v477, %v1002
      %v1027 = vmul.f32 %v482, %v1002
      %v1028 = vmul.f32 %v487, %v1002
      %v1029 = vmul.f32 %v492, %v1002
      %v1030 = vmul.f32 %v497, %v1002
      %v1031 = vmul.f32 %v502, %v1002
      %v1032 = vmul.f32 %v507, %v1002
      %v1033 = vmul.f32 %v512, %v1002
      %v1034 = vmul.f32 %v517, %v1002
      %v1035 = vmul.f32 %v522, %v1002
      %v1036 = vmul.f32 %v527, %v1002
      %v1037 = vmul.f32 %v532, %v1002
      %v1038 = vmul.f32 %v537, %v1002
      %v1039 = vmul.f32 %v542, %v1002
      %v1040 = vmul.f32 %v547, %v1002
      %v1041 = vmul.f32 %v552, %v1002
      %v1042 = vmul.f32 %v557, %v1002
      %v1043 = vmul.f32 %v562, %v1002
      %v1044 = vmul.f32 %v567, %v1002
      %v1045 = vmul.f32 %v572, %v1002
      %v1046 = vmul.f32 %v577, %v1002
      %v1047 = vmul.f32 %v582, %v1002
      %v1048 = vmul.f32 %v587, %v1002
      %v1049 = vmul.f32 %v592, %v1002
      %v1050 = vmul.f32 %v597, %v1002
      %v1051 = vmul.f32 %v602, %v1002
      %v1052 = vmul.f32 %v607, %v1002
      %v1053 = vmul.f32 %v612, %v1002
      %v1054 = vmul.f32 %v617, %v1002
      %v1055 = vmul.f32 %v622, %v1002
      %v1056 = vmul.f32 %v627, %v1002
      %v1057 = vmul.f32 %v632, %v1002
      %v1058 = vmul.f32 %v637, %v1002
      %v1059 = vmul.f32 %v642, %v1002
      %v1060 = vmul.f32 %v647, %v1002
      %v1061 = vmul.f32 %v652, %v1002
      %v1062 = vmul.f32 %v657, %v1002
      %v1063 = vmul.f32 %v662, %v1002
      %v1064 = vmul.f32 %v667, %v1002
      %v1065 = vmul.f32 %v672, %v1002
      %v1066 = vmul.f32 %v677, %v1002
      %v1067 = vmul.f32 %v682, %v1002
      %v1068 = vmul.f32 %v687, %v1002
      %v1069 = vmul.f32 %v692, %v1002
      %v1070 = vmul.f32 %v697, %v1002
      %v1071 = vmul.f32 %v702, %v1002
      %v1072 = vmul.f32 %v707, %v1002
      %v1073 = vmul.f32 %v712, %v1002
      %v1074 = vmul.f32 %v717, %v1002
      %v1075 = vmul.f32 %v722, %v1002
      %v1076 = vmul.f32 %v727, %v1002
      %v1077 = vmul.f32 %v732, %v1002
      %v1078 = vmul.f32 %v737, %v1002
      %v1079 = vmul.f32 %v742, %v1002
      %v1080 = vmul.f32 %v747, %v1002
      %v1081 = vmul.f32 %v752, %v1002
      %v1082 = vmul.f32 %v757, %v1002
      %v1083 = vmul.f32 %v762, %v1002
      %v1084 = vmul.f32 %v767, %v1002
      %v1085 = vmul.f32 %v772, %v1002
      %v1086 = vmul.f32 %v777, %v1002
      %v1087 = vmul.f32 %v782, %v1002
      %v1088 = vmul.f32 %v787, %v1002
      %v1089 = vmul.f32 %v792, %v1002
      %v1090 = vmul.f32 %v797, %v1002
      %v1091 = vmul.f32 %v802, %v1002
      %v1092 = vmul.f32 %v807, %v1002
      %v1093 = vmul.f32 %v812, %v1002
      %v1094 = vmul.f32 %v817, %v1002
      %v1095 = vmul.f32 %v822, %v1002
      %v1096 = vmul.f32 %v827, %v1002
      %v1097 = vmul.f32 %v832, %v1002
      %v1098 = vmul.f32 %v837, %v1002
      %v1099 = vmul.f32 %v842, %v1002
      %v1100 = vmul.f32 %v847, %v1002
      %v1101 = vmul.f32 %v852, %v1002
      %v1102 = vmul.f32 %v857, %v1002
      %v1103 = vmul.f32 %v862, %v1002
      %v1104 = vmul.f32 %v867, %v1002
      %v1105 = vmul.f32 %v872, %v1002
      %v1106 = vmul.f32 %v877, %v1002
      %v1107 = vmul.f32 %v882, %v1002
      %v1108 = vmul.f32 %v887, %v1002
      %v1109 = vmul.f32 %v892, %v1002
      %v1110 = vmul.f32 %v897, %v1002
      %v1111 = vmul.f32 %v902, %v1002
      %v1112 = vmul.f32 %v907, %v1002
      %v1113 = vmul.f32 %v912, %v1002
      %v1114 = vmul.f32 %v917, %v1002
      %v1115 = vmul.f32 %v922, %v1002
      %v1116 = vmul.f32 %v927, %v1002
      %v1117 = vmul.f32 %v932, %v1002
      %v1118 = vmul.f32 %v937, %v1002
      %v1119 = vmul.f32 %v942, %v1002
      %v1120 = vmul.f32 %v947, %v1002
      %v1121 = vmul.f32 %v952, %v1002
      %v1122 = vmul.f32 %v957, %v1002
      %v1123 = vmul.f32 %v962, %v1002
      %v1124 = vmul.f32 %v967, %v1002
      %v1125 = vmul.f32 %v972, %v1002
      %v1126 = vmul.f32 %v977, %v1002
      %v1127 = vmul.f32 %v982, %v1002
      %v1128 = vmul.f32 %v987, %v1002
      %v1129 = vmul.f32 %v992, %v1002
      %v1130 = vmul.f32 %v997, %v1002
      %1131 = vset.pattern.permute.xlu0 1
      %1132 = vperm.xlu0 %1131, %v228
      %v1133 = vpop.permute.xlu0 %1132
      %1135 = vset.pattern.permute.xlu0 1
      %1136 = vperm.xlu0 %1135, %v229
      %v1137 = vpop.permute.xlu0 %1136
      %1139 = vset.pattern.permute.xlu0 1
      %1140 = vperm.xlu0 %1139, %v230
      %v1141 = vpop.permute.xlu0 %1140
      %1143 = vset.pattern.permute.xlu0 1
      %1144 = vperm.xlu0 %1143, %v231
      %v1145 = vpop.permute.xlu0 %1144
      %1147 = vset.pattern.permute.xlu0 1
      %1148 = vperm.xlu0 %1147, %v232
      %v1149 = vpop.permute.xlu0 %1148
      %1151 = vset.pattern.permute.xlu0 1
      %1152 = vperm.xlu0 %1151, %v233
      %v1153 = vpop.permute.xlu0 %1152
      %1155 = vset.pattern.permute.xlu0 1
      %1156 = vperm.xlu0 %1155, %v234
      %v1157 = vpop.permute.xlu0 %1156
      %1159 = vset.pattern.permute.xlu0 1
      %1160 = vperm.xlu0 %1159, %v235
      %v1161 = vpop.permute.xlu0 %1160
      %1163 = vset.pattern.permute.xlu0 1
      %1164 = vperm.xlu0 %1163, %v236
      %v1165 = vpop.permute.xlu0 %1164
      %1167 = vset.pattern.permute.xlu0 1
      %1168 = vperm.xlu0 %1167, %v237
      %v1169 = vpop.permute.xlu0 %1168
      %1171 = vset.pattern.permute.xlu0 1
      %1172 = vperm.xlu0 %1171, %v238
      %v1173 = vpop.permute.xlu0 %1172
      %1175 = vset.pattern.permute.xlu0 1
      %1176 = vperm.xlu0 %1175, %v239
      %v1177 = vpop.permute.xlu0 %1176
      %1179 = vset.pattern.permute.xlu0 1
      %1180 = vperm.xlu0 %1179, %v240
      %v1181 = vpop.permute.xlu0 %1180
      %1183 = vset.pattern.permute.xlu0 1
      %1184 = vperm.xlu0 %1183, %v241
      %v1185 = vpop.permute.xlu0 %1184
      %1187 = vset.pattern.permute.xlu0 1
      %1188 = vperm.xlu0 %1187, %v242
      %v1189 = vpop.permute.xlu0 %1188
      %1191 = vset.pattern.permute.xlu0 1
      %1192 = vperm.xlu0 %1191, %v243
      %v1193 = vpop.permute.xlu0 %1192
      %1195 = vset.pattern.permute.xlu0 1
      %1196 = vperm.xlu0 %1195, %v244
      %v1197 = vpop.permute.xlu0 %1196
      %1199 = vset.pattern.permute.xlu0 1
      %1200 = vperm.xlu0 %1199, %v245
      %v1201 = vpop.permute.xlu0 %1200
      %1203 = vset.pattern.permute.xlu0 1
      %1204 = vperm.xlu0 %1203, %v246
      %v1205 = vpop.permute.xlu0 %1204
      %1207 = vset.pattern.permute.xlu0 1
      %1208 = vperm.xlu0 %1207, %v247
      %v1209 = vpop.permute.xlu0 %1208
      %1211 = vset.pattern.permute.xlu0 1
      %1212 = vperm.xlu0 %1211, %v248
      %v1213 = vpop.permute.xlu0 %1212
      %1215 = vset.pattern.permute.xlu0 1
      %1216 = vperm.xlu0 %1215, %v249
      %v1217 = vpop.permute.xlu0 %1216
      %1219 = vset.pattern.permute.xlu0 1
      %1220 = vperm.xlu0 %1219, %v250
      %v1221 = vpop.permute.xlu0 %1220
      %1223 = vset.pattern.permute.xlu0 1
      %1224 = vperm.xlu0 %1223, %v251
      %v1225 = vpop.permute.xlu0 %1224
      %1227 = vset.pattern.permute.xlu0 1
      %1228 = vperm.xlu0 %1227, %v252
      %v1229 = vpop.permute.xlu0 %1228
      %1231 = vset.pattern.permute.xlu0 1
      %1232 = vperm.xlu0 %1231, %v253
      %v1233 = vpop.permute.xlu0 %1232
      %1235 = vset.pattern.permute.xlu0 1
      %1236 = vperm.xlu0 %1235, %v254
      %v1237 = vpop.permute.xlu0 %1236
      %1239 = vset.pattern.permute.xlu0 1
      %1240 = vperm.xlu0 %1239, %v255
      %v1241 = vpop.permute.xlu0 %1240
      %1243 = vset.pattern.permute.xlu0 1
      %1244 = vperm.xlu0 %1243, %v256
      %v1245 = vpop.permute.xlu0 %1244
      %1247 = vset.pattern.permute.xlu0 1
      %1248 = vperm.xlu0 %1247, %v257
      %v1249 = vpop.permute.xlu0 %1248
      %1251 = vset.pattern.permute.xlu0 1
      %1252 = vperm.xlu0 %1251, %v258
      %v1253 = vpop.permute.xlu0 %1252
      %1255 = vset.pattern.permute.xlu0 1
      %1256 = vperm.xlu0 %1255, %v259
      %v1257 = vpop.permute.xlu0 %1256
      %1259 = vset.pattern.permute.xlu0 1
      %1260 = vperm.xlu0 %1259, %v260
      %v1261 = vpop.permute.xlu0 %1260
      %1263 = vset.pattern.permute.xlu0 1
      %1264 = vperm.xlu0 %1263, %v261
      %v1265 = vpop.permute.xlu0 %1264
      %1267 = vset.pattern.permute.xlu0 1
      %1268 = vperm.xlu0 %1267, %v262
      %v1269 = vpop.permute.xlu0 %1268
      %1271 = vset.pattern.permute.xlu0 1
      %1272 = vperm.xlu0 %1271, %v263
      %v1273 = vpop.permute.xlu0 %1272
      %1275 = vset.pattern.permute.xlu0 1
      %1276 = vperm.xlu0 %1275, %v264
      %v1277 = vpop.permute.xlu0 %1276
      %1279 = vset.pattern.permute.xlu0 1
      %1280 = vperm.xlu0 %1279, %v265
      %v1281 = vpop.permute.xlu0 %1280
      %1283 = vset.pattern.permute.xlu0 1
      %1284 = vperm.xlu0 %1283, %v266
      %v1285 = vpop.permute.xlu0 %1284
      %1287 = vset.pattern.permute.xlu0 1
      %1288 = vperm.xlu0 %1287, %v267
      %v1289 = vpop.permute.xlu0 %1288
      %1291 = vset.pattern.permute.xlu0 1
      %1292 = vperm.xlu0 %1291, %v268
      %v1293 = vpop.permute.xlu0 %1292
      %1295 = vset.pattern.permute.xlu0 1
      %1296 = vperm.xlu0 %1295, %v269
      %v1297 = vpop.permute.xlu0 %1296
      %1299 = vset.pattern.permute.xlu0 1
      %1300 = vperm.xlu0 %1299, %v270
      %v1301 = vpop.permute.xlu0 %1300
      %1303 = vset.pattern.permute.xlu0 1
      %1304 = vperm.xlu0 %1303, %v271
      %v1305 = vpop.permute.xlu0 %1304
      %1307 = vset.pattern.permute.xlu0 1
      %1308 = vperm.xlu0 %1307, %v272
      %v1309 = vpop.permute.xlu0 %1308
      %1311 = vset.pattern.permute.xlu0 1
      %1312 = vperm.xlu0 %1311, %v273
      %v1313 = vpop.permute.xlu0 %1312
      %1315 = vset.pattern.permute.xlu0 1
      %1316 = vperm.xlu0 %1315, %v274
      %v1317 = vpop.permute.xlu0 %1316
      %1319 = vset.pattern.permute.xlu0 1
      %1320 = vperm.xlu0 %1319, %v275
      %v1321 = vpop.permute.xlu0 %1320
      %1323 = vset.pattern.permute.xlu0 1
      %1324 = vperm.xlu0 %1323, %v276
      %v1325 = vpop.permute.xlu0 %1324
      %1327 = vset.pattern.permute.xlu0 1
      %1328 = vperm.xlu0 %1327, %v277
      %v1329 = vpop.permute.xlu0 %1328
      %1331 = vset.pattern.permute.xlu0 1
      %1332 = vperm.xlu0 %1331, %v278
      %v1333 = vpop.permute.xlu0 %1332
      %1335 = vset.pattern.permute.xlu0 1
      %1336 = vperm.xlu0 %1335, %v279
      %v1337 = vpop.permute.xlu0 %1336
      %1339 = vset.pattern.permute.xlu0 1
      %1340 = vperm.xlu0 %1339, %v280
      %v1341 = vpop.permute.xlu0 %1340
      %1343 = vset.pattern.permute.xlu0 1
      %1344 = vperm.xlu0 %1343, %v281
      %v1345 = vpop.permute.xlu0 %1344
      %1347 = vset.pattern.permute.xlu0 1
      %1348 = vperm.xlu0 %1347, %v282
      %v1349 = vpop.permute.xlu0 %1348
      %1351 = vset.pattern.permute.xlu0 1
      %1352 = vperm.xlu0 %1351, %v283
      %v1353 = vpop.permute.xlu0 %1352
      %1355 = vset.pattern.permute.xlu0 1
      %1356 = vperm.xlu0 %1355, %v284
      %v1357 = vpop.permute.xlu0 %1356
      %1359 = vset.pattern.permute.xlu0 1
      %1360 = vperm.xlu0 %1359, %v285
      %v1361 = vpop.permute.xlu0 %1360
      %1363 = vset.pattern.permute.xlu0 1
      %1364 = vperm.xlu0 %1363, %v286
      %v1365 = vpop.permute.xlu0 %1364
      %1367 = vset.pattern.permute.xlu0 1
      %1368 = vperm.xlu0 %1367, %v287
      %v1369 = vpop.permute.xlu0 %1368
      %1371 = vset.pattern.permute.xlu0 1
      %1372 = vperm.xlu0 %1371, %v288
      %v1373 = vpop.permute.xlu0 %1372
      %1375 = vset.pattern.permute.xlu0 1
      %1376 = vperm.xlu0 %1375, %v289
      %v1377 = vpop.permute.xlu0 %1376
      %1379 = vset.pattern.permute.xlu0 1
      %1380 = vperm.xlu0 %1379, %v290
      %v1381 = vpop.permute.xlu0 %1380
      %1383 = vset.pattern.permute.xlu0 1
      %1384 = vperm.xlu0 %1383, %v291
      %v1385 = vpop.permute.xlu0 %1384
      %1387 = vset.pattern.permute.xlu0 1
      %1388 = vperm.xlu0 %1387, %v292
      %v1389 = vpop.permute.xlu0 %1388
      %1391 = vset.pattern.permute.xlu0 1
      %1392 = vperm.xlu0 %1391, %v293
      %v1393 = vpop.permute.xlu0 %1392
      %1395 = vset.pattern.permute.xlu0 1
      %1396 = vperm.xlu0 %1395, %v294
      %v1397 = vpop.permute.xlu0 %1396
      %1399 = vset.pattern.permute.xlu0 1
      %1400 = vperm.xlu0 %1399, %v295
      %v1401 = vpop.permute.xlu0 %1400
      %1403 = vset.pattern.permute.xlu0 1
      %1404 = vperm.xlu0 %1403, %v296
      %v1405 = vpop.permute.xlu0 %1404
      %1407 = vset.pattern.permute.xlu0 1
      %1408 = vperm.xlu0 %1407, %v297
      %v1409 = vpop.permute.xlu0 %1408
      %1411 = vset.pattern.permute.xlu0 1
      %1412 = vperm.xlu0 %1411, %v298
      %v1413 = vpop.permute.xlu0 %1412
      %1415 = vset.pattern.permute.xlu0 1
      %1416 = vperm.xlu0 %1415, %v299
      %v1417 = vpop.permute.xlu0 %1416
      %1419 = vset.pattern.permute.xlu0 1
      %1420 = vperm.xlu0 %1419, %v300
      %v1421 = vpop.permute.xlu0 %1420
      %1423 = vset.pattern.permute.xlu0 1
      %1424 = vperm.xlu0 %1423, %v301
      %v1425 = vpop.permute.xlu0 %1424
      %1427 = vset.pattern.permute.xlu0 1
      %1428 = vperm.xlu0 %1427, %v302
      %v1429 = vpop.permute.xlu0 %1428
      %1431 = vset.pattern.permute.xlu0 1
      %1432 = vperm.xlu0 %1431, %v303
      %v1433 = vpop.permute.xlu0 %1432
      %1435 = vset.pattern.permute.xlu0 1
      %1436 = vperm.xlu0 %1435, %v304
      %v1437 = vpop.permute.xlu0 %1436
      %1439 = vset.pattern.permute.xlu0 1
      %1440 = vperm.xlu0 %1439, %v305
      %v1441 = vpop.permute.xlu0 %1440
      %1443 = vset.pattern.permute.xlu0 1
      %1444 = vperm.xlu0 %1443, %v306
      %v1445 = vpop.permute.xlu0 %1444
      %1447 = vset.pattern.permute.xlu0 1
      %1448 = vperm.xlu0 %1447, %v307
      %v1449 = vpop.permute.xlu0 %1448
      %1451 = vset.pattern.permute.xlu0 1
      %1452 = vperm.xlu0 %1451, %v308
      %v1453 = vpop.permute.xlu0 %1452
      %1455 = vset.pattern.permute.xlu0 1
      %1456 = vperm.xlu0 %1455, %v309
      %v1457 = vpop.permute.xlu0 %1456
      %1459 = vset.pattern.permute.xlu0 1
      %1460 = vperm.xlu0 %1459, %v310
      %v1461 = vpop.permute.xlu0 %1460
      %1463 = vset.pattern.permute.xlu0 1
      %1464 = vperm.xlu0 %1463, %v311
      %v1465 = vpop.permute.xlu0 %1464
      %1467 = vset.pattern.permute.xlu0 1
      %1468 = vperm.xlu0 %1467, %v312
      %v1469 = vpop.permute.xlu0 %1468
      %1471 = vset.pattern.permute.xlu0 1
      %1472 = vperm.xlu0 %1471, %v313
      %v1473 = vpop.permute.xlu0 %1472
      %1475 = vset.pattern.permute.xlu0 1
      %1476 = vperm.xlu0 %1475, %v314
      %v1477 = vpop.permute.xlu0 %1476
      %1479 = vset.pattern.permute.xlu0 1
      %1480 = vperm.xlu0 %1479, %v315
      %v1481 = vpop.permute.xlu0 %1480
      %1483 = vset.pattern.permute.xlu0 1
      %1484 = vperm.xlu0 %1483, %v316
      %v1485 = vpop.permute.xlu0 %1484
      %1487 = vset.pattern.permute.xlu0 1
      %1488 = vperm.xlu0 %1487, %v317
      %v1489 = vpop.permute.xlu0 %1488
      %1491 = vset.pattern.permute.xlu0 1
      %1492 = vperm.xlu0 %1491, %v318
      %v1493 = vpop.permute.xlu0 %1492
      %1495 = vset.pattern.permute.xlu0 1
      %1496 = vperm.xlu0 %1495, %v319
      %v1497 = vpop.permute.xlu0 %1496
      %1499 = vset.pattern.permute.xlu0 1
      %1500 = vperm.xlu0 %1499, %v320
      %v1501 = vpop.permute.xlu0 %1500
      %1503 = vset.pattern.permute.xlu0 1
      %1504 = vperm.xlu0 %1503, %v321
      %v1505 = vpop.permute.xlu0 %1504
      %1507 = vset.pattern.permute.xlu0 1
      %1508 = vperm.xlu0 %1507, %v322
      %v1509 = vpop.permute.xlu0 %1508
      %1511 = vset.pattern.permute.xlu0 1
      %1512 = vperm.xlu0 %1511, %v323
      %v1513 = vpop.permute.xlu0 %1512
      %1515 = vset.pattern.permute.xlu0 1
      %1516 = vperm.xlu0 %1515, %v324
      %v1517 = vpop.permute.xlu0 %1516
      %1519 = vset.pattern.permute.xlu0 1
      %1520 = vperm.xlu0 %1519, %v325
      %v1521 = vpop.permute.xlu0 %1520
      %1523 = vset.pattern.permute.xlu0 1
      %1524 = vperm.xlu0 %1523, %v326
      %v1525 = vpop.permute.xlu0 %1524
      %1527 = vset.pattern.permute.xlu0 1
      %1528 = vperm.xlu0 %1527, %v327
      %v1529 = vpop.permute.xlu0 %1528
      %1531 = vset.pattern.permute.xlu0 1
      %1532 = vperm.xlu0 %1531, %v328
      %v1533 = vpop.permute.xlu0 %1532
      %1535 = vset.pattern.permute.xlu0 1
      %1536 = vperm.xlu0 %1535, %v329
      %v1537 = vpop.permute.xlu0 %1536
      %1539 = vset.pattern.permute.xlu0 1
      %1540 = vperm.xlu0 %1539, %v330
      %v1541 = vpop.permute.xlu0 %1540
      %1543 = vset.pattern.permute.xlu0 1
      %1544 = vperm.xlu0 %1543, %v331
      %v1545 = vpop.permute.xlu0 %1544
      %1547 = vset.pattern.permute.xlu0 1
      %1548 = vperm.xlu0 %1547, %v332
      %v1549 = vpop.permute.xlu0 %1548
      %1551 = vset.pattern.permute.xlu0 1
      %1552 = vperm.xlu0 %1551, %v333
      %v1553 = vpop.permute.xlu0 %1552
      %1555 = vset.pattern.permute.xlu0 1
      %1556 = vperm.xlu0 %1555, %v334
      %v1557 = vpop.permute.xlu0 %1556
      %1559 = vset.pattern.permute.xlu0 1
      %1560 = vperm.xlu0 %1559, %v335
      %v1561 = vpop.permute.xlu0 %1560
      %1563 = vset.pattern.permute.xlu0 1
      %1564 = vperm.xlu0 %1563, %v336
      %v1565 = vpop.permute.xlu0 %1564
      %1567 = vset.pattern.permute.xlu0 1
      %1568 = vperm.xlu0 %1567, %v337
      %v1569 = vpop.permute.xlu0 %1568
      %1571 = vset.pattern.permute.xlu0 1
      %1572 = vperm.xlu0 %1571, %v338
      %v1573 = vpop.permute.xlu0 %1572
      %1575 = vset.pattern.permute.xlu0 1
      %1576 = vperm.xlu0 %1575, %v339
      %v1577 = vpop.permute.xlu0 %1576
      %1579 = vset.pattern.permute.xlu0 1
      %1580 = vperm.xlu0 %1579, %v340
      %v1581 = vpop.permute.xlu0 %1580
      %1583 = vset.pattern.permute.xlu0 1
      %1584 = vperm.xlu0 %1583, %v341
      %v1585 = vpop.permute.xlu0 %1584
      %1587 = vset.pattern.permute.xlu0 1
      %1588 = vperm.xlu0 %1587, %v342
      %v1589 = vpop.permute.xlu0 %1588
      %1591 = vset.pattern.permute.xlu0 1
      %1592 = vperm.xlu0 %1591, %v343
      %v1593 = vpop.permute.xlu0 %1592
      %1595 = vset.pattern.permute.xlu0 1
      %1596 = vperm.xlu0 %1595, %v344
      %v1597 = vpop.permute.xlu0 %1596
      %1599 = vset.pattern.permute.xlu0 1
      %1600 = vperm.xlu0 %1599, %v345
      %v1601 = vpop.permute.xlu0 %1600
      %1603 = vset.pattern.permute.xlu0 1
      %1604 = vperm.xlu0 %1603, %v346
      %v1605 = vpop.permute.xlu0 %1604
      %1607 = vset.pattern.permute.xlu0 1
      %1608 = vperm.xlu0 %1607, %v347
      %v1609 = vpop.permute.xlu0 %1608
      %1611 = vset.pattern.permute.xlu0 1
      %1612 = vperm.xlu0 %1611, %v348
      %v1613 = vpop.permute.xlu0 %1612
      %1615 = vset.pattern.permute.xlu0 1
      %1616 = vperm.xlu0 %1615, %v349
      %v1617 = vpop.permute.xlu0 %1616
      %1619 = vset.pattern.permute.xlu0 1
      %1620 = vperm.xlu0 %1619, %v350
      %v1621 = vpop.permute.xlu0 %1620
      %1623 = vset.pattern.permute.xlu0 1
      %1624 = vperm.xlu0 %1623, %v351
      %v1625 = vpop.permute.xlu0 %1624
      %1627 = vset.pattern.permute.xlu0 1
      %1628 = vperm.xlu0 %1627, %v352
      %v1629 = vpop.permute.xlu0 %1628
      %1631 = vset.pattern.permute.xlu0 1
      %1632 = vperm.xlu0 %1631, %v353
      %v1633 = vpop.permute.xlu0 %1632
      %1635 = vset.pattern.permute.xlu0 1
      %1636 = vperm.xlu0 %1635, %v354
      %v1637 = vpop.permute.xlu0 %1636
      %1639 = vset.pattern.permute.xlu0 1
      %1640 = vperm.xlu0 %1639, %v355
      %v1641 = vpop.permute.xlu0 %1640
      %v1643 = vlaneseq
      %v1644 = vshrl.u32 %v1643, 7
      %v1645 = vsub.s32 1, %v1644
      %v1646 = vrot.slane %v357, %v1645
      %v1647 = vmul.f32 %v1133, %v1646
      %v1648 = vmul.f32 %v1137, %v1646
      %v1649 = vmul.f32 %v1141, %v1646
      %v1650 = vmul.f32 %v1145, %v1646
      %v1651 = vmul.f32 %v1149, %v1646
      %v1652 = vmul.f32 %v1153, %v1646
      %v1653 = vmul.f32 %v1157, %v1646
      %v1654 = vmul.f32 %v1161, %v1646
      %v1655 = vmul.f32 %v1165, %v1646
      %v1656 = vmul.f32 %v1169, %v1646
      %v1657 = vmul.f32 %v1173, %v1646
      %v1658 = vmul.f32 %v1177, %v1646
      %v1659 = vmul.f32 %v1181, %v1646
      %v1660 = vmul.f32 %v1185, %v1646
      %v1661 = vmul.f32 %v1189, %v1646
      %v1662 = vmul.f32 %v1193, %v1646
      %v1663 = vmul.f32 %v1197, %v1646
      %v1664 = vmul.f32 %v1201, %v1646
      %v1665 = vmul.f32 %v1205, %v1646
      %v1666 = vmul.f32 %v1209, %v1646
      %v1667 = vmul.f32 %v1213, %v1646
      %v1668 = vmul.f32 %v1217, %v1646
      %v1669 = vmul.f32 %v1221, %v1646
      %v1670 = vmul.f32 %v1225, %v1646
      %v1671 = vmul.f32 %v1229, %v1646
      %v1672 = vmul.f32 %v1233, %v1646
      %v1673 = vmul.f32 %v1237, %v1646
      %v1674 = vmul.f32 %v1241, %v1646
      %v1675 = vmul.f32 %v1245, %v1646
      %v1676 = vmul.f32 %v1249, %v1646
      %v1677 = vmul.f32 %v1253, %v1646
      %v1678 = vmul.f32 %v1257, %v1646
      %v1679 = vmul.f32 %v1261, %v1646
      %v1680 = vmul.f32 %v1265, %v1646
      %v1681 = vmul.f32 %v1269, %v1646
      %v1682 = vmul.f32 %v1273, %v1646
      %v1683 = vmul.f32 %v1277, %v1646
      %v1684 = vmul.f32 %v1281, %v1646
      %v1685 = vmul.f32 %v1285, %v1646
      %v1686 = vmul.f32 %v1289, %v1646
      %v1687 = vmul.f32 %v1293, %v1646
      %v1688 = vmul.f32 %v1297, %v1646
      %v1689 = vmul.f32 %v1301, %v1646
      %v1690 = vmul.f32 %v1305, %v1646
      %v1691 = vmul.f32 %v1309, %v1646
      %v1692 = vmul.f32 %v1313, %v1646
      %v1693 = vmul.f32 %v1317, %v1646
      %v1694 = vmul.f32 %v1321, %v1646
      %v1695 = vmul.f32 %v1325, %v1646
      %v1696 = vmul.f32 %v1329, %v1646
      %v1697 = vmul.f32 %v1333, %v1646
      %v1698 = vmul.f32 %v1337, %v1646
      %v1699 = vmul.f32 %v1341, %v1646
      %v1700 = vmul.f32 %v1345, %v1646
      %v1701 = vmul.f32 %v1349, %v1646
      %v1702 = vmul.f32 %v1353, %v1646
      %v1703 = vmul.f32 %v1357, %v1646
      %v1704 = vmul.f32 %v1361, %v1646
      %v1705 = vmul.f32 %v1365, %v1646
      %v1706 = vmul.f32 %v1369, %v1646
      %v1707 = vmul.f32 %v1373, %v1646
      %v1708 = vmul.f32 %v1377, %v1646
      %v1709 = vmul.f32 %v1381, %v1646
      %v1710 = vmul.f32 %v1385, %v1646
      %v1711 = vmul.f32 %v1389, %v1646
      %v1712 = vmul.f32 %v1393, %v1646
      %v1713 = vmul.f32 %v1397, %v1646
      %v1714 = vmul.f32 %v1401, %v1646
      %v1715 = vmul.f32 %v1405, %v1646
      %v1716 = vmul.f32 %v1409, %v1646
      %v1717 = vmul.f32 %v1413, %v1646
      %v1718 = vmul.f32 %v1417, %v1646
      %v1719 = vmul.f32 %v1421, %v1646
      %v1720 = vmul.f32 %v1425, %v1646
      %v1721 = vmul.f32 %v1429, %v1646
      %v1722 = vmul.f32 %v1433, %v1646
      %v1723 = vmul.f32 %v1437, %v1646
      %v1724 = vmul.f32 %v1441, %v1646
      %v1725 = vmul.f32 %v1445, %v1646
      %v1726 = vmul.f32 %v1449, %v1646
      %v1727 = vmul.f32 %v1453, %v1646
      %v1728 = vmul.f32 %v1457, %v1646
      %v1729 = vmul.f32 %v1461, %v1646
      %v1730 = vmul.f32 %v1465, %v1646
      %v1731 = vmul.f32 %v1469, %v1646
      %v1732 = vmul.f32 %v1473, %v1646
      %v1733 = vmul.f32 %v1477, %v1646
      %v1734 = vmul.f32 %v1481, %v1646
      %v1735 = vmul.f32 %v1485, %v1646
      %v1736 = vmul.f32 %v1489, %v1646
      %v1737 = vmul.f32 %v1493, %v1646
      %v1738 = vmul.f32 %v1497, %v1646
      %v1739 = vmul.f32 %v1501, %v1646
      %v1740 = vmul.f32 %v1505, %v1646
      %v1741 = vmul.f32 %v1509, %v1646
      %v1742 = vmul.f32 %v1513, %v1646
      %v1743 = vmul.f32 %v1517, %v1646
      %v1744 = vmul.f32 %v1521, %v1646
      %v1745 = vmul.f32 %v1525, %v1646
      %v1746 = vmul.f32 %v1529, %v1646
      %v1747 = vmul.f32 %v1533, %v1646
      %v1748 = vmul.f32 %v1537, %v1646
      %v1749 = vmul.f32 %v1541, %v1646
      %v1750 = vmul.f32 %v1545, %v1646
      %v1751 = vmul.f32 %v1549, %v1646
      %v1752 = vmul.f32 %v1553, %v1646
      %v1753 = vmul.f32 %v1557, %v1646
      %v1754 = vmul.f32 %v1561, %v1646
      %v1755 = vmul.f32 %v1565, %v1646
      %v1756 = vmul.f32 %v1569, %v1646
      %v1757 = vmul.f32 %v1573, %v1646
      %v1758 = vmul.f32 %v1577, %v1646
      %v1759 = vmul.f32 %v1581, %v1646
      %v1760 = vmul.f32 %v1585, %v1646
      %v1761 = vmul.f32 %v1589, %v1646
      %v1762 = vmul.f32 %v1593, %v1646
      %v1763 = vmul.f32 %v1597, %v1646
      %v1764 = vmul.f32 %v1601, %v1646
      %v1765 = vmul.f32 %v1605, %v1646
      %v1766 = vmul.f32 %v1609, %v1646
      %v1767 = vmul.f32 %v1613, %v1646
      %v1768 = vmul.f32 %v1617, %v1646
      %v1769 = vmul.f32 %v1621, %v1646
      %v1770 = vmul.f32 %v1625, %v1646
      %v1771 = vmul.f32 %v1629, %v1646
      %v1772 = vmul.f32 %v1633, %v1646
      %v1773 = vmul.f32 %v1637, %v1646
      %v1774 = vmul.f32 %v1641, %v1646
      %v1775 = vadd.f32 %v1003, %v1647
      %v1776 = vadd.f32 %v1004, %v1648
      %v1777 = vadd.f32 %v1005, %v1649
      %v1778 = vadd.f32 %v1006, %v1650
      %v1779 = vadd.f32 %v1007, %v1651
      %v1780 = vadd.f32 %v1008, %v1652
      %v1781 = vadd.f32 %v1009, %v1653
      %v1782 = vadd.f32 %v1010, %v1654
      %v1783 = vadd.f32 %v1011, %v1655
      %v1784 = vadd.f32 %v1012, %v1656
      %v1785 = vadd.f32 %v1013, %v1657
      %v1786 = vadd.f32 %v1014, %v1658
      %v1787 = vadd.f32 %v1015, %v1659
      %v1788 = vadd.f32 %v1016, %v1660
      %v1789 = vadd.f32 %v1017, %v1661
      %v1790 = vadd.f32 %v1018, %v1662
      %v1791 = vadd.f32 %v1019, %v1663
      %v1792 = vadd.f32 %v1020, %v1664
      %v1793 = vadd.f32 %v1021, %v1665
      %v1794 = vadd.f32 %v1022, %v1666
      %v1795 = vadd.f32 %v1023, %v1667
      %v1796 = vadd.f32 %v1024, %v1668
      %v1797 = vadd.f32 %v1025, %v1669
      %v1798 = vadd.f32 %v1026, %v1670
      %v1799 = vadd.f32 %v1027, %v1671
      %v1800 = vadd.f32 %v1028, %v1672
      %v1801 = vadd.f32 %v1029, %v1673
      %v1802 = vadd.f32 %v1030, %v1674
      %v1803 = vadd.f32 %v1031, %v1675
      %v1804 = vadd.f32 %v1032, %v1676
      %v1805 = vadd.f32 %v1033, %v1677
      %v1806 = vadd.f32 %v1034, %v1678
      %v1807 = vadd.f32 %v1035, %v1679
      %v1808 = vadd.f32 %v1036, %v1680
      %v1809 = vadd.f32 %v1037, %v1681
      %v1810 = vadd.f32 %v1038, %v1682
      %v1811 = vadd.f32 %v1039, %v1683
      %v1812 = vadd.f32 %v1040, %v1684
      %v1813 = vadd.f32 %v1041, %v1685
      %v1814 = vadd.f32 %v1042, %v1686
      %v1815 = vadd.f32 %v1043, %v1687
      %v1816 = vadd.f32 %v1044, %v1688
      %v1817 = vadd.f32 %v1045, %v1689
      %v1818 = vadd.f32 %v1046, %v1690
      %v1819 = vadd.f32 %v1047, %v1691
      %v1820 = vadd.f32 %v1048, %v1692
      %v1821 = vadd.f32 %v1049, %v1693
      %v1822 = vadd.f32 %v1050, %v1694
      %v1823 = vadd.f32 %v1051, %v1695
      %v1824 = vadd.f32 %v1052, %v1696
      %v1825 = vadd.f32 %v1053, %v1697
      %v1826 = vadd.f32 %v1054, %v1698
      %v1827 = vadd.f32 %v1055, %v1699
      %v1828 = vadd.f32 %v1056, %v1700
      %v1829 = vadd.f32 %v1057, %v1701
      %v1830 = vadd.f32 %v1058, %v1702
      %v1831 = vadd.f32 %v1059, %v1703
      %v1832 = vadd.f32 %v1060, %v1704
      %v1833 = vadd.f32 %v1061, %v1705
      %v1834 = vadd.f32 %v1062, %v1706
      %v1835 = vadd.f32 %v1063, %v1707
      %v1836 = vadd.f32 %v1064, %v1708
      %v1837 = vadd.f32 %v1065, %v1709
      %v1838 = vadd.f32 %v1066, %v1710
      %v1839 = vadd.f32 %v1067, %v1711
      %v1840 = vadd.f32 %v1068, %v1712
      %v1841 = vadd.f32 %v1069, %v1713
      %v1842 = vadd.f32 %v1070, %v1714
      %v1843 = vadd.f32 %v1071, %v1715
      %v1844 = vadd.f32 %v1072, %v1716
      %v1845 = vadd.f32 %v1073, %v1717
      %v1846 = vadd.f32 %v1074, %v1718
      %v1847 = vadd.f32 %v1075, %v1719
      %v1848 = vadd.f32 %v1076, %v1720
      %v1849 = vadd.f32 %v1077, %v1721
      %v1850 = vadd.f32 %v1078, %v1722
      %v1851 = vadd.f32 %v1079, %v1723
      %v1852 = vadd.f32 %v1080, %v1724
      %v1853 = vadd.f32 %v1081, %v1725
      %v1854 = vadd.f32 %v1082, %v1726
      %v1855 = vadd.f32 %v1083, %v1727
      %v1856 = vadd.f32 %v1084, %v1728
      %v1857 = vadd.f32 %v1085, %v1729
      %v1858 = vadd.f32 %v1086, %v1730
      %v1859 = vadd.f32 %v1087, %v1731
      %v1860 = vadd.f32 %v1088, %v1732
      %v1861 = vadd.f32 %v1089, %v1733
      %v1862 = vadd.f32 %v1090, %v1734
      %v1863 = vadd.f32 %v1091, %v1735
      %v1864 = vadd.f32 %v1092, %v1736
      %v1865 = vadd.f32 %v1093, %v1737
      %v1866 = vadd.f32 %v1094, %v1738
      %v1867 = vadd.f32 %v1095, %v1739
      %v1868 = vadd.f32 %v1096, %v1740
      %v1869 = vadd.f32 %v1097, %v1741
      %v1870 = vadd.f32 %v1098, %v1742
      %v1871 = vadd.f32 %v1099, %v1743
      %v1872 = vadd.f32 %v1100, %v1744
      %v1873 = vadd.f32 %v1101, %v1745
      %v1874 = vadd.f32 %v1102, %v1746
      %v1875 = vadd.f32 %v1103, %v1747
      %v1876 = vadd.f32 %v1104, %v1748
      %v1877 = vadd.f32 %v1105, %v1749
      %v1878 = vadd.f32 %v1106, %v1750
      %v1879 = vadd.f32 %v1107, %v1751
      %v1880 = vadd.f32 %v1108, %v1752
      %v1881 = vadd.f32 %v1109, %v1753
      %v1882 = vadd.f32 %v1110, %v1754
      %v1883 = vadd.f32 %v1111, %v1755
      %v1884 = vadd.f32 %v1112, %v1756
      %v1885 = vadd.f32 %v1113, %v1757
      %v1886 = vadd.f32 %v1114, %v1758
      %v1887 = vadd.f32 %v1115, %v1759
      %v1888 = vadd.f32 %v1116, %v1760
      %v1889 = vadd.f32 %v1117, %v1761
      %v1890 = vadd.f32 %v1118, %v1762
      %v1891 = vadd.f32 %v1119, %v1763
      %v1892 = vadd.f32 %v1120, %v1764
      %v1893 = vadd.f32 %v1121, %v1765
      %v1894 = vadd.f32 %v1122, %v1766
      %v1895 = vadd.f32 %v1123, %v1767
      %v1896 = vadd.f32 %v1124, %v1768
      %v1897 = vadd.f32 %v1125, %v1769
      %v1898 = vadd.f32 %v1126, %v1770
      %v1899 = vadd.f32 %v1127, %v1771
      %v1900 = vadd.f32 %v1128, %v1772
      %v1901 = vadd.f32 %v1129, %v1773
      %v1902 = vadd.f32 %v1130, %v1774
      %1903 = vset.pattern.permute.xlu0 2
      %1904 = vperm.xlu0 %1903, %v228
      %v1905 = vpop.permute.xlu0 %1904
      %1907 = vset.pattern.permute.xlu0 2
      %1908 = vperm.xlu0 %1907, %v229
      %v1909 = vpop.permute.xlu0 %1908
      %1911 = vset.pattern.permute.xlu0 2
      %1912 = vperm.xlu0 %1911, %v230
      %v1913 = vpop.permute.xlu0 %1912
      %1915 = vset.pattern.permute.xlu0 2
      %1916 = vperm.xlu0 %1915, %v231
      %v1917 = vpop.permute.xlu0 %1916
      %1919 = vset.pattern.permute.xlu0 2
      %1920 = vperm.xlu0 %1919, %v232
      %v1921 = vpop.permute.xlu0 %1920
      %1923 = vset.pattern.permute.xlu0 2
      %1924 = vperm.xlu0 %1923, %v233
      %v1925 = vpop.permute.xlu0 %1924
      %1927 = vset.pattern.permute.xlu0 2
      %1928 = vperm.xlu0 %1927, %v234
      %v1929 = vpop.permute.xlu0 %1928
      %1931 = vset.pattern.permute.xlu0 2
      %1932 = vperm.xlu0 %1931, %v235
      %v1933 = vpop.permute.xlu0 %1932
      %1935 = vset.pattern.permute.xlu0 2
      %1936 = vperm.xlu0 %1935, %v236
      %v1937 = vpop.permute.xlu0 %1936
      %1939 = vset.pattern.permute.xlu0 2
      %1940 = vperm.xlu0 %1939, %v237
      %v1941 = vpop.permute.xlu0 %1940
      %1943 = vset.pattern.permute.xlu0 2
      %1944 = vperm.xlu0 %1943, %v238
      %v1945 = vpop.permute.xlu0 %1944
      %1947 = vset.pattern.permute.xlu0 2
      %1948 = vperm.xlu0 %1947, %v239
      %v1949 = vpop.permute.xlu0 %1948
      %1951 = vset.pattern.permute.xlu0 2
      %1952 = vperm.xlu0 %1951, %v240
      %v1953 = vpop.permute.xlu0 %1952
      %1955 = vset.pattern.permute.xlu0 2
      %1956 = vperm.xlu0 %1955, %v241
      %v1957 = vpop.permute.xlu0 %1956
      %1959 = vset.pattern.permute.xlu0 2
      %1960 = vperm.xlu0 %1959, %v242
      %v1961 = vpop.permute.xlu0 %1960
      %1963 = vset.pattern.permute.xlu0 2
      %1964 = vperm.xlu0 %1963, %v243
      %v1965 = vpop.permute.xlu0 %1964
      %1967 = vset.pattern.permute.xlu0 2
      %1968 = vperm.xlu0 %1967, %v244
      %v1969 = vpop.permute.xlu0 %1968
      %1971 = vset.pattern.permute.xlu0 2
      %1972 = vperm.xlu0 %1971, %v245
      %v1973 = vpop.permute.xlu0 %1972
      %1975 = vset.pattern.permute.xlu0 2
      %1976 = vperm.xlu0 %1975, %v246
      %v1977 = vpop.permute.xlu0 %1976
      %1979 = vset.pattern.permute.xlu0 2
      %1980 = vperm.xlu0 %1979, %v247
      %v1981 = vpop.permute.xlu0 %1980
      %1983 = vset.pattern.permute.xlu0 2
      %1984 = vperm.xlu0 %1983, %v248
      %v1985 = vpop.permute.xlu0 %1984
      %1987 = vset.pattern.permute.xlu0 2
      %1988 = vperm.xlu0 %1987, %v249
      %v1989 = vpop.permute.xlu0 %1988
      %1991 = vset.pattern.permute.xlu0 2
      %1992 = vperm.xlu0 %1991, %v250
      %v1993 = vpop.permute.xlu0 %1992
      %1995 = vset.pattern.permute.xlu0 2
      %1996 = vperm.xlu0 %1995, %v251
      %v1997 = vpop.permute.xlu0 %1996
      %1999 = vset.pattern.permute.xlu0 2
      %2000 = vperm.xlu0 %1999, %v252
      %v2001 = vpop.permute.xlu0 %2000
      %2003 = vset.pattern.permute.xlu0 2
      %2004 = vperm.xlu0 %2003, %v253
      %v2005 = vpop.permute.xlu0 %2004
      %2007 = vset.pattern.permute.xlu0 2
      %2008 = vperm.xlu0 %2007, %v254
      %v2009 = vpop.permute.xlu0 %2008
      %2011 = vset.pattern.permute.xlu0 2
      %2012 = vperm.xlu0 %2011, %v255
      %v2013 = vpop.permute.xlu0 %2012
      %2015 = vset.pattern.permute.xlu0 2
      %2016 = vperm.xlu0 %2015, %v256
      %v2017 = vpop.permute.xlu0 %2016
      %2019 = vset.pattern.permute.xlu0 2
      %2020 = vperm.xlu0 %2019, %v257
      %v2021 = vpop.permute.xlu0 %2020
      %2023 = vset.pattern.permute.xlu0 2
      %2024 = vperm.xlu0 %2023, %v258
      %v2025 = vpop.permute.xlu0 %2024
      %2027 = vset.pattern.permute.xlu0 2
      %2028 = vperm.xlu0 %2027, %v259
      %v2029 = vpop.permute.xlu0 %2028
      %2031 = vset.pattern.permute.xlu0 2
      %2032 = vperm.xlu0 %2031, %v260
      %v2033 = vpop.permute.xlu0 %2032
      %2035 = vset.pattern.permute.xlu0 2
      %2036 = vperm.xlu0 %2035, %v261
      %v2037 = vpop.permute.xlu0 %2036
      %2039 = vset.pattern.permute.xlu0 2
      %2040 = vperm.xlu0 %2039, %v262
      %v2041 = vpop.permute.xlu0 %2040
      %2043 = vset.pattern.permute.xlu0 2
      %2044 = vperm.xlu0 %2043, %v263
      %v2045 = vpop.permute.xlu0 %2044
      %2047 = vset.pattern.permute.xlu0 2
      %2048 = vperm.xlu0 %2047, %v264
      %v2049 = vpop.permute.xlu0 %2048
      %2051 = vset.pattern.permute.xlu0 2
      %2052 = vperm.xlu0 %2051, %v265
      %v2053 = vpop.permute.xlu0 %2052
      %2055 = vset.pattern.permute.xlu0 2
      %2056 = vperm.xlu0 %2055, %v266
      %v2057 = vpop.permute.xlu0 %2056
      %2059 = vset.pattern.permute.xlu0 2
      %2060 = vperm.xlu0 %2059, %v267
      %v2061 = vpop.permute.xlu0 %2060
      %2063 = vset.pattern.permute.xlu0 2
      %2064 = vperm.xlu0 %2063, %v268
      %v2065 = vpop.permute.xlu0 %2064
      %2067 = vset.pattern.permute.xlu0 2
      %2068 = vperm.xlu0 %2067, %v269
      %v2069 = vpop.permute.xlu0 %2068
      %2071 = vset.pattern.permute.xlu0 2
      %2072 = vperm.xlu0 %2071, %v270
      %v2073 = vpop.permute.xlu0 %2072
      %2075 = vset.pattern.permute.xlu0 2
      %2076 = vperm.xlu0 %2075, %v271
      %v2077 = vpop.permute.xlu0 %2076
      %2079 = vset.pattern.permute.xlu0 2
      %2080 = vperm.xlu0 %2079, %v272
      %v2081 = vpop.permute.xlu0 %2080
      %2083 = vset.pattern.permute.xlu0 2
      %2084 = vperm.xlu0 %2083, %v273
      %v2085 = vpop.permute.xlu0 %2084
      %2087 = vset.pattern.permute.xlu0 2
      %2088 = vperm.xlu0 %2087, %v274
      %v2089 = vpop.permute.xlu0 %2088
      %2091 = vset.pattern.permute.xlu0 2
      %2092 = vperm.xlu0 %2091, %v275
      %v2093 = vpop.permute.xlu0 %2092
      %2095 = vset.pattern.permute.xlu0 2
      %2096 = vperm.xlu0 %2095, %v276
      %v2097 = vpop.permute.xlu0 %2096
      %2099 = vset.pattern.permute.xlu0 2
      %2100 = vperm.xlu0 %2099, %v277
      %v2101 = vpop.permute.xlu0 %2100
      %2103 = vset.pattern.permute.xlu0 2
      %2104 = vperm.xlu0 %2103, %v278
      %v2105 = vpop.permute.xlu0 %2104
      %2107 = vset.pattern.permute.xlu0 2
      %2108 = vperm.xlu0 %2107, %v279
      %v2109 = vpop.permute.xlu0 %2108
      %2111 = vset.pattern.permute.xlu0 2
      %2112 = vperm.xlu0 %2111, %v280
      %v2113 = vpop.permute.xlu0 %2112
      %2115 = vset.pattern.permute.xlu0 2
      %2116 = vperm.xlu0 %2115, %v281
      %v2117 = vpop.permute.xlu0 %2116
      %2119 = vset.pattern.permute.xlu0 2
      %2120 = vperm.xlu0 %2119, %v282
      %v2121 = vpop.permute.xlu0 %2120
      %2123 = vset.pattern.permute.xlu0 2
      %2124 = vperm.xlu0 %2123, %v283
      %v2125 = vpop.permute.xlu0 %2124
      %2127 = vset.pattern.permute.xlu0 2
      %2128 = vperm.xlu0 %2127, %v284
      %v2129 = vpop.permute.xlu0 %2128
      %2131 = vset.pattern.permute.xlu0 2
      %2132 = vperm.xlu0 %2131, %v285
      %v2133 = vpop.permute.xlu0 %2132
      %2135 = vset.pattern.permute.xlu0 2
      %2136 = vperm.xlu0 %2135, %v286
      %v2137 = vpop.permute.xlu0 %2136
      %2139 = vset.pattern.permute.xlu0 2
      %2140 = vperm.xlu0 %2139, %v287
      %v2141 = vpop.permute.xlu0 %2140
      %2143 = vset.pattern.permute.xlu0 2
      %2144 = vperm.xlu0 %2143, %v288
      %v2145 = vpop.permute.xlu0 %2144
      %2147 = vset.pattern.permute.xlu0 2
      %2148 = vperm.xlu0 %2147, %v289
      %v2149 = vpop.permute.xlu0 %2148
      %2151 = vset.pattern.permute.xlu0 2
      %2152 = vperm.xlu0 %2151, %v290
      %v2153 = vpop.permute.xlu0 %2152
      %2155 = vset.pattern.permute.xlu0 2
      %2156 = vperm.xlu0 %2155, %v291
      %v2157 = vpop.permute.xlu0 %2156
      %2159 = vset.pattern.permute.xlu0 2
      %2160 = vperm.xlu0 %2159, %v292
      %v2161 = vpop.permute.xlu0 %2160
      %2163 = vset.pattern.permute.xlu0 2
      %2164 = vperm.xlu0 %2163, %v293
      %v2165 = vpop.permute.xlu0 %2164
      %2167 = vset.pattern.permute.xlu0 2
      %2168 = vperm.xlu0 %2167, %v294
      %v2169 = vpop.permute.xlu0 %2168
      %2171 = vset.pattern.permute.xlu0 2
      %2172 = vperm.xlu0 %2171, %v295
      %v2173 = vpop.permute.xlu0 %2172
      %2175 = vset.pattern.permute.xlu0 2
      %2176 = vperm.xlu0 %2175, %v296
      %v2177 = vpop.permute.xlu0 %2176
      %2179 = vset.pattern.permute.xlu0 2
      %2180 = vperm.xlu0 %2179, %v297
      %v2181 = vpop.permute.xlu0 %2180
      %2183 = vset.pattern.permute.xlu0 2
      %2184 = vperm.xlu0 %2183, %v298
      %v2185 = vpop.permute.xlu0 %2184
      %2187 = vset.pattern.permute.xlu0 2
      %2188 = vperm.xlu0 %2187, %v299
      %v2189 = vpop.permute.xlu0 %2188
      %2191 = vset.pattern.permute.xlu0 2
      %2192 = vperm.xlu0 %2191, %v300
      %v2193 = vpop.permute.xlu0 %2192
      %2195 = vset.pattern.permute.xlu0 2
      %2196 = vperm.xlu0 %2195, %v301
      %v2197 = vpop.permute.xlu0 %2196
      %2199 = vset.pattern.permute.xlu0 2
      %2200 = vperm.xlu0 %2199, %v302
      %v2201 = vpop.permute.xlu0 %2200
      %2203 = vset.pattern.permute.xlu0 2
      %2204 = vperm.xlu0 %2203, %v303
      %v2205 = vpop.permute.xlu0 %2204
      %2207 = vset.pattern.permute.xlu0 2
      %2208 = vperm.xlu0 %2207, %v304
      %v2209 = vpop.permute.xlu0 %2208
      %2211 = vset.pattern.permute.xlu0 2
      %2212 = vperm.xlu0 %2211, %v305
      %v2213 = vpop.permute.xlu0 %2212
      %2215 = vset.pattern.permute.xlu0 2
      %2216 = vperm.xlu0 %2215, %v306
      %v2217 = vpop.permute.xlu0 %2216
      %2219 = vset.pattern.permute.xlu0 2
      %2220 = vperm.xlu0 %2219, %v307
      %v2221 = vpop.permute.xlu0 %2220
      %2223 = vset.pattern.permute.xlu0 2
      %2224 = vperm.xlu0 %2223, %v308
      %v2225 = vpop.permute.xlu0 %2224
      %2227 = vset.pattern.permute.xlu0 2
      %2228 = vperm.xlu0 %2227, %v309
      %v2229 = vpop.permute.xlu0 %2228
      %2231 = vset.pattern.permute.xlu0 2
      %2232 = vperm.xlu0 %2231, %v310
      %v2233 = vpop.permute.xlu0 %2232
      %2235 = vset.pattern.permute.xlu0 2
      %2236 = vperm.xlu0 %2235, %v311
      %v2237 = vpop.permute.xlu0 %2236
      %2239 = vset.pattern.permute.xlu0 2
      %2240 = vperm.xlu0 %2239, %v312
      %v2241 = vpop.permute.xlu0 %2240
      %2243 = vset.pattern.permute.xlu0 2
      %2244 = vperm.xlu0 %2243, %v313
      %v2245 = vpop.permute.xlu0 %2244
      %2247 = vset.pattern.permute.xlu0 2
      %2248 = vperm.xlu0 %2247, %v314
      %v2249 = vpop.permute.xlu0 %2248
      %2251 = vset.pattern.permute.xlu0 2
      %2252 = vperm.xlu0 %2251, %v315
      %v2253 = vpop.permute.xlu0 %2252
      %2255 = vset.pattern.permute.xlu0 2
      %2256 = vperm.xlu0 %2255, %v316
      %v2257 = vpop.permute.xlu0 %2256
      %2259 = vset.pattern.permute.xlu0 2
      %2260 = vperm.xlu0 %2259, %v317
      %v2261 = vpop.permute.xlu0 %2260
      %2263 = vset.pattern.permute.xlu0 2
      %2264 = vperm.xlu0 %2263, %v318
      %v2265 = vpop.permute.xlu0 %2264
      %2267 = vset.pattern.permute.xlu0 2
      %2268 = vperm.xlu0 %2267, %v319
      %v2269 = vpop.permute.xlu0 %2268
      %2271 = vset.pattern.permute.xlu0 2
      %2272 = vperm.xlu0 %2271, %v320
      %v2273 = vpop.permute.xlu0 %2272
      %2275 = vset.pattern.permute.xlu0 2
      %2276 = vperm.xlu0 %2275, %v321
      %v2277 = vpop.permute.xlu0 %2276
      %2279 = vset.pattern.permute.xlu0 2
      %2280 = vperm.xlu0 %2279, %v322
      %v2281 = vpop.permute.xlu0 %2280
      %2283 = vset.pattern.permute.xlu0 2
      %2284 = vperm.xlu0 %2283, %v323
      %v2285 = vpop.permute.xlu0 %2284
      %2287 = vset.pattern.permute.xlu0 2
      %2288 = vperm.xlu0 %2287, %v324
      %v2289 = vpop.permute.xlu0 %2288
      %2291 = vset.pattern.permute.xlu0 2
      %2292 = vperm.xlu0 %2291, %v325
      %v2293 = vpop.permute.xlu0 %2292
      %2295 = vset.pattern.permute.xlu0 2
      %2296 = vperm.xlu0 %2295, %v326
      %v2297 = vpop.permute.xlu0 %2296
      %2299 = vset.pattern.permute.xlu0 2
      %2300 = vperm.xlu0 %2299, %v327
      %v2301 = vpop.permute.xlu0 %2300
      %2303 = vset.pattern.permute.xlu0 2
      %2304 = vperm.xlu0 %2303, %v328
      %v2305 = vpop.permute.xlu0 %2304
      %2307 = vset.pattern.permute.xlu0 2
      %2308 = vperm.xlu0 %2307, %v329
      %v2309 = vpop.permute.xlu0 %2308
      %2311 = vset.pattern.permute.xlu0 2
      %2312 = vperm.xlu0 %2311, %v330
      %v2313 = vpop.permute.xlu0 %2312
      %2315 = vset.pattern.permute.xlu0 2
      %2316 = vperm.xlu0 %2315, %v331
      %v2317 = vpop.permute.xlu0 %2316
      %2319 = vset.pattern.permute.xlu0 2
      %2320 = vperm.xlu0 %2319, %v332
      %v2321 = vpop.permute.xlu0 %2320
      %2323 = vset.pattern.permute.xlu0 2
      %2324 = vperm.xlu0 %2323, %v333
      %v2325 = vpop.permute.xlu0 %2324
      %2327 = vset.pattern.permute.xlu0 2
      %2328 = vperm.xlu0 %2327, %v334
      %v2329 = vpop.permute.xlu0 %2328
      %2331 = vset.pattern.permute.xlu0 2
      %2332 = vperm.xlu0 %2331, %v335
      %v2333 = vpop.permute.xlu0 %2332
      %2335 = vset.pattern.permute.xlu0 2
      %2336 = vperm.xlu0 %2335, %v336
      %v2337 = vpop.permute.xlu0 %2336
      %2339 = vset.pattern.permute.xlu0 2
      %2340 = vperm.xlu0 %2339, %v337
      %v2341 = vpop.permute.xlu0 %2340
      %2343 = vset.pattern.permute.xlu0 2
      %2344 = vperm.xlu0 %2343, %v338
      %v2345 = vpop.permute.xlu0 %2344
      %2347 = vset.pattern.permute.xlu0 2
      %2348 = vperm.xlu0 %2347, %v339
      %v2349 = vpop.permute.xlu0 %2348
      %2351 = vset.pattern.permute.xlu0 2
      %2352 = vperm.xlu0 %2351, %v340
      %v2353 = vpop.permute.xlu0 %2352
      %2355 = vset.pattern.permute.xlu0 2
      %2356 = vperm.xlu0 %2355, %v341
      %v2357 = vpop.permute.xlu0 %2356
      %2359 = vset.pattern.permute.xlu0 2
      %2360 = vperm.xlu0 %2359, %v342
      %v2361 = vpop.permute.xlu0 %2360
      %2363 = vset.pattern.permute.xlu0 2
      %2364 = vperm.xlu0 %2363, %v343
      %v2365 = vpop.permute.xlu0 %2364
      %2367 = vset.pattern.permute.xlu0 2
      %2368 = vperm.xlu0 %2367, %v344
      %v2369 = vpop.permute.xlu0 %2368
      %2371 = vset.pattern.permute.xlu0 2
      %2372 = vperm.xlu0 %2371, %v345
      %v2373 = vpop.permute.xlu0 %2372
      %2375 = vset.pattern.permute.xlu0 2
      %2376 = vperm.xlu0 %2375, %v346
      %v2377 = vpop.permute.xlu0 %2376
      %2379 = vset.pattern.permute.xlu0 2
      %2380 = vperm.xlu0 %2379, %v347
      %v2381 = vpop.permute.xlu0 %2380
      %2383 = vset.pattern.permute.xlu0 2
      %2384 = vperm.xlu0 %2383, %v348
      %v2385 = vpop.permute.xlu0 %2384
      %2387 = vset.pattern.permute.xlu0 2
      %2388 = vperm.xlu0 %2387, %v349
      %v2389 = vpop.permute.xlu0 %2388
      %2391 = vset.pattern.permute.xlu0 2
      %2392 = vperm.xlu0 %2391, %v350
      %v2393 = vpop.permute.xlu0 %2392
      %2395 = vset.pattern.permute.xlu0 2
      %2396 = vperm.xlu0 %2395, %v351
      %v2397 = vpop.permute.xlu0 %2396
      %2399 = vset.pattern.permute.xlu0 2
      %2400 = vperm.xlu0 %2399, %v352
      %v2401 = vpop.permute.xlu0 %2400
      %2403 = vset.pattern.permute.xlu0 2
      %2404 = vperm.xlu0 %2403, %v353
      %v2405 = vpop.permute.xlu0 %2404
      %2407 = vset.pattern.permute.xlu0 2
      %2408 = vperm.xlu0 %2407, %v354
      %v2409 = vpop.permute.xlu0 %2408
      %2411 = vset.pattern.permute.xlu0 2
      %2412 = vperm.xlu0 %2411, %v355
      %v2413 = vpop.permute.xlu0 %2412
      %v2415 = vlaneseq
      %v2416 = vshrl.u32 %v2415, 7
      %v2417 = vsub.s32 2, %v2416
      %v2418 = vrot.slane %v357, %v2417
      %v2419 = vmul.f32 %v1905, %v2418
      %v2420 = vmul.f32 %v1909, %v2418
      %v2421 = vmul.f32 %v1913, %v2418
      %v2422 = vmul.f32 %v1917, %v2418
      %v2423 = vmul.f32 %v1921, %v2418
      %v2424 = vmul.f32 %v1925, %v2418
      %v2425 = vmul.f32 %v1929, %v2418
      %v2426 = vmul.f32 %v1933, %v2418
      %v2427 = vmul.f32 %v1937, %v2418
      %v2428 = vmul.f32 %v1941, %v2418
      %v2429 = vmul.f32 %v1945, %v2418
      %v2430 = vmul.f32 %v1949, %v2418
      %v2431 = vmul.f32 %v1953, %v2418
      %v2432 = vmul.f32 %v1957, %v2418
      %v2433 = vmul.f32 %v1961, %v2418
      %v2434 = vmul.f32 %v1965, %v2418
      %v2435 = vmul.f32 %v1969, %v2418
      %v2436 = vmul.f32 %v1973, %v2418
      %v2437 = vmul.f32 %v1977, %v2418
      %v2438 = vmul.f32 %v1981, %v2418
      %v2439 = vmul.f32 %v1985, %v2418
      %v2440 = vmul.f32 %v1989, %v2418
      %v2441 = vmul.f32 %v1993, %v2418
      %v2442 = vmul.f32 %v1997, %v2418
      %v2443 = vmul.f32 %v2001, %v2418
      %v2444 = vmul.f32 %v2005, %v2418
      %v2445 = vmul.f32 %v2009, %v2418
      %v2446 = vmul.f32 %v2013, %v2418
      %v2447 = vmul.f32 %v2017, %v2418
      %v2448 = vmul.f32 %v2021, %v2418
      %v2449 = vmul.f32 %v2025, %v2418
      %v2450 = vmul.f32 %v2029, %v2418
      %v2451 = vmul.f32 %v2033, %v2418
      %v2452 = vmul.f32 %v2037, %v2418
      %v2453 = vmul.f32 %v2041, %v2418
      %v2454 = vmul.f32 %v2045, %v2418
      %v2455 = vmul.f32 %v2049, %v2418
      %v2456 = vmul.f32 %v2053, %v2418
      %v2457 = vmul.f32 %v2057, %v2418
      %v2458 = vmul.f32 %v2061, %v2418
      %v2459 = vmul.f32 %v2065, %v2418
      %v2460 = vmul.f32 %v2069, %v2418
      %v2461 = vmul.f32 %v2073, %v2418
      %v2462 = vmul.f32 %v2077, %v2418
      %v2463 = vmul.f32 %v2081, %v2418
      %v2464 = vmul.f32 %v2085, %v2418
      %v2465 = vmul.f32 %v2089, %v2418
      %v2466 = vmul.f32 %v2093, %v2418
      %v2467 = vmul.f32 %v2097, %v2418
      %v2468 = vmul.f32 %v2101, %v2418
      %v2469 = vmul.f32 %v2105, %v2418
      %v2470 = vmul.f32 %v2109, %v2418
      %v2471 = vmul.f32 %v2113, %v2418
      %v2472 = vmul.f32 %v2117, %v2418
      %v2473 = vmul.f32 %v2121, %v2418
      %v2474 = vmul.f32 %v2125, %v2418
      %v2475 = vmul.f32 %v2129, %v2418
      %v2476 = vmul.f32 %v2133, %v2418
      %v2477 = vmul.f32 %v2137, %v2418
      %v2478 = vmul.f32 %v2141, %v2418
      %v2479 = vmul.f32 %v2145, %v2418
      %v2480 = vmul.f32 %v2149, %v2418
      %v2481 = vmul.f32 %v2153, %v2418
      %v2482 = vmul.f32 %v2157, %v2418
      %v2483 = vmul.f32 %v2161, %v2418
      %v2484 = vmul.f32 %v2165, %v2418
      %v2485 = vmul.f32 %v2169, %v2418
      %v2486 = vmul.f32 %v2173, %v2418
      %v2487 = vmul.f32 %v2177, %v2418
      %v2488 = vmul.f32 %v2181, %v2418
      %v2489 = vmul.f32 %v2185, %v2418
      %v2490 = vmul.f32 %v2189, %v2418
      %v2491 = vmul.f32 %v2193, %v2418
      %v2492 = vmul.f32 %v2197, %v2418
      %v2493 = vmul.f32 %v2201, %v2418
      %v2494 = vmul.f32 %v2205, %v2418
      %v2495 = vmul.f32 %v2209, %v2418
      %v2496 = vmul.f32 %v2213, %v2418
      %v2497 = vmul.f32 %v2217, %v2418
      %v2498 = vmul.f32 %v2221, %v2418
      %v2499 = vmul.f32 %v2225, %v2418
      %v2500 = vmul.f32 %v2229, %v2418
      %v2501 = vmul.f32 %v2233, %v2418
      %v2502 = vmul.f32 %v2237, %v2418
      %v2503 = vmul.f32 %v2241, %v2418
      %v2504 = vmul.f32 %v2245, %v2418
      %v2505 = vmul.f32 %v2249, %v2418
      %v2506 = vmul.f32 %v2253, %v2418
      %v2507 = vmul.f32 %v2257, %v2418
      %v2508 = vmul.f32 %v2261, %v2418
      %v2509 = vmul.f32 %v2265, %v2418
      %v2510 = vmul.f32 %v2269, %v2418
      %v2511 = vmul.f32 %v2273, %v2418
      %v2512 = vmul.f32 %v2277, %v2418
      %v2513 = vmul.f32 %v2281, %v2418
      %v2514 = vmul.f32 %v2285, %v2418
      %v2515 = vmul.f32 %v2289, %v2418
      %v2516 = vmul.f32 %v2293, %v2418
      %v2517 = vmul.f32 %v2297, %v2418
      %v2518 = vmul.f32 %v2301, %v2418
      %v2519 = vmul.f32 %v2305, %v2418
      %v2520 = vmul.f32 %v2309, %v2418
      %v2521 = vmul.f32 %v2313, %v2418
      %v2522 = vmul.f32 %v2317, %v2418
      %v2523 = vmul.f32 %v2321, %v2418
      %v2524 = vmul.f32 %v2325, %v2418
      %v2525 = vmul.f32 %v2329, %v2418
      %v2526 = vmul.f32 %v2333, %v2418
      %v2527 = vmul.f32 %v2337, %v2418
      %v2528 = vmul.f32 %v2341, %v2418
      %v2529 = vmul.f32 %v2345, %v2418
      %v2530 = vmul.f32 %v2349, %v2418
      %v2531 = vmul.f32 %v2353, %v2418
      %v2532 = vmul.f32 %v2357, %v2418
      %v2533 = vmul.f32 %v2361, %v2418
      %v2534 = vmul.f32 %v2365, %v2418
      %v2535 = vmul.f32 %v2369, %v2418
      %v2536 = vmul.f32 %v2373, %v2418
      %v2537 = vmul.f32 %v2377, %v2418
      %v2538 = vmul.f32 %v2381, %v2418
      %v2539 = vmul.f32 %v2385, %v2418
      %v2540 = vmul.f32 %v2389, %v2418
      %v2541 = vmul.f32 %v2393, %v2418
      %v2542 = vmul.f32 %v2397, %v2418
      %v2543 = vmul.f32 %v2401, %v2418
      %v2544 = vmul.f32 %v2405, %v2418
      %v2545 = vmul.f32 %v2409, %v2418
      %v2546 = vmul.f32 %v2413, %v2418
      %v2547 = vadd.f32 %v1775, %v2419
      %v2548 = vadd.f32 %v1776, %v2420
      %v2549 = vadd.f32 %v1777, %v2421
      %v2550 = vadd.f32 %v1778, %v2422
      %v2551 = vadd.f32 %v1779, %v2423
      %v2552 = vadd.f32 %v1780, %v2424
      %v2553 = vadd.f32 %v1781, %v2425
      %v2554 = vadd.f32 %v1782, %v2426
      %v2555 = vadd.f32 %v1783, %v2427
      %v2556 = vadd.f32 %v1784, %v2428
      %v2557 = vadd.f32 %v1785, %v2429
      %v2558 = vadd.f32 %v1786, %v2430
      %v2559 = vadd.f32 %v1787, %v2431
      %v2560 = vadd.f32 %v1788, %v2432
      %v2561 = vadd.f32 %v1789, %v2433
      %v2562 = vadd.f32 %v1790, %v2434
      %v2563 = vadd.f32 %v1791, %v2435
      %v2564 = vadd.f32 %v1792, %v2436
      %v2565 = vadd.f32 %v1793, %v2437
      %v2566 = vadd.f32 %v1794, %v2438
      %v2567 = vadd.f32 %v1795, %v2439
      %v2568 = vadd.f32 %v1796, %v2440
      %v2569 = vadd.f32 %v1797, %v2441
      %v2570 = vadd.f32 %v1798, %v2442
      %v2571 = vadd.f32 %v1799, %v2443
      %v2572 = vadd.f32 %v1800, %v2444
      %v2573 = vadd.f32 %v1801, %v2445
      %v2574 = vadd.f32 %v1802, %v2446
      %v2575 = vadd.f32 %v1803, %v2447
      %v2576 = vadd.f32 %v1804, %v2448
      %v2577 = vadd.f32 %v1805, %v2449
      %v2578 = vadd.f32 %v1806, %v2450
      %v2579 = vadd.f32 %v1807, %v2451
      %v2580 = vadd.f32 %v1808, %v2452
      %v2581 = vadd.f32 %v1809, %v2453
      %v2582 = vadd.f32 %v1810, %v2454
      %v2583 = vadd.f32 %v1811, %v2455
      %v2584 = vadd.f32 %v1812, %v2456
      %v2585 = vadd.f32 %v1813, %v2457
      %v2586 = vadd.f32 %v1814, %v2458
      %v2587 = vadd.f32 %v1815, %v2459
      %v2588 = vadd.f32 %v1816, %v2460
      %v2589 = vadd.f32 %v1817, %v2461
      %v2590 = vadd.f32 %v1818, %v2462
      %v2591 = vadd.f32 %v1819, %v2463
      %v2592 = vadd.f32 %v1820, %v2464
      %v2593 = vadd.f32 %v1821, %v2465
      %v2594 = vadd.f32 %v1822, %v2466
      %v2595 = vadd.f32 %v1823, %v2467
      %v2596 = vadd.f32 %v1824, %v2468
      %v2597 = vadd.f32 %v1825, %v2469
      %v2598 = vadd.f32 %v1826, %v2470
      %v2599 = vadd.f32 %v1827, %v2471
      %v2600 = vadd.f32 %v1828, %v2472
      %v2601 = vadd.f32 %v1829, %v2473
      %v2602 = vadd.f32 %v1830, %v2474
      %v2603 = vadd.f32 %v1831, %v2475
      %v2604 = vadd.f32 %v1832, %v2476
      %v2605 = vadd.f32 %v1833, %v2477
      %v2606 = vadd.f32 %v1834, %v2478
      %v2607 = vadd.f32 %v1835, %v2479
      %v2608 = vadd.f32 %v1836, %v2480
      %v2609 = vadd.f32 %v1837, %v2481
      %v2610 = vadd.f32 %v1838, %v2482
      %v2611 = vadd.f32 %v1839, %v2483
      %v2612 = vadd.f32 %v1840, %v2484
      %v2613 = vadd.f32 %v1841, %v2485
      %v2614 = vadd.f32 %v1842, %v2486
      %v2615 = vadd.f32 %v1843, %v2487
      %v2616 = vadd.f32 %v1844, %v2488
      %v2617 = vadd.f32 %v1845, %v2489
      %v2618 = vadd.f32 %v1846, %v2490
      %v2619 = vadd.f32 %v1847, %v2491
      %v2620 = vadd.f32 %v1848, %v2492
      %v2621 = vadd.f32 %v1849, %v2493
      %v2622 = vadd.f32 %v1850, %v2494
      %v2623 = vadd.f32 %v1851, %v2495
      %v2624 = vadd.f32 %v1852, %v2496
      %v2625 = vadd.f32 %v1853, %v2497
      %v2626 = vadd.f32 %v1854, %v2498
      %v2627 = vadd.f32 %v1855, %v2499
      %v2628 = vadd.f32 %v1856, %v2500
      %v2629 = vadd.f32 %v1857, %v2501
      %v2630 = vadd.f32 %v1858, %v2502
      %v2631 = vadd.f32 %v1859, %v2503
      %v2632 = vadd.f32 %v1860, %v2504
      %v2633 = vadd.f32 %v1861, %v2505
      %v2634 = vadd.f32 %v1862, %v2506
      %v2635 = vadd.f32 %v1863, %v2507
      %v2636 = vadd.f32 %v1864, %v2508
      %v2637 = vadd.f32 %v1865, %v2509
      %v2638 = vadd.f32 %v1866, %v2510
      %v2639 = vadd.f32 %v1867, %v2511
      %v2640 = vadd.f32 %v1868, %v2512
      %v2641 = vadd.f32 %v1869, %v2513
      %v2642 = vadd.f32 %v1870, %v2514
      %v2643 = vadd.f32 %v1871, %v2515
      %v2644 = vadd.f32 %v1872, %v2516
      %v2645 = vadd.f32 %v1873, %v2517
      %v2646 = vadd.f32 %v1874, %v2518
      %v2647 = vadd.f32 %v1875, %v2519
      %v2648 = vadd.f32 %v1876, %v2520
      %v2649 = vadd.f32 %v1877, %v2521
      %v2650 = vadd.f32 %v1878, %v2522
      %v2651 = vadd.f32 %v1879, %v2523
      %v2652 = vadd.f32 %v1880, %v2524
      %v2653 = vadd.f32 %v1881, %v2525
      %v2654 = vadd.f32 %v1882, %v2526
      %v2655 = vadd.f32 %v1883, %v2527
      %v2656 = vadd.f32 %v1884, %v2528
      %v2657 = vadd.f32 %v1885, %v2529
      %v2658 = vadd.f32 %v1886, %v2530
      %v2659 = vadd.f32 %v1887, %v2531
      %v2660 = vadd.f32 %v1888, %v2532
      %v2661 = vadd.f32 %v1889, %v2533
      %v2662 = vadd.f32 %v1890, %v2534
      %v2663 = vadd.f32 %v1891, %v2535
      %v2664 = vadd.f32 %v1892, %v2536
      %v2665 = vadd.f32 %v1893, %v2537
      %v2666 = vadd.f32 %v1894, %v2538
      %v2667 = vadd.f32 %v1895, %v2539
      %v2668 = vadd.f32 %v1896, %v2540
      %v2669 = vadd.f32 %v1897, %v2541
      %v2670 = vadd.f32 %v1898, %v2542
      %v2671 = vadd.f32 %v1899, %v2543
      %v2672 = vadd.f32 %v1900, %v2544
      %v2673 = vadd.f32 %v1901, %v2545
      %v2674 = vadd.f32 %v1902, %v2546
      %v2675 = vlaneseq
      %v2676 = vshrl.u32 %v2675, 7
      %v2677 = vsub.s32 0, %v2676
      %v2678 = vrot.slane %v356, %v2677
      %v2679 = vadd.f32 %v2547, %v2678
      %v2680 = vadd.f32 %v2548, %v2678
      %v2681 = vadd.f32 %v2549, %v2678
      %v2682 = vadd.f32 %v2550, %v2678
      %v2683 = vadd.f32 %v2551, %v2678
      %v2684 = vadd.f32 %v2552, %v2678
      %v2685 = vadd.f32 %v2553, %v2678
      %v2686 = vadd.f32 %v2554, %v2678
      %v2687 = vadd.f32 %v2555, %v2678
      %v2688 = vadd.f32 %v2556, %v2678
      %v2689 = vadd.f32 %v2557, %v2678
      %v2690 = vadd.f32 %v2558, %v2678
      %v2691 = vadd.f32 %v2559, %v2678
      %v2692 = vadd.f32 %v2560, %v2678
      %v2693 = vadd.f32 %v2561, %v2678
      %v2694 = vadd.f32 %v2562, %v2678
      %v2695 = vadd.f32 %v2563, %v2678
      %v2696 = vadd.f32 %v2564, %v2678
      %v2697 = vadd.f32 %v2565, %v2678
      %v2698 = vadd.f32 %v2566, %v2678
      %v2699 = vadd.f32 %v2567, %v2678
      %v2700 = vadd.f32 %v2568, %v2678
      %v2701 = vadd.f32 %v2569, %v2678
      %v2702 = vadd.f32 %v2570, %v2678
      %v2703 = vadd.f32 %v2571, %v2678
      %v2704 = vadd.f32 %v2572, %v2678
      %v2705 = vadd.f32 %v2573, %v2678
      %v2706 = vadd.f32 %v2574, %v2678
      %v2707 = vadd.f32 %v2575, %v2678
      %v2708 = vadd.f32 %v2576, %v2678
      %v2709 = vadd.f32 %v2577, %v2678
      %v2710 = vadd.f32 %v2578, %v2678
      %v2711 = vadd.f32 %v2579, %v2678
      %v2712 = vadd.f32 %v2580, %v2678
      %v2713 = vadd.f32 %v2581, %v2678
      %v2714 = vadd.f32 %v2582, %v2678
      %v2715 = vadd.f32 %v2583, %v2678
      %v2716 = vadd.f32 %v2584, %v2678
      %v2717 = vadd.f32 %v2585, %v2678
      %v2718 = vadd.f32 %v2586, %v2678
      %v2719 = vadd.f32 %v2587, %v2678
      %v2720 = vadd.f32 %v2588, %v2678
      %v2721 = vadd.f32 %v2589, %v2678
      %v2722 = vadd.f32 %v2590, %v2678
      %v2723 = vadd.f32 %v2591, %v2678
      %v2724 = vadd.f32 %v2592, %v2678
      %v2725 = vadd.f32 %v2593, %v2678
      %v2726 = vadd.f32 %v2594, %v2678
      %v2727 = vadd.f32 %v2595, %v2678
      %v2728 = vadd.f32 %v2596, %v2678
      %v2729 = vadd.f32 %v2597, %v2678
      %v2730 = vadd.f32 %v2598, %v2678
      %v2731 = vadd.f32 %v2599, %v2678
      %v2732 = vadd.f32 %v2600, %v2678
      %v2733 = vadd.f32 %v2601, %v2678
      %v2734 = vadd.f32 %v2602, %v2678
      %v2735 = vadd.f32 %v2603, %v2678
      %v2736 = vadd.f32 %v2604, %v2678
      %v2737 = vadd.f32 %v2605, %v2678
      %v2738 = vadd.f32 %v2606, %v2678
      %v2739 = vadd.f32 %v2607, %v2678
      %v2740 = vadd.f32 %v2608, %v2678
      %v2741 = vadd.f32 %v2609, %v2678
      %v2742 = vadd.f32 %v2610, %v2678
      %v2743 = vadd.f32 %v2611, %v2678
      %v2744 = vadd.f32 %v2612, %v2678
      %v2745 = vadd.f32 %v2613, %v2678
      %v2746 = vadd.f32 %v2614, %v2678
      %v2747 = vadd.f32 %v2615, %v2678
      %v2748 = vadd.f32 %v2616, %v2678
      %v2749 = vadd.f32 %v2617, %v2678
      %v2750 = vadd.f32 %v2618, %v2678
      %v2751 = vadd.f32 %v2619, %v2678
      %v2752 = vadd.f32 %v2620, %v2678
      %v2753 = vadd.f32 %v2621, %v2678
      %v2754 = vadd.f32 %v2622, %v2678
      %v2755 = vadd.f32 %v2623, %v2678
      %v2756 = vadd.f32 %v2624, %v2678
      %v2757 = vadd.f32 %v2625, %v2678
      %v2758 = vadd.f32 %v2626, %v2678
      %v2759 = vadd.f32 %v2627, %v2678
      %v2760 = vadd.f32 %v2628, %v2678
      %v2761 = vadd.f32 %v2629, %v2678
      %v2762 = vadd.f32 %v2630, %v2678
      %v2763 = vadd.f32 %v2631, %v2678
      %v2764 = vadd.f32 %v2632, %v2678
      %v2765 = vadd.f32 %v2633, %v2678
      %v2766 = vadd.f32 %v2634, %v2678
      %v2767 = vadd.f32 %v2635, %v2678
      %v2768 = vadd.f32 %v2636, %v2678
      %v2769 = vadd.f32 %v2637, %v2678
      %v2770 = vadd.f32 %v2638, %v2678
      %v2771 = vadd.f32 %v2639, %v2678
      %v2772 = vadd.f32 %v2640, %v2678
      %v2773 = vadd.f32 %v2641, %v2678
      %v2774 = vadd.f32 %v2642, %v2678
      %v2775 = vadd.f32 %v2643, %v2678
      %v2776 = vadd.f32 %v2644, %v2678
      %v2777 = vadd.f32 %v2645, %v2678
      %v2778 = vadd.f32 %v2646, %v2678
      %v2779 = vadd.f32 %v2647, %v2678
      %v2780 = vadd.f32 %v2648, %v2678
      %v2781 = vadd.f32 %v2649, %v2678
      %v2782 = vadd.f32 %v2650, %v2678
      %v2783 = vadd.f32 %v2651, %v2678
      %v2784 = vadd.f32 %v2652, %v2678
      %v2785 = vadd.f32 %v2653, %v2678
      %v2786 = vadd.f32 %v2654, %v2678
      %v2787 = vadd.f32 %v2655, %v2678
      %v2788 = vadd.f32 %v2656, %v2678
      %v2789 = vadd.f32 %v2657, %v2678
      %v2790 = vadd.f32 %v2658, %v2678
      %v2791 = vadd.f32 %v2659, %v2678
      %v2792 = vadd.f32 %v2660, %v2678
      %v2793 = vadd.f32 %v2661, %v2678
      %v2794 = vadd.f32 %v2662, %v2678
      %v2795 = vadd.f32 %v2663, %v2678
      %v2796 = vadd.f32 %v2664, %v2678
      %v2797 = vadd.f32 %v2665, %v2678
      %v2798 = vadd.f32 %v2666, %v2678
      %v2799 = vadd.f32 %v2667, %v2678
      %v2800 = vadd.f32 %v2668, %v2678
      %v2801 = vadd.f32 %v2669, %v2678
      %v2802 = vadd.f32 %v2670, %v2678
      %v2803 = vadd.f32 %v2671, %v2678
      %v2804 = vadd.f32 %v2672, %v2678
      %v2805 = vadd.f32 %v2673, %v2678
      %v2806 = vadd.f32 %v2674, %v2678
      %v2807 = vmul.f32 %v2679, 100.0
      %v2808 = vmul.f32 %v2680, 100.0
      %v2809 = vmul.f32 %v2681, 100.0
      %v2810 = vmul.f32 %v2682, 100.0
      %v2811 = vmul.f32 %v2683, 100.0
      %v2812 = vmul.f32 %v2684, 100.0
      %v2813 = vmul.f32 %v2685, 100.0
      %v2814 = vmul.f32 %v2686, 100.0
      %v2815 = vmul.f32 %v2687, 100.0
      %v2816 = vmul.f32 %v2688, 100.0
      %v2817 = vmul.f32 %v2689, 100.0
      %v2818 = vmul.f32 %v2690, 100.0
      %v2819 = vmul.f32 %v2691, 100.0
      %v2820 = vmul.f32 %v2692, 100.0
      %v2821 = vmul.f32 %v2693, 100.0
      %v2822 = vmul.f32 %v2694, 100.0
      %v2823 = vmul.f32 %v2695, 100.0
      %v2824 = vmul.f32 %v2696, 100.0
      %v2825 = vmul.f32 %v2697, 100.0
      %v2826 = vmul.f32 %v2698, 100.0
      %v2827 = vmul.f32 %v2699, 100.0
      %v2828 = vmul.f32 %v2700, 100.0
      %v2829 = vmul.f32 %v2701, 100.0
      %v2830 = vmul.f32 %v2702, 100.0
      %v2831 = vmul.f32 %v2703, 100.0
      %v2832 = vmul.f32 %v2704, 100.0
      %v2833 = vmul.f32 %v2705, 100.0
      %v2834 = vmul.f32 %v2706, 100.0
      %v2835 = vmul.f32 %v2707, 100.0
      %v2836 = vmul.f32 %v2708, 100.0
      %v2837 = vmul.f32 %v2709, 100.0
      %v2838 = vmul.f32 %v2710, 100.0
      %v2839 = vmul.f32 %v2711, 100.0
      %v2840 = vmul.f32 %v2712, 100.0
      %v2841 = vmul.f32 %v2713, 100.0
      %v2842 = vmul.f32 %v2714, 100.0
      %v2843 = vmul.f32 %v2715, 100.0
      %v2844 = vmul.f32 %v2716, 100.0
      %v2845 = vmul.f32 %v2717, 100.0
      %v2846 = vmul.f32 %v2718, 100.0
      %v2847 = vmul.f32 %v2719, 100.0
      %v2848 = vmul.f32 %v2720, 100.0
      %v2849 = vmul.f32 %v2721, 100.0
      %v2850 = vmul.f32 %v2722, 100.0
      %v2851 = vmul.f32 %v2723, 100.0
      %v2852 = vmul.f32 %v2724, 100.0
      %v2853 = vmul.f32 %v2725, 100.0
      %v2854 = vmul.f32 %v2726, 100.0
      %v2855 = vmul.f32 %v2727, 100.0
      %v2856 = vmul.f32 %v2728, 100.0
      %v2857 = vmul.f32 %v2729, 100.0
      %v2858 = vmul.f32 %v2730, 100.0
      %v2859 = vmul.f32 %v2731, 100.0
      %v2860 = vmul.f32 %v2732, 100.0
      %v2861 = vmul.f32 %v2733, 100.0
      %v2862 = vmul.f32 %v2734, 100.0
      %v2863 = vmul.f32 %v2735, 100.0
      %v2864 = vmul.f32 %v2736, 100.0
      %v2865 = vmul.f32 %v2737, 100.0
      %v2866 = vmul.f32 %v2738, 100.0
      %v2867 = vmul.f32 %v2739, 100.0
      %v2868 = vmul.f32 %v2740, 100.0
      %v2869 = vmul.f32 %v2741, 100.0
      %v2870 = vmul.f32 %v2742, 100.0
      %v2871 = vmul.f32 %v2743, 100.0
      %v2872 = vmul.f32 %v2744, 100.0
      %v2873 = vmul.f32 %v2745, 100.0
      %v2874 = vmul.f32 %v2746, 100.0
      %v2875 = vmul.f32 %v2747, 100.0
      %v2876 = vmul.f32 %v2748, 100.0
      %v2877 = vmul.f32 %v2749, 100.0
      %v2878 = vmul.f32 %v2750, 100.0
      %v2879 = vmul.f32 %v2751, 100.0
      %v2880 = vmul.f32 %v2752, 100.0
      %v2881 = vmul.f32 %v2753, 100.0
      %v2882 = vmul.f32 %v2754, 100.0
      %v2883 = vmul.f32 %v2755, 100.0
      %v2884 = vmul.f32 %v2756, 100.0
      %v2885 = vmul.f32 %v2757, 100.0
      %v2886 = vmul.f32 %v2758, 100.0
      %v2887 = vmul.f32 %v2759, 100.0
      %v2888 = vmul.f32 %v2760, 100.0
      %v2889 = vmul.f32 %v2761, 100.0
      %v2890 = vmul.f32 %v2762, 100.0
      %v2891 = vmul.f32 %v2763, 100.0
      %v2892 = vmul.f32 %v2764, 100.0
      %v2893 = vmul.f32 %v2765, 100.0
      %v2894 = vmul.f32 %v2766, 100.0
      %v2895 = vmul.f32 %v2767, 100.0
      %v2896 = vmul.f32 %v2768, 100.0
      %v2897 = vmul.f32 %v2769, 100.0
      %v2898 = vmul.f32 %v2770, 100.0
      %v2899 = vmul.f32 %v2771, 100.0
      %v2900 = vmul.f32 %v2772, 100.0
      %v2901 = vmul.f32 %v2773, 100.0
      %v2902 = vmul.f32 %v2774, 100.0
      %v2903 = vmul.f32 %v2775, 100.0
      %v2904 = vmul.f32 %v2776, 100.0
      %v2905 = vmul.f32 %v2777, 100.0
      %v2906 = vmul.f32 %v2778, 100.0
      %v2907 = vmul.f32 %v2779, 100.0
      %v2908 = vmul.f32 %v2780, 100.0
      %v2909 = vmul.f32 %v2781, 100.0
      %v2910 = vmul.f32 %v2782, 100.0
      %v2911 = vmul.f32 %v2783, 100.0
      %v2912 = vmul.f32 %v2784, 100.0
      %v2913 = vmul.f32 %v2785, 100.0
      %v2914 = vmul.f32 %v2786, 100.0
      %v2915 = vmul.f32 %v2787, 100.0
      %v2916 = vmul.f32 %v2788, 100.0
      %v2917 = vmul.f32 %v2789, 100.0
      %v2918 = vmul.f32 %v2790, 100.0
      %v2919 = vmul.f32 %v2791, 100.0
      %v2920 = vmul.f32 %v2792, 100.0
      %v2921 = vmul.f32 %v2793, 100.0
      %v2922 = vmul.f32 %v2794, 100.0
      %v2923 = vmul.f32 %v2795, 100.0
      %v2924 = vmul.f32 %v2796, 100.0
      %v2925 = vmul.f32 %v2797, 100.0
      %v2926 = vmul.f32 %v2798, 100.0
      %v2927 = vmul.f32 %v2799, 100.0
      %v2928 = vmul.f32 %v2800, 100.0
      %v2929 = vmul.f32 %v2801, 100.0
      %v2930 = vmul.f32 %v2802, 100.0
      %v2931 = vmul.f32 %v2803, 100.0
      %v2932 = vmul.f32 %v2804, 100.0
      %v2933 = vmul.f32 %v2805, 100.0
      %v2934 = vmul.f32 %v2806, 100.0
      %v2935 = vmax.f32 %v2807, 0.0
      %v2936 = vmax.f32 %v2808, 0.0
      %v2937 = vmax.f32 %v2809, 0.0
      %v2938 = vmax.f32 %v2810, 0.0
      %v2939 = vmax.f32 %v2811, 0.0
      %v2940 = vmax.f32 %v2812, 0.0
      %v2941 = vmax.f32 %v2813, 0.0
      %v2942 = vmax.f32 %v2814, 0.0
      %v2943 = vmax.f32 %v2815, 0.0
      %v2944 = vmax.f32 %v2816, 0.0
      %v2945 = vmax.f32 %v2817, 0.0
      %v2946 = vmax.f32 %v2818, 0.0
      %v2947 = vmax.f32 %v2819, 0.0
      %v2948 = vmax.f32 %v2820, 0.0
      %v2949 = vmax.f32 %v2821, 0.0
      %v2950 = vmax.f32 %v2822, 0.0
      %v2951 = vmax.f32 %v2823, 0.0
      %v2952 = vmax.f32 %v2824, 0.0
      %v2953 = vmax.f32 %v2825, 0.0
      %v2954 = vmax.f32 %v2826, 0.0
      %v2955 = vmax.f32 %v2827, 0.0
      %v2956 = vmax.f32 %v2828, 0.0
      %v2957 = vmax.f32 %v2829, 0.0
      %v2958 = vmax.f32 %v2830, 0.0
      %v2959 = vmax.f32 %v2831, 0.0
      %v2960 = vmax.f32 %v2832, 0.0
      %v2961 = vmax.f32 %v2833, 0.0
      %v2962 = vmax.f32 %v2834, 0.0
      %v2963 = vmax.f32 %v2835, 0.0
      %v2964 = vmax.f32 %v2836, 0.0
      %v2965 = vmax.f32 %v2837, 0.0
      %v2966 = vmax.f32 %v2838, 0.0
      %v2967 = vmax.f32 %v2839, 0.0
      %v2968 = vmax.f32 %v2840, 0.0
      %v2969 = vmax.f32 %v2841, 0.0
      %v2970 = vmax.f32 %v2842, 0.0
      %v2971 = vmax.f32 %v2843, 0.0
      %v2972 = vmax.f32 %v2844, 0.0
      %v2973 = vmax.f32 %v2845, 0.0
      %v2974 = vmax.f32 %v2846, 0.0
      %v2975 = vmax.f32 %v2847, 0.0
      %v2976 = vmax.f32 %v2848, 0.0
      %v2977 = vmax.f32 %v2849, 0.0
      %v2978 = vmax.f32 %v2850, 0.0
      %v2979 = vmax.f32 %v2851, 0.0
      %v2980 = vmax.f32 %v2852, 0.0
      %v2981 = vmax.f32 %v2853, 0.0
      %v2982 = vmax.f32 %v2854, 0.0
      %v2983 = vmax.f32 %v2855, 0.0
      %v2984 = vmax.f32 %v2856, 0.0
      %v2985 = vmax.f32 %v2857, 0.0
      %v2986 = vmax.f32 %v2858, 0.0
      %v2987 = vmax.f32 %v2859, 0.0
      %v2988 = vmax.f32 %v2860, 0.0
      %v2989 = vmax.f32 %v2861, 0.0
      %v2990 = vmax.f32 %v2862, 0.0
      %v2991 = vmax.f32 %v2863, 0.0
      %v2992 = vmax.f32 %v2864, 0.0
      %v2993 = vmax.f32 %v2865, 0.0
      %v2994 = vmax.f32 %v2866, 0.0
      %v2995 = vmax.f32 %v2867, 0.0
      %v2996 = vmax.f32 %v2868, 0.0
      %v2997 = vmax.f32 %v2869, 0.0
      %v2998 = vmax.f32 %v2870, 0.0
      %v2999 = vmax.f32 %v2871, 0.0
      %v3000 = vmax.f32 %v2872, 0.0
      %v3001 = vmax.f32 %v2873, 0.0
      %v3002 = vmax.f32 %v2874, 0.0
      %v3003 = vmax.f32 %v2875, 0.0
      %v3004 = vmax.f32 %v2876, 0.0
      %v3005 = vmax.f32 %v2877, 0.0
      %v3006 = vmax.f32 %v2878, 0.0
      %v3007 = vmax.f32 %v2879, 0.0
      %v3008 = vmax.f32 %v2880, 0.0
      %v3009 = vmax.f32 %v2881, 0.0
      %v3010 = vmax.f32 %v2882, 0.0
      %v3011 = vmax.f32 %v2883, 0.0
      %v3012 = vmax.f32 %v2884, 0.0
      %v3013 = vmax.f32 %v2885, 0.0
      %v3014 = vmax.f32 %v2886, 0.0
      %v3015 = vmax.f32 %v2887, 0.0
      %v3016 = vmax.f32 %v2888, 0.0
      %v3017 = vmax.f32 %v2889, 0.0
      %v3018 = vmax.f32 %v2890, 0.0
      %v3019 = vmax.f32 %v2891, 0.0
      %v3020 = vmax.f32 %v2892, 0.0
      %v3021 = vmax.f32 %v2893, 0.0
      %v3022 = vmax.f32 %v2894, 0.0
      %v3023 = vmax.f32 %v2895, 0.0
      %v3024 = vmax.f32 %v2896, 0.0
      %v3025 = vmax.f32 %v2897, 0.0
      %v3026 = vmax.f32 %v2898, 0.0
      %v3027 = vmax.f32 %v2899, 0.0
      %v3028 = vmax.f32 %v2900, 0.0
      %v3029 = vmax.f32 %v2901, 0.0
      %v3030 = vmax.f32 %v2902, 0.0
      %v3031 = vmax.f32 %v2903, 0.0
      %v3032 = vmax.f32 %v2904, 0.0
      %v3033 = vmax.f32 %v2905, 0.0
      %v3034 = vmax.f32 %v2906, 0.0
      %v3035 = vmax.f32 %v2907, 0.0
      %v3036 = vmax.f32 %v2908, 0.0
      %v3037 = vmax.f32 %v2909, 0.0
      %v3038 = vmax.f32 %v2910, 0.0
      %v3039 = vmax.f32 %v2911, 0.0
      %v3040 = vmax.f32 %v2912, 0.0
      %v3041 = vmax.f32 %v2913, 0.0
      %v3042 = vmax.f32 %v2914, 0.0
      %v3043 = vmax.f32 %v2915, 0.0
      %v3044 = vmax.f32 %v2916, 0.0
      %v3045 = vmax.f32 %v2917, 0.0
      %v3046 = vmax.f32 %v2918, 0.0
      %v3047 = vmax.f32 %v2919, 0.0
      %v3048 = vmax.f32 %v2920, 0.0
      %v3049 = vmax.f32 %v2921, 0.0
      %v3050 = vmax.f32 %v2922, 0.0
      %v3051 = vmax.f32 %v2923, 0.0
      %v3052 = vmax.f32 %v2924, 0.0
      %v3053 = vmax.f32 %v2925, 0.0
      %v3054 = vmax.f32 %v2926, 0.0
      %v3055 = vmax.f32 %v2927, 0.0
      %v3056 = vmax.f32 %v2928, 0.0
      %v3057 = vmax.f32 %v2929, 0.0
      %v3058 = vmax.f32 %v2930, 0.0
      %v3059 = vmax.f32 %v2931, 0.0
      %v3060 = vmax.f32 %v2932, 0.0
      %v3061 = vmax.f32 %v2933, 0.0
      %v3062 = vmax.f32 %v2934, 0.0
      %v3063 = vand.u32 2147483647, %v2807
      %v3064 = vand.u32 2147483647, %v2808
      %v3065 = vand.u32 2147483647, %v2809
      %v3066 = vand.u32 2147483647, %v2810
      %v3067 = vand.u32 2147483647, %v2811
      %v3068 = vand.u32 2147483647, %v2812
      %v3069 = vand.u32 2147483647, %v2813
      %v3070 = vand.u32 2147483647, %v2814
      %v3071 = vand.u32 2147483647, %v2815
      %v3072 = vand.u32 2147483647, %v2816
      %v3073 = vand.u32 2147483647, %v2817
      %v3074 = vand.u32 2147483647, %v2818
      %v3075 = vand.u32 2147483647, %v2819
      %v3076 = vand.u32 2147483647, %v2820
      %v3077 = vand.u32 2147483647, %v2821
      %v3078 = vand.u32 2147483647, %v2822
      %v3079 = vand.u32 2147483647, %v2823
      %v3080 = vand.u32 2147483647, %v2824
      %v3081 = vand.u32 2147483647, %v2825
      %v3082 = vand.u32 2147483647, %v2826
      %v3083 = vand.u32 2147483647, %v2827
      %v3084 = vand.u32 2147483647, %v2828
      %v3085 = vand.u32 2147483647, %v2829
      %v3086 = vand.u32 2147483647, %v2830
      %v3087 = vand.u32 2147483647, %v2831
      %v3088 = vand.u32 2147483647, %v2832
      %v3089 = vand.u32 2147483647, %v2833
      %v3090 = vand.u32 2147483647, %v2834
      %v3091 = vand.u32 2147483647, %v2835
      %v3092 = vand.u32 2147483647, %v2836
      %v3093 = vand.u32 2147483647, %v2837
      %v3094 = vand.u32 2147483647, %v2838
      %v3095 = vand.u32 2147483647, %v2839
      %v3096 = vand.u32 2147483647, %v2840
      %v3097 = vand.u32 2147483647, %v2841
      %v3098 = vand.u32 2147483647, %v2842
      %v3099 = vand.u32 2147483647, %v2843
      %v3100 = vand.u32 2147483647, %v2844
      %v3101 = vand.u32 2147483647, %v2845
      %v3102 = vand.u32 2147483647, %v2846
      %v3103 = vand.u32 2147483647, %v2847
      %v3104 = vand.u32 2147483647, %v2848
      %v3105 = vand.u32 2147483647, %v2849
      %v3106 = vand.u32 2147483647, %v2850
      %v3107 = vand.u32 2147483647, %v2851
      %v3108 = vand.u32 2147483647, %v2852
      %v3109 = vand.u32 2147483647, %v2853
      %v3110 = vand.u32 2147483647, %v2854
      %v3111 = vand.u32 2147483647, %v2855
      %v3112 = vand.u32 2147483647, %v2856
      %v3113 = vand.u32 2147483647, %v2857
      %v3114 = vand.u32 2147483647, %v2858
      %v3115 = vand.u32 2147483647, %v2859
      %v3116 = vand.u32 2147483647, %v2860
      %v3117 = vand.u32 2147483647, %v2861
      %v3118 = vand.u32 2147483647, %v2862
      %v3119 = vand.u32 2147483647, %v2863
      %v3120 = vand.u32 2147483647, %v2864
      %v3121 = vand.u32 2147483647, %v2865
      %v3122 = vand.u32 2147483647, %v2866
      %v3123 = vand.u32 2147483647, %v2867
      %v3124 = vand.u32 2147483647, %v2868
      %v3125 = vand.u32 2147483647, %v2869
      %v3126 = vand.u32 2147483647, %v2870
      %v3127 = vand.u32 2147483647, %v2871
      %v3128 = vand.u32 2147483647, %v2872
      %v3129 = vand.u32 2147483647, %v2873
      %v3130 = vand.u32 2147483647, %v2874
      %v3131 = vand.u32 2147483647, %v2875
      %v3132 = vand.u32 2147483647, %v2876
      %v3133 = vand.u32 2147483647, %v2877
      %v3134 = vand.u32 2147483647, %v2878
      %v3135 = vand.u32 2147483647, %v2879
      %v3136 = vand.u32 2147483647, %v2880
      %v3137 = vand.u32 2147483647, %v2881
      %v3138 = vand.u32 2147483647, %v2882
      %v3139 = vand.u32 2147483647, %v2883
      %v3140 = vand.u32 2147483647, %v2884
      %v3141 = vand.u32 2147483647, %v2885
      %v3142 = vand.u32 2147483647, %v2886
      %v3143 = vand.u32 2147483647, %v2887
      %v3144 = vand.u32 2147483647, %v2888
      %v3145 = vand.u32 2147483647, %v2889
      %v3146 = vand.u32 2147483647, %v2890
      %v3147 = vand.u32 2147483647, %v2891
      %v3148 = vand.u32 2147483647, %v2892
      %v3149 = vand.u32 2147483647, %v2893
      %v3150 = vand.u32 2147483647, %v2894
      %v3151 = vand.u32 2147483647, %v2895
      %v3152 = vand.u32 2147483647, %v2896
      %v3153 = vand.u32 2147483647, %v2897
      %v3154 = vand.u32 2147483647, %v2898
      %v3155 = vand.u32 2147483647, %v2899
      %v3156 = vand.u32 2147483647, %v2900
      %v3157 = vand.u32 2147483647, %v2901
      %v3158 = vand.u32 2147483647, %v2902
      %v3159 = vand.u32 2147483647, %v2903
      %v3160 = vand.u32 2147483647, %v2904
      %v3161 = vand.u32 2147483647, %v2905
      %v3162 = vand.u32 2147483647, %v2906
      %v3163 = vand.u32 2147483647, %v2907
      %v3164 = vand.u32 2147483647, %v2908
      %v3165 = vand.u32 2147483647, %v2909
      %v3166 = vand.u32 2147483647, %v2910
      %v3167 = vand.u32 2147483647, %v2911
      %v3168 = vand.u32 2147483647, %v2912
      %v3169 = vand.u32 2147483647, %v2913
      %v3170 = vand.u32 2147483647, %v2914
      %v3171 = vand.u32 2147483647, %v2915
      %v3172 = vand.u32 2147483647, %v2916
      %v3173 = vand.u32 2147483647, %v2917
      %v3174 = vand.u32 2147483647, %v2918
      %v3175 = vand.u32 2147483647, %v2919
      %v3176 = vand.u32 2147483647, %v2920
      %v3177 = vand.u32 2147483647, %v2921
      %v3178 = vand.u32 2147483647, %v2922
      %v3179 = vand.u32 2147483647, %v2923
      %v3180 = vand.u32 2147483647, %v2924
      %v3181 = vand.u32 2147483647, %v2925
      %v3182 = vand.u32 2147483647, %v2926
      %v3183 = vand.u32 2147483647, %v2927
      %v3184 = vand.u32 2147483647, %v2928
      %v3185 = vand.u32 2147483647, %v2929
      %v3186 = vand.u32 2147483647, %v2930
      %v3187 = vand.u32 2147483647, %v2931
      %v3188 = vand.u32 2147483647, %v2932
      %v3189 = vand.u32 2147483647, %v2933
      %v3190 = vand.u32 2147483647, %v2934
      %v3191 = vsub.f32 0.0, %v3063
      %v3192 = vsub.f32 0.0, %v3064
      %v3193 = vsub.f32 0.0, %v3065
      %v3194 = vsub.f32 0.0, %v3066
      %v3195 = vsub.f32 0.0, %v3067
      %v3196 = vsub.f32 0.0, %v3068
      %v3197 = vsub.f32 0.0, %v3069
      %v3198 = vsub.f32 0.0, %v3070
      %v3199 = vsub.f32 0.0, %v3071
      %v3200 = vsub.f32 0.0, %v3072
      %v3201 = vsub.f32 0.0, %v3073
      %v3202 = vsub.f32 0.0, %v3074
      %v3203 = vsub.f32 0.0, %v3075
      %v3204 = vsub.f32 0.0, %v3076
      %v3205 = vsub.f32 0.0, %v3077
      %v3206 = vsub.f32 0.0, %v3078
      %v3207 = vsub.f32 0.0, %v3079
      %v3208 = vsub.f32 0.0, %v3080
      %v3209 = vsub.f32 0.0, %v3081
      %v3210 = vsub.f32 0.0, %v3082
      %v3211 = vsub.f32 0.0, %v3083
      %v3212 = vsub.f32 0.0, %v3084
      %v3213 = vsub.f32 0.0, %v3085
      %v3214 = vsub.f32 0.0, %v3086
      %v3215 = vsub.f32 0.0, %v3087
      %v3216 = vsub.f32 0.0, %v3088
      %v3217 = vsub.f32 0.0, %v3089
      %v3218 = vsub.f32 0.0, %v3090
      %v3219 = vsub.f32 0.0, %v3091
      %v3220 = vsub.f32 0.0, %v3092
      %v3221 = vsub.f32 0.0, %v3093
      %v3222 = vsub.f32 0.0, %v3094
      %v3223 = vsub.f32 0.0, %v3095
      %v3224 = vsub.f32 0.0, %v3096
      %v3225 = vsub.f32 0.0, %v3097
      %v3226 = vsub.f32 0.0, %v3098
      %v3227 = vsub.f32 0.0, %v3099
      %v3228 = vsub.f32 0.0, %v3100
      %v3229 = vsub.f32 0.0, %v3101
      %v3230 = vsub.f32 0.0, %v3102
      %v3231 = vsub.f32 0.0, %v3103
      %v3232 = vsub.f32 0.0, %v3104
      %v3233 = vsub.f32 0.0, %v3105
      %v3234 = vsub.f32 0.0, %v3106
      %v3235 = vsub.f32 0.0, %v3107
      %v3236 = vsub.f32 0.0, %v3108
      %v3237 = vsub.f32 0.0, %v3109
      %v3238 = vsub.f32 0.0, %v3110
      %v3239 = vsub.f32 0.0, %v3111
      %v3240 = vsub.f32 0.0, %v3112
      %v3241 = vsub.f32 0.0, %v3113
      %v3242 = vsub.f32 0.0, %v3114
      %v3243 = vsub.f32 0.0, %v3115
      %v3244 = vsub.f32 0.0, %v3116
      %v3245 = vsub.f32 0.0, %v3117
      %v3246 = vsub.f32 0.0, %v3118
      %v3247 = vsub.f32 0.0, %v3119
      %v3248 = vsub.f32 0.0, %v3120
      %v3249 = vsub.f32 0.0, %v3121
      %v3250 = vsub.f32 0.0, %v3122
      %v3251 = vsub.f32 0.0, %v3123
      %v3252 = vsub.f32 0.0, %v3124
      %v3253 = vsub.f32 0.0, %v3125
      %v3254 = vsub.f32 0.0, %v3126
      %v3255 = vsub.f32 0.0, %v3127
      %v3256 = vsub.f32 0.0, %v3128
      %v3257 = vsub.f32 0.0, %v3129
      %v3258 = vsub.f32 0.0, %v3130
      %v3259 = vsub.f32 0.0, %v3131
      %v3260 = vsub.f32 0.0, %v3132
      %v3261 = vsub.f32 0.0, %v3133
      %v3262 = vsub.f32 0.0, %v3134
      %v3263 = vsub.f32 0.0, %v3135
      %v3264 = vsub.f32 0.0, %v3136
      %v3265 = vsub.f32 0.0, %v3137
      %v3266 = vsub.f32 0.0, %v3138
      %v3267 = vsub.f32 0.0, %v3139
      %v3268 = vsub.f32 0.0, %v3140
      %v3269 = vsub.f32 0.0, %v3141
      %v3270 = vsub.f32 0.0, %v3142
      %v3271 = vsub.f32 0.0, %v3143
      %v3272 = vsub.f32 0.0, %v3144
      %v3273 = vsub.f32 0.0, %v3145
      %v3274 = vsub.f32 0.0, %v3146
      %v3275 = vsub.f32 0.0, %v3147
      %v3276 = vsub.f32 0.0, %v3148
      %v3277 = vsub.f32 0.0, %v3149
      %v3278 = vsub.f32 0.0, %v3150
      %v3279 = vsub.f32 0.0, %v3151
      %v3280 = vsub.f32 0.0, %v3152
      %v3281 = vsub.f32 0.0, %v3153
      %v3282 = vsub.f32 0.0, %v3154
      %v3283 = vsub.f32 0.0, %v3155
      %v3284 = vsub.f32 0.0, %v3156
      %v3285 = vsub.f32 0.0, %v3157
      %v3286 = vsub.f32 0.0, %v3158
      %v3287 = vsub.f32 0.0, %v3159
      %v3288 = vsub.f32 0.0, %v3160
      %v3289 = vsub.f32 0.0, %v3161
      %v3290 = vsub.f32 0.0, %v3162
      %v3291 = vsub.f32 0.0, %v3163
      %v3292 = vsub.f32 0.0, %v3164
      %v3293 = vsub.f32 0.0, %v3165
      %v3294 = vsub.f32 0.0, %v3166
      %v3295 = vsub.f32 0.0, %v3167
      %v3296 = vsub.f32 0.0, %v3168
      %v3297 = vsub.f32 0.0, %v3169
      %v3298 = vsub.f32 0.0, %v3170
      %v3299 = vsub.f32 0.0, %v3171
      %v3300 = vsub.f32 0.0, %v3172
      %v3301 = vsub.f32 0.0, %v3173
      %v3302 = vsub.f32 0.0, %v3174
      %v3303 = vsub.f32 0.0, %v3175
      %v3304 = vsub.f32 0.0, %v3176
      %v3305 = vsub.f32 0.0, %v3177
      %v3306 = vsub.f32 0.0, %v3178
      %v3307 = vsub.f32 0.0, %v3179
      %v3308 = vsub.f32 0.0, %v3180
      %v3309 = vsub.f32 0.0, %v3181
      %v3310 = vsub.f32 0.0, %v3182
      %v3311 = vsub.f32 0.0, %v3183
      %v3312 = vsub.f32 0.0, %v3184
      %v3313 = vsub.f32 0.0, %v3185
      %v3314 = vsub.f32 0.0, %v3186
      %v3315 = vsub.f32 0.0, %v3187
      %v3316 = vsub.f32 0.0, %v3188
      %v3317 = vsub.f32 0.0, %v3189
      %v3318 = vsub.f32 0.0, %v3190
      %v3319 = vmul.f32 %v3191, 1.442695
      %v3320 = vpow.pop %v3319
      %v3321 = vmul.f32 %v3192, 1.442695
      %v3322 = vpow.pop %v3321
      %v3323 = vmul.f32 %v3193, 1.442695
      %v3324 = vpow.pop %v3323
      %v3325 = vmul.f32 %v3194, 1.442695
      %v3326 = vpow.pop %v3325
      %v3327 = vmul.f32 %v3195, 1.442695
      %v3328 = vpow.pop %v3327
      %v3329 = vmul.f32 %v3196, 1.442695
      %v3330 = vpow.pop %v3329
      %v3331 = vmul.f32 %v3197, 1.442695
      %v3332 = vpow.pop %v3331
      %v3333 = vmul.f32 %v3198, 1.442695
      %v3334 = vpow.pop %v3333
      %v3335 = vmul.f32 %v3199, 1.442695
      %v3336 = vpow.pop %v3335
      %v3337 = vmul.f32 %v3200, 1.442695
      %v3338 = vpow.pop %v3337
      %v3339 = vmul.f32 %v3201, 1.442695
      %v3340 = vpow.pop %v3339
      %v3341 = vmul.f32 %v3202, 1.442695
      %v3342 = vpow.pop %v3341
      %v3343 = vmul.f32 %v3203, 1.442695
      %v3344 = vpow.pop %v3343
      %v3345 = vmul.f32 %v3204, 1.442695
      %v3346 = vpow.pop %v3345
      %v3347 = vmul.f32 %v3205, 1.442695
      %v3348 = vpow.pop %v3347
      %v3349 = vmul.f32 %v3206, 1.442695
      %v3350 = vpow.pop %v3349
      %v3351 = vmul.f32 %v3207, 1.442695
      %v3352 = vpow.pop %v3351
      %v3353 = vmul.f32 %v3208, 1.442695
      %v3354 = vpow.pop %v3353
      %v3355 = vmul.f32 %v3209, 1.442695
      %v3356 = vpow.pop %v3355
      %v3357 = vmul.f32 %v3210, 1.442695
      %v3358 = vpow.pop %v3357
      %v3359 = vmul.f32 %v3211, 1.442695
      %v3360 = vpow.pop %v3359
      %v3361 = vmul.f32 %v3212, 1.442695
      %v3362 = vpow.pop %v3361
      %v3363 = vmul.f32 %v3213, 1.442695
      %v3364 = vpow.pop %v3363
      %v3365 = vmul.f32 %v3214, 1.442695
      %v3366 = vpow.pop %v3365
      %v3367 = vmul.f32 %v3215, 1.442695
      %v3368 = vpow.pop %v3367
      %v3369 = vmul.f32 %v3216, 1.442695
      %v3370 = vpow.pop %v3369
      %v3371 = vmul.f32 %v3217, 1.442695
      %v3372 = vpow.pop %v3371
      %v3373 = vmul.f32 %v3218, 1.442695
      %v3374 = vpow.pop %v3373
      %v3375 = vmul.f32 %v3219, 1.442695
      %v3376 = vpow.pop %v3375
      %v3377 = vmul.f32 %v3220, 1.442695
      %v3378 = vpow.pop %v3377
      %v3379 = vmul.f32 %v3221, 1.442695
      %v3380 = vpow.pop %v3379
      %v3381 = vmul.f32 %v3222, 1.442695
      %v3382 = vpow.pop %v3381
      %v3383 = vmul.f32 %v3223, 1.442695
      %v3384 = vpow.pop %v3383
      %v3385 = vmul.f32 %v3224, 1.442695
      %v3386 = vpow.pop %v3385
      %v3387 = vmul.f32 %v3225, 1.442695
      %v3388 = vpow.pop %v3387
      %v3389 = vmul.f32 %v3226, 1.442695
      %v3390 = vpow.pop %v3389
      %v3391 = vmul.f32 %v3227, 1.442695
      %v3392 = vpow.pop %v3391
      %v3393 = vmul.f32 %v3228, 1.442695
      %v3394 = vpow.pop %v3393
      %v3395 = vmul.f32 %v3229, 1.442695
      %v3396 = vpow.pop %v3395
      %v3397 = vmul.f32 %v3230, 1.442695
      %v3398 = vpow.pop %v3397
      %v3399 = vmul.f32 %v3231, 1.442695
      %v3400 = vpow.pop %v3399
      %v3401 = vmul.f32 %v3232, 1.442695
      %v3402 = vpow.pop %v3401
      %v3403 = vmul.f32 %v3233, 1.442695
      %v3404 = vpow.pop %v3403
      %v3405 = vmul.f32 %v3234, 1.442695
      %v3406 = vpow.pop %v3405
      %v3407 = vmul.f32 %v3235, 1.442695
      %v3408 = vpow.pop %v3407
      %v3409 = vmul.f32 %v3236, 1.442695
      %v3410 = vpow.pop %v3409
      %v3411 = vmul.f32 %v3237, 1.442695
      %v3412 = vpow.pop %v3411
      %v3413 = vmul.f32 %v3238, 1.442695
      %v3414 = vpow.pop %v3413
      %v3415 = vmul.f32 %v3239, 1.442695
      %v3416 = vpow.pop %v3415
      %v3417 = vmul.f32 %v3240, 1.442695
      %v3418 = vpow.pop %v3417
      %v3419 = vmul.f32 %v3241, 1.442695
      %v3420 = vpow.pop %v3419
      %v3421 = vmul.f32 %v3242, 1.442695
      %v3422 = vpow.pop %v3421
      %v3423 = vmul.f32 %v3243, 1.442695
      %v3424 = vpow.pop %v3423
      %v3425 = vmul.f32 %v3244, 1.442695
      %v3426 = vpow.pop %v3425
      %v3427 = vmul.f32 %v3245, 1.442695
      %v3428 = vpow.pop %v3427
      %v3429 = vmul.f32 %v3246, 1.442695
      %v3430 = vpow.pop %v3429
      %v3431 = vmul.f32 %v3247, 1.442695
      %v3432 = vpow.pop %v3431
      %v3433 = vmul.f32 %v3248, 1.442695
      %v3434 = vpow.pop %v3433
      %v3435 = vmul.f32 %v3249, 1.442695
      %v3436 = vpow.pop %v3435
      %v3437 = vmul.f32 %v3250, 1.442695
      %v3438 = vpow.pop %v3437
      %v3439 = vmul.f32 %v3251, 1.442695
      %v3440 = vpow.pop %v3439
      %v3441 = vmul.f32 %v3252, 1.442695
      %v3442 = vpow.pop %v3441
      %v3443 = vmul.f32 %v3253, 1.442695
      %v3444 = vpow.pop %v3443
      %v3445 = vmul.f32 %v3254, 1.442695
      %v3446 = vpow.pop %v3445
      %v3447 = vmul.f32 %v3255, 1.442695
      %v3448 = vpow.pop %v3447
      %v3449 = vmul.f32 %v3256, 1.442695
      %v3450 = vpow.pop %v3449
      %v3451 = vmul.f32 %v3257, 1.442695
      %v3452 = vpow.pop %v3451
      %v3453 = vmul.f32 %v3258, 1.442695
      %v3454 = vpow.pop %v3453
      %v3455 = vmul.f32 %v3259, 1.442695
      %v3456 = vpow.pop %v3455
      %v3457 = vmul.f32 %v3260, 1.442695
      %v3458 = vpow.pop %v3457
      %v3459 = vmul.f32 %v3261, 1.442695
      %v3460 = vpow.pop %v3459
      %v3461 = vmul.f32 %v3262, 1.442695
      %v3462 = vpow.pop %v3461
      %v3463 = vmul.f32 %v3263, 1.442695
      %v3464 = vpow.pop %v3463
      %v3465 = vmul.f32 %v3264, 1.442695
      %v3466 = vpow.pop %v3465
      %v3467 = vmul.f32 %v3265, 1.442695
      %v3468 = vpow.pop %v3467
      %v3469 = vmul.f32 %v3266, 1.442695
      %v3470 = vpow.pop %v3469
      %v3471 = vmul.f32 %v3267, 1.442695
      %v3472 = vpow.pop %v3471
      %v3473 = vmul.f32 %v3268, 1.442695
      %v3474 = vpow.pop %v3473
      %v3475 = vmul.f32 %v3269, 1.442695
      %v3476 = vpow.pop %v3475
      %v3477 = vmul.f32 %v3270, 1.442695
      %v3478 = vpow.pop %v3477
      %v3479 = vmul.f32 %v3271, 1.442695
      %v3480 = vpow.pop %v3479
      %v3481 = vmul.f32 %v3272, 1.442695
      %v3482 = vpow.pop %v3481
      %v3483 = vmul.f32 %v3273, 1.442695
      %v3484 = vpow.pop %v3483
      %v3485 = vmul.f32 %v3274, 1.442695
      %v3486 = vpow.pop %v3485
      %v3487 = vmul.f32 %v3275, 1.442695
      %v3488 = vpow.pop %v3487
      %v3489 = vmul.f32 %v3276, 1.442695
      %v3490 = vpow.pop %v3489
      %v3491 = vmul.f32 %v3277, 1.442695
      %v3492 = vpow.pop %v3491
      %v3493 = vmul.f32 %v3278, 1.442695
      %v3494 = vpow.pop %v3493
      %v3495 = vmul.f32 %v3279, 1.442695
      %v3496 = vpow.pop %v3495
      %v3497 = vmul.f32 %v3280, 1.442695
      %v3498 = vpow.pop %v3497
      %v3499 = vmul.f32 %v3281, 1.442695
      %v3500 = vpow.pop %v3499
      %v3501 = vmul.f32 %v3282, 1.442695
      %v3502 = vpow.pop %v3501
      %v3503 = vmul.f32 %v3283, 1.442695
      %v3504 = vpow.pop %v3503
      %v3505 = vmul.f32 %v3284, 1.442695
      %v3506 = vpow.pop %v3505
      %v3507 = vmul.f32 %v3285, 1.442695
      %v3508 = vpow.pop %v3507
      %v3509 = vmul.f32 %v3286, 1.442695
      %v3510 = vpow.pop %v3509
      %v3511 = vmul.f32 %v3287, 1.442695
      %v3512 = vpow.pop %v3511
      %v3513 = vmul.f32 %v3288, 1.442695
      %v3514 = vpow.pop %v3513
      %v3515 = vmul.f32 %v3289, 1.442695
      %v3516 = vpow.pop %v3515
      %v3517 = vmul.f32 %v3290, 1.442695
      %v3518 = vpow.pop %v3517
      %v3519 = vmul.f32 %v3291, 1.442695
      %v3520 = vpow.pop %v3519
      %v3521 = vmul.f32 %v3292, 1.442695
      %v3522 = vpow.pop %v3521
      %v3523 = vmul.f32 %v3293, 1.442695
      %v3524 = vpow.pop %v3523
      %v3525 = vmul.f32 %v3294, 1.442695
      %v3526 = vpow.pop %v3525
      %v3527 = vmul.f32 %v3295, 1.442695
      %v3528 = vpow.pop %v3527
      %v3529 = vmul.f32 %v3296, 1.442695
      %v3530 = vpow.pop %v3529
      %v3531 = vmul.f32 %v3297, 1.442695
      %v3532 = vpow.pop %v3531
      %v3533 = vmul.f32 %v3298, 1.442695
      %v3534 = vpow.pop %v3533
      %v3535 = vmul.f32 %v3299, 1.442695
      %v3536 = vpow.pop %v3535
      %v3537 = vmul.f32 %v3300, 1.442695
      %v3538 = vpow.pop %v3537
      %v3539 = vmul.f32 %v3301, 1.442695
      %v3540 = vpow.pop %v3539
      %v3541 = vmul.f32 %v3302, 1.442695
      %v3542 = vpow.pop %v3541
      %v3543 = vmul.f32 %v3303, 1.442695
      %v3544 = vpow.pop %v3543
      %v3545 = vmul.f32 %v3304, 1.442695
      %v3546 = vpow.pop %v3545
      %v3547 = vmul.f32 %v3305, 1.442695
      %v3548 = vpow.pop %v3547
      %v3549 = vmul.f32 %v3306, 1.442695
      %v3550 = vpow.pop %v3549
      %v3551 = vmul.f32 %v3307, 1.442695
      %v3552 = vpow.pop %v3551
      %v3553 = vmul.f32 %v3308, 1.442695
      %v3554 = vpow.pop %v3553
      %v3555 = vmul.f32 %v3309, 1.442695
      %v3556 = vpow.pop %v3555
      %v3557 = vmul.f32 %v3310, 1.442695
      %v3558 = vpow.pop %v3557
      %v3559 = vmul.f32 %v3311, 1.442695
      %v3560 = vpow.pop %v3559
      %v3561 = vmul.f32 %v3312, 1.442695
      %v3562 = vpow.pop %v3561
      %v3563 = vmul.f32 %v3313, 1.442695
      %v3564 = vpow.pop %v3563
      %v3565 = vmul.f32 %v3314, 1.442695
      %v3566 = vpow.pop %v3565
      %v3567 = vmul.f32 %v3315, 1.442695
      %v3568 = vpow.pop %v3567
      %v3569 = vmul.f32 %v3316, 1.442695
      %v3570 = vpow.pop %v3569
      %v3571 = vmul.f32 %v3317, 1.442695
      %v3572 = vpow.pop %v3571
      %v3573 = vmul.f32 %v3318, 1.442695
      %v3574 = vpow.pop %v3573
      %v3575 = vadd.f32 %v3320, 1.0
      %v3576 = vadd.f32 %v3322, 1.0
      %v3577 = vadd.f32 %v3324, 1.0
      %v3578 = vadd.f32 %v3326, 1.0
      %v3579 = vadd.f32 %v3328, 1.0
      %v3580 = vadd.f32 %v3330, 1.0
      %v3581 = vadd.f32 %v3332, 1.0
      %v3582 = vadd.f32 %v3334, 1.0
      %v3583 = vadd.f32 %v3336, 1.0
      %v3584 = vadd.f32 %v3338, 1.0
      %v3585 = vadd.f32 %v3340, 1.0
      %v3586 = vadd.f32 %v3342, 1.0
      %v3587 = vadd.f32 %v3344, 1.0
      %v3588 = vadd.f32 %v3346, 1.0
      %v3589 = vadd.f32 %v3348, 1.0
      %v3590 = vadd.f32 %v3350, 1.0
      %v3591 = vadd.f32 %v3352, 1.0
      %v3592 = vadd.f32 %v3354, 1.0
      %v3593 = vadd.f32 %v3356, 1.0
      %v3594 = vadd.f32 %v3358, 1.0
      %v3595 = vadd.f32 %v3360, 1.0
      %v3596 = vadd.f32 %v3362, 1.0
      %v3597 = vadd.f32 %v3364, 1.0
      %v3598 = vadd.f32 %v3366, 1.0
      %v3599 = vadd.f32 %v3368, 1.0
      %v3600 = vadd.f32 %v3370, 1.0
      %v3601 = vadd.f32 %v3372, 1.0
      %v3602 = vadd.f32 %v3374, 1.0
      %v3603 = vadd.f32 %v3376, 1.0
      %v3604 = vadd.f32 %v3378, 1.0
      %v3605 = vadd.f32 %v3380, 1.0
      %v3606 = vadd.f32 %v3382, 1.0
      %v3607 = vadd.f32 %v3384, 1.0
      %v3608 = vadd.f32 %v3386, 1.0
      %v3609 = vadd.f32 %v3388, 1.0
      %v3610 = vadd.f32 %v3390, 1.0
      %v3611 = vadd.f32 %v3392, 1.0
      %v3612 = vadd.f32 %v3394, 1.0
      %v3613 = vadd.f32 %v3396, 1.0
      %v3614 = vadd.f32 %v3398, 1.0
      %v3615 = vadd.f32 %v3400, 1.0
      %v3616 = vadd.f32 %v3402, 1.0
      %v3617 = vadd.f32 %v3404, 1.0
      %v3618 = vadd.f32 %v3406, 1.0
      %v3619 = vadd.f32 %v3408, 1.0
      %v3620 = vadd.f32 %v3410, 1.0
      %v3621 = vadd.f32 %v3412, 1.0
      %v3622 = vadd.f32 %v3414, 1.0
      %v3623 = vadd.f32 %v3416, 1.0
      %v3624 = vadd.f32 %v3418, 1.0
      %v3625 = vadd.f32 %v3420, 1.0
      %v3626 = vadd.f32 %v3422, 1.0
      %v3627 = vadd.f32 %v3424, 1.0
      %v3628 = vadd.f32 %v3426, 1.0
      %v3629 = vadd.f32 %v3428, 1.0
      %v3630 = vadd.f32 %v3430, 1.0
      %v3631 = vadd.f32 %v3432, 1.0
      %v3632 = vadd.f32 %v3434, 1.0
      %v3633 = vadd.f32 %v3436, 1.0
      %v3634 = vadd.f32 %v3438, 1.0
      %v3635 = vadd.f32 %v3440, 1.0
      %v3636 = vadd.f32 %v3442, 1.0
      %v3637 = vadd.f32 %v3444, 1.0
      %v3638 = vadd.f32 %v3446, 1.0
      %v3639 = vadd.f32 %v3448, 1.0
      %v3640 = vadd.f32 %v3450, 1.0
      %v3641 = vadd.f32 %v3452, 1.0
      %v3642 = vadd.f32 %v3454, 1.0
      %v3643 = vadd.f32 %v3456, 1.0
      %v3644 = vadd.f32 %v3458, 1.0
      %v3645 = vadd.f32 %v3460, 1.0
      %v3646 = vadd.f32 %v3462, 1.0
      %v3647 = vadd.f32 %v3464, 1.0
      %v3648 = vadd.f32 %v3466, 1.0
      %v3649 = vadd.f32 %v3468, 1.0
      %v3650 = vadd.f32 %v3470, 1.0
      %v3651 = vadd.f32 %v3472, 1.0
      %v3652 = vadd.f32 %v3474, 1.0
      %v3653 = vadd.f32 %v3476, 1.0
      %v3654 = vadd.f32 %v3478, 1.0
      %v3655 = vadd.f32 %v3480, 1.0
      %v3656 = vadd.f32 %v3482, 1.0
      %v3657 = vadd.f32 %v3484, 1.0
      %v3658 = vadd.f32 %v3486, 1.0
      %v3659 = vadd.f32 %v3488, 1.0
      %v3660 = vadd.f32 %v3490, 1.0
      %v3661 = vadd.f32 %v3492, 1.0
      %v3662 = vadd.f32 %v3494, 1.0
      %v3663 = vadd.f32 %v3496, 1.0
      %v3664 = vadd.f32 %v3498, 1.0
      %v3665 = vadd.f32 %v3500, 1.0
      %v3666 = vadd.f32 %v3502, 1.0
      %v3667 = vadd.f32 %v3504, 1.0
      %v3668 = vadd.f32 %v3506, 1.0
      %v3669 = vadd.f32 %v3508, 1.0
      %v3670 = vadd.f32 %v3510, 1.0
      %v3671 = vadd.f32 %v3512, 1.0
      %v3672 = vadd.f32 %v3514, 1.0
      %v3673 = vadd.f32 %v3516, 1.0
      %v3674 = vadd.f32 %v3518, 1.0
      %v3675 = vadd.f32 %v3520, 1.0
      %v3676 = vadd.f32 %v3522, 1.0
      %v3677 = vadd.f32 %v3524, 1.0
      %v3678 = vadd.f32 %v3526, 1.0
      %v3679 = vadd.f32 %v3528, 1.0
      %v3680 = vadd.f32 %v3530, 1.0
      %v3681 = vadd.f32 %v3532, 1.0
      %v3682 = vadd.f32 %v3534, 1.0
      %v3683 = vadd.f32 %v3536, 1.0
      %v3684 = vadd.f32 %v3538, 1.0
      %v3685 = vadd.f32 %v3540, 1.0
      %v3686 = vadd.f32 %v3542, 1.0
      %v3687 = vadd.f32 %v3544, 1.0
      %v3688 = vadd.f32 %v3546, 1.0
      %v3689 = vadd.f32 %v3548, 1.0
      %v3690 = vadd.f32 %v3550, 1.0
      %v3691 = vadd.f32 %v3552, 1.0
      %v3692 = vadd.f32 %v3554, 1.0
      %v3693 = vadd.f32 %v3556, 1.0
      %v3694 = vadd.f32 %v3558, 1.0
      %v3695 = vadd.f32 %v3560, 1.0
      %v3696 = vadd.f32 %v3562, 1.0
      %v3697 = vadd.f32 %v3564, 1.0
      %v3698 = vadd.f32 %v3566, 1.0
      %v3699 = vadd.f32 %v3568, 1.0
      %v3700 = vadd.f32 %v3570, 1.0
      %v3701 = vadd.f32 %v3572, 1.0
      %v3702 = vadd.f32 %v3574, 1.0
      %v3703 = vlog2.pop %v3575
      %v3704 = vmul.f32 %v3703, 0.6931472
      %v3705 = vlog2.pop %v3576
      %v3706 = vmul.f32 %v3705, 0.6931472
      %v3707 = vlog2.pop %v3577
      %v3708 = vmul.f32 %v3707, 0.6931472
      %v3709 = vlog2.pop %v3578
      %v3710 = vmul.f32 %v3709, 0.6931472
      %v3711 = vlog2.pop %v3579
      %v3712 = vmul.f32 %v3711, 0.6931472
      %v3713 = vlog2.pop %v3580
      %v3714 = vmul.f32 %v3713, 0.6931472
      %v3715 = vlog2.pop %v3581
      %v3716 = vmul.f32 %v3715, 0.6931472
      %v3717 = vlog2.pop %v3582
      %v3718 = vmul.f32 %v3717, 0.6931472
      %v3719 = vlog2.pop %v3583
      %v3720 = vmul.f32 %v3719, 0.6931472
      %v3721 = vlog2.pop %v3584
      %v3722 = vmul.f32 %v3721, 0.6931472
      %v3723 = vlog2.pop %v3585
      %v3724 = vmul.f32 %v3723, 0.6931472
      %v3725 = vlog2.pop %v3586
      %v3726 = vmul.f32 %v3725, 0.6931472
      %v3727 = vlog2.pop %v3587
      %v3728 = vmul.f32 %v3727, 0.6931472
      %v3729 = vlog2.pop %v3588
      %v3730 = vmul.f32 %v3729, 0.6931472
      %v3731 = vlog2.pop %v3589
      %v3732 = vmul.f32 %v3731, 0.6931472
      %v3733 = vlog2.pop %v3590
      %v3734 = vmul.f32 %v3733, 0.6931472
      %v3735 = vlog2.pop %v3591
      %v3736 = vmul.f32 %v3735, 0.6931472
      %v3737 = vlog2.pop %v3592
      %v3738 = vmul.f32 %v3737, 0.6931472
      %v3739 = vlog2.pop %v3593
      %v3740 = vmul.f32 %v3739, 0.6931472
      %v3741 = vlog2.pop %v3594
      %v3742 = vmul.f32 %v3741, 0.6931472
      %v3743 = vlog2.pop %v3595
      %v3744 = vmul.f32 %v3743, 0.6931472
      %v3745 = vlog2.pop %v3596
      %v3746 = vmul.f32 %v3745, 0.6931472
      %v3747 = vlog2.pop %v3597
      %v3748 = vmul.f32 %v3747, 0.6931472
      %v3749 = vlog2.pop %v3598
      %v3750 = vmul.f32 %v3749, 0.6931472
      %v3751 = vlog2.pop %v3599
      %v3752 = vmul.f32 %v3751, 0.6931472
      %v3753 = vlog2.pop %v3600
      %v3754 = vmul.f32 %v3753, 0.6931472
      %v3755 = vlog2.pop %v3601
      %v3756 = vmul.f32 %v3755, 0.6931472
      %v3757 = vlog2.pop %v3602
      %v3758 = vmul.f32 %v3757, 0.6931472
      %v3759 = vlog2.pop %v3603
      %v3760 = vmul.f32 %v3759, 0.6931472
      %v3761 = vlog2.pop %v3604
      %v3762 = vmul.f32 %v3761, 0.6931472
      %v3763 = vlog2.pop %v3605
      %v3764 = vmul.f32 %v3763, 0.6931472
      %v3765 = vlog2.pop %v3606
      %v3766 = vmul.f32 %v3765, 0.6931472
      %v3767 = vlog2.pop %v3607
      %v3768 = vmul.f32 %v3767, 0.6931472
      %v3769 = vlog2.pop %v3608
      %v3770 = vmul.f32 %v3769, 0.6931472
      %v3771 = vlog2.pop %v3609
      %v3772 = vmul.f32 %v3771, 0.6931472
      %v3773 = vlog2.pop %v3610
      %v3774 = vmul.f32 %v3773, 0.6931472
      %v3775 = vlog2.pop %v3611
      %v3776 = vmul.f32 %v3775, 0.6931472
      %v3777 = vlog2.pop %v3612
      %v3778 = vmul.f32 %v3777, 0.6931472
      %v3779 = vlog2.pop %v3613
      %v3780 = vmul.f32 %v3779, 0.6931472
      %v3781 = vlog2.pop %v3614
      %v3782 = vmul.f32 %v3781, 0.6931472
      %v3783 = vlog2.pop %v3615
      %v3784 = vmul.f32 %v3783, 0.6931472
      %v3785 = vlog2.pop %v3616
      %v3786 = vmul.f32 %v3785, 0.6931472
      %v3787 = vlog2.pop %v3617
      %v3788 = vmul.f32 %v3787, 0.6931472
      %v3789 = vlog2.pop %v3618
      %v3790 = vmul.f32 %v3789, 0.6931472
      %v3791 = vlog2.pop %v3619
      %v3792 = vmul.f32 %v3791, 0.6931472
      %v3793 = vlog2.pop %v3620
      %v3794 = vmul.f32 %v3793, 0.6931472
      %v3795 = vlog2.pop %v3621
      %v3796 = vmul.f32 %v3795, 0.6931472
      %v3797 = vlog2.pop %v3622
      %v3798 = vmul.f32 %v3797, 0.6931472
      %v3799 = vlog2.pop %v3623
      %v3800 = vmul.f32 %v3799, 0.6931472
      %v3801 = vlog2.pop %v3624
      %v3802 = vmul.f32 %v3801, 0.6931472
      %v3803 = vlog2.pop %v3625
      %v3804 = vmul.f32 %v3803, 0.6931472
      %v3805 = vlog2.pop %v3626
      %v3806 = vmul.f32 %v3805, 0.6931472
      %v3807 = vlog2.pop %v3627
      %v3808 = vmul.f32 %v3807, 0.6931472
      %v3809 = vlog2.pop %v3628
      %v3810 = vmul.f32 %v3809, 0.6931472
      %v3811 = vlog2.pop %v3629
      %v3812 = vmul.f32 %v3811, 0.6931472
      %v3813 = vlog2.pop %v3630
      %v3814 = vmul.f32 %v3813, 0.6931472
      %v3815 = vlog2.pop %v3631
      %v3816 = vmul.f32 %v3815, 0.6931472
      %v3817 = vlog2.pop %v3632
      %v3818 = vmul.f32 %v3817, 0.6931472
      %v3819 = vlog2.pop %v3633
      %v3820 = vmul.f32 %v3819, 0.6931472
      %v3821 = vlog2.pop %v3634
      %v3822 = vmul.f32 %v3821, 0.6931472
      %v3823 = vlog2.pop %v3635
      %v3824 = vmul.f32 %v3823, 0.6931472
      %v3825 = vlog2.pop %v3636
      %v3826 = vmul.f32 %v3825, 0.6931472
      %v3827 = vlog2.pop %v3637
      %v3828 = vmul.f32 %v3827, 0.6931472
      %v3829 = vlog2.pop %v3638
      %v3830 = vmul.f32 %v3829, 0.6931472
      %v3831 = vlog2.pop %v3639
      %v3832 = vmul.f32 %v3831, 0.6931472
      %v3833 = vlog2.pop %v3640
      %v3834 = vmul.f32 %v3833, 0.6931472
      %v3835 = vlog2.pop %v3641
      %v3836 = vmul.f32 %v3835, 0.6931472
      %v3837 = vlog2.pop %v3642
      %v3838 = vmul.f32 %v3837, 0.6931472
      %v3839 = vlog2.pop %v3643
      %v3840 = vmul.f32 %v3839, 0.6931472
      %v3841 = vlog2.pop %v3644
      %v3842 = vmul.f32 %v3841, 0.6931472
      %v3843 = vlog2.pop %v3645
      %v3844 = vmul.f32 %v3843, 0.6931472
      %v3845 = vlog2.pop %v3646
      %v3846 = vmul.f32 %v3845, 0.6931472
      %v3847 = vlog2.pop %v3647
      %v3848 = vmul.f32 %v3847, 0.6931472
      %v3849 = vlog2.pop %v3648
      %v3850 = vmul.f32 %v3849, 0.6931472
      %v3851 = vlog2.pop %v3649
      %v3852 = vmul.f32 %v3851, 0.6931472
      %v3853 = vlog2.pop %v3650
      %v3854 = vmul.f32 %v3853, 0.6931472
      %v3855 = vlog2.pop %v3651
      %v3856 = vmul.f32 %v3855, 0.6931472
      %v3857 = vlog2.pop %v3652
      %v3858 = vmul.f32 %v3857, 0.6931472
      %v3859 = vlog2.pop %v3653
      %v3860 = vmul.f32 %v3859, 0.6931472
      %v3861 = vlog2.pop %v3654
      %v3862 = vmul.f32 %v3861, 0.6931472
      %v3863 = vlog2.pop %v3655
      %v3864 = vmul.f32 %v3863, 0.6931472
      %v3865 = vlog2.pop %v3656
      %v3866 = vmul.f32 %v3865, 0.6931472
      %v3867 = vlog2.pop %v3657
      %v3868 = vmul.f32 %v3867, 0.6931472
      %v3869 = vlog2.pop %v3658
      %v3870 = vmul.f32 %v3869, 0.6931472
      %v3871 = vlog2.pop %v3659
      %v3872 = vmul.f32 %v3871, 0.6931472
      %v3873 = vlog2.pop %v3660
      %v3874 = vmul.f32 %v3873, 0.6931472
      %v3875 = vlog2.pop %v3661
      %v3876 = vmul.f32 %v3875, 0.6931472
      %v3877 = vlog2.pop %v3662
      %v3878 = vmul.f32 %v3877, 0.6931472
      %v3879 = vlog2.pop %v3663
      %v3880 = vmul.f32 %v3879, 0.6931472
      %v3881 = vlog2.pop %v3664
      %v3882 = vmul.f32 %v3881, 0.6931472
      %v3883 = vlog2.pop %v3665
      %v3884 = vmul.f32 %v3883, 0.6931472
      %v3885 = vlog2.pop %v3666
      %v3886 = vmul.f32 %v3885, 0.6931472
      %v3887 = vlog2.pop %v3667
      %v3888 = vmul.f32 %v3887, 0.6931472
      %v3889 = vlog2.pop %v3668
      %v3890 = vmul.f32 %v3889, 0.6931472
      %v3891 = vlog2.pop %v3669
      %v3892 = vmul.f32 %v3891, 0.6931472
      %v3893 = vlog2.pop %v3670
      %v3894 = vmul.f32 %v3893, 0.6931472
      %v3895 = vlog2.pop %v3671
      %v3896 = vmul.f32 %v3895, 0.6931472
      %v3897 = vlog2.pop %v3672
      %v3898 = vmul.f32 %v3897, 0.6931472
      %v3899 = vlog2.pop %v3673
      %v3900 = vmul.f32 %v3899, 0.6931472
      %v3901 = vlog2.pop %v3674
      %v3902 = vmul.f32 %v3901, 0.6931472
      %v3903 = vlog2.pop %v3675
      %v3904 = vmul.f32 %v3903, 0.6931472
      %v3905 = vlog2.pop %v3676
      %v3906 = vmul.f32 %v3905, 0.6931472
      %v3907 = vlog2.pop %v3677
      %v3908 = vmul.f32 %v3907, 0.6931472
      %v3909 = vlog2.pop %v3678
      %v3910 = vmul.f32 %v3909, 0.6931472
      %v3911 = vlog2.pop %v3679
      %v3912 = vmul.f32 %v3911, 0.6931472
      %v3913 = vlog2.pop %v3680
      %v3914 = vmul.f32 %v3913, 0.6931472
      %v3915 = vlog2.pop %v3681
      %v3916 = vmul.f32 %v3915, 0.6931472
      %v3917 = vlog2.pop %v3682
      %v3918 = vmul.f32 %v3917, 0.6931472
      %v3919 = vlog2.pop %v3683
      %v3920 = vmul.f32 %v3919, 0.6931472
      %v3921 = vlog2.pop %v3684
      %v3922 = vmul.f32 %v3921, 0.6931472
      %v3923 = vlog2.pop %v3685
      %v3924 = vmul.f32 %v3923, 0.6931472
      %v3925 = vlog2.pop %v3686
      %v3926 = vmul.f32 %v3925, 0.6931472
      %v3927 = vlog2.pop %v3687
      %v3928 = vmul.f32 %v3927, 0.6931472
      %v3929 = vlog2.pop %v3688
      %v3930 = vmul.f32 %v3929, 0.6931472
      %v3931 = vlog2.pop %v3689
      %v3932 = vmul.f32 %v3931, 0.6931472
      %v3933 = vlog2.pop %v3690
      %v3934 = vmul.f32 %v3933, 0.6931472
      %v3935 = vlog2.pop %v3691
      %v3936 = vmul.f32 %v3935, 0.6931472
      %v3937 = vlog2.pop %v3692
      %v3938 = vmul.f32 %v3937, 0.6931472
      %v3939 = vlog2.pop %v3693
      %v3940 = vmul.f32 %v3939, 0.6931472
      %v3941 = vlog2.pop %v3694
      %v3942 = vmul.f32 %v3941, 0.6931472
      %v3943 = vlog2.pop %v3695
      %v3944 = vmul.f32 %v3943, 0.6931472
      %v3945 = vlog2.pop %v3696
      %v3946 = vmul.f32 %v3945, 0.6931472
      %v3947 = vlog2.pop %v3697
      %v3948 = vmul.f32 %v3947, 0.6931472
      %v3949 = vlog2.pop %v3698
      %v3950 = vmul.f32 %v3949, 0.6931472
      %v3951 = vlog2.pop %v3699
      %v3952 = vmul.f32 %v3951, 0.6931472
      %v3953 = vlog2.pop %v3700
      %v3954 = vmul.f32 %v3953, 0.6931472
      %v3955 = vlog2.pop %v3701
      %v3956 = vmul.f32 %v3955, 0.6931472
      %v3957 = vlog2.pop %v3702
      %v3958 = vmul.f32 %v3957, 0.6931472
      %v3959 = vadd.f32 %v2935, %v3704
      %v3960 = vadd.f32 %v2936, %v3706
      %v3961 = vadd.f32 %v2937, %v3708
      %v3962 = vadd.f32 %v2938, %v3710
      %v3963 = vadd.f32 %v2939, %v3712
      %v3964 = vadd.f32 %v2940, %v3714
      %v3965 = vadd.f32 %v2941, %v3716
      %v3966 = vadd.f32 %v2942, %v3718
      %v3967 = vadd.f32 %v2943, %v3720
      %v3968 = vadd.f32 %v2944, %v3722
      %v3969 = vadd.f32 %v2945, %v3724
      %v3970 = vadd.f32 %v2946, %v3726
      %v3971 = vadd.f32 %v2947, %v3728
      %v3972 = vadd.f32 %v2948, %v3730
      %v3973 = vadd.f32 %v2949, %v3732
      %v3974 = vadd.f32 %v2950, %v3734
      %v3975 = vadd.f32 %v2951, %v3736
      %v3976 = vadd.f32 %v2952, %v3738
      %v3977 = vadd.f32 %v2953, %v3740
      %v3978 = vadd.f32 %v2954, %v3742
      %v3979 = vadd.f32 %v2955, %v3744
      %v3980 = vadd.f32 %v2956, %v3746
      %v3981 = vadd.f32 %v2957, %v3748
      %v3982 = vadd.f32 %v2958, %v3750
      %v3983 = vadd.f32 %v2959, %v3752
      %v3984 = vadd.f32 %v2960, %v3754
      %v3985 = vadd.f32 %v2961, %v3756
      %v3986 = vadd.f32 %v2962, %v3758
      %v3987 = vadd.f32 %v2963, %v3760
      %v3988 = vadd.f32 %v2964, %v3762
      %v3989 = vadd.f32 %v2965, %v3764
      %v3990 = vadd.f32 %v2966, %v3766
      %v3991 = vadd.f32 %v2967, %v3768
      %v3992 = vadd.f32 %v2968, %v3770
      %v3993 = vadd.f32 %v2969, %v3772
      %v3994 = vadd.f32 %v2970, %v3774
      %v3995 = vadd.f32 %v2971, %v3776
      %v3996 = vadd.f32 %v2972, %v3778
      %v3997 = vadd.f32 %v2973, %v3780
      %v3998 = vadd.f32 %v2974, %v3782
      %v3999 = vadd.f32 %v2975, %v3784
      %v4000 = vadd.f32 %v2976, %v3786
      %v4001 = vadd.f32 %v2977, %v3788
      %v4002 = vadd.f32 %v2978, %v3790
      %v4003 = vadd.f32 %v2979, %v3792
      %v4004 = vadd.f32 %v2980, %v3794
      %v4005 = vadd.f32 %v2981, %v3796
      %v4006 = vadd.f32 %v2982, %v3798
      %v4007 = vadd.f32 %v2983, %v3800
      %v4008 = vadd.f32 %v2984, %v3802
      %v4009 = vadd.f32 %v2985, %v3804
      %v4010 = vadd.f32 %v2986, %v3806
      %v4011 = vadd.f32 %v2987, %v3808
      %v4012 = vadd.f32 %v2988, %v3810
      %v4013 = vadd.f32 %v2989, %v3812
      %v4014 = vadd.f32 %v2990, %v3814
      %v4015 = vadd.f32 %v2991, %v3816
      %v4016 = vadd.f32 %v2992, %v3818
      %v4017 = vadd.f32 %v2993, %v3820
      %v4018 = vadd.f32 %v2994, %v3822
      %v4019 = vadd.f32 %v2995, %v3824
      %v4020 = vadd.f32 %v2996, %v3826
      %v4021 = vadd.f32 %v2997, %v3828
      %v4022 = vadd.f32 %v2998, %v3830
      %v4023 = vadd.f32 %v2999, %v3832
      %v4024 = vadd.f32 %v3000, %v3834
      %v4025 = vadd.f32 %v3001, %v3836
      %v4026 = vadd.f32 %v3002, %v3838
      %v4027 = vadd.f32 %v3003, %v3840
      %v4028 = vadd.f32 %v3004, %v3842
      %v4029 = vadd.f32 %v3005, %v3844
      %v4030 = vadd.f32 %v3006, %v3846
      %v4031 = vadd.f32 %v3007, %v3848
      %v4032 = vadd.f32 %v3008, %v3850
      %v4033 = vadd.f32 %v3009, %v3852
      %v4034 = vadd.f32 %v3010, %v3854
      %v4035 = vadd.f32 %v3011, %v3856
      %v4036 = vadd.f32 %v3012, %v3858
      %v4037 = vadd.f32 %v3013, %v3860
      %v4038 = vadd.f32 %v3014, %v3862
      %v4039 = vadd.f32 %v3015, %v3864
      %v4040 = vadd.f32 %v3016, %v3866
      %v4041 = vadd.f32 %v3017, %v3868
      %v4042 = vadd.f32 %v3018, %v3870
      %v4043 = vadd.f32 %v3019, %v3872
      %v4044 = vadd.f32 %v3020, %v3874
      %v4045 = vadd.f32 %v3021, %v3876
      %v4046 = vadd.f32 %v3022, %v3878
      %v4047 = vadd.f32 %v3023, %v3880
      %v4048 = vadd.f32 %v3024, %v3882
      %v4049 = vadd.f32 %v3025, %v3884
      %v4050 = vadd.f32 %v3026, %v3886
      %v4051 = vadd.f32 %v3027, %v3888
      %v4052 = vadd.f32 %v3028, %v3890
      %v4053 = vadd.f32 %v3029, %v3892
      %v4054 = vadd.f32 %v3030, %v3894
      %v4055 = vadd.f32 %v3031, %v3896
      %v4056 = vadd.f32 %v3032, %v3898
      %v4057 = vadd.f32 %v3033, %v3900
      %v4058 = vadd.f32 %v3034, %v3902
      %v4059 = vadd.f32 %v3035, %v3904
      %v4060 = vadd.f32 %v3036, %v3906
      %v4061 = vadd.f32 %v3037, %v3908
      %v4062 = vadd.f32 %v3038, %v3910
      %v4063 = vadd.f32 %v3039, %v3912
      %v4064 = vadd.f32 %v3040, %v3914
      %v4065 = vadd.f32 %v3041, %v3916
      %v4066 = vadd.f32 %v3042, %v3918
      %v4067 = vadd.f32 %v3043, %v3920
      %v4068 = vadd.f32 %v3044, %v3922
      %v4069 = vadd.f32 %v3045, %v3924
      %v4070 = vadd.f32 %v3046, %v3926
      %v4071 = vadd.f32 %v3047, %v3928
      %v4072 = vadd.f32 %v3048, %v3930
      %v4073 = vadd.f32 %v3049, %v3932
      %v4074 = vadd.f32 %v3050, %v3934
      %v4075 = vadd.f32 %v3051, %v3936
      %v4076 = vadd.f32 %v3052, %v3938
      %v4077 = vadd.f32 %v3053, %v3940
      %v4078 = vadd.f32 %v3054, %v3942
      %v4079 = vadd.f32 %v3055, %v3944
      %v4080 = vadd.f32 %v3056, %v3946
      %v4081 = vadd.f32 %v3057, %v3948
      %v4082 = vadd.f32 %v3058, %v3950
      %v4083 = vadd.f32 %v3059, %v3952
      %v4084 = vadd.f32 %v3060, %v3954
      %v4085 = vadd.f32 %v3061, %v3956
      %v4086 = vadd.f32 %v3062, %v3958
      %v4087 = vmul.f32 %v3959, 0.01
      %v4088 = vmul.f32 %v3960, 0.01
      %v4089 = vmul.f32 %v3961, 0.01
      %v4090 = vmul.f32 %v3962, 0.01
      %v4091 = vmul.f32 %v3963, 0.01
      %v4092 = vmul.f32 %v3964, 0.01
      %v4093 = vmul.f32 %v3965, 0.01
      %v4094 = vmul.f32 %v3966, 0.01
      %v4095 = vmul.f32 %v3967, 0.01
      %v4096 = vmul.f32 %v3968, 0.01
      %v4097 = vmul.f32 %v3969, 0.01
      %v4098 = vmul.f32 %v3970, 0.01
      %v4099 = vmul.f32 %v3971, 0.01
      %v4100 = vmul.f32 %v3972, 0.01
      %v4101 = vmul.f32 %v3973, 0.01
      %v4102 = vmul.f32 %v3974, 0.01
      %v4103 = vmul.f32 %v3975, 0.01
      %v4104 = vmul.f32 %v3976, 0.01
      %v4105 = vmul.f32 %v3977, 0.01
      %v4106 = vmul.f32 %v3978, 0.01
      %v4107 = vmul.f32 %v3979, 0.01
      %v4108 = vmul.f32 %v3980, 0.01
      %v4109 = vmul.f32 %v3981, 0.01
      %v4110 = vmul.f32 %v3982, 0.01
      %v4111 = vmul.f32 %v3983, 0.01
      %v4112 = vmul.f32 %v3984, 0.01
      %v4113 = vmul.f32 %v3985, 0.01
      %v4114 = vmul.f32 %v3986, 0.01
      %v4115 = vmul.f32 %v3987, 0.01
      %v4116 = vmul.f32 %v3988, 0.01
      %v4117 = vmul.f32 %v3989, 0.01
      %v4118 = vmul.f32 %v3990, 0.01
      %v4119 = vmul.f32 %v3991, 0.01
      %v4120 = vmul.f32 %v3992, 0.01
      %v4121 = vmul.f32 %v3993, 0.01
      %v4122 = vmul.f32 %v3994, 0.01
      %v4123 = vmul.f32 %v3995, 0.01
      %v4124 = vmul.f32 %v3996, 0.01
      %v4125 = vmul.f32 %v3997, 0.01
      %v4126 = vmul.f32 %v3998, 0.01
      %v4127 = vmul.f32 %v3999, 0.01
      %v4128 = vmul.f32 %v4000, 0.01
      %v4129 = vmul.f32 %v4001, 0.01
      %v4130 = vmul.f32 %v4002, 0.01
      %v4131 = vmul.f32 %v4003, 0.01
      %v4132 = vmul.f32 %v4004, 0.01
      %v4133 = vmul.f32 %v4005, 0.01
      %v4134 = vmul.f32 %v4006, 0.01
      %v4135 = vmul.f32 %v4007, 0.01
      %v4136 = vmul.f32 %v4008, 0.01
      %v4137 = vmul.f32 %v4009, 0.01
      %v4138 = vmul.f32 %v4010, 0.01
      %v4139 = vmul.f32 %v4011, 0.01
      %v4140 = vmul.f32 %v4012, 0.01
      %v4141 = vmul.f32 %v4013, 0.01
      %v4142 = vmul.f32 %v4014, 0.01
      %v4143 = vmul.f32 %v4015, 0.01
      %v4144 = vmul.f32 %v4016, 0.01
      %v4145 = vmul.f32 %v4017, 0.01
      %v4146 = vmul.f32 %v4018, 0.01
      %v4147 = vmul.f32 %v4019, 0.01
      %v4148 = vmul.f32 %v4020, 0.01
      %v4149 = vmul.f32 %v4021, 0.01
      %v4150 = vmul.f32 %v4022, 0.01
      %v4151 = vmul.f32 %v4023, 0.01
      %v4152 = vmul.f32 %v4024, 0.01
      %v4153 = vmul.f32 %v4025, 0.01
      %v4154 = vmul.f32 %v4026, 0.01
      %v4155 = vmul.f32 %v4027, 0.01
      %v4156 = vmul.f32 %v4028, 0.01
      %v4157 = vmul.f32 %v4029, 0.01
      %v4158 = vmul.f32 %v4030, 0.01
      %v4159 = vmul.f32 %v4031, 0.01
      %v4160 = vmul.f32 %v4032, 0.01
      %v4161 = vmul.f32 %v4033, 0.01
      %v4162 = vmul.f32 %v4034, 0.01
      %v4163 = vmul.f32 %v4035, 0.01
      %v4164 = vmul.f32 %v4036, 0.01
      %v4165 = vmul.f32 %v4037, 0.01
      %v4166 = vmul.f32 %v4038, 0.01
      %v4167 = vmul.f32 %v4039, 0.01
      %v4168 = vmul.f32 %v4040, 0.01
      %v4169 = vmul.f32 %v4041, 0.01
      %v4170 = vmul.f32 %v4042, 0.01
      %v4171 = vmul.f32 %v4043, 0.01
      %v4172 = vmul.f32 %v4044, 0.01
      %v4173 = vmul.f32 %v4045, 0.01
      %v4174 = vmul.f32 %v4046, 0.01
      %v4175 = vmul.f32 %v4047, 0.01
      %v4176 = vmul.f32 %v4048, 0.01
      %v4177 = vmul.f32 %v4049, 0.01
      %v4178 = vmul.f32 %v4050, 0.01
      %v4179 = vmul.f32 %v4051, 0.01
      %v4180 = vmul.f32 %v4052, 0.01
      %v4181 = vmul.f32 %v4053, 0.01
      %v4182 = vmul.f32 %v4054, 0.01
      %v4183 = vmul.f32 %v4055, 0.01
      %v4184 = vmul.f32 %v4056, 0.01
      %v4185 = vmul.f32 %v4057, 0.01
      %v4186 = vmul.f32 %v4058, 0.01
      %v4187 = vmul.f32 %v4059, 0.01
      %v4188 = vmul.f32 %v4060, 0.01
      %v4189 = vmul.f32 %v4061, 0.01
      %v4190 = vmul.f32 %v4062, 0.01
      %v4191 = vmul.f32 %v4063, 0.01
      %v4192 = vmul.f32 %v4064, 0.01
      %v4193 = vmul.f32 %v4065, 0.01
      %v4194 = vmul.f32 %v4066, 0.01
      %v4195 = vmul.f32 %v4067, 0.01
      %v4196 = vmul.f32 %v4068, 0.01
      %v4197 = vmul.f32 %v4069, 0.01
      %v4198 = vmul.f32 %v4070, 0.01
      %v4199 = vmul.f32 %v4071, 0.01
      %v4200 = vmul.f32 %v4072, 0.01
      %v4201 = vmul.f32 %v4073, 0.01
      %v4202 = vmul.f32 %v4074, 0.01
      %v4203 = vmul.f32 %v4075, 0.01
      %v4204 = vmul.f32 %v4076, 0.01
      %v4205 = vmul.f32 %v4077, 0.01
      %v4206 = vmul.f32 %v4078, 0.01
      %v4207 = vmul.f32 %v4079, 0.01
      %v4208 = vmul.f32 %v4080, 0.01
      %v4209 = vmul.f32 %v4081, 0.01
      %v4210 = vmul.f32 %v4082, 0.01
      %v4211 = vmul.f32 %v4083, 0.01
      %v4212 = vmul.f32 %v4084, 0.01
      %v4213 = vmul.f32 %v4085, 0.01
      %v4214 = vmul.f32 %v4086, 0.01
      %v4215 = vld [vmem:[%s2] sm:$0xff]
      %v4216 = vld [vmem:[%s2 + $0x8] sm:$0xff]
      %v4217 = vld [vmem:[%s2 + $0x10] sm:$0xff]
      %v4218 = vld [vmem:[%s2 + $0x18] sm:$0xff]
      %v4219 = vld [vmem:[%s2 + $0x20] sm:$0xff]
      %v4220 = vld [vmem:[%s2 + $0x28] sm:$0xff]
      %v4221 = vld [vmem:[%s2 + $0x30] sm:$0xff]
      %v4222 = vld [vmem:[%s2 + $0x38] sm:$0xff]
      %v4223 = vld [vmem:[%s2 + $0x40] sm:$0xff]
      %v4224 = vld [vmem:[%s2 + $0x48] sm:$0xff]
      %v4225 = vld [vmem:[%s2 + $0x50] sm:$0xff]
      %v4226 = vld [vmem:[%s2 + $0x58] sm:$0xff]
      %v4227 = vld [vmem:[%s2 + $0x60] sm:$0xff]
      %v4228 = vld [vmem:[%s2 + $0x68] sm:$0xff]
      %v4229 = vld [vmem:[%s2 + $0x70] sm:$0xff]
      %v4230 = vld [vmem:[%s2 + $0x78] sm:$0xff]
      %v4231 = vlaneseq
      %v4232 = vshrl.u32 %v4231, 7
      %v4233 = vsub.s32 1, %v4232
      %v4234 = vrot.slane %v356, %v4233
      %4235 = vmatprep.subr.mxu0 0.0
      %4236 = vmatpush1.msra.mxu0 %v4215
      %4237 = vmatprep.subr.mxu0 0.0
      %4238 = vmatpush1.msra.mxu0 %v4216
      %4239 = vmatprep.subr.mxu0 0.0
      %4240 = vmatpush1.msra.mxu0 %v4217
      %4241 = vmatprep.subr.mxu0 0.0
      %4242 = vmatpush1.msra.mxu0 %v4218
      %4243 = vmatprep.subr.mxu0 0.0
      %4244 = vmatpush1.msra.mxu0 %v4219
      %4245 = vmatprep.subr.mxu0 0.0
      %4246 = vmatpush1.msra.mxu0 %v4220
      %4247 = vmatprep.subr.mxu0 0.0
      %4248 = vmatpush1.msra.mxu0 %v4221
      %4249 = vmatprep.subr.mxu0 0.0
      %4250 = vmatpush1.msra.mxu0 %v4222
      %4251 = vmatprep.subr.mxu0 0.0
      %4252 = vmatpush1.msra.mxu0 %v4223
      %4253 = vmatprep.subr.mxu0 0.0
      %4254 = vmatpush1.msra.mxu0 %v4224
      %4255 = vmatprep.subr.mxu0 0.0
      %4256 = vmatpush1.msra.mxu0 %v4225
      %4257 = vmatprep.subr.mxu0 0.0
      %4258 = vmatpush1.msra.mxu0 %v4226
      %4259 = vmatprep.subr.mxu0 0.0
      %4260 = vmatpush1.msra.mxu0 %v4227
      %4261 = vmatprep.subr.mxu0 0.0
      %4262 = vmatpush1.msra.mxu0 %v4228
      %4263 = vmatprep.subr.mxu0 0.0
      %4264 = vmatpush1.msra.mxu0 %v4229
      %4265 = vmatprep.subr.mxu0 0.0
      %4266 = vmatpush1.msra.mxu0 %v4230
      %4267 = vmatprep.subr.mxu0 0.0
      %4268 = vmatpush1.msra.mxu0 0.0
      %4269 = vmatprep.subr.mxu0 0.0
      %4270 = vmatpush1.msra.mxu0 0.0
      %4271 = vmatprep.subr.mxu0 0.0
      %4272 = vmatpush1.msra.mxu0 0.0
      %4273 = vmatprep.subr.mxu0 0.0
      %4274 = vmatpush1.msra.mxu0 0.0
      %4275 = vmatprep.subr.mxu0 0.0
      %4276 = vmatpush1.msra.mxu0 0.0
      %4277 = vmatprep.subr.mxu0 0.0
      %4278 = vmatpush1.msra.mxu0 0.0
      %4279 = vmatprep.subr.mxu0 0.0
      %4280 = vmatpush1.msra.mxu0 0.0
      %4281 = vmatprep.subr.mxu0 0.0
      %4282 = vmatpush1.msra.mxu0 0.0
      %4283 = vmatprep.subr.mxu0 0.0
      %4284 = vmatpush1.msra.mxu0 0.0
      %4285 = vmatprep.subr.mxu0 0.0
      %4286 = vmatpush1.msra.mxu0 0.0
      %4287 = vmatprep.subr.mxu0 0.0
      %4288 = vmatpush1.msra.mxu0 0.0
      %4289 = vmatprep.subr.mxu0 0.0
      %4290 = vmatpush1.msra.mxu0 0.0
      %4291 = vmatprep.subr.mxu0 0.0
      %4292 = vmatpush1.msra.mxu0 0.0
      %4293 = vmatprep.subr.mxu0 0.0
      %4294 = vmatpush1.msra.mxu0 0.0
      %4295 = vmatprep.subr.mxu0 0.0
      %4296 = vmatpush1.msra.mxu0 0.0
      %4297 = vmatprep.subr.mxu0 0.0
      %4298 = vmatpush1.msra.mxu0 0.0
      %4299 = vmatprep.mubr.f32.mxu0 0.0
      %4300 = vmatmul.mubr.f32.gmra.mrb[0].mxu0 %v4087
      %v4301 = vpop.f32.mrb[0].mxu0
      %v4302 = vadd.f32 %v4234, %v4301
      %v4303 = vpop.f32.mrb[0].mxu0
      %4304 = vmatprep.mubr.f32.mxu0 0.0
      %4305 = vmatmul.mubr.f32.gmra.mrb[0].mxu0 %v4088
      %v4306 = vpop.f32.mrb[0].mxu0
      %v4307 = vadd.f32 %v4234, %v4306
      %v4308 = vpop.f32.mrb[0].mxu0
      %4309 = vmatprep.mubr.f32.mxu0 0.0
      %4310 = vmatmul.mubr.f32.gmra.mrb[0].mxu0 %v4089
      %v4311 = vpop.f32.mrb[0].mxu0
      %v4312 = vadd.f32 %v4234, %v4311
      %v4313 = vpop.f32.mrb[0].mxu0
      %4314 = vmatprep.mubr.f32.mxu0 0.0
      %4315 = vmatmul.mubr.f32.gmra.mrb[0].mxu0 %v4090
      %v4316 = vpop.f32.mrb[0].mxu0
      %v4317 = vadd.f32 %v4234, %v4316
      %v4318 = vpop.f32.mrb[0].mxu0
      %4319 = vmatprep.mubr.f32.mxu0 0.0
      %4320 = vmatmul.mubr.f32.gmra.mrb[0].mxu0 %v4091
      %v4321 = vpop.f32.mrb[0].mxu0
      %v4322 = vadd.f32 %v4234, %v4321
      %v4323 = vpop.f32.mrb[0].mxu0
      %4324 = vmatprep.mubr.f32.mxu0 0.0
      %4325 = vmatmul.mubr.f32.gmra.mrb[0].mxu0 %v4092
      %v4326 = vpop.f32.mrb[0].mxu0
      %v4327 = vadd.f32 %v4234, %v4326
      %v4328 = vpop.f32.mrb[0].mxu0
      %4329 = vmatprep.mubr.f32.mxu0 0.0
      %4330 = vmatmul.mubr.f32.gmra.mrb[0].mxu0 %v4093
      %v4331 = vpop.f32.mrb[0].mxu0
      %v4332 = vadd.f32 %v4234, %v4331
      %v4333 = vpop.f32.mrb[0].mxu0
      %4334 = vmatprep.mubr.f32.mxu0 0.0
      %4335 = vmatmul.mubr.f32.gmra.mrb[0].mxu0 %v4094
      %v4336 = vpop.f32.mrb[0].mxu0
      %v4337 = vadd.f32 %v4234, %v4336
      %v4338 = vpop.f32.mrb[0].mxu0
      %4339 = vmatprep.mubr.f32.mxu0 0.0
      %4340 = vmatmul.mubr.f32.gmra.mrb[0].mxu0 %v4095
      %v4341 = vpop.f32.mrb[0].mxu0
      %v4342 = vadd.f32 %v4234, %v4341
      %v4343 = vpop.f32.mrb[0].mxu0
      %4344 = vmatprep.mubr.f32.mxu0 0.0
      %4345 = vmatmul.mubr.f32.gmra.mrb[0].mxu0 %v4096
      %v4346 = vpop.f32.mrb[0].mxu0
      %v4347 = vadd.f32 %v4234, %v4346
      %v4348 = vpop.f32.mrb[0].mxu0
      %4349 = vmatprep.mubr.f32.mxu0 0.0
      %4350 = vmatmul.mubr.f32.gmra.mrb[0].mxu0 %v4097
      %v4351 = vpop.f32.mrb[0].mxu0
      %v4352 = vadd.f32 %v4234, %v4351
      %v4353 = vpop.f32.mrb[0].mxu0
      %4354 = vmatprep.mubr.f32.mxu0 0.0
      %4355 = vmatmul.mubr.f32.gmra.mrb[0].mxu0 %v4098
      %v4356 = vpop.f32.mrb[0].mxu0
      %v4357 = vadd.f32 %v4234, %v4356
      %v4358 = vpop.f32.mrb[0].mxu0
      %4359 = vmatprep.mubr.f32.mxu0 0.0
      %4360 = vmatmul.mubr.f32.gmra.mrb[0].mxu0 %v4099
      %v4361 = vpop.f32.mrb[0].mxu0
      %v4362 = vadd.f32 %v4234, %v4361
      %v4363 = vpop.f32.mrb[0].mxu0
      %4364 = vmatprep.mubr.f32.mxu0 0.0
      %4365 = vmatmul.mubr.f32.gmra.mrb[0].mxu0 %v4100
      %v4366 = vpop.f32.mrb[0].mxu0
      %v4367 = vadd.f32 %v4234, %v4366
      %v4368 = vpop.f32.mrb[0].mxu0
      %4369 = vmatprep.mubr.f32.mxu0 0.0
      %4370 = vmatmul.mubr.f32.gmra.mrb[0].mxu0 %v4101
      %v4371 = vpop.f32.mrb[0].mxu0
      %v4372 = vadd.f32 %v4234, %v4371
      %v4373 = vpop.f32.mrb[0].mxu0
      %4374 = vmatprep.mubr.f32.mxu0 0.0
      %4375 = vmatmul.mubr.f32.gmra.mrb[0].mxu0 %v4102
      %v4376 = vpop.f32.mrb[0].mxu0
      %v4377 = vadd.f32 %v4234, %v4376
      %v4378 = vpop.f32.mrb[0].mxu0
      %4379 = vmatprep.mubr.f32.mxu0 0.0
      %4380 = vmatmul.mubr.f32.gmra.mrb[0].mxu0 %v4103
      %v4381 = vpop.f32.mrb[0].mxu0
      %v4382 = vadd.f32 %v4234, %v4381
      %v4383 = vpop.f32.mrb[0].mxu0
      %4384 = vmatprep.mubr.f32.mxu0 0.0
      %4385 = vmatmul.mubr.f32.gmra.mrb[0].mxu0 %v4104
      %v4386 = vpop.f32.mrb[0].mxu0
      %v4387 = vadd.f32 %v4234, %v4386
      %v4388 = vpop.f32.mrb[0].mxu0
      %4389 = vmatprep.mubr.f32.mxu0 0.0
      %4390 = vmatmul.mubr.f32.gmra.mrb[0].mxu0 %v4105
      %v4391 = vpop.f32.mrb[0].mxu0
      %v4392 = vadd.f32 %v4234, %v4391
      %v4393 = vpop.f32.mrb[0].mxu0
      %4394 = vmatprep.mubr.f32.mxu0 0.0
      %4395 = vmatmul.mubr.f32.gmra.mrb[0].mxu0 %v4106
      %v4396 = vpop.f32.mrb[0].mxu0
      %v4397 = vadd.f32 %v4234, %v4396
      %v4398 = vpop.f32.mrb[0].mxu0
      %4399 = vmatprep.mubr.f32.mxu0 0.0
      %4400 = vmatmul.mubr.f32.gmra.mrb[0].mxu0 %v4107
      %v4401 = vpop.f32.mrb[0].mxu0
      %v4402 = vadd.f32 %v4234, %v4401
      %v4403 = vpop.f32.mrb[0].mxu0
      %4404 = vmatprep.mubr.f32.mxu0 0.0
      %4405 = vmatmul.mubr.f32.gmra.mrb[0].mxu0 %v4108
      %v4406 = vpop.f32.mrb[0].mxu0
      %v4407 = vadd.f32 %v4234, %v4406
      %v4408 = vpop.f32.mrb[0].mxu0
      %4409 = vmatprep.mubr.f32.mxu0 0.0
      %4410 = vmatmul.mubr.f32.gmra.mrb[0].mxu0 %v4109
      %v4411 = vpop.f32.mrb[0].mxu0
      %v4412 = vadd.f32 %v4234, %v4411
      %v4413 = vpop.f32.mrb[0].mxu0
      %4414 = vmatprep.mubr.f32.mxu0 0.0
      %4415 = vmatmul.mubr.f32.gmra.mrb[0].mxu0 %v4110
      %v4416 = vpop.f32.mrb[0].mxu0
      %v4417 = vadd.f32 %v4234, %v4416
      %v4418 = vpop.f32.mrb[0].mxu0
      %4419 = vmatprep.mubr.f32.mxu0 0.0
      %4420 = vmatmul.mubr.f32.gmra.mrb[0].mxu0 %v4111
      %v4421 = vpop.f32.mrb[0].mxu0
      %v4422 = vadd.f32 %v4234, %v4421
      %v4423 = vpop.f32.mrb[0].mxu0
      %4424 = vmatprep.mubr.f32.mxu0 0.0
      %4425 = vmatmul.mubr.f32.gmra.mrb[0].mxu0 %v4112
      %v4426 = vpop.f32.mrb[0].mxu0
      %v4427 = vadd.f32 %v4234, %v4426
      %v4428 = vpop.f32.mrb[0].mxu0
      %4429 = vmatprep.mubr.f32.mxu0 0.0
      %4430 = vmatmul.mubr.f32.gmra.mrb[0].mxu0 %v4113
      %v4431 = vpop.f32.mrb[0].mxu0
      %v4432 = vadd.f32 %v4234, %v4431
      %v4433 = vpop.f32.mrb[0].mxu0
      %4434 = vmatprep.mubr.f32.mxu0 0.0
      %4435 = vmatmul.mubr.f32.gmra.mrb[0].mxu0 %v4114
      %v4436 = vpop.f32.mrb[0].mxu0
      %v4437 = vadd.f32 %v4234, %v4436
      %v4438 = vpop.f32.mrb[0].mxu0
      %4439 = vmatprep.mubr.f32.mxu0 0.0
      %4440 = vmatmul.mubr.f32.gmra.mrb[0].mxu0 %v4115
      %v4441 = vpop.f32.mrb[0].mxu0
      %v4442 = vadd.f32 %v4234, %v4441
      %v4443 = vpop.f32.mrb[0].mxu0
      %4444 = vmatprep.mubr.f32.mxu0 0.0
      %4445 = vmatmul.mubr.f32.gmra.mrb[0].mxu0 %v4116
      %v4446 = vpop.f32.mrb[0].mxu0
      %v4447 = vadd.f32 %v4234, %v4446
      %v4448 = vpop.f32.mrb[0].mxu0
      %4449 = vmatprep.mubr.f32.mxu0 0.0
      %4450 = vmatmul.mubr.f32.gmra.mrb[0].mxu0 %v4117
      %v4451 = vpop.f32.mrb[0].mxu0
      %v4452 = vadd.f32 %v4234, %v4451
      %v4453 = vpop.f32.mrb[0].mxu0
      %4454 = vmatprep.mubr.f32.mxu0 0.0
      %4455 = vmatmul.mubr.f32.gmra.mrb[0].mxu0 %v4118
      %v4456 = vpop.f32.mrb[0].mxu0
      %v4457 = vadd.f32 %v4234, %v4456
      %v4458 = vpop.f32.mrb[0].mxu0
      %4459 = vmatprep.mubr.f32.mxu0 0.0
      %4460 = vmatmul.mubr.f32.gmra.mrb[0].mxu0 %v4119
      %v4461 = vpop.f32.mrb[0].mxu0
      %v4462 = vadd.f32 %v4234, %v4461
      %v4463 = vpop.f32.mrb[0].mxu0
      %4464 = vmatprep.mubr.f32.mxu0 0.0
      %4465 = vmatmul.mubr.f32.gmra.mrb[0].mxu0 %v4120
      %v4466 = vpop.f32.mrb[0].mxu0
      %v4467 = vadd.f32 %v4234, %v4466
      %v4468 = vpop.f32.mrb[0].mxu0
      %4469 = vmatprep.mubr.f32.mxu0 0.0
      %4470 = vmatmul.mubr.f32.gmra.mrb[0].mxu0 %v4121
      %v4471 = vpop.f32.mrb[0].mxu0
      %v4472 = vadd.f32 %v4234, %v4471
      %v4473 = vpop.f32.mrb[0].mxu0
      %4474 = vmatprep.mubr.f32.mxu0 0.0
      %4475 = vmatmul.mubr.f32.gmra.mrb[0].mxu0 %v4122
      %v4476 = vpop.f32.mrb[0].mxu0
      %v4477 = vadd.f32 %v4234, %v4476
      %v4478 = vpop.f32.mrb[0].mxu0
      %4479 = vmatprep.mubr.f32.mxu0 0.0
      %4480 = vmatmul.mubr.f32.gmra.mrb[0].mxu0 %v4123
      %v4481 = vpop.f32.mrb[0].mxu0
      %v4482 = vadd.f32 %v4234, %v4481
      %v4483 = vpop.f32.mrb[0].mxu0
      %4484 = vmatprep.mubr.f32.mxu0 0.0
      %4485 = vmatmul.mubr.f32.gmra.mrb[0].mxu0 %v4124
      %v4486 = vpop.f32.mrb[0].mxu0
      %v4487 = vadd.f32 %v4234, %v4486
      %v4488 = vpop.f32.mrb[0].mxu0
      %4489 = vmatprep.mubr.f32.mxu0 0.0
      %4490 = vmatmul.mubr.f32.gmra.mrb[0].mxu0 %v4125
      %v4491 = vpop.f32.mrb[0].mxu0
      %v4492 = vadd.f32 %v4234, %v4491
      %v4493 = vpop.f32.mrb[0].mxu0
      %4494 = vmatprep.mubr.f32.mxu0 0.0
      %4495 = vmatmul.mubr.f32.gmra.mrb[0].mxu0 %v4126
      %v4496 = vpop.f32.mrb[0].mxu0
      %v4497 = vadd.f32 %v4234, %v4496
      %v4498 = vpop.f32.mrb[0].mxu0
      %4499 = vmatprep.mubr.f32.mxu0 0.0
      %4500 = vmatmul.mubr.f32.gmra.mrb[0].mxu0 %v4127
      %v4501 = vpop.f32.mrb[0].mxu0
      %v4502 = vadd.f32 %v4234, %v4501
      %v4503 = vpop.f32.mrb[0].mxu0
      %4504 = vmatprep.mubr.f32.mxu0 0.0
      %4505 = vmatmul.mubr.f32.gmra.mrb[0].mxu0 %v4128
      %v4506 = vpop.f32.mrb[0].mxu0
      %v4507 = vadd.f32 %v4234, %v4506
      %v4508 = vpop.f32.mrb[0].mxu0
      %4509 = vmatprep.mubr.f32.mxu0 0.0
      %4510 = vmatmul.mubr.f32.gmra.mrb[0].mxu0 %v4129
      %v4511 = vpop.f32.mrb[0].mxu0
      %v4512 = vadd.f32 %v4234, %v4511
      %v4513 = vpop.f32.mrb[0].mxu0
      %4514 = vmatprep.mubr.f32.mxu0 0.0
      %4515 = vmatmul.mubr.f32.gmra.mrb[0].mxu0 %v4130
      %v4516 = vpop.f32.mrb[0].mxu0
      %v4517 = vadd.f32 %v4234, %v4516
      %v4518 = vpop.f32.mrb[0].mxu0
      %4519 = vmatprep.mubr.f32.mxu0 0.0
      %4520 = vmatmul.mubr.f32.gmra.mrb[0].mxu0 %v4131
      %v4521 = vpop.f32.mrb[0].mxu0
      %v4522 = vadd.f32 %v4234, %v4521
      %v4523 = vpop.f32.mrb[0].mxu0
      %4524 = vmatprep.mubr.f32.mxu0 0.0
      %4525 = vmatmul.mubr.f32.gmra.mrb[0].mxu0 %v4132
      %v4526 = vpop.f32.mrb[0].mxu0
      %v4527 = vadd.f32 %v4234, %v4526
      %v4528 = vpop.f32.mrb[0].mxu0
      %4529 = vmatprep.mubr.f32.mxu0 0.0
      %4530 = vmatmul.mubr.f32.gmra.mrb[0].mxu0 %v4133
      %v4531 = vpop.f32.mrb[0].mxu0
      %v4532 = vadd.f32 %v4234, %v4531
      %v4533 = vpop.f32.mrb[0].mxu0
      %4534 = vmatprep.mubr.f32.mxu0 0.0
      %4535 = vmatmul.mubr.f32.gmra.mrb[0].mxu0 %v4134
      %v4536 = vpop.f32.mrb[0].mxu0
      %v4537 = vadd.f32 %v4234, %v4536
      %v4538 = vpop.f32.mrb[0].mxu0
      %4539 = vmatprep.mubr.f32.mxu0 0.0
      %4540 = vmatmul.mubr.f32.gmra.mrb[0].mxu0 %v4135
      %v4541 = vpop.f32.mrb[0].mxu0
      %v4542 = vadd.f32 %v4234, %v4541
      %v4543 = vpop.f32.mrb[0].mxu0
      %4544 = vmatprep.mubr.f32.mxu0 0.0
      %4545 = vmatmul.mubr.f32.gmra.mrb[0].mxu0 %v4136
      %v4546 = vpop.f32.mrb[0].mxu0
      %v4547 = vadd.f32 %v4234, %v4546
      %v4548 = vpop.f32.mrb[0].mxu0
      %4549 = vmatprep.mubr.f32.mxu0 0.0
      %4550 = vmatmul.mubr.f32.gmra.mrb[0].mxu0 %v4137
      %v4551 = vpop.f32.mrb[0].mxu0
      %v4552 = vadd.f32 %v4234, %v4551
      %v4553 = vpop.f32.mrb[0].mxu0
      %4554 = vmatprep.mubr.f32.mxu0 0.0
      %4555 = vmatmul.mubr.f32.gmra.mrb[0].mxu0 %v4138
      %v4556 = vpop.f32.mrb[0].mxu0
      %v4557 = vadd.f32 %v4234, %v4556
      %v4558 = vpop.f32.mrb[0].mxu0
      %4559 = vmatprep.mubr.f32.mxu0 0.0
      %4560 = vmatmul.mubr.f32.gmra.mrb[0].mxu0 %v4139
      %v4561 = vpop.f32.mrb[0].mxu0
      %v4562 = vadd.f32 %v4234, %v4561
      %v4563 = vpop.f32.mrb[0].mxu0
      %4564 = vmatprep.mubr.f32.mxu0 0.0
      %4565 = vmatmul.mubr.f32.gmra.mrb[0].mxu0 %v4140
      %v4566 = vpop.f32.mrb[0].mxu0
      %v4567 = vadd.f32 %v4234, %v4566
      %v4568 = vpop.f32.mrb[0].mxu0
      %4569 = vmatprep.mubr.f32.mxu0 0.0
      %4570 = vmatmul.mubr.f32.gmra.mrb[0].mxu0 %v4141
      %v4571 = vpop.f32.mrb[0].mxu0
      %v4572 = vadd.f32 %v4234, %v4571
      %v4573 = vpop.f32.mrb[0].mxu0
      %4574 = vmatprep.mubr.f32.mxu0 0.0
      %4575 = vmatmul.mubr.f32.gmra.mrb[0].mxu0 %v4142
      %v4576 = vpop.f32.mrb[0].mxu0
      %v4577 = vadd.f32 %v4234, %v4576
      %v4578 = vpop.f32.mrb[0].mxu0
      %4579 = vmatprep.mubr.f32.mxu0 0.0
      %4580 = vmatmul.mubr.f32.gmra.mrb[0].mxu0 %v4143
      %v4581 = vpop.f32.mrb[0].mxu0
      %v4582 = vadd.f32 %v4234, %v4581
      %v4583 = vpop.f32.mrb[0].mxu0
      %4584 = vmatprep.mubr.f32.mxu0 0.0
      %4585 = vmatmul.mubr.f32.gmra.mrb[0].mxu0 %v4144
      %v4586 = vpop.f32.mrb[0].mxu0
      %v4587 = vadd.f32 %v4234, %v4586
      %v4588 = vpop.f32.mrb[0].mxu0
      %4589 = vmatprep.mubr.f32.mxu0 0.0
      %4590 = vmatmul.mubr.f32.gmra.mrb[0].mxu0 %v4145
      %v4591 = vpop.f32.mrb[0].mxu0
      %v4592 = vadd.f32 %v4234, %v4591
      %v4593 = vpop.f32.mrb[0].mxu0
      %4594 = vmatprep.mubr.f32.mxu0 0.0
      %4595 = vmatmul.mubr.f32.gmra.mrb[0].mxu0 %v4146
      %v4596 = vpop.f32.mrb[0].mxu0
      %v4597 = vadd.f32 %v4234, %v4596
      %v4598 = vpop.f32.mrb[0].mxu0
      %4599 = vmatprep.mubr.f32.mxu0 0.0
      %4600 = vmatmul.mubr.f32.gmra.mrb[0].mxu0 %v4147
      %v4601 = vpop.f32.mrb[0].mxu0
      %v4602 = vadd.f32 %v4234, %v4601
      %v4603 = vpop.f32.mrb[0].mxu0
      %4604 = vmatprep.mubr.f32.mxu0 0.0
      %4605 = vmatmul.mubr.f32.gmra.mrb[0].mxu0 %v4148
      %v4606 = vpop.f32.mrb[0].mxu0
      %v4607 = vadd.f32 %v4234, %v4606
      %v4608 = vpop.f32.mrb[0].mxu0
      %4609 = vmatprep.mubr.f32.mxu0 0.0
      %4610 = vmatmul.mubr.f32.gmra.mrb[0].mxu0 %v4149
      %v4611 = vpop.f32.mrb[0].mxu0
      %v4612 = vadd.f32 %v4234, %v4611
      %v4613 = vpop.f32.mrb[0].mxu0
      %4614 = vmatprep.mubr.f32.mxu0 0.0
      %4615 = vmatmul.mubr.f32.gmra.mrb[0].mxu0 %v4150
      %v4616 = vpop.f32.mrb[0].mxu0
      %v4617 = vadd.f32 %v4234, %v4616
      %v4618 = vpop.f32.mrb[0].mxu0
      %4619 = vmatprep.mubr.f32.mxu0 0.0
      %4620 = vmatmul.mubr.f32.gmra.mrb[0].mxu0 %v4151
      %v4621 = vpop.f32.mrb[0].mxu0
      %v4622 = vadd.f32 %v4234, %v4621
      %v4623 = vpop.f32.mrb[0].mxu0
      %4624 = vmatprep.mubr.f32.mxu0 0.0
      %4625 = vmatmul.mubr.f32.gmra.mrb[0].mxu0 %v4152
      %v4626 = vpop.f32.mrb[0].mxu0
      %v4627 = vadd.f32 %v4234, %v4626
      %v4628 = vpop.f32.mrb[0].mxu0
      %4629 = vmatprep.mubr.f32.mxu0 0.0
      %4630 = vmatmul.mubr.f32.gmra.mrb[0].mxu0 %v4153
      %v4631 = vpop.f32.mrb[0].mxu0
      %v4632 = vadd.f32 %v4234, %v4631
      %v4633 = vpop.f32.mrb[0].mxu0
      %4634 = vmatprep.mubr.f32.mxu0 0.0
      %4635 = vmatmul.mubr.f32.gmra.mrb[0].mxu0 %v4154
      %v4636 = vpop.f32.mrb[0].mxu0
      %v4637 = vadd.f32 %v4234, %v4636
      %v4638 = vpop.f32.mrb[0].mxu0
      %4639 = vmatprep.mubr.f32.mxu0 0.0
      %4640 = vmatmul.mubr.f32.gmra.mrb[0].mxu0 %v4155
      %v4641 = vpop.f32.mrb[0].mxu0
      %v4642 = vadd.f32 %v4234, %v4641
      %v4643 = vpop.f32.mrb[0].mxu0
      %4644 = vmatprep.mubr.f32.mxu0 0.0
      %4645 = vmatmul.mubr.f32.gmra.mrb[0].mxu0 %v4156
      %v4646 = vpop.f32.mrb[0].mxu0
      %v4647 = vadd.f32 %v4234, %v4646
      %v4648 = vpop.f32.mrb[0].mxu0
      %4649 = vmatprep.mubr.f32.mxu0 0.0
      %4650 = vmatmul.mubr.f32.gmra.mrb[0].mxu0 %v4157
      %v4651 = vpop.f32.mrb[0].mxu0
      %v4652 = vadd.f32 %v4234, %v4651
      %v4653 = vpop.f32.mrb[0].mxu0
      %4654 = vmatprep.mubr.f32.mxu0 0.0
      %4655 = vmatmul.mubr.f32.gmra.mrb[0].mxu0 %v4158
      %v4656 = vpop.f32.mrb[0].mxu0
      %v4657 = vadd.f32 %v4234, %v4656
      %v4658 = vpop.f32.mrb[0].mxu0
      %4659 = vmatprep.mubr.f32.mxu0 0.0
      %4660 = vmatmul.mubr.f32.gmra.mrb[0].mxu0 %v4159
      %v4661 = vpop.f32.mrb[0].mxu0
      %v4662 = vadd.f32 %v4234, %v4661
      %v4663 = vpop.f32.mrb[0].mxu0
      %4664 = vmatprep.mubr.f32.mxu0 0.0
      %4665 = vmatmul.mubr.f32.gmra.mrb[0].mxu0 %v4160
      %v4666 = vpop.f32.mrb[0].mxu0
      %v4667 = vadd.f32 %v4234, %v4666
      %v4668 = vpop.f32.mrb[0].mxu0
      %4669 = vmatprep.mubr.f32.mxu0 0.0
      %4670 = vmatmul.mubr.f32.gmra.mrb[0].mxu0 %v4161
      %v4671 = vpop.f32.mrb[0].mxu0
      %v4672 = vadd.f32 %v4234, %v4671
      %v4673 = vpop.f32.mrb[0].mxu0
      %4674 = vmatprep.mubr.f32.mxu0 0.0
      %4675 = vmatmul.mubr.f32.gmra.mrb[0].mxu0 %v4162
      %v4676 = vpop.f32.mrb[0].mxu0
      %v4677 = vadd.f32 %v4234, %v4676
      %v4678 = vpop.f32.mrb[0].mxu0
      %4679 = vmatprep.mubr.f32.mxu0 0.0
      %4680 = vmatmul.mubr.f32.gmra.mrb[0].mxu0 %v4163
      %v4681 = vpop.f32.mrb[0].mxu0
      %v4682 = vadd.f32 %v4234, %v4681
      %v4683 = vpop.f32.mrb[0].mxu0
      %4684 = vmatprep.mubr.f32.mxu0 0.0
      %4685 = vmatmul.mubr.f32.gmra.mrb[0].mxu0 %v4164
      %v4686 = vpop.f32.mrb[0].mxu0
      %v4687 = vadd.f32 %v4234, %v4686
      %v4688 = vpop.f32.mrb[0].mxu0
      %4689 = vmatprep.mubr.f32.mxu0 0.0
      %4690 = vmatmul.mubr.f32.gmra.mrb[0].mxu0 %v4165
      %v4691 = vpop.f32.mrb[0].mxu0
      %v4692 = vadd.f32 %v4234, %v4691
      %v4693 = vpop.f32.mrb[0].mxu0
      %4694 = vmatprep.mubr.f32.mxu0 0.0
      %4695 = vmatmul.mubr.f32.gmra.mrb[0].mxu0 %v4166
      %v4696 = vpop.f32.mrb[0].mxu0
      %v4697 = vadd.f32 %v4234, %v4696
      %v4698 = vpop.f32.mrb[0].mxu0
      %4699 = vmatprep.mubr.f32.mxu0 0.0
      %4700 = vmatmul.mubr.f32.gmra.mrb[0].mxu0 %v4167
      %v4701 = vpop.f32.mrb[0].mxu0
      %v4702 = vadd.f32 %v4234, %v4701
      %v4703 = vpop.f32.mrb[0].mxu0
      %4704 = vmatprep.mubr.f32.mxu0 0.0
      %4705 = vmatmul.mubr.f32.gmra.mrb[0].mxu0 %v4168
      %v4706 = vpop.f32.mrb[0].mxu0
      %v4707 = vadd.f32 %v4234, %v4706
      %v4708 = vpop.f32.mrb[0].mxu0
      %4709 = vmatprep.mubr.f32.mxu0 0.0
      %4710 = vmatmul.mubr.f32.gmra.mrb[0].mxu0 %v4169
      %v4711 = vpop.f32.mrb[0].mxu0
      %v4712 = vadd.f32 %v4234, %v4711
      %v4713 = vpop.f32.mrb[0].mxu0
      %4714 = vmatprep.mubr.f32.mxu0 0.0
      %4715 = vmatmul.mubr.f32.gmra.mrb[0].mxu0 %v4170
      %v4716 = vpop.f32.mrb[0].mxu0
      %v4717 = vadd.f32 %v4234, %v4716
      %v4718 = vpop.f32.mrb[0].mxu0
      %4719 = vmatprep.mubr.f32.mxu0 0.0
      %4720 = vmatmul.mubr.f32.gmra.mrb[0].mxu0 %v4171
      %v4721 = vpop.f32.mrb[0].mxu0
      %v4722 = vadd.f32 %v4234, %v4721
      %v4723 = vpop.f32.mrb[0].mxu0
      %4724 = vmatprep.mubr.f32.mxu0 0.0
      %4725 = vmatmul.mubr.f32.gmra.mrb[0].mxu0 %v4172
      %v4726 = vpop.f32.mrb[0].mxu0
      %v4727 = vadd.f32 %v4234, %v4726
      %v4728 = vpop.f32.mrb[0].mxu0
      %4729 = vmatprep.mubr.f32.mxu0 0.0
      %4730 = vmatmul.mubr.f32.gmra.mrb[0].mxu0 %v4173
      %v4731 = vpop.f32.mrb[0].mxu0
      %v4732 = vadd.f32 %v4234, %v4731
      %v4733 = vpop.f32.mrb[0].mxu0
      %4734 = vmatprep.mubr.f32.mxu0 0.0
      %4735 = vmatmul.mubr.f32.gmra.mrb[0].mxu0 %v4174
      %v4736 = vpop.f32.mrb[0].mxu0
      %v4737 = vadd.f32 %v4234, %v4736
      %v4738 = vpop.f32.mrb[0].mxu0
      %4739 = vmatprep.mubr.f32.mxu0 0.0
      %4740 = vmatmul.mubr.f32.gmra.mrb[0].mxu0 %v4175
      %v4741 = vpop.f32.mrb[0].mxu0
      %v4742 = vadd.f32 %v4234, %v4741
      %v4743 = vpop.f32.mrb[0].mxu0
      %4744 = vmatprep.mubr.f32.mxu0 0.0
      %4745 = vmatmul.mubr.f32.gmra.mrb[0].mxu0 %v4176
      %v4746 = vpop.f32.mrb[0].mxu0
      %v4747 = vadd.f32 %v4234, %v4746
      %v4748 = vpop.f32.mrb[0].mxu0
      %4749 = vmatprep.mubr.f32.mxu0 0.0
      %4750 = vmatmul.mubr.f32.gmra.mrb[0].mxu0 %v4177
      %v4751 = vpop.f32.mrb[0].mxu0
      %v4752 = vadd.f32 %v4234, %v4751
      %v4753 = vpop.f32.mrb[0].mxu0
      %4754 = vmatprep.mubr.f32.mxu0 0.0
      %4755 = vmatmul.mubr.f32.gmra.mrb[0].mxu0 %v4178
      %v4756 = vpop.f32.mrb[0].mxu0
      %v4757 = vadd.f32 %v4234, %v4756
      %v4758 = vpop.f32.mrb[0].mxu0
      %4759 = vmatprep.mubr.f32.mxu0 0.0
      %4760 = vmatmul.mubr.f32.gmra.mrb[0].mxu0 %v4179
      %v4761 = vpop.f32.mrb[0].mxu0
      %v4762 = vadd.f32 %v4234, %v4761
      %v4763 = vpop.f32.mrb[0].mxu0
      %4764 = vmatprep.mubr.f32.mxu0 0.0
      %4765 = vmatmul.mubr.f32.gmra.mrb[0].mxu0 %v4180
      %v4766 = vpop.f32.mrb[0].mxu0
      %v4767 = vadd.f32 %v4234, %v4766
      %v4768 = vpop.f32.mrb[0].mxu0
      %4769 = vmatprep.mubr.f32.mxu0 0.0
      %4770 = vmatmul.mubr.f32.gmra.mrb[0].mxu0 %v4181
      %v4771 = vpop.f32.mrb[0].mxu0
      %v4772 = vadd.f32 %v4234, %v4771
      %v4773 = vpop.f32.mrb[0].mxu0
      %4774 = vmatprep.mubr.f32.mxu0 0.0
      %4775 = vmatmul.mubr.f32.gmra.mrb[0].mxu0 %v4182
      %v4776 = vpop.f32.mrb[0].mxu0
      %v4777 = vadd.f32 %v4234, %v4776
      %v4778 = vpop.f32.mrb[0].mxu0
      %4779 = vmatprep.mubr.f32.mxu0 0.0
      %4780 = vmatmul.mubr.f32.gmra.mrb[0].mxu0 %v4183
      %v4781 = vpop.f32.mrb[0].mxu0
      %v4782 = vadd.f32 %v4234, %v4781
      %v4783 = vpop.f32.mrb[0].mxu0
      %4784 = vmatprep.mubr.f32.mxu0 0.0
      %4785 = vmatmul.mubr.f32.gmra.mrb[0].mxu0 %v4184
      %v4786 = vpop.f32.mrb[0].mxu0
      %v4787 = vadd.f32 %v4234, %v4786
      %v4788 = vpop.f32.mrb[0].mxu0
      %4789 = vmatprep.mubr.f32.mxu0 0.0
      %4790 = vmatmul.mubr.f32.gmra.mrb[0].mxu0 %v4185
      %v4791 = vpop.f32.mrb[0].mxu0
      %v4792 = vadd.f32 %v4234, %v4791
      %v4793 = vpop.f32.mrb[0].mxu0
      %4794 = vmatprep.mubr.f32.mxu0 0.0
      %4795 = vmatmul.mubr.f32.gmra.mrb[0].mxu0 %v4186
      %v4796 = vpop.f32.mrb[0].mxu0
      %v4797 = vadd.f32 %v4234, %v4796
      %v4798 = vpop.f32.mrb[0].mxu0
      %4799 = vmatprep.mubr.f32.mxu0 0.0
      %4800 = vmatmul.mubr.f32.gmra.mrb[0].mxu0 %v4187
      %v4801 = vpop.f32.mrb[0].mxu0
      %v4802 = vadd.f32 %v4234, %v4801
      %v4803 = vpop.f32.mrb[0].mxu0
      %4804 = vmatprep.mubr.f32.mxu0 0.0
      %4805 = vmatmul.mubr.f32.gmra.mrb[0].mxu0 %v4188
      %v4806 = vpop.f32.mrb[0].mxu0
      %v4807 = vadd.f32 %v4234, %v4806
      %v4808 = vpop.f32.mrb[0].mxu0
      %4809 = vmatprep.mubr.f32.mxu0 0.0
      %4810 = vmatmul.mubr.f32.gmra.mrb[0].mxu0 %v4189
      %v4811 = vpop.f32.mrb[0].mxu0
      %v4812 = vadd.f32 %v4234, %v4811
      %v4813 = vpop.f32.mrb[0].mxu0
      %4814 = vmatprep.mubr.f32.mxu0 0.0
      %4815 = vmatmul.mubr.f32.gmra.mrb[0].mxu0 %v4190
      %v4816 = vpop.f32.mrb[0].mxu0
      %v4817 = vadd.f32 %v4234, %v4816
      %v4818 = vpop.f32.mrb[0].mxu0
      %4819 = vmatprep.mubr.f32.mxu0 0.0
      %4820 = vmatmul.mubr.f32.gmra.mrb[0].mxu0 %v4191
      %v4821 = vpop.f32.mrb[0].mxu0
      %v4822 = vadd.f32 %v4234, %v4821
      %v4823 = vpop.f32.mrb[0].mxu0
      %4824 = vmatprep.mubr.f32.mxu0 0.0
      %4825 = vmatmul.mubr.f32.gmra.mrb[0].mxu0 %v4192
      %v4826 = vpop.f32.mrb[0].mxu0
      %v4827 = vadd.f32 %v4234, %v4826
      %v4828 = vpop.f32.mrb[0].mxu0
      %4829 = vmatprep.mubr.f32.mxu0 0.0
      %4830 = vmatmul.mubr.f32.gmra.mrb[0].mxu0 %v4193
      %v4831 = vpop.f32.mrb[0].mxu0
      %v4832 = vadd.f32 %v4234, %v4831
      %v4833 = vpop.f32.mrb[0].mxu0
      %4834 = vmatprep.mubr.f32.mxu0 0.0
      %4835 = vmatmul.mubr.f32.gmra.mrb[0].mxu0 %v4194
      %v4836 = vpop.f32.mrb[0].mxu0
      %v4837 = vadd.f32 %v4234, %v4836
      %v4838 = vpop.f32.mrb[0].mxu0
      %4839 = vmatprep.mubr.f32.mxu0 0.0
      %4840 = vmatmul.mubr.f32.gmra.mrb[0].mxu0 %v4195
      %v4841 = vpop.f32.mrb[0].mxu0
      %v4842 = vadd.f32 %v4234, %v4841
      %v4843 = vpop.f32.mrb[0].mxu0
      %4844 = vmatprep.mubr.f32.mxu0 0.0
      %4845 = vmatmul.mubr.f32.gmra.mrb[0].mxu0 %v4196
      %v4846 = vpop.f32.mrb[0].mxu0
      %v4847 = vadd.f32 %v4234, %v4846
      %v4848 = vpop.f32.mrb[0].mxu0
      %4849 = vmatprep.mubr.f32.mxu0 0.0
      %4850 = vmatmul.mubr.f32.gmra.mrb[0].mxu0 %v4197
      %v4851 = vpop.f32.mrb[0].mxu0
      %v4852 = vadd.f32 %v4234, %v4851
      %v4853 = vpop.f32.mrb[0].mxu0
      %4854 = vmatprep.mubr.f32.mxu0 0.0
      %4855 = vmatmul.mubr.f32.gmra.mrb[0].mxu0 %v4198
      %v4856 = vpop.f32.mrb[0].mxu0
      %v4857 = vadd.f32 %v4234, %v4856
      %v4858 = vpop.f32.mrb[0].mxu0
      %4859 = vmatprep.mubr.f32.mxu0 0.0
      %4860 = vmatmul.mubr.f32.gmra.mrb[0].mxu0 %v4199
      %v4861 = vpop.f32.mrb[0].mxu0
      %v4862 = vadd.f32 %v4234, %v4861
      %v4863 = vpop.f32.mrb[0].mxu0
      %4864 = vmatprep.mubr.f32.mxu0 0.0
      %4865 = vmatmul.mubr.f32.gmra.mrb[0].mxu0 %v4200
      %v4866 = vpop.f32.mrb[0].mxu0
      %v4867 = vadd.f32 %v4234, %v4866
      %v4868 = vpop.f32.mrb[0].mxu0
      %4869 = vmatprep.mubr.f32.mxu0 0.0
      %4870 = vmatmul.mubr.f32.gmra.mrb[0].mxu0 %v4201
      %v4871 = vpop.f32.mrb[0].mxu0
      %v4872 = vadd.f32 %v4234, %v4871
      %v4873 = vpop.f32.mrb[0].mxu0
      %4874 = vmatprep.mubr.f32.mxu0 0.0
      %4875 = vmatmul.mubr.f32.gmra.mrb[0].mxu0 %v4202
      %v4876 = vpop.f32.mrb[0].mxu0
      %v4877 = vadd.f32 %v4234, %v4876
      %v4878 = vpop.f32.mrb[0].mxu0
      %4879 = vmatprep.mubr.f32.mxu0 0.0
      %4880 = vmatmul.mubr.f32.gmra.mrb[0].mxu0 %v4203
      %v4881 = vpop.f32.mrb[0].mxu0
      %v4882 = vadd.f32 %v4234, %v4881
      %v4883 = vpop.f32.mrb[0].mxu0
      %4884 = vmatprep.mubr.f32.mxu0 0.0
      %4885 = vmatmul.mubr.f32.gmra.mrb[0].mxu0 %v4204
      %v4886 = vpop.f32.mrb[0].mxu0
      %v4887 = vadd.f32 %v4234, %v4886
      %v4888 = vpop.f32.mrb[0].mxu0
      %4889 = vmatprep.mubr.f32.mxu0 0.0
      %4890 = vmatmul.mubr.f32.gmra.mrb[0].mxu0 %v4205
      %v4891 = vpop.f32.mrb[0].mxu0
      %v4892 = vadd.f32 %v4234, %v4891
      %v4893 = vpop.f32.mrb[0].mxu0
      %4894 = vmatprep.mubr.f32.mxu0 0.0
      %4895 = vmatmul.mubr.f32.gmra.mrb[0].mxu0 %v4206
      %v4896 = vpop.f32.mrb[0].mxu0
      %v4897 = vadd.f32 %v4234, %v4896
      %v4898 = vpop.f32.mrb[0].mxu0
      %4899 = vmatprep.mubr.f32.mxu0 0.0
      %4900 = vmatmul.mubr.f32.gmra.mrb[0].mxu0 %v4207
      %v4901 = vpop.f32.mrb[0].mxu0
      %v4902 = vadd.f32 %v4234, %v4901
      %v4903 = vpop.f32.mrb[0].mxu0
      %4904 = vmatprep.mubr.f32.mxu0 0.0
      %4905 = vmatmul.mubr.f32.gmra.mrb[0].mxu0 %v4208
      %v4906 = vpop.f32.mrb[0].mxu0
      %v4907 = vadd.f32 %v4234, %v4906
      %v4908 = vpop.f32.mrb[0].mxu0
      %4909 = vmatprep.mubr.f32.mxu0 0.0
      %4910 = vmatmul.mubr.f32.gmra.mrb[0].mxu0 %v4209
      %v4911 = vpop.f32.mrb[0].mxu0
      %v4912 = vadd.f32 %v4234, %v4911
      %v4913 = vpop.f32.mrb[0].mxu0
      %4914 = vmatprep.mubr.f32.mxu0 0.0
      %4915 = vmatmul.mubr.f32.gmra.mrb[0].mxu0 %v4210
      %v4916 = vpop.f32.mrb[0].mxu0
      %v4917 = vadd.f32 %v4234, %v4916
      %v4918 = vpop.f32.mrb[0].mxu0
      %4919 = vmatprep.mubr.f32.mxu0 0.0
      %4920 = vmatmul.mubr.f32.gmra.mrb[0].mxu0 %v4211
      %v4921 = vpop.f32.mrb[0].mxu0
      %v4922 = vadd.f32 %v4234, %v4921
      %v4923 = vpop.f32.mrb[0].mxu0
      %4924 = vmatprep.mubr.f32.mxu0 0.0
      %4925 = vmatmul.mubr.f32.gmra.mrb[0].mxu0 %v4212
      %v4926 = vpop.f32.mrb[0].mxu0
      %v4927 = vadd.f32 %v4234, %v4926
      %v4928 = vpop.f32.mrb[0].mxu0
      %4929 = vmatprep.mubr.f32.mxu0 0.0
      %4930 = vmatmul.mubr.f32.gmra.mrb[0].mxu0 %v4213
      %v4931 = vpop.f32.mrb[0].mxu0
      %v4932 = vadd.f32 %v4234, %v4931
      %v4933 = vpop.f32.mrb[0].mxu0
      %4934 = vmatprep.mubr.f32.mxu0 0.0
      %4935 = vmatmul.mubr.f32.gmra.mrb[0].mxu0 %v4214
      %v4936 = vpop.f32.mrb[0].mxu0
      %v4937 = vadd.f32 %v4234, %v4936
      %v4938 = vpop.f32.mrb[0].mxu0
      %4939 = vdwg.mxu0
      %v4940 = vmul.f32 %v4302, 100.0
      %v4941 = vmul.f32 %v4307, 100.0
      %v4942 = vmul.f32 %v4312, 100.0
      %v4943 = vmul.f32 %v4317, 100.0
      %v4944 = vmul.f32 %v4322, 100.0
      %v4945 = vmul.f32 %v4327, 100.0
      %v4946 = vmul.f32 %v4332, 100.0
      %v4947 = vmul.f32 %v4337, 100.0
      %v4948 = vmul.f32 %v4342, 100.0
      %v4949 = vmul.f32 %v4347, 100.0
      %v4950 = vmul.f32 %v4352, 100.0
      %v4951 = vmul.f32 %v4357, 100.0
      %v4952 = vmul.f32 %v4362, 100.0
      %v4953 = vmul.f32 %v4367, 100.0
      %v4954 = vmul.f32 %v4372, 100.0
      %v4955 = vmul.f32 %v4377, 100.0
      %v4956 = vmul.f32 %v4382, 100.0
      %v4957 = vmul.f32 %v4387, 100.0
      %v4958 = vmul.f32 %v4392, 100.0
      %v4959 = vmul.f32 %v4397, 100.0
      %v4960 = vmul.f32 %v4402, 100.0
      %v4961 = vmul.f32 %v4407, 100.0
      %v4962 = vmul.f32 %v4412, 100.0
      %v4963 = vmul.f32 %v4417, 100.0
      %v4964 = vmul.f32 %v4422, 100.0
      %v4965 = vmul.f32 %v4427, 100.0
      %v4966 = vmul.f32 %v4432, 100.0
      %v4967 = vmul.f32 %v4437, 100.0
      %v4968 = vmul.f32 %v4442, 100.0
      %v4969 = vmul.f32 %v4447, 100.0
      %v4970 = vmul.f32 %v4452, 100.0
      %v4971 = vmul.f32 %v4457, 100.0
      %v4972 = vmul.f32 %v4462, 100.0
      %v4973 = vmul.f32 %v4467, 100.0
      %v4974 = vmul.f32 %v4472, 100.0
      %v4975 = vmul.f32 %v4477, 100.0
      %v4976 = vmul.f32 %v4482, 100.0
      %v4977 = vmul.f32 %v4487, 100.0
      %v4978 = vmul.f32 %v4492, 100.0
      %v4979 = vmul.f32 %v4497, 100.0
      %v4980 = vmul.f32 %v4502, 100.0
      %v4981 = vmul.f32 %v4507, 100.0
      %v4982 = vmul.f32 %v4512, 100.0
      %v4983 = vmul.f32 %v4517, 100.0
      %v4984 = vmul.f32 %v4522, 100.0
      %v4985 = vmul.f32 %v4527, 100.0
      %v4986 = vmul.f32 %v4532, 100.0
      %v4987 = vmul.f32 %v4537, 100.0
      %v4988 = vmul.f32 %v4542, 100.0
      %v4989 = vmul.f32 %v4547, 100.0
      %v4990 = vmul.f32 %v4552, 100.0
      %v4991 = vmul.f32 %v4557, 100.0
      %v4992 = vmul.f32 %v4562, 100.0
      %v4993 = vmul.f32 %v4567, 100.0
      %v4994 = vmul.f32 %v4572, 100.0
      %v4995 = vmul.f32 %v4577, 100.0
      %v4996 = vmul.f32 %v4582, 100.0
      %v4997 = vmul.f32 %v4587, 100.0
      %v4998 = vmul.f32 %v4592, 100.0
      %v4999 = vmul.f32 %v4597, 100.0
      %v5000 = vmul.f32 %v4602, 100.0
      %v5001 = vmul.f32 %v4607, 100.0
      %v5002 = vmul.f32 %v4612, 100.0
      %v5003 = vmul.f32 %v4617, 100.0
      %v5004 = vmul.f32 %v4622, 100.0
      %v5005 = vmul.f32 %v4627, 100.0
      %v5006 = vmul.f32 %v4632, 100.0
      %v5007 = vmul.f32 %v4637, 100.0
      %v5008 = vmul.f32 %v4642, 100.0
      %v5009 = vmul.f32 %v4647, 100.0
      %v5010 = vmul.f32 %v4652, 100.0
      %v5011 = vmul.f32 %v4657, 100.0
      %v5012 = vmul.f32 %v4662, 100.0
      %v5013 = vmul.f32 %v4667, 100.0
      %v5014 = vmul.f32 %v4672, 100.0
      %v5015 = vmul.f32 %v4677, 100.0
      %v5016 = vmul.f32 %v4682, 100.0
      %v5017 = vmul.f32 %v4687, 100.0
      %v5018 = vmul.f32 %v4692, 100.0
      %v5019 = vmul.f32 %v4697, 100.0
      %v5020 = vmul.f32 %v4702, 100.0
      %v5021 = vmul.f32 %v4707, 100.0
      %v5022 = vmul.f32 %v4712, 100.0
      %v5023 = vmul.f32 %v4717, 100.0
      %v5024 = vmul.f32 %v4722, 100.0
      %v5025 = vmul.f32 %v4727, 100.0
      %v5026 = vmul.f32 %v4732, 100.0
      %v5027 = vmul.f32 %v4737, 100.0
      %v5028 = vmul.f32 %v4742, 100.0
      %v5029 = vmul.f32 %v4747, 100.0
      %v5030 = vmul.f32 %v4752, 100.0
      %v5031 = vmul.f32 %v4757, 100.0
      %v5032 = vmul.f32 %v4762, 100.0
      %v5033 = vmul.f32 %v4767, 100.0
      %v5034 = vmul.f32 %v4772, 100.0
      %v5035 = vmul.f32 %v4777, 100.0
      %v5036 = vmul.f32 %v4782, 100.0
      %v5037 = vmul.f32 %v4787, 100.0
      %v5038 = vmul.f32 %v4792, 100.0
      %v5039 = vmul.f32 %v4797, 100.0
      %v5040 = vmul.f32 %v4802, 100.0
      %v5041 = vmul.f32 %v4807, 100.0
      %v5042 = vmul.f32 %v4812, 100.0
      %v5043 = vmul.f32 %v4817, 100.0
      %v5044 = vmul.f32 %v4822, 100.0
      %v5045 = vmul.f32 %v4827, 100.0
      %v5046 = vmul.f32 %v4832, 100.0
      %v5047 = vmul.f32 %v4837, 100.0
      %v5048 = vmul.f32 %v4842, 100.0
      %v5049 = vmul.f32 %v4847, 100.0
      %v5050 = vmul.f32 %v4852, 100.0
      %v5051 = vmul.f32 %v4857, 100.0
      %v5052 = vmul.f32 %v4862, 100.0
      %v5053 = vmul.f32 %v4867, 100.0
      %v5054 = vmul.f32 %v4872, 100.0
      %v5055 = vmul.f32 %v4877, 100.0
      %v5056 = vmul.f32 %v4882, 100.0
      %v5057 = vmul.f32 %v4887, 100.0
      %v5058 = vmul.f32 %v4892, 100.0
      %v5059 = vmul.f32 %v4897, 100.0
      %v5060 = vmul.f32 %v4902, 100.0
      %v5061 = vmul.f32 %v4907, 100.0
      %v5062 = vmul.f32 %v4912, 100.0
      %v5063 = vmul.f32 %v4917, 100.0
      %v5064 = vmul.f32 %v4922, 100.0
      %v5065 = vmul.f32 %v4927, 100.0
      %v5066 = vmul.f32 %v4932, 100.0
      %v5067 = vmul.f32 %v4937, 100.0
      %v5068 = vmax.f32 %v4940, 0.0
      %v5069 = vmax.f32 %v4941, 0.0
      %v5070 = vmax.f32 %v4942, 0.0
      %v5071 = vmax.f32 %v4943, 0.0
      %v5072 = vmax.f32 %v4944, 0.0
      %v5073 = vmax.f32 %v4945, 0.0
      %v5074 = vmax.f32 %v4946, 0.0
      %v5075 = vmax.f32 %v4947, 0.0
      %v5076 = vmax.f32 %v4948, 0.0
      %v5077 = vmax.f32 %v4949, 0.0
      %v5078 = vmax.f32 %v4950, 0.0
      %v5079 = vmax.f32 %v4951, 0.0
      %v5080 = vmax.f32 %v4952, 0.0
      %v5081 = vmax.f32 %v4953, 0.0
      %v5082 = vmax.f32 %v4954, 0.0
      %v5083 = vmax.f32 %v4955, 0.0
      %v5084 = vmax.f32 %v4956, 0.0
      %v5085 = vmax.f32 %v4957, 0.0
      %v5086 = vmax.f32 %v4958, 0.0
      %v5087 = vmax.f32 %v4959, 0.0
      %v5088 = vmax.f32 %v4960, 0.0
      %v5089 = vmax.f32 %v4961, 0.0
      %v5090 = vmax.f32 %v4962, 0.0
      %v5091 = vmax.f32 %v4963, 0.0
      %v5092 = vmax.f32 %v4964, 0.0
      %v5093 = vmax.f32 %v4965, 0.0
      %v5094 = vmax.f32 %v4966, 0.0
      %v5095 = vmax.f32 %v4967, 0.0
      %v5096 = vmax.f32 %v4968, 0.0
      %v5097 = vmax.f32 %v4969, 0.0
      %v5098 = vmax.f32 %v4970, 0.0
      %v5099 = vmax.f32 %v4971, 0.0
      %v5100 = vmax.f32 %v4972, 0.0
      %v5101 = vmax.f32 %v4973, 0.0
      %v5102 = vmax.f32 %v4974, 0.0
      %v5103 = vmax.f32 %v4975, 0.0
      %v5104 = vmax.f32 %v4976, 0.0
      %v5105 = vmax.f32 %v4977, 0.0
      %v5106 = vmax.f32 %v4978, 0.0
      %v5107 = vmax.f32 %v4979, 0.0
      %v5108 = vmax.f32 %v4980, 0.0
      %v5109 = vmax.f32 %v4981, 0.0
      %v5110 = vmax.f32 %v4982, 0.0
      %v5111 = vmax.f32 %v4983, 0.0
      %v5112 = vmax.f32 %v4984, 0.0
      %v5113 = vmax.f32 %v4985, 0.0
      %v5114 = vmax.f32 %v4986, 0.0
      %v5115 = vmax.f32 %v4987, 0.0
      %v5116 = vmax.f32 %v4988, 0.0
      %v5117 = vmax.f32 %v4989, 0.0
      %v5118 = vmax.f32 %v4990, 0.0
      %v5119 = vmax.f32 %v4991, 0.0
      %v5120 = vmax.f32 %v4992, 0.0
      %v5121 = vmax.f32 %v4993, 0.0
      %v5122 = vmax.f32 %v4994, 0.0
      %v5123 = vmax.f32 %v4995, 0.0
      %v5124 = vmax.f32 %v4996, 0.0
      %v5125 = vmax.f32 %v4997, 0.0
      %v5126 = vmax.f32 %v4998, 0.0
      %v5127 = vmax.f32 %v4999, 0.0
      %v5128 = vmax.f32 %v5000, 0.0
      %v5129 = vmax.f32 %v5001, 0.0
      %v5130 = vmax.f32 %v5002, 0.0
      %v5131 = vmax.f32 %v5003, 0.0
      %v5132 = vmax.f32 %v5004, 0.0
      %v5133 = vmax.f32 %v5005, 0.0
      %v5134 = vmax.f32 %v5006, 0.0
      %v5135 = vmax.f32 %v5007, 0.0
      %v5136 = vmax.f32 %v5008, 0.0
      %v5137 = vmax.f32 %v5009, 0.0
      %v5138 = vmax.f32 %v5010, 0.0
      %v5139 = vmax.f32 %v5011, 0.0
      %v5140 = vmax.f32 %v5012, 0.0
      %v5141 = vmax.f32 %v5013, 0.0
      %v5142 = vmax.f32 %v5014, 0.0
      %v5143 = vmax.f32 %v5015, 0.0
      %v5144 = vmax.f32 %v5016, 0.0
      %v5145 = vmax.f32 %v5017, 0.0
      %v5146 = vmax.f32 %v5018, 0.0
      %v5147 = vmax.f32 %v5019, 0.0
      %v5148 = vmax.f32 %v5020, 0.0
      %v5149 = vmax.f32 %v5021, 0.0
      %v5150 = vmax.f32 %v5022, 0.0
      %v5151 = vmax.f32 %v5023, 0.0
      %v5152 = vmax.f32 %v5024, 0.0
      %v5153 = vmax.f32 %v5025, 0.0
      %v5154 = vmax.f32 %v5026, 0.0
      %v5155 = vmax.f32 %v5027, 0.0
      %v5156 = vmax.f32 %v5028, 0.0
      %v5157 = vmax.f32 %v5029, 0.0
      %v5158 = vmax.f32 %v5030, 0.0
      %v5159 = vmax.f32 %v5031, 0.0
      %v5160 = vmax.f32 %v5032, 0.0
      %v5161 = vmax.f32 %v5033, 0.0
      %v5162 = vmax.f32 %v5034, 0.0
      %v5163 = vmax.f32 %v5035, 0.0
      %v5164 = vmax.f32 %v5036, 0.0
      %v5165 = vmax.f32 %v5037, 0.0
      %v5166 = vmax.f32 %v5038, 0.0
      %v5167 = vmax.f32 %v5039, 0.0
      %v5168 = vmax.f32 %v5040, 0.0
      %v5169 = vmax.f32 %v5041, 0.0
      %v5170 = vmax.f32 %v5042, 0.0
      %v5171 = vmax.f32 %v5043, 0.0
      %v5172 = vmax.f32 %v5044, 0.0
      %v5173 = vmax.f32 %v5045, 0.0
      %v5174 = vmax.f32 %v5046, 0.0
      %v5175 = vmax.f32 %v5047, 0.0
      %v5176 = vmax.f32 %v5048, 0.0
      %v5177 = vmax.f32 %v5049, 0.0
      %v5178 = vmax.f32 %v5050, 0.0
      %v5179 = vmax.f32 %v5051, 0.0
      %v5180 = vmax.f32 %v5052, 0.0
      %v5181 = vmax.f32 %v5053, 0.0
      %v5182 = vmax.f32 %v5054, 0.0
      %v5183 = vmax.f32 %v5055, 0.0
      %v5184 = vmax.f32 %v5056, 0.0
      %v5185 = vmax.f32 %v5057, 0.0
      %v5186 = vmax.f32 %v5058, 0.0
      %v5187 = vmax.f32 %v5059, 0.0
      %v5188 = vmax.f32 %v5060, 0.0
      %v5189 = vmax.f32 %v5061, 0.0
      %v5190 = vmax.f32 %v5062, 0.0
      %v5191 = vmax.f32 %v5063, 0.0
      %v5192 = vmax.f32 %v5064, 0.0
      %v5193 = vmax.f32 %v5065, 0.0
      %v5194 = vmax.f32 %v5066, 0.0
      %v5195 = vmax.f32 %v5067, 0.0
      %v5196 = vand.u32 2147483647, %v4940
      %v5197 = vand.u32 2147483647, %v4941
      %v5198 = vand.u32 2147483647, %v4942
      %v5199 = vand.u32 2147483647, %v4943
      %v5200 = vand.u32 2147483647, %v4944
      %v5201 = vand.u32 2147483647, %v4945
      %v5202 = vand.u32 2147483647, %v4946
      %v5203 = vand.u32 2147483647, %v4947
      %v5204 = vand.u32 2147483647, %v4948
      %v5205 = vand.u32 2147483647, %v4949
      %v5206 = vand.u32 2147483647, %v4950
      %v5207 = vand.u32 2147483647, %v4951
      %v5208 = vand.u32 2147483647, %v4952
      %v5209 = vand.u32 2147483647, %v4953
      %v5210 = vand.u32 2147483647, %v4954
      %v5211 = vand.u32 2147483647, %v4955
      %v5212 = vand.u32 2147483647, %v4956
      %v5213 = vand.u32 2147483647, %v4957
      %v5214 = vand.u32 2147483647, %v4958
      %v5215 = vand.u32 2147483647, %v4959
      %v5216 = vand.u32 2147483647, %v4960
      %v5217 = vand.u32 2147483647, %v4961
      %v5218 = vand.u32 2147483647, %v4962
      %v5219 = vand.u32 2147483647, %v4963
      %v5220 = vand.u32 2147483647, %v4964
      %v5221 = vand.u32 2147483647, %v4965
      %v5222 = vand.u32 2147483647, %v4966
      %v5223 = vand.u32 2147483647, %v4967
      %v5224 = vand.u32 2147483647, %v4968
      %v5225 = vand.u32 2147483647, %v4969
      %v5226 = vand.u32 2147483647, %v4970
      %v5227 = vand.u32 2147483647, %v4971
      %v5228 = vand.u32 2147483647, %v4972
      %v5229 = vand.u32 2147483647, %v4973
      %v5230 = vand.u32 2147483647, %v4974
      %v5231 = vand.u32 2147483647, %v4975
      %v5232 = vand.u32 2147483647, %v4976
      %v5233 = vand.u32 2147483647, %v4977
      %v5234 = vand.u32 2147483647, %v4978
      %v5235 = vand.u32 2147483647, %v4979
      %v5236 = vand.u32 2147483647, %v4980
      %v5237 = vand.u32 2147483647, %v4981
      %v5238 = vand.u32 2147483647, %v4982
      %v5239 = vand.u32 2147483647, %v4983
      %v5240 = vand.u32 2147483647, %v4984
      %v5241 = vand.u32 2147483647, %v4985
      %v5242 = vand.u32 2147483647, %v4986
      %v5243 = vand.u32 2147483647, %v4987
      %v5244 = vand.u32 2147483647, %v4988
      %v5245 = vand.u32 2147483647, %v4989
      %v5246 = vand.u32 2147483647, %v4990
      %v5247 = vand.u32 2147483647, %v4991
      %v5248 = vand.u32 2147483647, %v4992
      %v5249 = vand.u32 2147483647, %v4993
      %v5250 = vand.u32 2147483647, %v4994
      %v5251 = vand.u32 2147483647, %v4995
      %v5252 = vand.u32 2147483647, %v4996
      %v5253 = vand.u32 2147483647, %v4997
      %v5254 = vand.u32 2147483647, %v4998
      %v5255 = vand.u32 2147483647, %v4999
      %v5256 = vand.u32 2147483647, %v5000
      %v5257 = vand.u32 2147483647, %v5001
      %v5258 = vand.u32 2147483647, %v5002
      %v5259 = vand.u32 2147483647, %v5003
      %v5260 = vand.u32 2147483647, %v5004
      %v5261 = vand.u32 2147483647, %v5005
      %v5262 = vand.u32 2147483647, %v5006
      %v5263 = vand.u32 2147483647, %v5007
      %v5264 = vand.u32 2147483647, %v5008
      %v5265 = vand.u32 2147483647, %v5009
      %v5266 = vand.u32 2147483647, %v5010
      %v5267 = vand.u32 2147483647, %v5011
      %v5268 = vand.u32 2147483647, %v5012
      %v5269 = vand.u32 2147483647, %v5013
      %v5270 = vand.u32 2147483647, %v5014
      %v5271 = vand.u32 2147483647, %v5015
      %v5272 = vand.u32 2147483647, %v5016
      %v5273 = vand.u32 2147483647, %v5017
      %v5274 = vand.u32 2147483647, %v5018
      %v5275 = vand.u32 2147483647, %v5019
      %v5276 = vand.u32 2147483647, %v5020
      %v5277 = vand.u32 2147483647, %v5021
      %v5278 = vand.u32 2147483647, %v5022
      %v5279 = vand.u32 2147483647, %v5023
      %v5280 = vand.u32 2147483647, %v5024
      %v5281 = vand.u32 2147483647, %v5025
      %v5282 = vand.u32 2147483647, %v5026
      %v5283 = vand.u32 2147483647, %v5027
      %v5284 = vand.u32 2147483647, %v5028
      %v5285 = vand.u32 2147483647, %v5029
      %v5286 = vand.u32 2147483647, %v5030
      %v5287 = vand.u32 2147483647, %v5031
      %v5288 = vand.u32 2147483647, %v5032
      %v5289 = vand.u32 2147483647, %v5033
      %v5290 = vand.u32 2147483647, %v5034
      %v5291 = vand.u32 2147483647, %v5035
      %v5292 = vand.u32 2147483647, %v5036
      %v5293 = vand.u32 2147483647, %v5037
      %v5294 = vand.u32 2147483647, %v5038
      %v5295 = vand.u32 2147483647, %v5039
      %v5296 = vand.u32 2147483647, %v5040
      %v5297 = vand.u32 2147483647, %v5041
      %v5298 = vand.u32 2147483647, %v5042
      %v5299 = vand.u32 2147483647, %v5043
      %v5300 = vand.u32 2147483647, %v5044
      %v5301 = vand.u32 2147483647, %v5045
      %v5302 = vand.u32 2147483647, %v5046
      %v5303 = vand.u32 2147483647, %v5047
      %v5304 = vand.u32 2147483647, %v5048
      %v5305 = vand.u32 2147483647, %v5049
      %v5306 = vand.u32 2147483647, %v5050
      %v5307 = vand.u32 2147483647, %v5051
      %v5308 = vand.u32 2147483647, %v5052
      %v5309 = vand.u32 2147483647, %v5053
      %v5310 = vand.u32 2147483647, %v5054
      %v5311 = vand.u32 2147483647, %v5055
      %v5312 = vand.u32 2147483647, %v5056
      %v5313 = vand.u32 2147483647, %v5057
      %v5314 = vand.u32 2147483647, %v5058
      %v5315 = vand.u32 2147483647, %v5059
      %v5316 = vand.u32 2147483647, %v5060
      %v5317 = vand.u32 2147483647, %v5061
      %v5318 = vand.u32 2147483647, %v5062
      %v5319 = vand.u32 2147483647, %v5063
      %v5320 = vand.u32 2147483647, %v5064
      %v5321 = vand.u32 2147483647, %v5065
      %v5322 = vand.u32 2147483647, %v5066
      %v5323 = vand.u32 2147483647, %v5067
      %v5324 = vsub.f32 0.0, %v5196
      %v5325 = vsub.f32 0.0, %v5197
      %v5326 = vsub.f32 0.0, %v5198
      %v5327 = vsub.f32 0.0, %v5199
      %v5328 = vsub.f32 0.0, %v5200
      %v5329 = vsub.f32 0.0, %v5201
      %v5330 = vsub.f32 0.0, %v5202
      %v5331 = vsub.f32 0.0, %v5203
      %v5332 = vsub.f32 0.0, %v5204
      %v5333 = vsub.f32 0.0, %v5205
      %v5334 = vsub.f32 0.0, %v5206
      %v5335 = vsub.f32 0.0, %v5207
      %v5336 = vsub.f32 0.0, %v5208
      %v5337 = vsub.f32 0.0, %v5209
      %v5338 = vsub.f32 0.0, %v5210
      %v5339 = vsub.f32 0.0, %v5211
      %v5340 = vsub.f32 0.0, %v5212
      %v5341 = vsub.f32 0.0, %v5213
      %v5342 = vsub.f32 0.0, %v5214
      %v5343 = vsub.f32 0.0, %v5215
      %v5344 = vsub.f32 0.0, %v5216
      %v5345 = vsub.f32 0.0, %v5217
      %v5346 = vsub.f32 0.0, %v5218
      %v5347 = vsub.f32 0.0, %v5219
      %v5348 = vsub.f32 0.0, %v5220
      %v5349 = vsub.f32 0.0, %v5221
      %v5350 = vsub.f32 0.0, %v5222
      %v5351 = vsub.f32 0.0, %v5223
      %v5352 = vsub.f32 0.0, %v5224
      %v5353 = vsub.f32 0.0, %v5225
      %v5354 = vsub.f32 0.0, %v5226
      %v5355 = vsub.f32 0.0, %v5227
      %v5356 = vsub.f32 0.0, %v5228
      %v5357 = vsub.f32 0.0, %v5229
      %v5358 = vsub.f32 0.0, %v5230
      %v5359 = vsub.f32 0.0, %v5231
      %v5360 = vsub.f32 0.0, %v5232
      %v5361 = vsub.f32 0.0, %v5233
      %v5362 = vsub.f32 0.0, %v5234
      %v5363 = vsub.f32 0.0, %v5235
      %v5364 = vsub.f32 0.0, %v5236
      %v5365 = vsub.f32 0.0, %v5237
      %v5366 = vsub.f32 0.0, %v5238
      %v5367 = vsub.f32 0.0, %v5239
      %v5368 = vsub.f32 0.0, %v5240
      %v5369 = vsub.f32 0.0, %v5241
      %v5370 = vsub.f32 0.0, %v5242
      %v5371 = vsub.f32 0.0, %v5243
      %v5372 = vsub.f32 0.0, %v5244
      %v5373 = vsub.f32 0.0, %v5245
      %v5374 = vsub.f32 0.0, %v5246
      %v5375 = vsub.f32 0.0, %v5247
      %v5376 = vsub.f32 0.0, %v5248
      %v5377 = vsub.f32 0.0, %v5249
      %v5378 = vsub.f32 0.0, %v5250
      %v5379 = vsub.f32 0.0, %v5251
      %v5380 = vsub.f32 0.0, %v5252
      %v5381 = vsub.f32 0.0, %v5253
      %v5382 = vsub.f32 0.0, %v5254
      %v5383 = vsub.f32 0.0, %v5255
      %v5384 = vsub.f32 0.0, %v5256
      %v5385 = vsub.f32 0.0, %v5257
      %v5386 = vsub.f32 0.0, %v5258
      %v5387 = vsub.f32 0.0, %v5259
      %v5388 = vsub.f32 0.0, %v5260
      %v5389 = vsub.f32 0.0, %v5261
      %v5390 = vsub.f32 0.0, %v5262
      %v5391 = vsub.f32 0.0, %v5263
      %v5392 = vsub.f32 0.0, %v5264
      %v5393 = vsub.f32 0.0, %v5265
      %v5394 = vsub.f32 0.0, %v5266
      %v5395 = vsub.f32 0.0, %v5267
      %v5396 = vsub.f32 0.0, %v5268
      %v5397 = vsub.f32 0.0, %v5269
      %v5398 = vsub.f32 0.0, %v5270
      %v5399 = vsub.f32 0.0, %v5271
      %v5400 = vsub.f32 0.0, %v5272
      %v5401 = vsub.f32 0.0, %v5273
      %v5402 = vsub.f32 0.0, %v5274
      %v5403 = vsub.f32 0.0, %v5275
      %v5404 = vsub.f32 0.0, %v5276
      %v5405 = vsub.f32 0.0, %v5277
      %v5406 = vsub.f32 0.0, %v5278
      %v5407 = vsub.f32 0.0, %v5279
      %v5408 = vsub.f32 0.0, %v5280
      %v5409 = vsub.f32 0.0, %v5281
      %v5410 = vsub.f32 0.0, %v5282
      %v5411 = vsub.f32 0.0, %v5283
      %v5412 = vsub.f32 0.0, %v5284
      %v5413 = vsub.f32 0.0, %v5285
      %v5414 = vsub.f32 0.0, %v5286
      %v5415 = vsub.f32 0.0, %v5287
      %v5416 = vsub.f32 0.0, %v5288
      %v5417 = vsub.f32 0.0, %v5289
      %v5418 = vsub.f32 0.0, %v5290
      %v5419 = vsub.f32 0.0, %v5291
      %v5420 = vsub.f32 0.0, %v5292
      %v5421 = vsub.f32 0.0, %v5293
      %v5422 = vsub.f32 0.0, %v5294
      %v5423 = vsub.f32 0.0, %v5295
      %v5424 = vsub.f32 0.0, %v5296
      %v5425 = vsub.f32 0.0, %v5297
      %v5426 = vsub.f32 0.0, %v5298
      %v5427 = vsub.f32 0.0, %v5299
      %v5428 = vsub.f32 0.0, %v5300
      %v5429 = vsub.f32 0.0, %v5301
      %v5430 = vsub.f32 0.0, %v5302
      %v5431 = vsub.f32 0.0, %v5303
      %v5432 = vsub.f32 0.0, %v5304
      %v5433 = vsub.f32 0.0, %v5305
      %v5434 = vsub.f32 0.0, %v5306
      %v5435 = vsub.f32 0.0, %v5307
      %v5436 = vsub.f32 0.0, %v5308
      %v5437 = vsub.f32 0.0, %v5309
      %v5438 = vsub.f32 0.0, %v5310
      %v5439 = vsub.f32 0.0, %v5311
      %v5440 = vsub.f32 0.0, %v5312
      %v5441 = vsub.f32 0.0, %v5313
      %v5442 = vsub.f32 0.0, %v5314
      %v5443 = vsub.f32 0.0, %v5315
      %v5444 = vsub.f32 0.0, %v5316
      %v5445 = vsub.f32 0.0, %v5317
      %v5446 = vsub.f32 0.0, %v5318
      %v5447 = vsub.f32 0.0, %v5319
      %v5448 = vsub.f32 0.0, %v5320
      %v5449 = vsub.f32 0.0, %v5321
      %v5450 = vsub.f32 0.0, %v5322
      %v5451 = vsub.f32 0.0, %v5323
      %v5452 = vmul.f32 %v5324, 1.442695
      %v5453 = vpow.pop %v5452
      %v5454 = vmul.f32 %v5325, 1.442695
      %v5455 = vpow.pop %v5454
      %v5456 = vmul.f32 %v5326, 1.442695
      %v5457 = vpow.pop %v5456
      %v5458 = vmul.f32 %v5327, 1.442695
      %v5459 = vpow.pop %v5458
      %v5460 = vmul.f32 %v5328, 1.442695
      %v5461 = vpow.pop %v5460
      %v5462 = vmul.f32 %v5329, 1.442695
      %v5463 = vpow.pop %v5462
      %v5464 = vmul.f32 %v5330, 1.442695
      %v5465 = vpow.pop %v5464
      %v5466 = vmul.f32 %v5331, 1.442695
      %v5467 = vpow.pop %v5466
      %v5468 = vmul.f32 %v5332, 1.442695
      %v5469 = vpow.pop %v5468
      %v5470 = vmul.f32 %v5333, 1.442695
      %v5471 = vpow.pop %v5470
      %v5472 = vmul.f32 %v5334, 1.442695
      %v5473 = vpow.pop %v5472
      %v5474 = vmul.f32 %v5335, 1.442695
      %v5475 = vpow.pop %v5474
      %v5476 = vmul.f32 %v5336, 1.442695
      %v5477 = vpow.pop %v5476
      %v5478 = vmul.f32 %v5337, 1.442695
      %v5479 = vpow.pop %v5478
      %v5480 = vmul.f32 %v5338, 1.442695
      %v5481 = vpow.pop %v5480
      %v5482 = vmul.f32 %v5339, 1.442695
      %v5483 = vpow.pop %v5482
      %v5484 = vmul.f32 %v5340, 1.442695
      %v5485 = vpow.pop %v5484
      %v5486 = vmul.f32 %v5341, 1.442695
      %v5487 = vpow.pop %v5486
      %v5488 = vmul.f32 %v5342, 1.442695
      %v5489 = vpow.pop %v5488
      %v5490 = vmul.f32 %v5343, 1.442695
      %v5491 = vpow.pop %v5490
      %v5492 = vmul.f32 %v5344, 1.442695
      %v5493 = vpow.pop %v5492
      %v5494 = vmul.f32 %v5345, 1.442695
      %v5495 = vpow.pop %v5494
      %v5496 = vmul.f32 %v5346, 1.442695
      %v5497 = vpow.pop %v5496
      %v5498 = vmul.f32 %v5347, 1.442695
      %v5499 = vpow.pop %v5498
      %v5500 = vmul.f32 %v5348, 1.442695
      %v5501 = vpow.pop %v5500
      %v5502 = vmul.f32 %v5349, 1.442695
      %v5503 = vpow.pop %v5502
      %v5504 = vmul.f32 %v5350, 1.442695
      %v5505 = vpow.pop %v5504
      %v5506 = vmul.f32 %v5351, 1.442695
      %v5507 = vpow.pop %v5506
      %v5508 = vmul.f32 %v5352, 1.442695
      %v5509 = vpow.pop %v5508
      %v5510 = vmul.f32 %v5353, 1.442695
      %v5511 = vpow.pop %v5510
      %v5512 = vmul.f32 %v5354, 1.442695
      %v5513 = vpow.pop %v5512
      %v5514 = vmul.f32 %v5355, 1.442695
      %v5515 = vpow.pop %v5514
      %v5516 = vmul.f32 %v5356, 1.442695
      %v5517 = vpow.pop %v5516
      %v5518 = vmul.f32 %v5357, 1.442695
      %v5519 = vpow.pop %v5518
      %v5520 = vmul.f32 %v5358, 1.442695
      %v5521 = vpow.pop %v5520
      %v5522 = vmul.f32 %v5359, 1.442695
      %v5523 = vpow.pop %v5522
      %v5524 = vmul.f32 %v5360, 1.442695
      %v5525 = vpow.pop %v5524
      %v5526 = vmul.f32 %v5361, 1.442695
      %v5527 = vpow.pop %v5526
      %v5528 = vmul.f32 %v5362, 1.442695
      %v5529 = vpow.pop %v5528
      %v5530 = vmul.f32 %v5363, 1.442695
      %v5531 = vpow.pop %v5530
      %v5532 = vmul.f32 %v5364, 1.442695
      %v5533 = vpow.pop %v5532
      %v5534 = vmul.f32 %v5365, 1.442695
      %v5535 = vpow.pop %v5534
      %v5536 = vmul.f32 %v5366, 1.442695
      %v5537 = vpow.pop %v5536
      %v5538 = vmul.f32 %v5367, 1.442695
      %v5539 = vpow.pop %v5538
      %v5540 = vmul.f32 %v5368, 1.442695
      %v5541 = vpow.pop %v5540
      %v5542 = vmul.f32 %v5369, 1.442695
      %v5543 = vpow.pop %v5542
      %v5544 = vmul.f32 %v5370, 1.442695
      %v5545 = vpow.pop %v5544
      %v5546 = vmul.f32 %v5371, 1.442695
      %v5547 = vpow.pop %v5546
      %v5548 = vmul.f32 %v5372, 1.442695
      %v5549 = vpow.pop %v5548
      %v5550 = vmul.f32 %v5373, 1.442695
      %v5551 = vpow.pop %v5550
      %v5552 = vmul.f32 %v5374, 1.442695
      %v5553 = vpow.pop %v5552
      %v5554 = vmul.f32 %v5375, 1.442695
      %v5555 = vpow.pop %v5554
      %v5556 = vmul.f32 %v5376, 1.442695
      %v5557 = vpow.pop %v5556
      %v5558 = vmul.f32 %v5377, 1.442695
      %v5559 = vpow.pop %v5558
      %v5560 = vmul.f32 %v5378, 1.442695
      %v5561 = vpow.pop %v5560
      %v5562 = vmul.f32 %v5379, 1.442695
      %v5563 = vpow.pop %v5562
      %v5564 = vmul.f32 %v5380, 1.442695
      %v5565 = vpow.pop %v5564
      %v5566 = vmul.f32 %v5381, 1.442695
      %v5567 = vpow.pop %v5566
      %v5568 = vmul.f32 %v5382, 1.442695
      %v5569 = vpow.pop %v5568
      %v5570 = vmul.f32 %v5383, 1.442695
      %v5571 = vpow.pop %v5570
      %v5572 = vmul.f32 %v5384, 1.442695
      %v5573 = vpow.pop %v5572
      %v5574 = vmul.f32 %v5385, 1.442695
      %v5575 = vpow.pop %v5574
      %v5576 = vmul.f32 %v5386, 1.442695
      %v5577 = vpow.pop %v5576
      %v5578 = vmul.f32 %v5387, 1.442695
      %v5579 = vpow.pop %v5578
      %v5580 = vmul.f32 %v5388, 1.442695
      %v5581 = vpow.pop %v5580
      %v5582 = vmul.f32 %v5389, 1.442695
      %v5583 = vpow.pop %v5582
      %v5584 = vmul.f32 %v5390, 1.442695
      %v5585 = vpow.pop %v5584
      %v5586 = vmul.f32 %v5391, 1.442695
      %v5587 = vpow.pop %v5586
      %v5588 = vmul.f32 %v5392, 1.442695
      %v5589 = vpow.pop %v5588
      %v5590 = vmul.f32 %v5393, 1.442695
      %v5591 = vpow.pop %v5590
      %v5592 = vmul.f32 %v5394, 1.442695
      %v5593 = vpow.pop %v5592
      %v5594 = vmul.f32 %v5395, 1.442695
      %v5595 = vpow.pop %v5594
      %v5596 = vmul.f32 %v5396, 1.442695
      %v5597 = vpow.pop %v5596
      %v5598 = vmul.f32 %v5397, 1.442695
      %v5599 = vpow.pop %v5598
      %v5600 = vmul.f32 %v5398, 1.442695
      %v5601 = vpow.pop %v5600
      %v5602 = vmul.f32 %v5399, 1.442695
      %v5603 = vpow.pop %v5602
      %v5604 = vmul.f32 %v5400, 1.442695
      %v5605 = vpow.pop %v5604
      %v5606 = vmul.f32 %v5401, 1.442695
      %v5607 = vpow.pop %v5606
      %v5608 = vmul.f32 %v5402, 1.442695
      %v5609 = vpow.pop %v5608
      %v5610 = vmul.f32 %v5403, 1.442695
      %v5611 = vpow.pop %v5610
      %v5612 = vmul.f32 %v5404, 1.442695
      %v5613 = vpow.pop %v5612
      %v5614 = vmul.f32 %v5405, 1.442695
      %v5615 = vpow.pop %v5614
      %v5616 = vmul.f32 %v5406, 1.442695
      %v5617 = vpow.pop %v5616
      %v5618 = vmul.f32 %v5407, 1.442695
      %v5619 = vpow.pop %v5618
      %v5620 = vmul.f32 %v5408, 1.442695
      %v5621 = vpow.pop %v5620
      %v5622 = vmul.f32 %v5409, 1.442695
      %v5623 = vpow.pop %v5622
      %v5624 = vmul.f32 %v5410, 1.442695
      %v5625 = vpow.pop %v5624
      %v5626 = vmul.f32 %v5411, 1.442695
      %v5627 = vpow.pop %v5626
      %v5628 = vmul.f32 %v5412, 1.442695
      %v5629 = vpow.pop %v5628
      %v5630 = vmul.f32 %v5413, 1.442695
      %v5631 = vpow.pop %v5630
      %v5632 = vmul.f32 %v5414, 1.442695
      %v5633 = vpow.pop %v5632
      %v5634 = vmul.f32 %v5415, 1.442695
      %v5635 = vpow.pop %v5634
      %v5636 = vmul.f32 %v5416, 1.442695
      %v5637 = vpow.pop %v5636
      %v5638 = vmul.f32 %v5417, 1.442695
      %v5639 = vpow.pop %v5638
      %v5640 = vmul.f32 %v5418, 1.442695
      %v5641 = vpow.pop %v5640
      %v5642 = vmul.f32 %v5419, 1.442695
      %v5643 = vpow.pop %v5642
      %v5644 = vmul.f32 %v5420, 1.442695
      %v5645 = vpow.pop %v5644
      %v5646 = vmul.f32 %v5421, 1.442695
      %v5647 = vpow.pop %v5646
      %v5648 = vmul.f32 %v5422, 1.442695
      %v5649 = vpow.pop %v5648
      %v5650 = vmul.f32 %v5423, 1.442695
      %v5651 = vpow.pop %v5650
      %v5652 = vmul.f32 %v5424, 1.442695
      %v5653 = vpow.pop %v5652
      %v5654 = vmul.f32 %v5425, 1.442695
      %v5655 = vpow.pop %v5654
      %v5656 = vmul.f32 %v5426, 1.442695
      %v5657 = vpow.pop %v5656
      %v5658 = vmul.f32 %v5427, 1.442695
      %v5659 = vpow.pop %v5658
      %v5660 = vmul.f32 %v5428, 1.442695
      %v5661 = vpow.pop %v5660
      %v5662 = vmul.f32 %v5429, 1.442695
      %v5663 = vpow.pop %v5662
      %v5664 = vmul.f32 %v5430, 1.442695
      %v5665 = vpow.pop %v5664
      %v5666 = vmul.f32 %v5431, 1.442695
      %v5667 = vpow.pop %v5666
      %v5668 = vmul.f32 %v5432, 1.442695
      %v5669 = vpow.pop %v5668
      %v5670 = vmul.f32 %v5433, 1.442695
      %v5671 = vpow.pop %v5670
      %v5672 = vmul.f32 %v5434, 1.442695
      %v5673 = vpow.pop %v5672
      %v5674 = vmul.f32 %v5435, 1.442695
      %v5675 = vpow.pop %v5674
      %v5676 = vmul.f32 %v5436, 1.442695
      %v5677 = vpow.pop %v5676
      %v5678 = vmul.f32 %v5437, 1.442695
      %v5679 = vpow.pop %v5678
      %v5680 = vmul.f32 %v5438, 1.442695
      %v5681 = vpow.pop %v5680
      %v5682 = vmul.f32 %v5439, 1.442695
      %v5683 = vpow.pop %v5682
      %v5684 = vmul.f32 %v5440, 1.442695
      %v5685 = vpow.pop %v5684
      %v5686 = vmul.f32 %v5441, 1.442695
      %v5687 = vpow.pop %v5686
      %v5688 = vmul.f32 %v5442, 1.442695
      %v5689 = vpow.pop %v5688
      %v5690 = vmul.f32 %v5443, 1.442695
      %v5691 = vpow.pop %v5690
      %v5692 = vmul.f32 %v5444, 1.442695
      %v5693 = vpow.pop %v5692
      %v5694 = vmul.f32 %v5445, 1.442695
      %v5695 = vpow.pop %v5694
      %v5696 = vmul.f32 %v5446, 1.442695
      %v5697 = vpow.pop %v5696
      %v5698 = vmul.f32 %v5447, 1.442695
      %v5699 = vpow.pop %v5698
      %v5700 = vmul.f32 %v5448, 1.442695
      %v5701 = vpow.pop %v5700
      %v5702 = vmul.f32 %v5449, 1.442695
      %v5703 = vpow.pop %v5702
      %v5704 = vmul.f32 %v5450, 1.442695
      %v5705 = vpow.pop %v5704
      %v5706 = vmul.f32 %v5451, 1.442695
      %v5707 = vpow.pop %v5706
      %v5708 = vadd.f32 %v5453, 1.0
      %v5709 = vadd.f32 %v5455, 1.0
      %v5710 = vadd.f32 %v5457, 1.0
      %v5711 = vadd.f32 %v5459, 1.0
      %v5712 = vadd.f32 %v5461, 1.0
      %v5713 = vadd.f32 %v5463, 1.0
      %v5714 = vadd.f32 %v5465, 1.0
      %v5715 = vadd.f32 %v5467, 1.0
      %v5716 = vadd.f32 %v5469, 1.0
      %v5717 = vadd.f32 %v5471, 1.0
      %v5718 = vadd.f32 %v5473, 1.0
      %v5719 = vadd.f32 %v5475, 1.0
      %v5720 = vadd.f32 %v5477, 1.0
      %v5721 = vadd.f32 %v5479, 1.0
      %v5722 = vadd.f32 %v5481, 1.0
      %v5723 = vadd.f32 %v5483, 1.0
      %v5724 = vadd.f32 %v5485, 1.0
      %v5725 = vadd.f32 %v5487, 1.0
      %v5726 = vadd.f32 %v5489, 1.0
      %v5727 = vadd.f32 %v5491, 1.0
      %v5728 = vadd.f32 %v5493, 1.0
      %v5729 = vadd.f32 %v5495, 1.0
      %v5730 = vadd.f32 %v5497, 1.0
      %v5731 = vadd.f32 %v5499, 1.0
      %v5732 = vadd.f32 %v5501, 1.0
      %v5733 = vadd.f32 %v5503, 1.0
      %v5734 = vadd.f32 %v5505, 1.0
      %v5735 = vadd.f32 %v5507, 1.0
      %v5736 = vadd.f32 %v5509, 1.0
      %v5737 = vadd.f32 %v5511, 1.0
      %v5738 = vadd.f32 %v5513, 1.0
      %v5739 = vadd.f32 %v5515, 1.0
      %v5740 = vadd.f32 %v5517, 1.0
      %v5741 = vadd.f32 %v5519, 1.0
      %v5742 = vadd.f32 %v5521, 1.0
      %v5743 = vadd.f32 %v5523, 1.0
      %v5744 = vadd.f32 %v5525, 1.0
      %v5745 = vadd.f32 %v5527, 1.0
      %v5746 = vadd.f32 %v5529, 1.0
      %v5747 = vadd.f32 %v5531, 1.0
      %v5748 = vadd.f32 %v5533, 1.0
      %v5749 = vadd.f32 %v5535, 1.0
      %v5750 = vadd.f32 %v5537, 1.0
      %v5751 = vadd.f32 %v5539, 1.0
      %v5752 = vadd.f32 %v5541, 1.0
      %v5753 = vadd.f32 %v5543, 1.0
      %v5754 = vadd.f32 %v5545, 1.0
      %v5755 = vadd.f32 %v5547, 1.0
      %v5756 = vadd.f32 %v5549, 1.0
      %v5757 = vadd.f32 %v5551, 1.0
      %v5758 = vadd.f32 %v5553, 1.0
      %v5759 = vadd.f32 %v5555, 1.0
      %v5760 = vadd.f32 %v5557, 1.0
      %v5761 = vadd.f32 %v5559, 1.0
      %v5762 = vadd.f32 %v5561, 1.0
      %v5763 = vadd.f32 %v5563, 1.0
      %v5764 = vadd.f32 %v5565, 1.0
      %v5765 = vadd.f32 %v5567, 1.0
      %v5766 = vadd.f32 %v5569, 1.0
      %v5767 = vadd.f32 %v5571, 1.0
      %v5768 = vadd.f32 %v5573, 1.0
      %v5769 = vadd.f32 %v5575, 1.0
      %v5770 = vadd.f32 %v5577, 1.0
      %v5771 = vadd.f32 %v5579, 1.0
      %v5772 = vadd.f32 %v5581, 1.0
      %v5773 = vadd.f32 %v5583, 1.0
      %v5774 = vadd.f32 %v5585, 1.0
      %v5775 = vadd.f32 %v5587, 1.0
      %v5776 = vadd.f32 %v5589, 1.0
      %v5777 = vadd.f32 %v5591, 1.0
      %v5778 = vadd.f32 %v5593, 1.0
      %v5779 = vadd.f32 %v5595, 1.0
      %v5780 = vadd.f32 %v5597, 1.0
      %v5781 = vadd.f32 %v5599, 1.0
      %v5782 = vadd.f32 %v5601, 1.0
      %v5783 = vadd.f32 %v5603, 1.0
      %v5784 = vadd.f32 %v5605, 1.0
      %v5785 = vadd.f32 %v5607, 1.0
      %v5786 = vadd.f32 %v5609, 1.0
      %v5787 = vadd.f32 %v5611, 1.0
      %v5788 = vadd.f32 %v5613, 1.0
      %v5789 = vadd.f32 %v5615, 1.0
      %v5790 = vadd.f32 %v5617, 1.0
      %v5791 = vadd.f32 %v5619, 1.0
      %v5792 = vadd.f32 %v5621, 1.0
      %v5793 = vadd.f32 %v5623, 1.0
      %v5794 = vadd.f32 %v5625, 1.0
      %v5795 = vadd.f32 %v5627, 1.0
      %v5796 = vadd.f32 %v5629, 1.0
      %v5797 = vadd.f32 %v5631, 1.0
      %v5798 = vadd.f32 %v5633, 1.0
      %v5799 = vadd.f32 %v5635, 1.0
      %v5800 = vadd.f32 %v5637, 1.0
      %v5801 = vadd.f32 %v5639, 1.0
      %v5802 = vadd.f32 %v5641, 1.0
      %v5803 = vadd.f32 %v5643, 1.0
      %v5804 = vadd.f32 %v5645, 1.0
      %v5805 = vadd.f32 %v5647, 1.0
      %v5806 = vadd.f32 %v5649, 1.0
      %v5807 = vadd.f32 %v5651, 1.0
      %v5808 = vadd.f32 %v5653, 1.0
      %v5809 = vadd.f32 %v5655, 1.0
      %v5810 = vadd.f32 %v5657, 1.0
      %v5811 = vadd.f32 %v5659, 1.0
      %v5812 = vadd.f32 %v5661, 1.0
      %v5813 = vadd.f32 %v5663, 1.0
      %v5814 = vadd.f32 %v5665, 1.0
      %v5815 = vadd.f32 %v5667, 1.0
      %v5816 = vadd.f32 %v5669, 1.0
      %v5817 = vadd.f32 %v5671, 1.0
      %v5818 = vadd.f32 %v5673, 1.0
      %v5819 = vadd.f32 %v5675, 1.0
      %v5820 = vadd.f32 %v5677, 1.0
      %v5821 = vadd.f32 %v5679, 1.0
      %v5822 = vadd.f32 %v5681, 1.0
      %v5823 = vadd.f32 %v5683, 1.0
      %v5824 = vadd.f32 %v5685, 1.0
      %v5825 = vadd.f32 %v5687, 1.0
      %v5826 = vadd.f32 %v5689, 1.0
      %v5827 = vadd.f32 %v5691, 1.0
      %v5828 = vadd.f32 %v5693, 1.0
      %v5829 = vadd.f32 %v5695, 1.0
      %v5830 = vadd.f32 %v5697, 1.0
      %v5831 = vadd.f32 %v5699, 1.0
      %v5832 = vadd.f32 %v5701, 1.0
      %v5833 = vadd.f32 %v5703, 1.0
      %v5834 = vadd.f32 %v5705, 1.0
      %v5835 = vadd.f32 %v5707, 1.0
      %v5836 = vlog2.pop %v5708
      %v5837 = vmul.f32 %v5836, 0.6931472
      %v5838 = vlog2.pop %v5709
      %v5839 = vmul.f32 %v5838, 0.6931472
      %v5840 = vlog2.pop %v5710
      %v5841 = vmul.f32 %v5840, 0.6931472
      %v5842 = vlog2.pop %v5711
      %v5843 = vmul.f32 %v5842, 0.6931472
      %v5844 = vlog2.pop %v5712
      %v5845 = vmul.f32 %v5844, 0.6931472
      %v5846 = vlog2.pop %v5713
      %v5847 = vmul.f32 %v5846, 0.6931472
      %v5848 = vlog2.pop %v5714
      %v5849 = vmul.f32 %v5848, 0.6931472
      %v5850 = vlog2.pop %v5715
      %v5851 = vmul.f32 %v5850, 0.6931472
      %v5852 = vlog2.pop %v5716
      %v5853 = vmul.f32 %v5852, 0.6931472
      %v5854 = vlog2.pop %v5717
      %v5855 = vmul.f32 %v5854, 0.6931472
      %v5856 = vlog2.pop %v5718
      %v5857 = vmul.f32 %v5856, 0.6931472
      %v5858 = vlog2.pop %v5719
      %v5859 = vmul.f32 %v5858, 0.6931472
      %v5860 = vlog2.pop %v5720
      %v5861 = vmul.f32 %v5860, 0.6931472
      %v5862 = vlog2.pop %v5721
      %v5863 = vmul.f32 %v5862, 0.6931472
      %v5864 = vlog2.pop %v5722
      %v5865 = vmul.f32 %v5864, 0.6931472
      %v5866 = vlog2.pop %v5723
      %v5867 = vmul.f32 %v5866, 0.6931472
      %v5868 = vlog2.pop %v5724
      %v5869 = vmul.f32 %v5868, 0.6931472
      %v5870 = vlog2.pop %v5725
      %v5871 = vmul.f32 %v5870, 0.6931472
      %v5872 = vlog2.pop %v5726
      %v5873 = vmul.f32 %v5872, 0.6931472
      %v5874 = vlog2.pop %v5727
      %v5875 = vmul.f32 %v5874, 0.6931472
      %v5876 = vlog2.pop %v5728
      %v5877 = vmul.f32 %v5876, 0.6931472
      %v5878 = vlog2.pop %v5729
      %v5879 = vmul.f32 %v5878, 0.6931472
      %v5880 = vlog2.pop %v5730
      %v5881 = vmul.f32 %v5880, 0.6931472
      %v5882 = vlog2.pop %v5731
      %v5883 = vmul.f32 %v5882, 0.6931472
      %v5884 = vlog2.pop %v5732
      %v5885 = vmul.f32 %v5884, 0.6931472
      %v5886 = vlog2.pop %v5733
      %v5887 = vmul.f32 %v5886, 0.6931472
      %v5888 = vlog2.pop %v5734
      %v5889 = vmul.f32 %v5888, 0.6931472
      %v5890 = vlog2.pop %v5735
      %v5891 = vmul.f32 %v5890, 0.6931472
      %v5892 = vlog2.pop %v5736
      %v5893 = vmul.f32 %v5892, 0.6931472
      %v5894 = vlog2.pop %v5737
      %v5895 = vmul.f32 %v5894, 0.6931472
      %v5896 = vlog2.pop %v5738
      %v5897 = vmul.f32 %v5896, 0.6931472
      %v5898 = vlog2.pop %v5739
      %v5899 = vmul.f32 %v5898, 0.6931472
      %v5900 = vlog2.pop %v5740
      %v5901 = vmul.f32 %v5900, 0.6931472
      %v5902 = vlog2.pop %v5741
      %v5903 = vmul.f32 %v5902, 0.6931472
      %v5904 = vlog2.pop %v5742
      %v5905 = vmul.f32 %v5904, 0.6931472
      %v5906 = vlog2.pop %v5743
      %v5907 = vmul.f32 %v5906, 0.6931472
      %v5908 = vlog2.pop %v5744
      %v5909 = vmul.f32 %v5908, 0.6931472
      %v5910 = vlog2.pop %v5745
      %v5911 = vmul.f32 %v5910, 0.6931472
      %v5912 = vlog2.pop %v5746
      %v5913 = vmul.f32 %v5912, 0.6931472
      %v5914 = vlog2.pop %v5747
      %v5915 = vmul.f32 %v5914, 0.6931472
      %v5916 = vlog2.pop %v5748
      %v5917 = vmul.f32 %v5916, 0.6931472
      %v5918 = vlog2.pop %v5749
      %v5919 = vmul.f32 %v5918, 0.6931472
      %v5920 = vlog2.pop %v5750
      %v5921 = vmul.f32 %v5920, 0.6931472
      %v5922 = vlog2.pop %v5751
      %v5923 = vmul.f32 %v5922, 0.6931472
      %v5924 = vlog2.pop %v5752
      %v5925 = vmul.f32 %v5924, 0.6931472
      %v5926 = vlog2.pop %v5753
      %v5927 = vmul.f32 %v5926, 0.6931472
      %v5928 = vlog2.pop %v5754
      %v5929 = vmul.f32 %v5928, 0.6931472
      %v5930 = vlog2.pop %v5755
      %v5931 = vmul.f32 %v5930, 0.6931472
      %v5932 = vlog2.pop %v5756
      %v5933 = vmul.f32 %v5932, 0.6931472
      %v5934 = vlog2.pop %v5757
      %v5935 = vmul.f32 %v5934, 0.6931472
      %v5936 = vlog2.pop %v5758
      %v5937 = vmul.f32 %v5936, 0.6931472
      %v5938 = vlog2.pop %v5759
      %v5939 = vmul.f32 %v5938, 0.6931472
      %v5940 = vlog2.pop %v5760
      %v5941 = vmul.f32 %v5940, 0.6931472
      %v5942 = vlog2.pop %v5761
      %v5943 = vmul.f32 %v5942, 0.6931472
      %v5944 = vlog2.pop %v5762
      %v5945 = vmul.f32 %v5944, 0.6931472
      %v5946 = vlog2.pop %v5763
      %v5947 = vmul.f32 %v5946, 0.6931472
      %v5948 = vlog2.pop %v5764
      %v5949 = vmul.f32 %v5948, 0.6931472
      %v5950 = vlog2.pop %v5765
      %v5951 = vmul.f32 %v5950, 0.6931472
      %v5952 = vlog2.pop %v5766
      %v5953 = vmul.f32 %v5952, 0.6931472
      %v5954 = vlog2.pop %v5767
      %v5955 = vmul.f32 %v5954, 0.6931472
      %v5956 = vlog2.pop %v5768
      %v5957 = vmul.f32 %v5956, 0.6931472
      %v5958 = vlog2.pop %v5769
      %v5959 = vmul.f32 %v5958, 0.6931472
      %v5960 = vlog2.pop %v5770
      %v5961 = vmul.f32 %v5960, 0.6931472
      %v5962 = vlog2.pop %v5771
      %v5963 = vmul.f32 %v5962, 0.6931472
      %v5964 = vlog2.pop %v5772
      %v5965 = vmul.f32 %v5964, 0.6931472
      %v5966 = vlog2.pop %v5773
      %v5967 = vmul.f32 %v5966, 0.6931472
      %v5968 = vlog2.pop %v5774
      %v5969 = vmul.f32 %v5968, 0.6931472
      %v5970 = vlog2.pop %v5775
      %v5971 = vmul.f32 %v5970, 0.6931472
      %v5972 = vlog2.pop %v5776
      %v5973 = vmul.f32 %v5972, 0.6931472
      %v5974 = vlog2.pop %v5777
      %v5975 = vmul.f32 %v5974, 0.6931472
      %v5976 = vlog2.pop %v5778
      %v5977 = vmul.f32 %v5976, 0.6931472
      %v5978 = vlog2.pop %v5779
      %v5979 = vmul.f32 %v5978, 0.6931472
      %v5980 = vlog2.pop %v5780
      %v5981 = vmul.f32 %v5980, 0.6931472
      %v5982 = vlog2.pop %v5781
      %v5983 = vmul.f32 %v5982, 0.6931472
      %v5984 = vlog2.pop %v5782
      %v5985 = vmul.f32 %v5984, 0.6931472
      %v5986 = vlog2.pop %v5783
      %v5987 = vmul.f32 %v5986, 0.6931472
      %v5988 = vlog2.pop %v5784
      %v5989 = vmul.f32 %v5988, 0.6931472
      %v5990 = vlog2.pop %v5785
      %v5991 = vmul.f32 %v5990, 0.6931472
      %v5992 = vlog2.pop %v5786
      %v5993 = vmul.f32 %v5992, 0.6931472
      %v5994 = vlog2.pop %v5787
      %v5995 = vmul.f32 %v5994, 0.6931472
      %v5996 = vlog2.pop %v5788
      %v5997 = vmul.f32 %v5996, 0.6931472
      %v5998 = vlog2.pop %v5789
      %v5999 = vmul.f32 %v5998, 0.6931472
      %v6000 = vlog2.pop %v5790
      %v6001 = vmul.f32 %v6000, 0.6931472
      %v6002 = vlog2.pop %v5791
      %v6003 = vmul.f32 %v6002, 0.6931472
      %v6004 = vlog2.pop %v5792
      %v6005 = vmul.f32 %v6004, 0.6931472
      %v6006 = vlog2.pop %v5793
      %v6007 = vmul.f32 %v6006, 0.6931472
      %v6008 = vlog2.pop %v5794
      %v6009 = vmul.f32 %v6008, 0.6931472
      %v6010 = vlog2.pop %v5795
      %v6011 = vmul.f32 %v6010, 0.6931472
      %v6012 = vlog2.pop %v5796
      %v6013 = vmul.f32 %v6012, 0.6931472
      %v6014 = vlog2.pop %v5797
      %v6015 = vmul.f32 %v6014, 0.6931472
      %v6016 = vlog2.pop %v5798
      %v6017 = vmul.f32 %v6016, 0.6931472
      %v6018 = vlog2.pop %v5799
      %v6019 = vmul.f32 %v6018, 0.6931472
      %v6020 = vlog2.pop %v5800
      %v6021 = vmul.f32 %v6020, 0.6931472
      %v6022 = vlog2.pop %v5801
      %v6023 = vmul.f32 %v6022, 0.6931472
      %v6024 = vlog2.pop %v5802
      %v6025 = vmul.f32 %v6024, 0.6931472
      %v6026 = vlog2.pop %v5803
      %v6027 = vmul.f32 %v6026, 0.6931472
      %v6028 = vlog2.pop %v5804
      %v6029 = vmul.f32 %v6028, 0.6931472
      %v6030 = vlog2.pop %v5805
      %v6031 = vmul.f32 %v6030, 0.6931472
      %v6032 = vlog2.pop %v5806
      %v6033 = vmul.f32 %v6032, 0.6931472
      %v6034 = vlog2.pop %v5807
      %v6035 = vmul.f32 %v6034, 0.6931472
      %v6036 = vlog2.pop %v5808
      %v6037 = vmul.f32 %v6036, 0.6931472
      %v6038 = vlog2.pop %v5809
      %v6039 = vmul.f32 %v6038, 0.6931472
      %v6040 = vlog2.pop %v5810
      %v6041 = vmul.f32 %v6040, 0.6931472
      %v6042 = vlog2.pop %v5811
      %v6043 = vmul.f32 %v6042, 0.6931472
      %v6044 = vlog2.pop %v5812
      %v6045 = vmul.f32 %v6044, 0.6931472
      %v6046 = vlog2.pop %v5813
      %v6047 = vmul.f32 %v6046, 0.6931472
      %v6048 = vlog2.pop %v5814
      %v6049 = vmul.f32 %v6048, 0.6931472
      %v6050 = vlog2.pop %v5815
      %v6051 = vmul.f32 %v6050, 0.6931472
      %v6052 = vlog2.pop %v5816
      %v6053 = vmul.f32 %v6052, 0.6931472
      %v6054 = vlog2.pop %v5817
      %v6055 = vmul.f32 %v6054, 0.6931472
      %v6056 = vlog2.pop %v5818
      %v6057 = vmul.f32 %v6056, 0.6931472
      %v6058 = vlog2.pop %v5819
      %v6059 = vmul.f32 %v6058, 0.6931472
      %v6060 = vlog2.pop %v5820
      %v6061 = vmul.f32 %v6060, 0.6931472
      %v6062 = vlog2.pop %v5821
      %v6063 = vmul.f32 %v6062, 0.6931472
      %v6064 = vlog2.pop %v5822
      %v6065 = vmul.f32 %v6064, 0.6931472
      %v6066 = vlog2.pop %v5823
      %v6067 = vmul.f32 %v6066, 0.6931472
      %v6068 = vlog2.pop %v5824
      %v6069 = vmul.f32 %v6068, 0.6931472
      %v6070 = vlog2.pop %v5825
      %v6071 = vmul.f32 %v6070, 0.6931472
      %v6072 = vlog2.pop %v5826
      %v6073 = vmul.f32 %v6072, 0.6931472
      %v6074 = vlog2.pop %v5827
      %v6075 = vmul.f32 %v6074, 0.6931472
      %v6076 = vlog2.pop %v5828
      %v6077 = vmul.f32 %v6076, 0.6931472
      %v6078 = vlog2.pop %v5829
      %v6079 = vmul.f32 %v6078, 0.6931472
      %v6080 = vlog2.pop %v5830
      %v6081 = vmul.f32 %v6080, 0.6931472
      %v6082 = vlog2.pop %v5831
      %v6083 = vmul.f32 %v6082, 0.6931472
      %v6084 = vlog2.pop %v5832
      %v6085 = vmul.f32 %v6084, 0.6931472
      %v6086 = vlog2.pop %v5833
      %v6087 = vmul.f32 %v6086, 0.6931472
      %v6088 = vlog2.pop %v5834
      %v6089 = vmul.f32 %v6088, 0.6931472
      %v6090 = vlog2.pop %v5835
      %v6091 = vmul.f32 %v6090, 0.6931472
      %v6092 = vadd.f32 %v5068, %v5837
      %v6093 = vadd.f32 %v5069, %v5839
      %v6094 = vadd.f32 %v5070, %v5841
      %v6095 = vadd.f32 %v5071, %v5843
      %v6096 = vadd.f32 %v5072, %v5845
      %v6097 = vadd.f32 %v5073, %v5847
      %v6098 = vadd.f32 %v5074, %v5849
      %v6099 = vadd.f32 %v5075, %v5851
      %v6100 = vadd.f32 %v5076, %v5853
      %v6101 = vadd.f32 %v5077, %v5855
      %v6102 = vadd.f32 %v5078, %v5857
      %v6103 = vadd.f32 %v5079, %v5859
      %v6104 = vadd.f32 %v5080, %v5861
      %v6105 = vadd.f32 %v5081, %v5863
      %v6106 = vadd.f32 %v5082, %v5865
      %v6107 = vadd.f32 %v5083, %v5867
      %v6108 = vadd.f32 %v5084, %v5869
      %v6109 = vadd.f32 %v5085, %v5871
      %v6110 = vadd.f32 %v5086, %v5873
      %v6111 = vadd.f32 %v5087, %v5875
      %v6112 = vadd.f32 %v5088, %v5877
      %v6113 = vadd.f32 %v5089, %v5879
      %v6114 = vadd.f32 %v5090, %v5881
      %v6115 = vadd.f32 %v5091, %v5883
      %v6116 = vadd.f32 %v5092, %v5885
      %v6117 = vadd.f32 %v5093, %v5887
      %v6118 = vadd.f32 %v5094, %v5889
      %v6119 = vadd.f32 %v5095, %v5891
      %v6120 = vadd.f32 %v5096, %v5893
      %v6121 = vadd.f32 %v5097, %v5895
      %v6122 = vadd.f32 %v5098, %v5897
      %v6123 = vadd.f32 %v5099, %v5899
      %v6124 = vadd.f32 %v5100, %v5901
      %v6125 = vadd.f32 %v5101, %v5903
      %v6126 = vadd.f32 %v5102, %v5905
      %v6127 = vadd.f32 %v5103, %v5907
      %v6128 = vadd.f32 %v5104, %v5909
      %v6129 = vadd.f32 %v5105, %v5911
      %v6130 = vadd.f32 %v5106, %v5913
      %v6131 = vadd.f32 %v5107, %v5915
      %v6132 = vadd.f32 %v5108, %v5917
      %v6133 = vadd.f32 %v5109, %v5919
      %v6134 = vadd.f32 %v5110, %v5921
      %v6135 = vadd.f32 %v5111, %v5923
      %v6136 = vadd.f32 %v5112, %v5925
      %v6137 = vadd.f32 %v5113, %v5927
      %v6138 = vadd.f32 %v5114, %v5929
      %v6139 = vadd.f32 %v5115, %v5931
      %v6140 = vadd.f32 %v5116, %v5933
      %v6141 = vadd.f32 %v5117, %v5935
      %v6142 = vadd.f32 %v5118, %v5937
      %v6143 = vadd.f32 %v5119, %v5939
      %v6144 = vadd.f32 %v5120, %v5941
      %v6145 = vadd.f32 %v5121, %v5943
      %v6146 = vadd.f32 %v5122, %v5945
      %v6147 = vadd.f32 %v5123, %v5947
      %v6148 = vadd.f32 %v5124, %v5949
      %v6149 = vadd.f32 %v5125, %v5951
      %v6150 = vadd.f32 %v5126, %v5953
      %v6151 = vadd.f32 %v5127, %v5955
      %v6152 = vadd.f32 %v5128, %v5957
      %v6153 = vadd.f32 %v5129, %v5959
      %v6154 = vadd.f32 %v5130, %v5961
      %v6155 = vadd.f32 %v5131, %v5963
      %v6156 = vadd.f32 %v5132, %v5965
      %v6157 = vadd.f32 %v5133, %v5967
      %v6158 = vadd.f32 %v5134, %v5969
      %v6159 = vadd.f32 %v5135, %v5971
      %v6160 = vadd.f32 %v5136, %v5973
      %v6161 = vadd.f32 %v5137, %v5975
      %v6162 = vadd.f32 %v5138, %v5977
      %v6163 = vadd.f32 %v5139, %v5979
      %v6164 = vadd.f32 %v5140, %v5981
      %v6165 = vadd.f32 %v5141, %v5983
      %v6166 = vadd.f32 %v5142, %v5985
      %v6167 = vadd.f32 %v5143, %v5987
      %v6168 = vadd.f32 %v5144, %v5989
      %v6169 = vadd.f32 %v5145, %v5991
      %v6170 = vadd.f32 %v5146, %v5993
      %v6171 = vadd.f32 %v5147, %v5995
      %v6172 = vadd.f32 %v5148, %v5997
      %v6173 = vadd.f32 %v5149, %v5999
      %v6174 = vadd.f32 %v5150, %v6001
      %v6175 = vadd.f32 %v5151, %v6003
      %v6176 = vadd.f32 %v5152, %v6005
      %v6177 = vadd.f32 %v5153, %v6007
      %v6178 = vadd.f32 %v5154, %v6009
      %v6179 = vadd.f32 %v5155, %v6011
      %v6180 = vadd.f32 %v5156, %v6013
      %v6181 = vadd.f32 %v5157, %v6015
      %v6182 = vadd.f32 %v5158, %v6017
      %v6183 = vadd.f32 %v5159, %v6019
      %v6184 = vadd.f32 %v5160, %v6021
      %v6185 = vadd.f32 %v5161, %v6023
      %v6186 = vadd.f32 %v5162, %v6025
      %v6187 = vadd.f32 %v5163, %v6027
      %v6188 = vadd.f32 %v5164, %v6029
      %v6189 = vadd.f32 %v5165, %v6031
      %v6190 = vadd.f32 %v5166, %v6033
      %v6191 = vadd.f32 %v5167, %v6035
      %v6192 = vadd.f32 %v5168, %v6037
      %v6193 = vadd.f32 %v5169, %v6039
      %v6194 = vadd.f32 %v5170, %v6041
      %v6195 = vadd.f32 %v5171, %v6043
      %v6196 = vadd.f32 %v5172, %v6045
      %v6197 = vadd.f32 %v5173, %v6047
      %v6198 = vadd.f32 %v5174, %v6049
      %v6199 = vadd.f32 %v5175, %v6051
      %v6200 = vadd.f32 %v5176, %v6053
      %v6201 = vadd.f32 %v5177, %v6055
      %v6202 = vadd.f32 %v5178, %v6057
      %v6203 = vadd.f32 %v5179, %v6059
      %v6204 = vadd.f32 %v5180, %v6061
      %v6205 = vadd.f32 %v5181, %v6063
      %v6206 = vadd.f32 %v5182, %v6065
      %v6207 = vadd.f32 %v5183, %v6067
      %v6208 = vadd.f32 %v5184, %v6069
      %v6209 = vadd.f32 %v5185, %v6071
      %v6210 = vadd.f32 %v5186, %v6073
      %v6211 = vadd.f32 %v5187, %v6075
      %v6212 = vadd.f32 %v5188, %v6077
      %v6213 = vadd.f32 %v5189, %v6079
      %v6214 = vadd.f32 %v5190, %v6081
      %v6215 = vadd.f32 %v5191, %v6083
      %v6216 = vadd.f32 %v5192, %v6085
      %v6217 = vadd.f32 %v5193, %v6087
      %v6218 = vadd.f32 %v5194, %v6089
      %v6219 = vadd.f32 %v5195, %v6091
      %v6220 = vmul.f32 %v6092, 0.01
      %v6221 = vmul.f32 %v6093, 0.01
      %v6222 = vmul.f32 %v6094, 0.01
      %v6223 = vmul.f32 %v6095, 0.01
      %v6224 = vmul.f32 %v6096, 0.01
      %v6225 = vmul.f32 %v6097, 0.01
      %v6226 = vmul.f32 %v6098, 0.01
      %v6227 = vmul.f32 %v6099, 0.01
      %v6228 = vmul.f32 %v6100, 0.01
      %v6229 = vmul.f32 %v6101, 0.01
      %v6230 = vmul.f32 %v6102, 0.01
      %v6231 = vmul.f32 %v6103, 0.01
      %v6232 = vmul.f32 %v6104, 0.01
      %v6233 = vmul.f32 %v6105, 0.01
      %v6234 = vmul.f32 %v6106, 0.01
      %v6235 = vmul.f32 %v6107, 0.01
      %v6236 = vmul.f32 %v6108, 0.01
      %v6237 = vmul.f32 %v6109, 0.01
      %v6238 = vmul.f32 %v6110, 0.01
      %v6239 = vmul.f32 %v6111, 0.01
      %v6240 = vmul.f32 %v6112, 0.01
      %v6241 = vmul.f32 %v6113, 0.01
      %v6242 = vmul.f32 %v6114, 0.01
      %v6243 = vmul.f32 %v6115, 0.01
      %v6244 = vmul.f32 %v6116, 0.01
      %v6245 = vmul.f32 %v6117, 0.01
      %v6246 = vmul.f32 %v6118, 0.01
      %v6247 = vmul.f32 %v6119, 0.01
      %v6248 = vmul.f32 %v6120, 0.01
      %v6249 = vmul.f32 %v6121, 0.01
      %v6250 = vmul.f32 %v6122, 0.01
      %v6251 = vmul.f32 %v6123, 0.01
      %v6252 = vmul.f32 %v6124, 0.01
      %v6253 = vmul.f32 %v6125, 0.01
      %v6254 = vmul.f32 %v6126, 0.01
      %v6255 = vmul.f32 %v6127, 0.01
      %v6256 = vmul.f32 %v6128, 0.01
      %v6257 = vmul.f32 %v6129, 0.01
      %v6258 = vmul.f32 %v6130, 0.01
      %v6259 = vmul.f32 %v6131, 0.01
      %v6260 = vmul.f32 %v6132, 0.01
      %v6261 = vmul.f32 %v6133, 0.01
      %v6262 = vmul.f32 %v6134, 0.01
      %v6263 = vmul.f32 %v6135, 0.01
      %v6264 = vmul.f32 %v6136, 0.01
      %v6265 = vmul.f32 %v6137, 0.01
      %v6266 = vmul.f32 %v6138, 0.01
      %v6267 = vmul.f32 %v6139, 0.01
      %v6268 = vmul.f32 %v6140, 0.01
      %v6269 = vmul.f32 %v6141, 0.01
      %v6270 = vmul.f32 %v6142, 0.01
      %v6271 = vmul.f32 %v6143, 0.01
      %v6272 = vmul.f32 %v6144, 0.01
      %v6273 = vmul.f32 %v6145, 0.01
      %v6274 = vmul.f32 %v6146, 0.01
      %v6275 = vmul.f32 %v6147, 0.01
      %v6276 = vmul.f32 %v6148, 0.01
      %v6277 = vmul.f32 %v6149, 0.01
      %v6278 = vmul.f32 %v6150, 0.01
      %v6279 = vmul.f32 %v6151, 0.01
      %v6280 = vmul.f32 %v6152, 0.01
      %v6281 = vmul.f32 %v6153, 0.01
      %v6282 = vmul.f32 %v6154, 0.01
      %v6283 = vmul.f32 %v6155, 0.01
      %v6284 = vmul.f32 %v6156, 0.01
      %v6285 = vmul.f32 %v6157, 0.01
      %v6286 = vmul.f32 %v6158, 0.01
      %v6287 = vmul.f32 %v6159, 0.01
      %v6288 = vmul.f32 %v6160, 0.01
      %v6289 = vmul.f32 %v6161, 0.01
      %v6290 = vmul.f32 %v6162, 0.01
      %v6291 = vmul.f32 %v6163, 0.01
      %v6292 = vmul.f32 %v6164, 0.01
      %v6293 = vmul.f32 %v6165, 0.01
      %v6294 = vmul.f32 %v6166, 0.01
      %v6295 = vmul.f32 %v6167, 0.01
      %v6296 = vmul.f32 %v6168, 0.01
      %v6297 = vmul.f32 %v6169, 0.01
      %v6298 = vmul.f32 %v6170, 0.01
      %v6299 = vmul.f32 %v6171, 0.01
      %v6300 = vmul.f32 %v6172, 0.01
      %v6301 = vmul.f32 %v6173, 0.01
      %v6302 = vmul.f32 %v6174, 0.01
      %v6303 = vmul.f32 %v6175, 0.01
      %v6304 = vmul.f32 %v6176, 0.01
      %v6305 = vmul.f32 %v6177, 0.01
      %v6306 = vmul.f32 %v6178, 0.01
      %v6307 = vmul.f32 %v6179, 0.01
      %v6308 = vmul.f32 %v6180, 0.01
      %v6309 = vmul.f32 %v6181, 0.01
      %v6310 = vmul.f32 %v6182, 0.01
      %v6311 = vmul.f32 %v6183, 0.01
      %v6312 = vmul.f32 %v6184, 0.01
      %v6313 = vmul.f32 %v6185, 0.01
      %v6314 = vmul.f32 %v6186, 0.01
      %v6315 = vmul.f32 %v6187, 0.01
      %v6316 = vmul.f32 %v6188, 0.01
      %v6317 = vmul.f32 %v6189, 0.01
      %v6318 = vmul.f32 %v6190, 0.01
      %v6319 = vmul.f32 %v6191, 0.01
      %v6320 = vmul.f32 %v6192, 0.01
      %v6321 = vmul.f32 %v6193, 0.01
      %v6322 = vmul.f32 %v6194, 0.01
      %v6323 = vmul.f32 %v6195, 0.01
      %v6324 = vmul.f32 %v6196, 0.01
      %v6325 = vmul.f32 %v6197, 0.01
      %v6326 = vmul.f32 %v6198, 0.01
      %v6327 = vmul.f32 %v6199, 0.01
      %v6328 = vmul.f32 %v6200, 0.01
      %v6329 = vmul.f32 %v6201, 0.01
      %v6330 = vmul.f32 %v6202, 0.01
      %v6331 = vmul.f32 %v6203, 0.01
      %v6332 = vmul.f32 %v6204, 0.01
      %v6333 = vmul.f32 %v6205, 0.01
      %v6334 = vmul.f32 %v6206, 0.01
      %v6335 = vmul.f32 %v6207, 0.01
      %v6336 = vmul.f32 %v6208, 0.01
      %v6337 = vmul.f32 %v6209, 0.01
      %v6338 = vmul.f32 %v6210, 0.01
      %v6339 = vmul.f32 %v6211, 0.01
      %v6340 = vmul.f32 %v6212, 0.01
      %v6341 = vmul.f32 %v6213, 0.01
      %v6342 = vmul.f32 %v6214, 0.01
      %v6343 = vmul.f32 %v6215, 0.01
      %v6344 = vmul.f32 %v6216, 0.01
      %v6345 = vmul.f32 %v6217, 0.01
      %v6346 = vmul.f32 %v6218, 0.01
      %v6347 = vmul.f32 %v6219, 0.01
      %s6348 = scalar_lea.vmem %s2, 128
      %v6349 = vld [vmem:[%s6348] sm:$0xff]
      %v6350 = vld [vmem:[%s6348 + $0x8] sm:$0xff]
      %v6351 = vld [vmem:[%s6348 + $0x10] sm:$0xff]
      %v6352 = vld [vmem:[%s6348 + $0x18] sm:$0xff]
      %v6353 = vld [vmem:[%s6348 + $0x20] sm:$0xff]
      %v6354 = vld [vmem:[%s6348 + $0x28] sm:$0xff]
      %v6355 = vld [vmem:[%s6348 + $0x30] sm:$0xff]
      %v6356 = vld [vmem:[%s6348 + $0x38] sm:$0xff]
      %v6357 = vld [vmem:[%s6348 + $0x40] sm:$0xff]
      %v6358 = vld [vmem:[%s6348 + $0x48] sm:$0xff]
      %v6359 = vld [vmem:[%s6348 + $0x50] sm:$0xff]
      %v6360 = vld [vmem:[%s6348 + $0x58] sm:$0xff]
      %v6361 = vld [vmem:[%s6348 + $0x60] sm:$0xff]
      %v6362 = vld [vmem:[%s6348 + $0x68] sm:$0xff]
      %v6363 = vld [vmem:[%s6348 + $0x70] sm:$0xff]
      %v6364 = vld [vmem:[%s6348 + $0x78] sm:$0xff]
      %v6365 = vlaneseq
      %v6366 = vshrl.u32 %v6365, 7
      %v6367 = vsub.s32 0, %v6366
      %v6368 = vrot.slane %v358, %v6367
      %v6369 = vmul.f32 %v362, %v6368
      %v6370 = vmul.f32 %v367, %v6368
      %v6371 = vmul.f32 %v372, %v6368
      %v6372 = vmul.f32 %v377, %v6368
      %v6373 = vmul.f32 %v382, %v6368
      %v6374 = vmul.f32 %v387, %v6368
      %v6375 = vmul.f32 %v392, %v6368
      %v6376 = vmul.f32 %v397, %v6368
      %v6377 = vmul.f32 %v402, %v6368
      %v6378 = vmul.f32 %v407, %v6368
      %v6379 = vmul.f32 %v412, %v6368
      %v6380 = vmul.f32 %v417, %v6368
      %v6381 = vmul.f32 %v422, %v6368
      %v6382 = vmul.f32 %v427, %v6368
      %v6383 = vmul.f32 %v432, %v6368
      %v6384 = vmul.f32 %v437, %v6368
      %v6385 = vmul.f32 %v442, %v6368
      %v6386 = vmul.f32 %v447, %v6368
      %v6387 = vmul.f32 %v452, %v6368
      %v6388 = vmul.f32 %v457, %v6368
      %v6389 = vmul.f32 %v462, %v6368
      %v6390 = vmul.f32 %v467, %v6368
      %v6391 = vmul.f32 %v472, %v6368
      %v6392 = vmul.f32 %v477, %v6368
      %v6393 = vmul.f32 %v482, %v6368
      %v6394 = vmul.f32 %v487, %v6368
      %v6395 = vmul.f32 %v492, %v6368
      %v6396 = vmul.f32 %v497, %v6368
      %v6397 = vmul.f32 %v502, %v6368
      %v6398 = vmul.f32 %v507, %v6368
      %v6399 = vmul.f32 %v512, %v6368
      %v6400 = vmul.f32 %v517, %v6368
      %v6401 = vmul.f32 %v522, %v6368
      %v6402 = vmul.f32 %v527, %v6368
      %v6403 = vmul.f32 %v532, %v6368
      %v6404 = vmul.f32 %v537, %v6368
      %v6405 = vmul.f32 %v542, %v6368
      %v6406 = vmul.f32 %v547, %v6368
      %v6407 = vmul.f32 %v552, %v6368
      %v6408 = vmul.f32 %v557, %v6368
      %v6409 = vmul.f32 %v562, %v6368
      %v6410 = vmul.f32 %v567, %v6368
      %v6411 = vmul.f32 %v572, %v6368
      %v6412 = vmul.f32 %v577, %v6368
      %v6413 = vmul.f32 %v582, %v6368
      %v6414 = vmul.f32 %v587, %v6368
      %v6415 = vmul.f32 %v592, %v6368
      %v6416 = vmul.f32 %v597, %v6368
      %v6417 = vmul.f32 %v602, %v6368
      %v6418 = vmul.f32 %v607, %v6368
      %v6419 = vmul.f32 %v612, %v6368
      %v6420 = vmul.f32 %v617, %v6368
      %v6421 = vmul.f32 %v622, %v6368
      %v6422 = vmul.f32 %v627, %v6368
      %v6423 = vmul.f32 %v632, %v6368
      %v6424 = vmul.f32 %v637, %v6368
      %v6425 = vmul.f32 %v642, %v6368
      %v6426 = vmul.f32 %v647, %v6368
      %v6427 = vmul.f32 %v652, %v6368
      %v6428 = vmul.f32 %v657, %v6368
      %v6429 = vmul.f32 %v662, %v6368
      %v6430 = vmul.f32 %v667, %v6368
      %v6431 = vmul.f32 %v672, %v6368
      %v6432 = vmul.f32 %v677, %v6368
      %v6433 = vmul.f32 %v682, %v6368
      %v6434 = vmul.f32 %v687, %v6368
      %v6435 = vmul.f32 %v692, %v6368
      %v6436 = vmul.f32 %v697, %v6368
      %v6437 = vmul.f32 %v702, %v6368
      %v6438 = vmul.f32 %v707, %v6368
      %v6439 = vmul.f32 %v712, %v6368
      %v6440 = vmul.f32 %v717, %v6368
      %v6441 = vmul.f32 %v722, %v6368
      %v6442 = vmul.f32 %v727, %v6368
      %v6443 = vmul.f32 %v732, %v6368
      %v6444 = vmul.f32 %v737, %v6368
      %v6445 = vmul.f32 %v742, %v6368
      %v6446 = vmul.f32 %v747, %v6368
      %v6447 = vmul.f32 %v752, %v6368
      %v6448 = vmul.f32 %v757, %v6368
      %v6449 = vmul.f32 %v762, %v6368
      %v6450 = vmul.f32 %v767, %v6368
      %v6451 = vmul.f32 %v772, %v6368
      %v6452 = vmul.f32 %v777, %v6368
      %v6453 = vmul.f32 %v782, %v6368
      %v6454 = vmul.f32 %v787, %v6368
      %v6455 = vmul.f32 %v792, %v6368
      %v6456 = vmul.f32 %v797, %v6368
      %v6457 = vmul.f32 %v802, %v6368
      %v6458 = vmul.f32 %v807, %v6368
      %v6459 = vmul.f32 %v812, %v6368
      %v6460 = vmul.f32 %v817, %v6368
      %v6461 = vmul.f32 %v822, %v6368
      %v6462 = vmul.f32 %v827, %v6368
      %v6463 = vmul.f32 %v832, %v6368
      %v6464 = vmul.f32 %v837, %v6368
      %v6465 = vmul.f32 %v842, %v6368
      %v6466 = vmul.f32 %v847, %v6368
      %v6467 = vmul.f32 %v852, %v6368
      %v6468 = vmul.f32 %v857, %v6368
      %v6469 = vmul.f32 %v862, %v6368
      %v6470 = vmul.f32 %v867, %v6368
      %v6471 = vmul.f32 %v872, %v6368
      %v6472 = vmul.f32 %v877, %v6368
      %v6473 = vmul.f32 %v882, %v6368
      %v6474 = vmul.f32 %v887, %v6368
      %v6475 = vmul.f32 %v892, %v6368
      %v6476 = vmul.f32 %v897, %v6368
      %v6477 = vmul.f32 %v902, %v6368
      %v6478 = vmul.f32 %v907, %v6368
      %v6479 = vmul.f32 %v912, %v6368
      %v6480 = vmul.f32 %v917, %v6368
      %v6481 = vmul.f32 %v922, %v6368
      %v6482 = vmul.f32 %v927, %v6368
      %v6483 = vmul.f32 %v932, %v6368
      %v6484 = vmul.f32 %v937, %v6368
      %v6485 = vmul.f32 %v942, %v6368
      %v6486 = vmul.f32 %v947, %v6368
      %v6487 = vmul.f32 %v952, %v6368
      %v6488 = vmul.f32 %v957, %v6368
      %v6489 = vmul.f32 %v962, %v6368
      %v6490 = vmul.f32 %v967, %v6368
      %v6491 = vmul.f32 %v972, %v6368
      %v6492 = vmul.f32 %v977, %v6368
      %v6493 = vmul.f32 %v982, %v6368
      %v6494 = vmul.f32 %v987, %v6368
      %v6495 = vmul.f32 %v992, %v6368
      %v6496 = vmul.f32 %v997, %v6368
      %v6497 = vlaneseq
      %v6498 = vshrl.u32 %v6497, 7
      %v6499 = vsub.s32 1, %v6498
      %v6500 = vrot.slane %v358, %v6499
      %v6501 = vmul.f32 %v1133, %v6500
      %v6502 = vmul.f32 %v1137, %v6500
      %v6503 = vmul.f32 %v1141, %v6500
      %v6504 = vmul.f32 %v1145, %v6500
      %v6505 = vmul.f32 %v1149, %v6500
      %v6506 = vmul.f32 %v1153, %v6500
      %v6507 = vmul.f32 %v1157, %v6500
      %v6508 = vmul.f32 %v1161, %v6500
      %v6509 = vmul.f32 %v1165, %v6500
      %v6510 = vmul.f32 %v1169, %v6500
      %v6511 = vmul.f32 %v1173, %v6500
      %v6512 = vmul.f32 %v1177, %v6500
      %v6513 = vmul.f32 %v1181, %v6500
      %v6514 = vmul.f32 %v1185, %v6500
      %v6515 = vmul.f32 %v1189, %v6500
      %v6516 = vmul.f32 %v1193, %v6500
      %v6517 = vmul.f32 %v1197, %v6500
      %v6518 = vmul.f32 %v1201, %v6500
      %v6519 = vmul.f32 %v1205, %v6500
      %v6520 = vmul.f32 %v1209, %v6500
      %v6521 = vmul.f32 %v1213, %v6500
      %v6522 = vmul.f32 %v1217, %v6500
      %v6523 = vmul.f32 %v1221, %v6500
      %v6524 = vmul.f32 %v1225, %v6500
      %v6525 = vmul.f32 %v1229, %v6500
      %v6526 = vmul.f32 %v1233, %v6500
      %v6527 = vmul.f32 %v1237, %v6500
      %v6528 = vmul.f32 %v1241, %v6500
      %v6529 = vmul.f32 %v1245, %v6500
      %v6530 = vmul.f32 %v1249, %v6500
      %v6531 = vmul.f32 %v1253, %v6500
      %v6532 = vmul.f32 %v1257, %v6500
      %v6533 = vmul.f32 %v1261, %v6500
      %v6534 = vmul.f32 %v1265, %v6500
      %v6535 = vmul.f32 %v1269, %v6500
      %v6536 = vmul.f32 %v1273, %v6500
      %v6537 = vmul.f32 %v1277, %v6500
      %v6538 = vmul.f32 %v1281, %v6500
      %v6539 = vmul.f32 %v1285, %v6500
      %v6540 = vmul.f32 %v1289, %v6500
      %v6541 = vmul.f32 %v1293, %v6500
      %v6542 = vmul.f32 %v1297, %v6500
      %v6543 = vmul.f32 %v1301, %v6500
      %v6544 = vmul.f32 %v1305, %v6500
      %v6545 = vmul.f32 %v1309, %v6500
      %v6546 = vmul.f32 %v1313, %v6500
      %v6547 = vmul.f32 %v1317, %v6500
      %v6548 = vmul.f32 %v1321, %v6500
      %v6549 = vmul.f32 %v1325, %v6500
      %v6550 = vmul.f32 %v1329, %v6500
      %v6551 = vmul.f32 %v1333, %v6500
      %v6552 = vmul.f32 %v1337, %v6500
      %v6553 = vmul.f32 %v1341, %v6500
      %v6554 = vmul.f32 %v1345, %v6500
      %v6555 = vmul.f32 %v1349, %v6500
      %v6556 = vmul.f32 %v1353, %v6500
      %v6557 = vmul.f32 %v1357, %v6500
      %v6558 = vmul.f32 %v1361, %v6500
      %v6559 = vmul.f32 %v1365, %v6500
      %v6560 = vmul.f32 %v1369, %v6500
      %v6561 = vmul.f32 %v1373, %v6500
      %v6562 = vmul.f32 %v1377, %v6500
      %v6563 = vmul.f32 %v1381, %v6500
      %v6564 = vmul.f32 %v1385, %v6500
      %v6565 = vmul.f32 %v1389, %v6500
      %v6566 = vmul.f32 %v1393, %v6500
      %v6567 = vmul.f32 %v1397, %v6500
      %v6568 = vmul.f32 %v1401, %v6500
      %v6569 = vmul.f32 %v1405, %v6500
      %v6570 = vmul.f32 %v1409, %v6500
      %v6571 = vmul.f32 %v1413, %v6500
      %v6572 = vmul.f32 %v1417, %v6500
      %v6573 = vmul.f32 %v1421, %v6500
      %v6574 = vmul.f32 %v1425, %v6500
      %v6575 = vmul.f32 %v1429, %v6500
      %v6576 = vmul.f32 %v1433, %v6500
      %v6577 = vmul.f32 %v1437, %v6500
      %v6578 = vmul.f32 %v1441, %v6500
      %v6579 = vmul.f32 %v1445, %v6500
      %v6580 = vmul.f32 %v1449, %v6500
      %v6581 = vmul.f32 %v1453, %v6500
      %v6582 = vmul.f32 %v1457, %v6500
      %v6583 = vmul.f32 %v1461, %v6500
      %v6584 = vmul.f32 %v1465, %v6500
      %v6585 = vmul.f32 %v1469, %v6500
      %v6586 = vmul.f32 %v1473, %v6500
      %v6587 = vmul.f32 %v1477, %v6500
      %v6588 = vmul.f32 %v1481, %v6500
      %v6589 = vmul.f32 %v1485, %v6500
      %v6590 = vmul.f32 %v1489, %v6500
      %v6591 = vmul.f32 %v1493, %v6500
      %v6592 = vmul.f32 %v1497, %v6500
      %v6593 = vmul.f32 %v1501, %v6500
      %v6594 = vmul.f32 %v1505, %v6500
      %v6595 = vmul.f32 %v1509, %v6500
      %v6596 = vmul.f32 %v1513, %v6500
      %v6597 = vmul.f32 %v1517, %v6500
      %v6598 = vmul.f32 %v1521, %v6500
      %v6599 = vmul.f32 %v1525, %v6500
      %v6600 = vmul.f32 %v1529, %v6500
      %v6601 = vmul.f32 %v1533, %v6500
      %v6602 = vmul.f32 %v1537, %v6500
      %v6603 = vmul.f32 %v1541, %v6500
      %v6604 = vmul.f32 %v1545, %v6500
      %v6605 = vmul.f32 %v1549, %v6500
      %v6606 = vmul.f32 %v1553, %v6500
      %v6607 = vmul.f32 %v1557, %v6500
      %v6608 = vmul.f32 %v1561, %v6500
      %v6609 = vmul.f32 %v1565, %v6500
      %v6610 = vmul.f32 %v1569, %v6500
      %v6611 = vmul.f32 %v1573, %v6500
      %v6612 = vmul.f32 %v1577, %v6500
      %v6613 = vmul.f32 %v1581, %v6500
      %v6614 = vmul.f32 %v1585, %v6500
      %v6615 = vmul.f32 %v1589, %v6500
      %v6616 = vmul.f32 %v1593, %v6500
      %v6617 = vmul.f32 %v1597, %v6500
      %v6618 = vmul.f32 %v1601, %v6500
      %v6619 = vmul.f32 %v1605, %v6500
      %v6620 = vmul.f32 %v1609, %v6500
      %v6621 = vmul.f32 %v1613, %v6500
      %v6622 = vmul.f32 %v1617, %v6500
      %v6623 = vmul.f32 %v1621, %v6500
      %v6624 = vmul.f32 %v1625, %v6500
      %v6625 = vmul.f32 %v1629, %v6500
      %v6626 = vmul.f32 %v1633, %v6500
      %v6627 = vmul.f32 %v1637, %v6500
      %v6628 = vmul.f32 %v1641, %v6500
      %v6629 = vadd.f32 %v6369, %v6501
      %v6630 = vadd.f32 %v6370, %v6502
      %v6631 = vadd.f32 %v6371, %v6503
      %v6632 = vadd.f32 %v6372, %v6504
      %v6633 = vadd.f32 %v6373, %v6505
      %v6634 = vadd.f32 %v6374, %v6506
      %v6635 = vadd.f32 %v6375, %v6507
      %v6636 = vadd.f32 %v6376, %v6508
      %v6637 = vadd.f32 %v6377, %v6509
      %v6638 = vadd.f32 %v6378, %v6510
      %v6639 = vadd.f32 %v6379, %v6511
      %v6640 = vadd.f32 %v6380, %v6512
      %v6641 = vadd.f32 %v6381, %v6513
      %v6642 = vadd.f32 %v6382, %v6514
      %v6643 = vadd.f32 %v6383, %v6515
      %v6644 = vadd.f32 %v6384, %v6516
      %v6645 = vadd.f32 %v6385, %v6517
      %v6646 = vadd.f32 %v6386, %v6518
      %v6647 = vadd.f32 %v6387, %v6519
      %v6648 = vadd.f32 %v6388, %v6520
      %v6649 = vadd.f32 %v6389, %v6521
      %v6650 = vadd.f32 %v6390, %v6522
      %v6651 = vadd.f32 %v6391, %v6523
      %v6652 = vadd.f32 %v6392, %v6524
      %v6653 = vadd.f32 %v6393, %v6525
      %v6654 = vadd.f32 %v6394, %v6526
      %v6655 = vadd.f32 %v6395, %v6527
      %v6656 = vadd.f32 %v6396, %v6528
      %v6657 = vadd.f32 %v6397, %v6529
      %v6658 = vadd.f32 %v6398, %v6530
      %v6659 = vadd.f32 %v6399, %v6531
      %v6660 = vadd.f32 %v6400, %v6532
      %v6661 = vadd.f32 %v6401, %v6533
      %v6662 = vadd.f32 %v6402, %v6534
      %v6663 = vadd.f32 %v6403, %v6535
      %v6664 = vadd.f32 %v6404, %v6536
      %v6665 = vadd.f32 %v6405, %v6537
      %v6666 = vadd.f32 %v6406, %v6538
      %v6667 = vadd.f32 %v6407, %v6539
      %v6668 = vadd.f32 %v6408, %v6540
      %v6669 = vadd.f32 %v6409, %v6541
      %v6670 = vadd.f32 %v6410, %v6542
      %v6671 = vadd.f32 %v6411, %v6543
      %v6672 = vadd.f32 %v6412, %v6544
      %v6673 = vadd.f32 %v6413, %v6545
      %v6674 = vadd.f32 %v6414, %v6546
      %v6675 = vadd.f32 %v6415, %v6547
      %v6676 = vadd.f32 %v6416, %v6548
      %v6677 = vadd.f32 %v6417, %v6549
      %v6678 = vadd.f32 %v6418, %v6550
      %v6679 = vadd.f32 %v6419, %v6551
      %v6680 = vadd.f32 %v6420, %v6552
      %v6681 = vadd.f32 %v6421, %v6553
      %v6682 = vadd.f32 %v6422, %v6554
      %v6683 = vadd.f32 %v6423, %v6555
      %v6684 = vadd.f32 %v6424, %v6556
      %v6685 = vadd.f32 %v6425, %v6557
      %v6686 = vadd.f32 %v6426, %v6558
      %v6687 = vadd.f32 %v6427, %v6559
      %v6688 = vadd.f32 %v6428, %v6560
      %v6689 = vadd.f32 %v6429, %v6561
      %v6690 = vadd.f32 %v6430, %v6562
      %v6691 = vadd.f32 %v6431, %v6563
      %v6692 = vadd.f32 %v6432, %v6564
      %v6693 = vadd.f32 %v6433, %v6565
      %v6694 = vadd.f32 %v6434, %v6566
      %v6695 = vadd.f32 %v6435, %v6567
      %v6696 = vadd.f32 %v6436, %v6568
      %v6697 = vadd.f32 %v6437, %v6569
      %v6698 = vadd.f32 %v6438, %v6570
      %v6699 = vadd.f32 %v6439, %v6571
      %v6700 = vadd.f32 %v6440, %v6572
      %v6701 = vadd.f32 %v6441, %v6573
      %v6702 = vadd.f32 %v6442, %v6574
      %v6703 = vadd.f32 %v6443, %v6575
      %v6704 = vadd.f32 %v6444, %v6576
      %v6705 = vadd.f32 %v6445, %v6577
      %v6706 = vadd.f32 %v6446, %v6578
      %v6707 = vadd.f32 %v6447, %v6579
      %v6708 = vadd.f32 %v6448, %v6580
      %v6709 = vadd.f32 %v6449, %v6581
      %v6710 = vadd.f32 %v6450, %v6582
      %v6711 = vadd.f32 %v6451, %v6583
      %v6712 = vadd.f32 %v6452, %v6584
      %v6713 = vadd.f32 %v6453, %v6585
      %v6714 = vadd.f32 %v6454, %v6586
      %v6715 = vadd.f32 %v6455, %v6587
      %v6716 = vadd.f32 %v6456, %v6588
      %v6717 = vadd.f32 %v6457, %v6589
      %v6718 = vadd.f32 %v6458, %v6590
      %v6719 = vadd.f32 %v6459, %v6591
      %v6720 = vadd.f32 %v6460, %v6592
      %v6721 = vadd.f32 %v6461, %v6593
      %v6722 = vadd.f32 %v6462, %v6594
      %v6723 = vadd.f32 %v6463, %v6595
      %v6724 = vadd.f32 %v6464, %v6596
      %v6725 = vadd.f32 %v6465, %v6597
      %v6726 = vadd.f32 %v6466, %v6598
      %v6727 = vadd.f32 %v6467, %v6599
      %v6728 = vadd.f32 %v6468, %v6600
      %v6729 = vadd.f32 %v6469, %v6601
      %v6730 = vadd.f32 %v6470, %v6602
      %v6731 = vadd.f32 %v6471, %v6603
      %v6732 = vadd.f32 %v6472, %v6604
      %v6733 = vadd.f32 %v6473, %v6605
      %v6734 = vadd.f32 %v6474, %v6606
      %v6735 = vadd.f32 %v6475, %v6607
      %v6736 = vadd.f32 %v6476, %v6608
      %v6737 = vadd.f32 %v6477, %v6609
      %v6738 = vadd.f32 %v6478, %v6610
      %v6739 = vadd.f32 %v6479, %v6611
      %v6740 = vadd.f32 %v6480, %v6612
      %v6741 = vadd.f32 %v6481, %v6613
      %v6742 = vadd.f32 %v6482, %v6614
      %v6743 = vadd.f32 %v6483, %v6615
      %v6744 = vadd.f32 %v6484, %v6616
      %v6745 = vadd.f32 %v6485, %v6617
      %v6746 = vadd.f32 %v6486, %v6618
      %v6747 = vadd.f32 %v6487, %v6619
      %v6748 = vadd.f32 %v6488, %v6620
      %v6749 = vadd.f32 %v6489, %v6621
      %v6750 = vadd.f32 %v6490, %v6622
      %v6751 = vadd.f32 %v6491, %v6623
      %v6752 = vadd.f32 %v6492, %v6624
      %v6753 = vadd.f32 %v6493, %v6625
      %v6754 = vadd.f32 %v6494, %v6626
      %v6755 = vadd.f32 %v6495, %v6627
      %v6756 = vadd.f32 %v6496, %v6628
      %v6757 = vlaneseq
      %v6758 = vshrl.u32 %v6757, 7
      %v6759 = vsub.s32 2, %v6758
      %v6760 = vrot.slane %v358, %v6759
      %v6761 = vmul.f32 %v1905, %v6760
      %v6762 = vmul.f32 %v1909, %v6760
      %v6763 = vmul.f32 %v1913, %v6760
      %v6764 = vmul.f32 %v1917, %v6760
      %v6765 = vmul.f32 %v1921, %v6760
      %v6766 = vmul.f32 %v1925, %v6760
      %v6767 = vmul.f32 %v1929, %v6760
      %v6768 = vmul.f32 %v1933, %v6760
      %v6769 = vmul.f32 %v1937, %v6760
      %v6770 = vmul.f32 %v1941, %v6760
      %v6771 = vmul.f32 %v1945, %v6760
      %v6772 = vmul.f32 %v1949, %v6760
      %v6773 = vmul.f32 %v1953, %v6760
      %v6774 = vmul.f32 %v1957, %v6760
      %v6775 = vmul.f32 %v1961, %v6760
      %v6776 = vmul.f32 %v1965, %v6760
      %v6777 = vmul.f32 %v1969, %v6760
      %v6778 = vmul.f32 %v1973, %v6760
      %v6779 = vmul.f32 %v1977, %v6760
      %v6780 = vmul.f32 %v1981, %v6760
      %v6781 = vmul.f32 %v1985, %v6760
      %v6782 = vmul.f32 %v1989, %v6760
      %v6783 = vmul.f32 %v1993, %v6760
      %v6784 = vmul.f32 %v1997, %v6760
      %v6785 = vmul.f32 %v2001, %v6760
      %v6786 = vmul.f32 %v2005, %v6760
      %v6787 = vmul.f32 %v2009, %v6760
      %v6788 = vmul.f32 %v2013, %v6760
      %v6789 = vmul.f32 %v2017, %v6760
      %v6790 = vmul.f32 %v2021, %v6760
      %v6791 = vmul.f32 %v2025, %v6760
      %v6792 = vmul.f32 %v2029, %v6760
      %v6793 = vmul.f32 %v2033, %v6760
      %v6794 = vmul.f32 %v2037, %v6760
      %v6795 = vmul.f32 %v2041, %v6760
      %v6796 = vmul.f32 %v2045, %v6760
      %v6797 = vmul.f32 %v2049, %v6760
      %v6798 = vmul.f32 %v2053, %v6760
      %v6799 = vmul.f32 %v2057, %v6760
      %v6800 = vmul.f32 %v2061, %v6760
      %v6801 = vmul.f32 %v2065, %v6760
      %v6802 = vmul.f32 %v2069, %v6760
      %v6803 = vmul.f32 %v2073, %v6760
      %v6804 = vmul.f32 %v2077, %v6760
      %v6805 = vmul.f32 %v2081, %v6760
      %v6806 = vmul.f32 %v2085, %v6760
      %v6807 = vmul.f32 %v2089, %v6760
      %v6808 = vmul.f32 %v2093, %v6760
      %v6809 = vmul.f32 %v2097, %v6760
      %v6810 = vmul.f32 %v2101, %v6760
      %v6811 = vmul.f32 %v2105, %v6760
      %v6812 = vmul.f32 %v2109, %v6760
      %v6813 = vmul.f32 %v2113, %v6760
      %v6814 = vmul.f32 %v2117, %v6760
      %v6815 = vmul.f32 %v2121, %v6760
      %v6816 = vmul.f32 %v2125, %v6760
      %v6817 = vmul.f32 %v2129, %v6760
      %v6818 = vmul.f32 %v2133, %v6760
      %v6819 = vmul.f32 %v2137, %v6760
      %v6820 = vmul.f32 %v2141, %v6760
      %v6821 = vmul.f32 %v2145, %v6760
      %v6822 = vmul.f32 %v2149, %v6760
      %v6823 = vmul.f32 %v2153, %v6760
      %v6824 = vmul.f32 %v2157, %v6760
      %v6825 = vmul.f32 %v2161, %v6760
      %v6826 = vmul.f32 %v2165, %v6760
      %v6827 = vmul.f32 %v2169, %v6760
      %v6828 = vmul.f32 %v2173, %v6760
      %v6829 = vmul.f32 %v2177, %v6760
      %v6830 = vmul.f32 %v2181, %v6760
      %v6831 = vmul.f32 %v2185, %v6760
      %v6832 = vmul.f32 %v2189, %v6760
      %v6833 = vmul.f32 %v2193, %v6760
      %v6834 = vmul.f32 %v2197, %v6760
      %v6835 = vmul.f32 %v2201, %v6760
      %v6836 = vmul.f32 %v2205, %v6760
      %v6837 = vmul.f32 %v2209, %v6760
      %v6838 = vmul.f32 %v2213, %v6760
      %v6839 = vmul.f32 %v2217, %v6760
      %v6840 = vmul.f32 %v2221, %v6760
      %v6841 = vmul.f32 %v2225, %v6760
      %v6842 = vmul.f32 %v2229, %v6760
      %v6843 = vmul.f32 %v2233, %v6760
      %v6844 = vmul.f32 %v2237, %v6760
      %v6845 = vmul.f32 %v2241, %v6760
      %v6846 = vmul.f32 %v2245, %v6760
      %v6847 = vmul.f32 %v2249, %v6760
      %v6848 = vmul.f32 %v2253, %v6760
      %v6849 = vmul.f32 %v2257, %v6760
      %v6850 = vmul.f32 %v2261, %v6760
      %v6851 = vmul.f32 %v2265, %v6760
      %v6852 = vmul.f32 %v2269, %v6760
      %v6853 = vmul.f32 %v2273, %v6760
      %v6854 = vmul.f32 %v2277, %v6760
      %v6855 = vmul.f32 %v2281, %v6760
      %v6856 = vmul.f32 %v2285, %v6760
      %v6857 = vmul.f32 %v2289, %v6760
      %v6858 = vmul.f32 %v2293, %v6760
      %v6859 = vmul.f32 %v2297, %v6760
      %v6860 = vmul.f32 %v2301, %v6760
      %v6861 = vmul.f32 %v2305, %v6760
      %v6862 = vmul.f32 %v2309, %v6760
      %v6863 = vmul.f32 %v2313, %v6760
      %v6864 = vmul.f32 %v2317, %v6760
      %v6865 = vmul.f32 %v2321, %v6760
      %v6866 = vmul.f32 %v2325, %v6760
      %v6867 = vmul.f32 %v2329, %v6760
      %v6868 = vmul.f32 %v2333, %v6760
      %v6869 = vmul.f32 %v2337, %v6760
      %v6870 = vmul.f32 %v2341, %v6760
      %v6871 = vmul.f32 %v2345, %v6760
      %v6872 = vmul.f32 %v2349, %v6760
      %v6873 = vmul.f32 %v2353, %v6760
      %v6874 = vmul.f32 %v2357, %v6760
      %v6875 = vmul.f32 %v2361, %v6760
      %v6876 = vmul.f32 %v2365, %v6760
      %v6877 = vmul.f32 %v2369, %v6760
      %v6878 = vmul.f32 %v2373, %v6760
      %v6879 = vmul.f32 %v2377, %v6760
      %v6880 = vmul.f32 %v2381, %v6760
      %v6881 = vmul.f32 %v2385, %v6760
      %v6882 = vmul.f32 %v2389, %v6760
      %v6883 = vmul.f32 %v2393, %v6760
      %v6884 = vmul.f32 %v2397, %v6760
      %v6885 = vmul.f32 %v2401, %v6760
      %v6886 = vmul.f32 %v2405, %v6760
      %v6887 = vmul.f32 %v2409, %v6760
      %v6888 = vmul.f32 %v2413, %v6760
      %v6889 = vadd.f32 %v6629, %v6761
      %v6890 = vadd.f32 %v6630, %v6762
      %v6891 = vadd.f32 %v6631, %v6763
      %v6892 = vadd.f32 %v6632, %v6764
      %v6893 = vadd.f32 %v6633, %v6765
      %v6894 = vadd.f32 %v6634, %v6766
      %v6895 = vadd.f32 %v6635, %v6767
      %v6896 = vadd.f32 %v6636, %v6768
      %v6897 = vadd.f32 %v6637, %v6769
      %v6898 = vadd.f32 %v6638, %v6770
      %v6899 = vadd.f32 %v6639, %v6771
      %v6900 = vadd.f32 %v6640, %v6772
      %v6901 = vadd.f32 %v6641, %v6773
      %v6902 = vadd.f32 %v6642, %v6774
      %v6903 = vadd.f32 %v6643, %v6775
      %v6904 = vadd.f32 %v6644, %v6776
      %v6905 = vadd.f32 %v6645, %v6777
      %v6906 = vadd.f32 %v6646, %v6778
      %v6907 = vadd.f32 %v6647, %v6779
      %v6908 = vadd.f32 %v6648, %v6780
      %v6909 = vadd.f32 %v6649, %v6781
      %v6910 = vadd.f32 %v6650, %v6782
      %v6911 = vadd.f32 %v6651, %v6783
      %v6912 = vadd.f32 %v6652, %v6784
      %v6913 = vadd.f32 %v6653, %v6785
      %v6914 = vadd.f32 %v6654, %v6786
      %v6915 = vadd.f32 %v6655, %v6787
      %v6916 = vadd.f32 %v6656, %v6788
      %v6917 = vadd.f32 %v6657, %v6789
      %v6918 = vadd.f32 %v6658, %v6790
      %v6919 = vadd.f32 %v6659, %v6791
      %v6920 = vadd.f32 %v6660, %v6792
      %v6921 = vadd.f32 %v6661, %v6793
      %v6922 = vadd.f32 %v6662, %v6794
      %v6923 = vadd.f32 %v6663, %v6795
      %v6924 = vadd.f32 %v6664, %v6796
      %v6925 = vadd.f32 %v6665, %v6797
      %v6926 = vadd.f32 %v6666, %v6798
      %v6927 = vadd.f32 %v6667, %v6799
      %v6928 = vadd.f32 %v6668, %v6800
      %v6929 = vadd.f32 %v6669, %v6801
      %v6930 = vadd.f32 %v6670, %v6802
      %v6931 = vadd.f32 %v6671, %v6803
      %v6932 = vadd.f32 %v6672, %v6804
      %v6933 = vadd.f32 %v6673, %v6805
      %v6934 = vadd.f32 %v6674, %v6806
      %v6935 = vadd.f32 %v6675, %v6807
      %v6936 = vadd.f32 %v6676, %v6808
      %v6937 = vadd.f32 %v6677, %v6809
      %v6938 = vadd.f32 %v6678, %v6810
      %v6939 = vadd.f32 %v6679, %v6811
      %v6940 = vadd.f32 %v6680, %v6812
      %v6941 = vadd.f32 %v6681, %v6813
      %v6942 = vadd.f32 %v6682, %v6814
      %v6943 = vadd.f32 %v6683, %v6815
      %v6944 = vadd.f32 %v6684, %v6816
      %v6945 = vadd.f32 %v6685, %v6817
      %v6946 = vadd.f32 %v6686, %v6818
      %v6947 = vadd.f32 %v6687, %v6819
      %v6948 = vadd.f32 %v6688, %v6820
      %v6949 = vadd.f32 %v6689, %v6821
      %v6950 = vadd.f32 %v6690, %v6822
      %v6951 = vadd.f32 %v6691, %v6823
      %v6952 = vadd.f32 %v6692, %v6824
      %v6953 = vadd.f32 %v6693, %v6825
      %v6954 = vadd.f32 %v6694, %v6826
      %v6955 = vadd.f32 %v6695, %v6827
      %v6956 = vadd.f32 %v6696, %v6828
      %v6957 = vadd.f32 %v6697, %v6829
      %v6958 = vadd.f32 %v6698, %v6830
      %v6959 = vadd.f32 %v6699, %v6831
      %v6960 = vadd.f32 %v6700, %v6832
      %v6961 = vadd.f32 %v6701, %v6833
      %v6962 = vadd.f32 %v6702, %v6834
      %v6963 = vadd.f32 %v6703, %v6835
      %v6964 = vadd.f32 %v6704, %v6836
      %v6965 = vadd.f32 %v6705, %v6837
      %v6966 = vadd.f32 %v6706, %v6838
      %v6967 = vadd.f32 %v6707, %v6839
      %v6968 = vadd.f32 %v6708, %v6840
      %v6969 = vadd.f32 %v6709, %v6841
      %v6970 = vadd.f32 %v6710, %v6842
      %v6971 = vadd.f32 %v6711, %v6843
      %v6972 = vadd.f32 %v6712, %v6844
      %v6973 = vadd.f32 %v6713, %v6845
      %v6974 = vadd.f32 %v6714, %v6846
      %v6975 = vadd.f32 %v6715, %v6847
      %v6976 = vadd.f32 %v6716, %v6848
      %v6977 = vadd.f32 %v6717, %v6849
      %v6978 = vadd.f32 %v6718, %v6850
      %v6979 = vadd.f32 %v6719, %v6851
      %v6980 = vadd.f32 %v6720, %v6852
      %v6981 = vadd.f32 %v6721, %v6853
      %v6982 = vadd.f32 %v6722, %v6854
      %v6983 = vadd.f32 %v6723, %v6855
      %v6984 = vadd.f32 %v6724, %v6856
      %v6985 = vadd.f32 %v6725, %v6857
      %v6986 = vadd.f32 %v6726, %v6858
      %v6987 = vadd.f32 %v6727, %v6859
      %v6988 = vadd.f32 %v6728, %v6860
      %v6989 = vadd.f32 %v6729, %v6861
      %v6990 = vadd.f32 %v6730, %v6862
      %v6991 = vadd.f32 %v6731, %v6863
      %v6992 = vadd.f32 %v6732, %v6864
      %v6993 = vadd.f32 %v6733, %v6865
      %v6994 = vadd.f32 %v6734, %v6866
      %v6995 = vadd.f32 %v6735, %v6867
      %v6996 = vadd.f32 %v6736, %v6868
      %v6997 = vadd.f32 %v6737, %v6869
      %v6998 = vadd.f32 %v6738, %v6870
      %v6999 = vadd.f32 %v6739, %v6871
      %v7000 = vadd.f32 %v6740, %v6872
      %v7001 = vadd.f32 %v6741, %v6873
      %v7002 = vadd.f32 %v6742, %v6874
      %v7003 = vadd.f32 %v6743, %v6875
      %v7004 = vadd.f32 %v6744, %v6876
      %v7005 = vadd.f32 %v6745, %v6877
      %v7006 = vadd.f32 %v6746, %v6878
      %v7007 = vadd.f32 %v6747, %v6879
      %v7008 = vadd.f32 %v6748, %v6880
      %v7009 = vadd.f32 %v6749, %v6881
      %v7010 = vadd.f32 %v6750, %v6882
      %v7011 = vadd.f32 %v6751, %v6883
      %v7012 = vadd.f32 %v6752, %v6884
      %v7013 = vadd.f32 %v6753, %v6885
      %v7014 = vadd.f32 %v6754, %v6886
      %v7015 = vadd.f32 %v6755, %v6887
      %v7016 = vadd.f32 %v6756, %v6888
      %7017 = vmatprep.subr.mxu0 0.0
      %7018 = vmatpush1.msra.mxu0 %v6349
      %7019 = vmatprep.subr.mxu0 0.0
      %7020 = vmatpush1.msra.mxu0 %v6350
      %7021 = vmatprep.subr.mxu0 0.0
      %7022 = vmatpush1.msra.mxu0 %v6351
      %7023 = vmatprep.subr.mxu0 0.0
      %7024 = vmatpush1.msra.mxu0 %v6352
      %7025 = vmatprep.subr.mxu0 0.0
      %7026 = vmatpush1.msra.mxu0 %v6353
      %7027 = vmatprep.subr.mxu0 0.0
      %7028 = vmatpush1.msra.mxu0 %v6354
      %7029 = vmatprep.subr.mxu0 0.0
      %7030 = vmatpush1.msra.mxu0 %v6355
      %7031 = vmatprep.subr.mxu0 0.0
      %7032 = vmatpush1.msra.mxu0 %v6356
      %7033 = vmatprep.subr.mxu0 0.0
      %7034 = vmatpush1.msra.mxu0 %v6357
      %7035 = vmatprep.subr.mxu0 0.0
      %7036 = vmatpush1.msra.mxu0 %v6358
      %7037 = vmatprep.subr.mxu0 0.0
      %7038 = vmatpush1.msra.mxu0 %v6359
      %7039 = vmatprep.subr.mxu0 0.0
      %7040 = vmatpush1.msra.mxu0 %v6360
      %7041 = vmatprep.subr.mxu0 0.0
      %7042 = vmatpush1.msra.mxu0 %v6361
      %7043 = vmatprep.subr.mxu0 0.0
      %7044 = vmatpush1.msra.mxu0 %v6362
      %7045 = vmatprep.subr.mxu0 0.0
      %7046 = vmatpush1.msra.mxu0 %v6363
      %7047 = vmatprep.subr.mxu0 0.0
      %7048 = vmatpush1.msra.mxu0 %v6364
      %7049 = vmatprep.subr.mxu0 0.0
      %7050 = vmatpush1.msra.mxu0 0.0
      %7051 = vmatprep.subr.mxu0 0.0
      %7052 = vmatpush1.msra.mxu0 0.0
      %7053 = vmatprep.subr.mxu0 0.0
      %7054 = vmatpush1.msra.mxu0 0.0
      %7055 = vmatprep.subr.mxu0 0.0
      %7056 = vmatpush1.msra.mxu0 0.0
      %7057 = vmatprep.subr.mxu0 0.0
      %7058 = vmatpush1.msra.mxu0 0.0
      %7059 = vmatprep.subr.mxu0 0.0
      %7060 = vmatpush1.msra.mxu0 0.0
      %7061 = vmatprep.subr.mxu0 0.0
      %7062 = vmatpush1.msra.mxu0 0.0
      %7063 = vmatprep.subr.mxu0 0.0
      %7064 = vmatpush1.msra.mxu0 0.0
      %7065 = vmatprep.subr.mxu0 0.0
      %7066 = vmatpush1.msra.mxu0 0.0
      %7067 = vmatprep.subr.mxu0 0.0
      %7068 = vmatpush1.msra.mxu0 0.0
      %7069 = vmatprep.subr.mxu0 0.0
      %7070 = vmatpush1.msra.mxu0 0.0
      %7071 = vmatprep.subr.mxu0 0.0
      %7072 = vmatpush1.msra.mxu0 0.0
      %7073 = vmatprep.subr.mxu0 0.0
      %7074 = vmatpush1.msra.mxu0 0.0
      %7075 = vmatprep.subr.mxu0 0.0
      %7076 = vmatpush1.msra.mxu0 0.0
      %7077 = vmatprep.subr.mxu0 0.0
      %7078 = vmatpush1.msra.mxu0 0.0
      %7079 = vmatprep.subr.mxu0 0.0
      %7080 = vmatpush1.msra.mxu0 0.0
      %7081 = vmatprep.mubr.f32.mxu0 0.0
      %7082 = vmatmul.mubr.f32.gmra.mrb[0].mxu0 %v6220
      %v7083 = vpop.f32.mrb[0].mxu0
      %v7084 = vadd.f32 %v6889, %v7083
      %v7085 = vpop.f32.mrb[0].mxu0
      %7086 = vmatprep.mubr.f32.mxu0 0.0
      %7087 = vmatmul.mubr.f32.gmra.mrb[0].mxu0 %v6221
      %v7088 = vpop.f32.mrb[0].mxu0
      %v7089 = vadd.f32 %v6890, %v7088
      %v7090 = vpop.f32.mrb[0].mxu0
      %7091 = vmatprep.mubr.f32.mxu0 0.0
      %7092 = vmatmul.mubr.f32.gmra.mrb[0].mxu0 %v6222
      %v7093 = vpop.f32.mrb[0].mxu0
      %v7094 = vadd.f32 %v6891, %v7093
      %v7095 = vpop.f32.mrb[0].mxu0
      %7096 = vmatprep.mubr.f32.mxu0 0.0
      %7097 = vmatmul.mubr.f32.gmra.mrb[0].mxu0 %v6223
      %v7098 = vpop.f32.mrb[0].mxu0
      %v7099 = vadd.f32 %v6892, %v7098
      %v7100 = vpop.f32.mrb[0].mxu0
      %7101 = vmatprep.mubr.f32.mxu0 0.0
      %7102 = vmatmul.mubr.f32.gmra.mrb[0].mxu0 %v6224
      %v7103 = vpop.f32.mrb[0].mxu0
      %v7104 = vadd.f32 %v6893, %v7103
      %v7105 = vpop.f32.mrb[0].mxu0
      %7106 = vmatprep.mubr.f32.mxu0 0.0
      %7107 = vmatmul.mubr.f32.gmra.mrb[0].mxu0 %v6225
      %v7108 = vpop.f32.mrb[0].mxu0
      %v7109 = vadd.f32 %v6894, %v7108
      %v7110 = vpop.f32.mrb[0].mxu0
      %7111 = vmatprep.mubr.f32.mxu0 0.0
      %7112 = vmatmul.mubr.f32.gmra.mrb[0].mxu0 %v6226
      %v7113 = vpop.f32.mrb[0].mxu0
      %v7114 = vadd.f32 %v6895, %v7113
      %v7115 = vpop.f32.mrb[0].mxu0
      %7116 = vmatprep.mubr.f32.mxu0 0.0
      %7117 = vmatmul.mubr.f32.gmra.mrb[0].mxu0 %v6227
      %v7118 = vpop.f32.mrb[0].mxu0
      %v7119 = vadd.f32 %v6896, %v7118
      %v7120 = vpop.f32.mrb[0].mxu0
      %7121 = vmatprep.mubr.f32.mxu0 0.0
      %7122 = vmatmul.mubr.f32.gmra.mrb[0].mxu0 %v6228
      %v7123 = vpop.f32.mrb[0].mxu0
      %v7124 = vadd.f32 %v6897, %v7123
      %v7125 = vpop.f32.mrb[0].mxu0
      %7126 = vmatprep.mubr.f32.mxu0 0.0
      %7127 = vmatmul.mubr.f32.gmra.mrb[0].mxu0 %v6229
      %v7128 = vpop.f32.mrb[0].mxu0
      %v7129 = vadd.f32 %v6898, %v7128
      %v7130 = vpop.f32.mrb[0].mxu0
      %7131 = vmatprep.mubr.f32.mxu0 0.0
      %7132 = vmatmul.mubr.f32.gmra.mrb[0].mxu0 %v6230
      %v7133 = vpop.f32.mrb[0].mxu0
      %v7134 = vadd.f32 %v6899, %v7133
      %v7135 = vpop.f32.mrb[0].mxu0
      %7136 = vmatprep.mubr.f32.mxu0 0.0
      %7137 = vmatmul.mubr.f32.gmra.mrb[0].mxu0 %v6231
      %v7138 = vpop.f32.mrb[0].mxu0
      %v7139 = vadd.f32 %v6900, %v7138
      %v7140 = vpop.f32.mrb[0].mxu0
      %7141 = vmatprep.mubr.f32.mxu0 0.0
      %7142 = vmatmul.mubr.f32.gmra.mrb[0].mxu0 %v6232
      %v7143 = vpop.f32.mrb[0].mxu0
      %v7144 = vadd.f32 %v6901, %v7143
      %v7145 = vpop.f32.mrb[0].mxu0
      %7146 = vmatprep.mubr.f32.mxu0 0.0
      %7147 = vmatmul.mubr.f32.gmra.mrb[0].mxu0 %v6233
      %v7148 = vpop.f32.mrb[0].mxu0
      %v7149 = vadd.f32 %v6902, %v7148
      %v7150 = vpop.f32.mrb[0].mxu0
      %7151 = vmatprep.mubr.f32.mxu0 0.0
      %7152 = vmatmul.mubr.f32.gmra.mrb[0].mxu0 %v6234
      %v7153 = vpop.f32.mrb[0].mxu0
      %v7154 = vadd.f32 %v6903, %v7153
      %v7155 = vpop.f32.mrb[0].mxu0
      %7156 = vmatprep.mubr.f32.mxu0 0.0
      %7157 = vmatmul.mubr.f32.gmra.mrb[0].mxu0 %v6235
      %v7158 = vpop.f32.mrb[0].mxu0
      %v7159 = vadd.f32 %v6904, %v7158
      %v7160 = vpop.f32.mrb[0].mxu0
      %7161 = vmatprep.mubr.f32.mxu0 0.0
      %7162 = vmatmul.mubr.f32.gmra.mrb[0].mxu0 %v6236
      %v7163 = vpop.f32.mrb[0].mxu0
      %v7164 = vadd.f32 %v6905, %v7163
      %v7165 = vpop.f32.mrb[0].mxu0
      %7166 = vmatprep.mubr.f32.mxu0 0.0
      %7167 = vmatmul.mubr.f32.gmra.mrb[0].mxu0 %v6237
      %v7168 = vpop.f32.mrb[0].mxu0
      %v7169 = vadd.f32 %v6906, %v7168
      %v7170 = vpop.f32.mrb[0].mxu0
      %7171 = vmatprep.mubr.f32.mxu0 0.0
      %7172 = vmatmul.mubr.f32.gmra.mrb[0].mxu0 %v6238
      %v7173 = vpop.f32.mrb[0].mxu0
      %v7174 = vadd.f32 %v6907, %v7173
      %v7175 = vpop.f32.mrb[0].mxu0
      %7176 = vmatprep.mubr.f32.mxu0 0.0
      %7177 = vmatmul.mubr.f32.gmra.mrb[0].mxu0 %v6239
      %v7178 = vpop.f32.mrb[0].mxu0
      %v7179 = vadd.f32 %v6908, %v7178
      %v7180 = vpop.f32.mrb[0].mxu0
      %7181 = vmatprep.mubr.f32.mxu0 0.0
      %7182 = vmatmul.mubr.f32.gmra.mrb[0].mxu0 %v6240
      %v7183 = vpop.f32.mrb[0].mxu0
      %v7184 = vadd.f32 %v6909, %v7183
      %v7185 = vpop.f32.mrb[0].mxu0
      %7186 = vmatprep.mubr.f32.mxu0 0.0
      %7187 = vmatmul.mubr.f32.gmra.mrb[0].mxu0 %v6241
      %v7188 = vpop.f32.mrb[0].mxu0
      %v7189 = vadd.f32 %v6910, %v7188
      %v7190 = vpop.f32.mrb[0].mxu0
      %7191 = vmatprep.mubr.f32.mxu0 0.0
      %7192 = vmatmul.mubr.f32.gmra.mrb[0].mxu0 %v6242
      %v7193 = vpop.f32.mrb[0].mxu0
      %v7194 = vadd.f32 %v6911, %v7193
      %v7195 = vpop.f32.mrb[0].mxu0
      %7196 = vmatprep.mubr.f32.mxu0 0.0
      %7197 = vmatmul.mubr.f32.gmra.mrb[0].mxu0 %v6243
      %v7198 = vpop.f32.mrb[0].mxu0
      %v7199 = vadd.f32 %v6912, %v7198
      %v7200 = vpop.f32.mrb[0].mxu0
      %7201 = vmatprep.mubr.f32.mxu0 0.0
      %7202 = vmatmul.mubr.f32.gmra.mrb[0].mxu0 %v6244
      %v7203 = vpop.f32.mrb[0].mxu0
      %v7204 = vadd.f32 %v6913, %v7203
      %v7205 = vpop.f32.mrb[0].mxu0
      %7206 = vmatprep.mubr.f32.mxu0 0.0
      %7207 = vmatmul.mubr.f32.gmra.mrb[0].mxu0 %v6245
      %v7208 = vpop.f32.mrb[0].mxu0
      %v7209 = vadd.f32 %v6914, %v7208
      %v7210 = vpop.f32.mrb[0].mxu0
      %7211 = vmatprep.mubr.f32.mxu0 0.0
      %7212 = vmatmul.mubr.f32.gmra.mrb[0].mxu0 %v6246
      %v7213 = vpop.f32.mrb[0].mxu0
      %v7214 = vadd.f32 %v6915, %v7213
      %v7215 = vpop.f32.mrb[0].mxu0
      %7216 = vmatprep.mubr.f32.mxu0 0.0
      %7217 = vmatmul.mubr.f32.gmra.mrb[0].mxu0 %v6247
      %v7218 = vpop.f32.mrb[0].mxu0
      %v7219 = vadd.f32 %v6916, %v7218
      %v7220 = vpop.f32.mrb[0].mxu0
      %7221 = vmatprep.mubr.f32.mxu0 0.0
      %7222 = vmatmul.mubr.f32.gmra.mrb[0].mxu0 %v6248
      %v7223 = vpop.f32.mrb[0].mxu0
      %v7224 = vadd.f32 %v6917, %v7223
      %v7225 = vpop.f32.mrb[0].mxu0
      %7226 = vmatprep.mubr.f32.mxu0 0.0
      %7227 = vmatmul.mubr.f32.gmra.mrb[0].mxu0 %v6249
      %v7228 = vpop.f32.mrb[0].mxu0
      %v7229 = vadd.f32 %v6918, %v7228
      %v7230 = vpop.f32.mrb[0].mxu0
      %7231 = vmatprep.mubr.f32.mxu0 0.0
      %7232 = vmatmul.mubr.f32.gmra.mrb[0].mxu0 %v6250
      %v7233 = vpop.f32.mrb[0].mxu0
      %v7234 = vadd.f32 %v6919, %v7233
      %v7235 = vpop.f32.mrb[0].mxu0
      %7236 = vmatprep.mubr.f32.mxu0 0.0
      %7237 = vmatmul.mubr.f32.gmra.mrb[0].mxu0 %v6251
      %v7238 = vpop.f32.mrb[0].mxu0
      %v7239 = vadd.f32 %v6920, %v7238
      %v7240 = vpop.f32.mrb[0].mxu0
      %7241 = vmatprep.mubr.f32.mxu0 0.0
      %7242 = vmatmul.mubr.f32.gmra.mrb[0].mxu0 %v6252
      %v7243 = vpop.f32.mrb[0].mxu0
      %v7244 = vadd.f32 %v6921, %v7243
      %v7245 = vpop.f32.mrb[0].mxu0
      %7246 = vmatprep.mubr.f32.mxu0 0.0
      %7247 = vmatmul.mubr.f32.gmra.mrb[0].mxu0 %v6253
      %v7248 = vpop.f32.mrb[0].mxu0
      %v7249 = vadd.f32 %v6922, %v7248
      %v7250 = vpop.f32.mrb[0].mxu0
      %7251 = vmatprep.mubr.f32.mxu0 0.0
      %7252 = vmatmul.mubr.f32.gmra.mrb[0].mxu0 %v6254
      %v7253 = vpop.f32.mrb[0].mxu0
      %v7254 = vadd.f32 %v6923, %v7253
      %v7255 = vpop.f32.mrb[0].mxu0
      %7256 = vmatprep.mubr.f32.mxu0 0.0
      %7257 = vmatmul.mubr.f32.gmra.mrb[0].mxu0 %v6255
      %v7258 = vpop.f32.mrb[0].mxu0
      %v7259 = vadd.f32 %v6924, %v7258
      %v7260 = vpop.f32.mrb[0].mxu0
      %7261 = vmatprep.mubr.f32.mxu0 0.0
      %7262 = vmatmul.mubr.f32.gmra.mrb[0].mxu0 %v6256
      %v7263 = vpop.f32.mrb[0].mxu0
      %v7264 = vadd.f32 %v6925, %v7263
      %v7265 = vpop.f32.mrb[0].mxu0
      %7266 = vmatprep.mubr.f32.mxu0 0.0
      %7267 = vmatmul.mubr.f32.gmra.mrb[0].mxu0 %v6257
      %v7268 = vpop.f32.mrb[0].mxu0
      %v7269 = vadd.f32 %v6926, %v7268
      %v7270 = vpop.f32.mrb[0].mxu0
      %7271 = vmatprep.mubr.f32.mxu0 0.0
      %7272 = vmatmul.mubr.f32.gmra.mrb[0].mxu0 %v6258
      %v7273 = vpop.f32.mrb[0].mxu0
      %v7274 = vadd.f32 %v6927, %v7273
      %v7275 = vpop.f32.mrb[0].mxu0
      %7276 = vmatprep.mubr.f32.mxu0 0.0
      %7277 = vmatmul.mubr.f32.gmra.mrb[0].mxu0 %v6259
      %v7278 = vpop.f32.mrb[0].mxu0
      %v7279 = vadd.f32 %v6928, %v7278
      %v7280 = vpop.f32.mrb[0].mxu0
      %7281 = vmatprep.mubr.f32.mxu0 0.0
      %7282 = vmatmul.mubr.f32.gmra.mrb[0].mxu0 %v6260
      %v7283 = vpop.f32.mrb[0].mxu0
      %v7284 = vadd.f32 %v6929, %v7283
      %v7285 = vpop.f32.mrb[0].mxu0
      %7286 = vmatprep.mubr.f32.mxu0 0.0
      %7287 = vmatmul.mubr.f32.gmra.mrb[0].mxu0 %v6261
      %v7288 = vpop.f32.mrb[0].mxu0
      %v7289 = vadd.f32 %v6930, %v7288
      %v7290 = vpop.f32.mrb[0].mxu0
      %7291 = vmatprep.mubr.f32.mxu0 0.0
      %7292 = vmatmul.mubr.f32.gmra.mrb[0].mxu0 %v6262
      %v7293 = vpop.f32.mrb[0].mxu0
      %v7294 = vadd.f32 %v6931, %v7293
      %v7295 = vpop.f32.mrb[0].mxu0
      %7296 = vmatprep.mubr.f32.mxu0 0.0
      %7297 = vmatmul.mubr.f32.gmra.mrb[0].mxu0 %v6263
      %v7298 = vpop.f32.mrb[0].mxu0
      %v7299 = vadd.f32 %v6932, %v7298
      %v7300 = vpop.f32.mrb[0].mxu0
      %7301 = vmatprep.mubr.f32.mxu0 0.0
      %7302 = vmatmul.mubr.f32.gmra.mrb[0].mxu0 %v6264
      %v7303 = vpop.f32.mrb[0].mxu0
      %v7304 = vadd.f32 %v6933, %v7303
      %v7305 = vpop.f32.mrb[0].mxu0
      %7306 = vmatprep.mubr.f32.mxu0 0.0
      %7307 = vmatmul.mubr.f32.gmra.mrb[0].mxu0 %v6265
      %v7308 = vpop.f32.mrb[0].mxu0
      %v7309 = vadd.f32 %v6934, %v7308
      %v7310 = vpop.f32.mrb[0].mxu0
      %7311 = vmatprep.mubr.f32.mxu0 0.0
      %7312 = vmatmul.mubr.f32.gmra.mrb[0].mxu0 %v6266
      %v7313 = vpop.f32.mrb[0].mxu0
      %v7314 = vadd.f32 %v6935, %v7313
      %v7315 = vpop.f32.mrb[0].mxu0
      %7316 = vmatprep.mubr.f32.mxu0 0.0
      %7317 = vmatmul.mubr.f32.gmra.mrb[0].mxu0 %v6267
      %v7318 = vpop.f32.mrb[0].mxu0
      %v7319 = vadd.f32 %v6936, %v7318
      %v7320 = vpop.f32.mrb[0].mxu0
      %7321 = vmatprep.mubr.f32.mxu0 0.0
      %7322 = vmatmul.mubr.f32.gmra.mrb[0].mxu0 %v6268
      %v7323 = vpop.f32.mrb[0].mxu0
      %v7324 = vadd.f32 %v6937, %v7323
      %v7325 = vpop.f32.mrb[0].mxu0
      %7326 = vmatprep.mubr.f32.mxu0 0.0
      %7327 = vmatmul.mubr.f32.gmra.mrb[0].mxu0 %v6269
      %v7328 = vpop.f32.mrb[0].mxu0
      %v7329 = vadd.f32 %v6938, %v7328
      %v7330 = vpop.f32.mrb[0].mxu0
      %7331 = vmatprep.mubr.f32.mxu0 0.0
      %7332 = vmatmul.mubr.f32.gmra.mrb[0].mxu0 %v6270
      %v7333 = vpop.f32.mrb[0].mxu0
      %v7334 = vadd.f32 %v6939, %v7333
      %v7335 = vpop.f32.mrb[0].mxu0
      %7336 = vmatprep.mubr.f32.mxu0 0.0
      %7337 = vmatmul.mubr.f32.gmra.mrb[0].mxu0 %v6271
      %v7338 = vpop.f32.mrb[0].mxu0
      %v7339 = vadd.f32 %v6940, %v7338
      %v7340 = vpop.f32.mrb[0].mxu0
      %7341 = vmatprep.mubr.f32.mxu0 0.0
      %7342 = vmatmul.mubr.f32.gmra.mrb[0].mxu0 %v6272
      %v7343 = vpop.f32.mrb[0].mxu0
      %v7344 = vadd.f32 %v6941, %v7343
      %v7345 = vpop.f32.mrb[0].mxu0
      %7346 = vmatprep.mubr.f32.mxu0 0.0
      %7347 = vmatmul.mubr.f32.gmra.mrb[0].mxu0 %v6273
      %v7348 = vpop.f32.mrb[0].mxu0
      %v7349 = vadd.f32 %v6942, %v7348
      %v7350 = vpop.f32.mrb[0].mxu0
      %7351 = vmatprep.mubr.f32.mxu0 0.0
      %7352 = vmatmul.mubr.f32.gmra.mrb[0].mxu0 %v6274
      %v7353 = vpop.f32.mrb[0].mxu0
      %v7354 = vadd.f32 %v6943, %v7353
      %v7355 = vpop.f32.mrb[0].mxu0
      %7356 = vmatprep.mubr.f32.mxu0 0.0
      %7357 = vmatmul.mubr.f32.gmra.mrb[0].mxu0 %v6275
      %v7358 = vpop.f32.mrb[0].mxu0
      %v7359 = vadd.f32 %v6944, %v7358
      %v7360 = vpop.f32.mrb[0].mxu0
      %7361 = vmatprep.mubr.f32.mxu0 0.0
      %7362 = vmatmul.mubr.f32.gmra.mrb[0].mxu0 %v6276
      %v7363 = vpop.f32.mrb[0].mxu0
      %v7364 = vadd.f32 %v6945, %v7363
      %v7365 = vpop.f32.mrb[0].mxu0
      %7366 = vmatprep.mubr.f32.mxu0 0.0
      %7367 = vmatmul.mubr.f32.gmra.mrb[0].mxu0 %v6277
      %v7368 = vpop.f32.mrb[0].mxu0
      %v7369 = vadd.f32 %v6946, %v7368
      %v7370 = vpop.f32.mrb[0].mxu0
      %7371 = vmatprep.mubr.f32.mxu0 0.0
      %7372 = vmatmul.mubr.f32.gmra.mrb[0].mxu0 %v6278
      %v7373 = vpop.f32.mrb[0].mxu0
      %v7374 = vadd.f32 %v6947, %v7373
      %v7375 = vpop.f32.mrb[0].mxu0
      %7376 = vmatprep.mubr.f32.mxu0 0.0
      %7377 = vmatmul.mubr.f32.gmra.mrb[0].mxu0 %v6279
      %v7378 = vpop.f32.mrb[0].mxu0
      %v7379 = vadd.f32 %v6948, %v7378
      %v7380 = vpop.f32.mrb[0].mxu0
      %7381 = vmatprep.mubr.f32.mxu0 0.0
      %7382 = vmatmul.mubr.f32.gmra.mrb[0].mxu0 %v6280
      %v7383 = vpop.f32.mrb[0].mxu0
      %v7384 = vadd.f32 %v6949, %v7383
      %v7385 = vpop.f32.mrb[0].mxu0
      %7386 = vmatprep.mubr.f32.mxu0 0.0
      %7387 = vmatmul.mubr.f32.gmra.mrb[0].mxu0 %v6281
      %v7388 = vpop.f32.mrb[0].mxu0
      %v7389 = vadd.f32 %v6950, %v7388
      %v7390 = vpop.f32.mrb[0].mxu0
      %7391 = vmatprep.mubr.f32.mxu0 0.0
      %7392 = vmatmul.mubr.f32.gmra.mrb[0].mxu0 %v6282
      %v7393 = vpop.f32.mrb[0].mxu0
      %v7394 = vadd.f32 %v6951, %v7393
      %v7395 = vpop.f32.mrb[0].mxu0
      %7396 = vmatprep.mubr.f32.mxu0 0.0
      %7397 = vmatmul.mubr.f32.gmra.mrb[0].mxu0 %v6283
      %v7398 = vpop.f32.mrb[0].mxu0
      %v7399 = vadd.f32 %v6952, %v7398
      %v7400 = vpop.f32.mrb[0].mxu0
      %7401 = vmatprep.mubr.f32.mxu0 0.0
      %7402 = vmatmul.mubr.f32.gmra.mrb[0].mxu0 %v6284
      %v7403 = vpop.f32.mrb[0].mxu0
      %v7404 = vadd.f32 %v6953, %v7403
      %v7405 = vpop.f32.mrb[0].mxu0
      %7406 = vmatprep.mubr.f32.mxu0 0.0
      %7407 = vmatmul.mubr.f32.gmra.mrb[0].mxu0 %v6285
      %v7408 = vpop.f32.mrb[0].mxu0
      %v7409 = vadd.f32 %v6954, %v7408
      %v7410 = vpop.f32.mrb[0].mxu0
      %7411 = vmatprep.mubr.f32.mxu0 0.0
      %7412 = vmatmul.mubr.f32.gmra.mrb[0].mxu0 %v6286
      %v7413 = vpop.f32.mrb[0].mxu0
      %v7414 = vadd.f32 %v6955, %v7413
      %v7415 = vpop.f32.mrb[0].mxu0
      %7416 = vmatprep.mubr.f32.mxu0 0.0
      %7417 = vmatmul.mubr.f32.gmra.mrb[0].mxu0 %v6287
      %v7418 = vpop.f32.mrb[0].mxu0
      %v7419 = vadd.f32 %v6956, %v7418
      %v7420 = vpop.f32.mrb[0].mxu0
      %7421 = vmatprep.mubr.f32.mxu0 0.0
      %7422 = vmatmul.mubr.f32.gmra.mrb[0].mxu0 %v6288
      %v7423 = vpop.f32.mrb[0].mxu0
      %v7424 = vadd.f32 %v6957, %v7423
      %v7425 = vpop.f32.mrb[0].mxu0
      %7426 = vmatprep.mubr.f32.mxu0 0.0
      %7427 = vmatmul.mubr.f32.gmra.mrb[0].mxu0 %v6289
      %v7428 = vpop.f32.mrb[0].mxu0
      %v7429 = vadd.f32 %v6958, %v7428
      %v7430 = vpop.f32.mrb[0].mxu0
      %7431 = vmatprep.mubr.f32.mxu0 0.0
      %7432 = vmatmul.mubr.f32.gmra.mrb[0].mxu0 %v6290
      %v7433 = vpop.f32.mrb[0].mxu0
      %v7434 = vadd.f32 %v6959, %v7433
      %v7435 = vpop.f32.mrb[0].mxu0
      %7436 = vmatprep.mubr.f32.mxu0 0.0
      %7437 = vmatmul.mubr.f32.gmra.mrb[0].mxu0 %v6291
      %v7438 = vpop.f32.mrb[0].mxu0
      %v7439 = vadd.f32 %v6960, %v7438
      %v7440 = vpop.f32.mrb[0].mxu0
      %7441 = vmatprep.mubr.f32.mxu0 0.0
      %7442 = vmatmul.mubr.f32.gmra.mrb[0].mxu0 %v6292
      %v7443 = vpop.f32.mrb[0].mxu0
      %v7444 = vadd.f32 %v6961, %v7443
      %v7445 = vpop.f32.mrb[0].mxu0
      %7446 = vmatprep.mubr.f32.mxu0 0.0
      %7447 = vmatmul.mubr.f32.gmra.mrb[0].mxu0 %v6293
      %v7448 = vpop.f32.mrb[0].mxu0
      %v7449 = vadd.f32 %v6962, %v7448
      %v7450 = vpop.f32.mrb[0].mxu0
      %7451 = vmatprep.mubr.f32.mxu0 0.0
      %7452 = vmatmul.mubr.f32.gmra.mrb[0].mxu0 %v6294
      %v7453 = vpop.f32.mrb[0].mxu0
      %v7454 = vadd.f32 %v6963, %v7453
      %v7455 = vpop.f32.mrb[0].mxu0
      %7456 = vmatprep.mubr.f32.mxu0 0.0
      %7457 = vmatmul.mubr.f32.gmra.mrb[0].mxu0 %v6295
      %v7458 = vpop.f32.mrb[0].mxu0
      %v7459 = vadd.f32 %v6964, %v7458
      %v7460 = vpop.f32.mrb[0].mxu0
      %7461 = vmatprep.mubr.f32.mxu0 0.0
      %7462 = vmatmul.mubr.f32.gmra.mrb[0].mxu0 %v6296
      %v7463 = vpop.f32.mrb[0].mxu0
      %v7464 = vadd.f32 %v6965, %v7463
      %v7465 = vpop.f32.mrb[0].mxu0
      %7466 = vmatprep.mubr.f32.mxu0 0.0
      %7467 = vmatmul.mubr.f32.gmra.mrb[0].mxu0 %v6297
      %v7468 = vpop.f32.mrb[0].mxu0
      %v7469 = vadd.f32 %v6966, %v7468
      %v7470 = vpop.f32.mrb[0].mxu0
      %7471 = vmatprep.mubr.f32.mxu0 0.0
      %7472 = vmatmul.mubr.f32.gmra.mrb[0].mxu0 %v6298
      %v7473 = vpop.f32.mrb[0].mxu0
      %v7474 = vadd.f32 %v6967, %v7473
      %v7475 = vpop.f32.mrb[0].mxu0
      %7476 = vmatprep.mubr.f32.mxu0 0.0
      %7477 = vmatmul.mubr.f32.gmra.mrb[0].mxu0 %v6299
      %v7478 = vpop.f32.mrb[0].mxu0
      %v7479 = vadd.f32 %v6968, %v7478
      %v7480 = vpop.f32.mrb[0].mxu0
      %7481 = vmatprep.mubr.f32.mxu0 0.0
      %7482 = vmatmul.mubr.f32.gmra.mrb[0].mxu0 %v6300
      %v7483 = vpop.f32.mrb[0].mxu0
      %v7484 = vadd.f32 %v6969, %v7483
      %v7485 = vpop.f32.mrb[0].mxu0
      %7486 = vmatprep.mubr.f32.mxu0 0.0
      %7487 = vmatmul.mubr.f32.gmra.mrb[0].mxu0 %v6301
      %v7488 = vpop.f32.mrb[0].mxu0
      %v7489 = vadd.f32 %v6970, %v7488
      %v7490 = vpop.f32.mrb[0].mxu0
      %7491 = vmatprep.mubr.f32.mxu0 0.0
      %7492 = vmatmul.mubr.f32.gmra.mrb[0].mxu0 %v6302
      %v7493 = vpop.f32.mrb[0].mxu0
      %v7494 = vadd.f32 %v6971, %v7493
      %v7495 = vpop.f32.mrb[0].mxu0
      %7496 = vmatprep.mubr.f32.mxu0 0.0
      %7497 = vmatmul.mubr.f32.gmra.mrb[0].mxu0 %v6303
      %v7498 = vpop.f32.mrb[0].mxu0
      %v7499 = vadd.f32 %v6972, %v7498
      %v7500 = vpop.f32.mrb[0].mxu0
      %7501 = vmatprep.mubr.f32.mxu0 0.0
      %7502 = vmatmul.mubr.f32.gmra.mrb[0].mxu0 %v6304
      %v7503 = vpop.f32.mrb[0].mxu0
      %v7504 = vadd.f32 %v6973, %v7503
      %v7505 = vpop.f32.mrb[0].mxu0
      %7506 = vmatprep.mubr.f32.mxu0 0.0
      %7507 = vmatmul.mubr.f32.gmra.mrb[0].mxu0 %v6305
      %v7508 = vpop.f32.mrb[0].mxu0
      %v7509 = vadd.f32 %v6974, %v7508
      %v7510 = vpop.f32.mrb[0].mxu0
      %7511 = vmatprep.mubr.f32.mxu0 0.0
      %7512 = vmatmul.mubr.f32.gmra.mrb[0].mxu0 %v6306
      %v7513 = vpop.f32.mrb[0].mxu0
      %v7514 = vadd.f32 %v6975, %v7513
      %v7515 = vpop.f32.mrb[0].mxu0
      %7516 = vmatprep.mubr.f32.mxu0 0.0
      %7517 = vmatmul.mubr.f32.gmra.mrb[0].mxu0 %v6307
      %v7518 = vpop.f32.mrb[0].mxu0
      %v7519 = vadd.f32 %v6976, %v7518
      %v7520 = vpop.f32.mrb[0].mxu0
      %7521 = vmatprep.mubr.f32.mxu0 0.0
      %7522 = vmatmul.mubr.f32.gmra.mrb[0].mxu0 %v6308
      %v7523 = vpop.f32.mrb[0].mxu0
      %v7524 = vadd.f32 %v6977, %v7523
      %v7525 = vpop.f32.mrb[0].mxu0
      %7526 = vmatprep.mubr.f32.mxu0 0.0
      %7527 = vmatmul.mubr.f32.gmra.mrb[0].mxu0 %v6309
      %v7528 = vpop.f32.mrb[0].mxu0
      %v7529 = vadd.f32 %v6978, %v7528
      %v7530 = vpop.f32.mrb[0].mxu0
      %7531 = vmatprep.mubr.f32.mxu0 0.0
      %7532 = vmatmul.mubr.f32.gmra.mrb[0].mxu0 %v6310
      %v7533 = vpop.f32.mrb[0].mxu0
      %v7534 = vadd.f32 %v6979, %v7533
      %v7535 = vpop.f32.mrb[0].mxu0
      %7536 = vmatprep.mubr.f32.mxu0 0.0
      %7537 = vmatmul.mubr.f32.gmra.mrb[0].mxu0 %v6311
      %v7538 = vpop.f32.mrb[0].mxu0
      %v7539 = vadd.f32 %v6980, %v7538
      %v7540 = vpop.f32.mrb[0].mxu0
      %7541 = vmatprep.mubr.f32.mxu0 0.0
      %7542 = vmatmul.mubr.f32.gmra.mrb[0].mxu0 %v6312
      %v7543 = vpop.f32.mrb[0].mxu0
      %v7544 = vadd.f32 %v6981, %v7543
      %v7545 = vpop.f32.mrb[0].mxu0
      %7546 = vmatprep.mubr.f32.mxu0 0.0
      %7547 = vmatmul.mubr.f32.gmra.mrb[0].mxu0 %v6313
      %v7548 = vpop.f32.mrb[0].mxu0
      %v7549 = vadd.f32 %v6982, %v7548
      %v7550 = vpop.f32.mrb[0].mxu0
      %7551 = vmatprep.mubr.f32.mxu0 0.0
      %7552 = vmatmul.mubr.f32.gmra.mrb[0].mxu0 %v6314
      %v7553 = vpop.f32.mrb[0].mxu0
      %v7554 = vadd.f32 %v6983, %v7553
      %v7555 = vpop.f32.mrb[0].mxu0
      %7556 = vmatprep.mubr.f32.mxu0 0.0
      %7557 = vmatmul.mubr.f32.gmra.mrb[0].mxu0 %v6315
      %v7558 = vpop.f32.mrb[0].mxu0
      %v7559 = vadd.f32 %v6984, %v7558
      %v7560 = vpop.f32.mrb[0].mxu0
      %7561 = vmatprep.mubr.f32.mxu0 0.0
      %7562 = vmatmul.mubr.f32.gmra.mrb[0].mxu0 %v6316
      %v7563 = vpop.f32.mrb[0].mxu0
      %v7564 = vadd.f32 %v6985, %v7563
      %v7565 = vpop.f32.mrb[0].mxu0
      %7566 = vmatprep.mubr.f32.mxu0 0.0
      %7567 = vmatmul.mubr.f32.gmra.mrb[0].mxu0 %v6317
      %v7568 = vpop.f32.mrb[0].mxu0
      %v7569 = vadd.f32 %v6986, %v7568
      %v7570 = vpop.f32.mrb[0].mxu0
      %7571 = vmatprep.mubr.f32.mxu0 0.0
      %7572 = vmatmul.mubr.f32.gmra.mrb[0].mxu0 %v6318
      %v7573 = vpop.f32.mrb[0].mxu0
      %v7574 = vadd.f32 %v6987, %v7573
      %v7575 = vpop.f32.mrb[0].mxu0
      %7576 = vmatprep.mubr.f32.mxu0 0.0
      %7577 = vmatmul.mubr.f32.gmra.mrb[0].mxu0 %v6319
      %v7578 = vpop.f32.mrb[0].mxu0
      %v7579 = vadd.f32 %v6988, %v7578
      %v7580 = vpop.f32.mrb[0].mxu0
      %7581 = vmatprep.mubr.f32.mxu0 0.0
      %7582 = vmatmul.mubr.f32.gmra.mrb[0].mxu0 %v6320
      %v7583 = vpop.f32.mrb[0].mxu0
      %v7584 = vadd.f32 %v6989, %v7583
      %v7585 = vpop.f32.mrb[0].mxu0
      %7586 = vmatprep.mubr.f32.mxu0 0.0
      %7587 = vmatmul.mubr.f32.gmra.mrb[0].mxu0 %v6321
      %v7588 = vpop.f32.mrb[0].mxu0
      %v7589 = vadd.f32 %v6990, %v7588
      %v7590 = vpop.f32.mrb[0].mxu0
      %7591 = vmatprep.mubr.f32.mxu0 0.0
      %7592 = vmatmul.mubr.f32.gmra.mrb[0].mxu0 %v6322
      %v7593 = vpop.f32.mrb[0].mxu0
      %v7594 = vadd.f32 %v6991, %v7593
      %v7595 = vpop.f32.mrb[0].mxu0
      %7596 = vmatprep.mubr.f32.mxu0 0.0
      %7597 = vmatmul.mubr.f32.gmra.mrb[0].mxu0 %v6323
      %v7598 = vpop.f32.mrb[0].mxu0
      %v7599 = vadd.f32 %v6992, %v7598
      %v7600 = vpop.f32.mrb[0].mxu0
      %7601 = vmatprep.mubr.f32.mxu0 0.0
      %7602 = vmatmul.mubr.f32.gmra.mrb[0].mxu0 %v6324
      %v7603 = vpop.f32.mrb[0].mxu0
      %v7604 = vadd.f32 %v6993, %v7603
      %v7605 = vpop.f32.mrb[0].mxu0
      %7606 = vmatprep.mubr.f32.mxu0 0.0
      %7607 = vmatmul.mubr.f32.gmra.mrb[0].mxu0 %v6325
      %v7608 = vpop.f32.mrb[0].mxu0
      %v7609 = vadd.f32 %v6994, %v7608
      %v7610 = vpop.f32.mrb[0].mxu0
      %7611 = vmatprep.mubr.f32.mxu0 0.0
      %7612 = vmatmul.mubr.f32.gmra.mrb[0].mxu0 %v6326
      %v7613 = vpop.f32.mrb[0].mxu0
      %v7614 = vadd.f32 %v6995, %v7613
      %v7615 = vpop.f32.mrb[0].mxu0
      %7616 = vmatprep.mubr.f32.mxu0 0.0
      %7617 = vmatmul.mubr.f32.gmra.mrb[0].mxu0 %v6327
      %v7618 = vpop.f32.mrb[0].mxu0
      %v7619 = vadd.f32 %v6996, %v7618
      %v7620 = vpop.f32.mrb[0].mxu0
      %7621 = vmatprep.mubr.f32.mxu0 0.0
      %7622 = vmatmul.mubr.f32.gmra.mrb[0].mxu0 %v6328
      %v7623 = vpop.f32.mrb[0].mxu0
      %v7624 = vadd.f32 %v6997, %v7623
      %v7625 = vpop.f32.mrb[0].mxu0
      %7626 = vmatprep.mubr.f32.mxu0 0.0
      %7627 = vmatmul.mubr.f32.gmra.mrb[0].mxu0 %v6329
      %v7628 = vpop.f32.mrb[0].mxu0
      %v7629 = vadd.f32 %v6998, %v7628
      %v7630 = vpop.f32.mrb[0].mxu0
      %7631 = vmatprep.mubr.f32.mxu0 0.0
      %7632 = vmatmul.mubr.f32.gmra.mrb[0].mxu0 %v6330
      %v7633 = vpop.f32.mrb[0].mxu0
      %v7634 = vadd.f32 %v6999, %v7633
      %v7635 = vpop.f32.mrb[0].mxu0
      %7636 = vmatprep.mubr.f32.mxu0 0.0
      %7637 = vmatmul.mubr.f32.gmra.mrb[0].mxu0 %v6331
      %v7638 = vpop.f32.mrb[0].mxu0
      %v7639 = vadd.f32 %v7000, %v7638
      %v7640 = vpop.f32.mrb[0].mxu0
      %7641 = vmatprep.mubr.f32.mxu0 0.0
      %7642 = vmatmul.mubr.f32.gmra.mrb[0].mxu0 %v6332
      %v7643 = vpop.f32.mrb[0].mxu0
      %v7644 = vadd.f32 %v7001, %v7643
      %v7645 = vpop.f32.mrb[0].mxu0
      %7646 = vmatprep.mubr.f32.mxu0 0.0
      %7647 = vmatmul.mubr.f32.gmra.mrb[0].mxu0 %v6333
      %v7648 = vpop.f32.mrb[0].mxu0
      %v7649 = vadd.f32 %v7002, %v7648
      %v7650 = vpop.f32.mrb[0].mxu0
      %7651 = vmatprep.mubr.f32.mxu0 0.0
      %7652 = vmatmul.mubr.f32.gmra.mrb[0].mxu0 %v6334
      %v7653 = vpop.f32.mrb[0].mxu0
      %v7654 = vadd.f32 %v7003, %v7653
      %v7655 = vpop.f32.mrb[0].mxu0
      %7656 = vmatprep.mubr.f32.mxu0 0.0
      %7657 = vmatmul.mubr.f32.gmra.mrb[0].mxu0 %v6335
      %v7658 = vpop.f32.mrb[0].mxu0
      %v7659 = vadd.f32 %v7004, %v7658
      %v7660 = vpop.f32.mrb[0].mxu0
      %7661 = vmatprep.mubr.f32.mxu0 0.0
      %7662 = vmatmul.mubr.f32.gmra.mrb[0].mxu0 %v6336
      %v7663 = vpop.f32.mrb[0].mxu0
      %v7664 = vadd.f32 %v7005, %v7663
      %v7665 = vpop.f32.mrb[0].mxu0
      %7666 = vmatprep.mubr.f32.mxu0 0.0
      %7667 = vmatmul.mubr.f32.gmra.mrb[0].mxu0 %v6337
      %v7668 = vpop.f32.mrb[0].mxu0
      %v7669 = vadd.f32 %v7006, %v7668
      %v7670 = vpop.f32.mrb[0].mxu0
      %7671 = vmatprep.mubr.f32.mxu0 0.0
      %7672 = vmatmul.mubr.f32.gmra.mrb[0].mxu0 %v6338
      %v7673 = vpop.f32.mrb[0].mxu0
      %v7674 = vadd.f32 %v7007, %v7673
      %v7675 = vpop.f32.mrb[0].mxu0
      %7676 = vmatprep.mubr.f32.mxu0 0.0
      %7677 = vmatmul.mubr.f32.gmra.mrb[0].mxu0 %v6339
      %v7678 = vpop.f32.mrb[0].mxu0
      %v7679 = vadd.f32 %v7008, %v7678
      %v7680 = vpop.f32.mrb[0].mxu0
      %7681 = vmatprep.mubr.f32.mxu0 0.0
      %7682 = vmatmul.mubr.f32.gmra.mrb[0].mxu0 %v6340
      %v7683 = vpop.f32.mrb[0].mxu0
      %v7684 = vadd.f32 %v7009, %v7683
      %v7685 = vpop.f32.mrb[0].mxu0
      %7686 = vmatprep.mubr.f32.mxu0 0.0
      %7687 = vmatmul.mubr.f32.gmra.mrb[0].mxu0 %v6341
      %v7688 = vpop.f32.mrb[0].mxu0
      %v7689 = vadd.f32 %v7010, %v7688
      %v7690 = vpop.f32.mrb[0].mxu0
      %7691 = vmatprep.mubr.f32.mxu0 0.0
      %7692 = vmatmul.mubr.f32.gmra.mrb[0].mxu0 %v6342
      %v7693 = vpop.f32.mrb[0].mxu0
      %v7694 = vadd.f32 %v7011, %v7693
      %v7695 = vpop.f32.mrb[0].mxu0
      %7696 = vmatprep.mubr.f32.mxu0 0.0
      %7697 = vmatmul.mubr.f32.gmra.mrb[0].mxu0 %v6343
      %v7698 = vpop.f32.mrb[0].mxu0
      %v7699 = vadd.f32 %v7012, %v7698
      %v7700 = vpop.f32.mrb[0].mxu0
      %7701 = vmatprep.mubr.f32.mxu0 0.0
      %7702 = vmatmul.mubr.f32.gmra.mrb[0].mxu0 %v6344
      %v7703 = vpop.f32.mrb[0].mxu0
      %v7704 = vadd.f32 %v7013, %v7703
      %v7705 = vpop.f32.mrb[0].mxu0
      %7706 = vmatprep.mubr.f32.mxu0 0.0
      %7707 = vmatmul.mubr.f32.gmra.mrb[0].mxu0 %v6345
      %v7708 = vpop.f32.mrb[0].mxu0
      %v7709 = vadd.f32 %v7014, %v7708
      %v7710 = vpop.f32.mrb[0].mxu0
      %7711 = vmatprep.mubr.f32.mxu0 0.0
      %7712 = vmatmul.mubr.f32.gmra.mrb[0].mxu0 %v6346
      %v7713 = vpop.f32.mrb[0].mxu0
      %v7714 = vadd.f32 %v7015, %v7713
      %v7715 = vpop.f32.mrb[0].mxu0
      %7716 = vmatprep.mubr.f32.mxu0 0.0
      %7717 = vmatmul.mubr.f32.gmra.mrb[0].mxu0 %v6347
      %v7718 = vpop.f32.mrb[0].mxu0
      %v7719 = vadd.f32 %v7016, %v7718
      %v7720 = vpop.f32.mrb[0].mxu0
      %7721 = vdwg.mxu0
      %v7722 = vmul.f32 %v7084, 0.70710677
      %v7723 = vmul.f32 %v7089, 0.70710677
      %v7724 = vmul.f32 %v7094, 0.70710677
      %v7725 = vmul.f32 %v7099, 0.70710677
      %v7726 = vmul.f32 %v7104, 0.70710677
      %v7727 = vmul.f32 %v7109, 0.70710677
      %v7728 = vmul.f32 %v7114, 0.70710677
      %v7729 = vmul.f32 %v7119, 0.70710677
      %v7730 = vmul.f32 %v7124, 0.70710677
      %v7731 = vmul.f32 %v7129, 0.70710677
      %v7732 = vmul.f32 %v7134, 0.70710677
      %v7733 = vmul.f32 %v7139, 0.70710677
      %v7734 = vmul.f32 %v7144, 0.70710677
      %v7735 = vmul.f32 %v7149, 0.70710677
      %v7736 = vmul.f32 %v7154, 0.70710677
      %v7737 = vmul.f32 %v7159, 0.70710677
      %v7738 = vmul.f32 %v7164, 0.70710677
      %v7739 = vmul.f32 %v7169, 0.70710677
      %v7740 = vmul.f32 %v7174, 0.70710677
      %v7741 = vmul.f32 %v7179, 0.70710677
      %v7742 = vmul.f32 %v7184, 0.70710677
      %v7743 = vmul.f32 %v7189, 0.70710677
      %v7744 = vmul.f32 %v7194, 0.70710677
      %v7745 = vmul.f32 %v7199, 0.70710677
      %v7746 = vmul.f32 %v7204, 0.70710677
      %v7747 = vmul.f32 %v7209, 0.70710677
      %v7748 = vmul.f32 %v7214, 0.70710677
      %v7749 = vmul.f32 %v7219, 0.70710677
      %v7750 = vmul.f32 %v7224, 0.70710677
      %v7751 = vmul.f32 %v7229, 0.70710677
      %v7752 = vmul.f32 %v7234, 0.70710677
      %v7753 = vmul.f32 %v7239, 0.70710677
      %v7754 = vmul.f32 %v7244, 0.70710677
      %v7755 = vmul.f32 %v7249, 0.70710677
      %v7756 = vmul.f32 %v7254, 0.70710677
      %v7757 = vmul.f32 %v7259, 0.70710677
      %v7758 = vmul.f32 %v7264, 0.70710677
      %v7759 = vmul.f32 %v7269, 0.70710677
      %v7760 = vmul.f32 %v7274, 0.70710677
      %v7761 = vmul.f32 %v7279, 0.70710677
      %v7762 = vmul.f32 %v7284, 0.70710677
      %v7763 = vmul.f32 %v7289, 0.70710677
      %v7764 = vmul.f32 %v7294, 0.70710677
      %v7765 = vmul.f32 %v7299, 0.70710677
      %v7766 = vmul.f32 %v7304, 0.70710677
      %v7767 = vmul.f32 %v7309, 0.70710677
      %v7768 = vmul.f32 %v7314, 0.70710677
      %v7769 = vmul.f32 %v7319, 0.70710677
      %v7770 = vmul.f32 %v7324, 0.70710677
      %v7771 = vmul.f32 %v7329, 0.70710677
      %v7772 = vmul.f32 %v7334, 0.70710677
      %v7773 = vmul.f32 %v7339, 0.70710677
      %v7774 = vmul.f32 %v7344, 0.70710677
      %v7775 = vmul.f32 %v7349, 0.70710677
      %v7776 = vmul.f32 %v7354, 0.70710677
      %v7777 = vmul.f32 %v7359, 0.70710677
      %v7778 = vmul.f32 %v7364, 0.70710677
      %v7779 = vmul.f32 %v7369, 0.70710677
      %v7780 = vmul.f32 %v7374, 0.70710677
      %v7781 = vmul.f32 %v7379, 0.70710677
      %v7782 = vmul.f32 %v7384, 0.70710677
      %v7783 = vmul.f32 %v7389, 0.70710677
      %v7784 = vmul.f32 %v7394, 0.70710677
      %v7785 = vmul.f32 %v7399, 0.70710677
      %v7786 = vmul.f32 %v7404, 0.70710677
      %v7787 = vmul.f32 %v7409, 0.70710677
      %v7788 = vmul.f32 %v7414, 0.70710677
      %v7789 = vmul.f32 %v7419, 0.70710677
      %v7790 = vmul.f32 %v7424, 0.70710677
      %v7791 = vmul.f32 %v7429, 0.70710677
      %v7792 = vmul.f32 %v7434, 0.70710677
      %v7793 = vmul.f32 %v7439, 0.70710677
      %v7794 = vmul.f32 %v7444, 0.70710677
      %v7795 = vmul.f32 %v7449, 0.70710677
      %v7796 = vmul.f32 %v7454, 0.70710677
      %v7797 = vmul.f32 %v7459, 0.70710677
      %v7798 = vmul.f32 %v7464, 0.70710677
      %v7799 = vmul.f32 %v7469, 0.70710677
      %v7800 = vmul.f32 %v7474, 0.70710677
      %v7801 = vmul.f32 %v7479, 0.70710677
      %v7802 = vmul.f32 %v7484, 0.70710677
      %v7803 = vmul.f32 %v7489, 0.70710677
      %v7804 = vmul.f32 %v7494, 0.70710677
      %v7805 = vmul.f32 %v7499, 0.70710677
      %v7806 = vmul.f32 %v7504, 0.70710677
      %v7807 = vmul.f32 %v7509, 0.70710677
      %v7808 = vmul.f32 %v7514, 0.70710677
      %v7809 = vmul.f32 %v7519, 0.70710677
      %v7810 = vmul.f32 %v7524, 0.70710677
      %v7811 = vmul.f32 %v7529, 0.70710677
      %v7812 = vmul.f32 %v7534, 0.70710677
      %v7813 = vmul.f32 %v7539, 0.70710677
      %v7814 = vmul.f32 %v7544, 0.70710677
      %v7815 = vmul.f32 %v7549, 0.70710677
      %v7816 = vmul.f32 %v7554, 0.70710677
      %v7817 = vmul.f32 %v7559, 0.70710677
      %v7818 = vmul.f32 %v7564, 0.70710677
      %v7819 = vmul.f32 %v7569, 0.70710677
      %v7820 = vmul.f32 %v7574, 0.70710677
      %v7821 = vmul.f32 %v7579, 0.70710677
      %v7822 = vmul.f32 %v7584, 0.70710677
      %v7823 = vmul.f32 %v7589, 0.70710677
      %v7824 = vmul.f32 %v7594, 0.70710677
      %v7825 = vmul.f32 %v7599, 0.70710677
      %v7826 = vmul.f32 %v7604, 0.70710677
      %v7827 = vmul.f32 %v7609, 0.70710677
      %v7828 = vmul.f32 %v7614, 0.70710677
      %v7829 = vmul.f32 %v7619, 0.70710677
      %v7830 = vmul.f32 %v7624, 0.70710677
      %v7831 = vmul.f32 %v7629, 0.70710677
      %v7832 = vmul.f32 %v7634, 0.70710677
      %v7833 = vmul.f32 %v7639, 0.70710677
      %v7834 = vmul.f32 %v7644, 0.70710677
      %v7835 = vmul.f32 %v7649, 0.70710677
      %v7836 = vmul.f32 %v7654, 0.70710677
      %v7837 = vmul.f32 %v7659, 0.70710677
      %v7838 = vmul.f32 %v7664, 0.70710677
      %v7839 = vmul.f32 %v7669, 0.70710677
      %v7840 = vmul.f32 %v7674, 0.70710677
      %v7841 = vmul.f32 %v7679, 0.70710677
      %v7842 = vmul.f32 %v7684, 0.70710677
      %v7843 = vmul.f32 %v7689, 0.70710677
      %v7844 = vmul.f32 %v7694, 0.70710677
      %v7845 = vmul.f32 %v7699, 0.70710677
      %v7846 = vmul.f32 %v7704, 0.70710677
      %v7847 = vmul.f32 %v7709, 0.70710677
      %v7848 = vmul.f32 %v7714, 0.70710677
      %v7849 = vmul.f32 %v7719, 0.70710677
      %v7850 = vlaneseq
      %v7851 = vshrl.u32 %v7850, 7
      %v7852 = vsub.s32 2, %v7851
      %v7853 = vrot.slane %v356, %v7852
      %v7854 = vadd.f32 %v7722, %v7853
      %v7855 = vadd.f32 %v7723, %v7853
      %v7856 = vadd.f32 %v7724, %v7853
      %v7857 = vadd.f32 %v7725, %v7853
      %v7858 = vadd.f32 %v7726, %v7853
      %v7859 = vadd.f32 %v7727, %v7853
      %v7860 = vadd.f32 %v7728, %v7853
      %v7861 = vadd.f32 %v7729, %v7853
      %v7862 = vadd.f32 %v7730, %v7853
      %v7863 = vadd.f32 %v7731, %v7853
      %v7864 = vadd.f32 %v7732, %v7853
      %v7865 = vadd.f32 %v7733, %v7853
      %v7866 = vadd.f32 %v7734, %v7853
      %v7867 = vadd.f32 %v7735, %v7853
      %v7868 = vadd.f32 %v7736, %v7853
      %v7869 = vadd.f32 %v7737, %v7853
      %v7870 = vadd.f32 %v7738, %v7853
      %v7871 = vadd.f32 %v7739, %v7853
      %v7872 = vadd.f32 %v7740, %v7853
      %v7873 = vadd.f32 %v7741, %v7853
      %v7874 = vadd.f32 %v7742, %v7853
      %v7875 = vadd.f32 %v7743, %v7853
      %v7876 = vadd.f32 %v7744, %v7853
      %v7877 = vadd.f32 %v7745, %v7853
      %v7878 = vadd.f32 %v7746, %v7853
      %v7879 = vadd.f32 %v7747, %v7853
      %v7880 = vadd.f32 %v7748, %v7853
      %v7881 = vadd.f32 %v7749, %v7853
      %v7882 = vadd.f32 %v7750, %v7853
      %v7883 = vadd.f32 %v7751, %v7853
      %v7884 = vadd.f32 %v7752, %v7853
      %v7885 = vadd.f32 %v7753, %v7853
      %v7886 = vadd.f32 %v7754, %v7853
      %v7887 = vadd.f32 %v7755, %v7853
      %v7888 = vadd.f32 %v7756, %v7853
      %v7889 = vadd.f32 %v7757, %v7853
      %v7890 = vadd.f32 %v7758, %v7853
      %v7891 = vadd.f32 %v7759, %v7853
      %v7892 = vadd.f32 %v7760, %v7853
      %v7893 = vadd.f32 %v7761, %v7853
      %v7894 = vadd.f32 %v7762, %v7853
      %v7895 = vadd.f32 %v7763, %v7853
      %v7896 = vadd.f32 %v7764, %v7853
      %v7897 = vadd.f32 %v7765, %v7853
      %v7898 = vadd.f32 %v7766, %v7853
      %v7899 = vadd.f32 %v7767, %v7853
      %v7900 = vadd.f32 %v7768, %v7853
      %v7901 = vadd.f32 %v7769, %v7853
      %v7902 = vadd.f32 %v7770, %v7853
      %v7903 = vadd.f32 %v7771, %v7853
      %v7904 = vadd.f32 %v7772, %v7853
      %v7905 = vadd.f32 %v7773, %v7853
      %v7906 = vadd.f32 %v7774, %v7853
      %v7907 = vadd.f32 %v7775, %v7853
      %v7908 = vadd.f32 %v7776, %v7853
      %v7909 = vadd.f32 %v7777, %v7853
      %v7910 = vadd.f32 %v7778, %v7853
      %v7911 = vadd.f32 %v7779, %v7853
      %v7912 = vadd.f32 %v7780, %v7853
      %v7913 = vadd.f32 %v7781, %v7853
      %v7914 = vadd.f32 %v7782, %v7853
      %v7915 = vadd.f32 %v7783, %v7853
      %v7916 = vadd.f32 %v7784, %v7853
      %v7917 = vadd.f32 %v7785, %v7853
      %v7918 = vadd.f32 %v7786, %v7853
      %v7919 = vadd.f32 %v7787, %v7853
      %v7920 = vadd.f32 %v7788, %v7853
      %v7921 = vadd.f32 %v7789, %v7853
      %v7922 = vadd.f32 %v7790, %v7853
      %v7923 = vadd.f32 %v7791, %v7853
      %v7924 = vadd.f32 %v7792, %v7853
      %v7925 = vadd.f32 %v7793, %v7853
      %v7926 = vadd.f32 %v7794, %v7853
      %v7927 = vadd.f32 %v7795, %v7853
      %v7928 = vadd.f32 %v7796, %v7853
      %v7929 = vadd.f32 %v7797, %v7853
      %v7930 = vadd.f32 %v7798, %v7853
      %v7931 = vadd.f32 %v7799, %v7853
      %v7932 = vadd.f32 %v7800, %v7853
      %v7933 = vadd.f32 %v7801, %v7853
      %v7934 = vadd.f32 %v7802, %v7853
      %v7935 = vadd.f32 %v7803, %v7853
      %v7936 = vadd.f32 %v7804, %v7853
      %v7937 = vadd.f32 %v7805, %v7853
      %v7938 = vadd.f32 %v7806, %v7853
      %v7939 = vadd.f32 %v7807, %v7853
      %v7940 = vadd.f32 %v7808, %v7853
      %v7941 = vadd.f32 %v7809, %v7853
      %v7942 = vadd.f32 %v7810, %v7853
      %v7943 = vadd.f32 %v7811, %v7853
      %v7944 = vadd.f32 %v7812, %v7853
      %v7945 = vadd.f32 %v7813, %v7853
      %v7946 = vadd.f32 %v7814, %v7853
      %v7947 = vadd.f32 %v7815, %v7853
      %v7948 = vadd.f32 %v7816, %v7853
      %v7949 = vadd.f32 %v7817, %v7853
      %v7950 = vadd.f32 %v7818, %v7853
      %v7951 = vadd.f32 %v7819, %v7853
      %v7952 = vadd.f32 %v7820, %v7853
      %v7953 = vadd.f32 %v7821, %v7853
      %v7954 = vadd.f32 %v7822, %v7853
      %v7955 = vadd.f32 %v7823, %v7853
      %v7956 = vadd.f32 %v7824, %v7853
      %v7957 = vadd.f32 %v7825, %v7853
      %v7958 = vadd.f32 %v7826, %v7853
      %v7959 = vadd.f32 %v7827, %v7853
      %v7960 = vadd.f32 %v7828, %v7853
      %v7961 = vadd.f32 %v7829, %v7853
      %v7962 = vadd.f32 %v7830, %v7853
      %v7963 = vadd.f32 %v7831, %v7853
      %v7964 = vadd.f32 %v7832, %v7853
      %v7965 = vadd.f32 %v7833, %v7853
      %v7966 = vadd.f32 %v7834, %v7853
      %v7967 = vadd.f32 %v7835, %v7853
      %v7968 = vadd.f32 %v7836, %v7853
      %v7969 = vadd.f32 %v7837, %v7853
      %v7970 = vadd.f32 %v7838, %v7853
      %v7971 = vadd.f32 %v7839, %v7853
      %v7972 = vadd.f32 %v7840, %v7853
      %v7973 = vadd.f32 %v7841, %v7853
      %v7974 = vadd.f32 %v7842, %v7853
      %v7975 = vadd.f32 %v7843, %v7853
      %v7976 = vadd.f32 %v7844, %v7853
      %v7977 = vadd.f32 %v7845, %v7853
      %v7978 = vadd.f32 %v7846, %v7853
      %v7979 = vadd.f32 %v7847, %v7853
      %v7980 = vadd.f32 %v7848, %v7853
      %v7981 = vadd.f32 %v7849, %v7853
      %v7982 = vmul.f32 %v7854, 100.0
      %v7983 = vmul.f32 %v7855, 100.0
      %v7984 = vmul.f32 %v7856, 100.0
      %v7985 = vmul.f32 %v7857, 100.0
      %v7986 = vmul.f32 %v7858, 100.0
      %v7987 = vmul.f32 %v7859, 100.0
      %v7988 = vmul.f32 %v7860, 100.0
      %v7989 = vmul.f32 %v7861, 100.0
      %v7990 = vmul.f32 %v7862, 100.0
      %v7991 = vmul.f32 %v7863, 100.0
      %v7992 = vmul.f32 %v7864, 100.0
      %v7993 = vmul.f32 %v7865, 100.0
      %v7994 = vmul.f32 %v7866, 100.0
      %v7995 = vmul.f32 %v7867, 100.0
      %v7996 = vmul.f32 %v7868, 100.0
      %v7997 = vmul.f32 %v7869, 100.0
      %v7998 = vmul.f32 %v7870, 100.0
      %v7999 = vmul.f32 %v7871, 100.0
      %v8000 = vmul.f32 %v7872, 100.0
      %v8001 = vmul.f32 %v7873, 100.0
      %v8002 = vmul.f32 %v7874, 100.0
      %v8003 = vmul.f32 %v7875, 100.0
      %v8004 = vmul.f32 %v7876, 100.0
      %v8005 = vmul.f32 %v7877, 100.0
      %v8006 = vmul.f32 %v7878, 100.0
      %v8007 = vmul.f32 %v7879, 100.0
      %v8008 = vmul.f32 %v7880, 100.0
      %v8009 = vmul.f32 %v7881, 100.0
      %v8010 = vmul.f32 %v7882, 100.0
      %v8011 = vmul.f32 %v7883, 100.0
      %v8012 = vmul.f32 %v7884, 100.0
      %v8013 = vmul.f32 %v7885, 100.0
      %v8014 = vmul.f32 %v7886, 100.0
      %v8015 = vmul.f32 %v7887, 100.0
      %v8016 = vmul.f32 %v7888, 100.0
      %v8017 = vmul.f32 %v7889, 100.0
      %v8018 = vmul.f32 %v7890, 100.0
      %v8019 = vmul.f32 %v7891, 100.0
      %v8020 = vmul.f32 %v7892, 100.0
      %v8021 = vmul.f32 %v7893, 100.0
      %v8022 = vmul.f32 %v7894, 100.0
      %v8023 = vmul.f32 %v7895, 100.0
      %v8024 = vmul.f32 %v7896, 100.0
      %v8025 = vmul.f32 %v7897, 100.0
      %v8026 = vmul.f32 %v7898, 100.0
      %v8027 = vmul.f32 %v7899, 100.0
      %v8028 = vmul.f32 %v7900, 100.0
      %v8029 = vmul.f32 %v7901, 100.0
      %v8030 = vmul.f32 %v7902, 100.0
      %v8031 = vmul.f32 %v7903, 100.0
      %v8032 = vmul.f32 %v7904, 100.0
      %v8033 = vmul.f32 %v7905, 100.0
      %v8034 = vmul.f32 %v7906, 100.0
      %v8035 = vmul.f32 %v7907, 100.0
      %v8036 = vmul.f32 %v7908, 100.0
      %v8037 = vmul.f32 %v7909, 100.0
      %v8038 = vmul.f32 %v7910, 100.0
      %v8039 = vmul.f32 %v7911, 100.0
      %v8040 = vmul.f32 %v7912, 100.0
      %v8041 = vmul.f32 %v7913, 100.0
      %v8042 = vmul.f32 %v7914, 100.0
      %v8043 = vmul.f32 %v7915, 100.0
      %v8044 = vmul.f32 %v7916, 100.0
      %v8045 = vmul.f32 %v7917, 100.0
      %v8046 = vmul.f32 %v7918, 100.0
      %v8047 = vmul.f32 %v7919, 100.0
      %v8048 = vmul.f32 %v7920, 100.0
      %v8049 = vmul.f32 %v7921, 100.0
      %v8050 = vmul.f32 %v7922, 100.0
      %v8051 = vmul.f32 %v7923, 100.0
      %v8052 = vmul.f32 %v7924, 100.0
      %v8053 = vmul.f32 %v7925, 100.0
      %v8054 = vmul.f32 %v7926, 100.0
      %v8055 = vmul.f32 %v7927, 100.0
      %v8056 = vmul.f32 %v7928, 100.0
      %v8057 = vmul.f32 %v7929, 100.0
      %v8058 = vmul.f32 %v7930, 100.0
      %v8059 = vmul.f32 %v7931, 100.0
      %v8060 = vmul.f32 %v7932, 100.0
      %v8061 = vmul.f32 %v7933, 100.0
      %v8062 = vmul.f32 %v7934, 100.0
      %v8063 = vmul.f32 %v7935, 100.0
      %v8064 = vmul.f32 %v7936, 100.0
      %v8065 = vmul.f32 %v7937, 100.0
      %v8066 = vmul.f32 %v7938, 100.0
      %v8067 = vmul.f32 %v7939, 100.0
      %v8068 = vmul.f32 %v7940, 100.0
      %v8069 = vmul.f32 %v7941, 100.0
      %v8070 = vmul.f32 %v7942, 100.0
      %v8071 = vmul.f32 %v7943, 100.0
      %v8072 = vmul.f32 %v7944, 100.0
      %v8073 = vmul.f32 %v7945, 100.0
      %v8074 = vmul.f32 %v7946, 100.0
      %v8075 = vmul.f32 %v7947, 100.0
      %v8076 = vmul.f32 %v7948, 100.0
      %v8077 = vmul.f32 %v7949, 100.0
      %v8078 = vmul.f32 %v7950, 100.0
      %v8079 = vmul.f32 %v7951, 100.0
      %v8080 = vmul.f32 %v7952, 100.0
      %v8081 = vmul.f32 %v7953, 100.0
      %v8082 = vmul.f32 %v7954, 100.0
      %v8083 = vmul.f32 %v7955, 100.0
      %v8084 = vmul.f32 %v7956, 100.0
      %v8085 = vmul.f32 %v7957, 100.0
      %v8086 = vmul.f32 %v7958, 100.0
      %v8087 = vmul.f32 %v7959, 100.0
      %v8088 = vmul.f32 %v7960, 100.0
      %v8089 = vmul.f32 %v7961, 100.0
      %v8090 = vmul.f32 %v7962, 100.0
      %v8091 = vmul.f32 %v7963, 100.0
      %v8092 = vmul.f32 %v7964, 100.0
      %v8093 = vmul.f32 %v7965, 100.0
      %v8094 = vmul.f32 %v7966, 100.0
      %v8095 = vmul.f32 %v7967, 100.0
      %v8096 = vmul.f32 %v7968, 100.0
      %v8097 = vmul.f32 %v7969, 100.0
      %v8098 = vmul.f32 %v7970, 100.0
      %v8099 = vmul.f32 %v7971, 100.0
      %v8100 = vmul.f32 %v7972, 100.0
      %v8101 = vmul.f32 %v7973, 100.0
      %v8102 = vmul.f32 %v7974, 100.0
      %v8103 = vmul.f32 %v7975, 100.0
      %v8104 = vmul.f32 %v7976, 100.0
      %v8105 = vmul.f32 %v7977, 100.0
      %v8106 = vmul.f32 %v7978, 100.0
      %v8107 = vmul.f32 %v7979, 100.0
      %v8108 = vmul.f32 %v7980, 100.0
      %v8109 = vmul.f32 %v7981, 100.0
      %v8110 = vmax.f32 %v7982, 0.0
      %v8111 = vmax.f32 %v7983, 0.0
      %v8112 = vmax.f32 %v7984, 0.0
      %v8113 = vmax.f32 %v7985, 0.0
      %v8114 = vmax.f32 %v7986, 0.0
      %v8115 = vmax.f32 %v7987, 0.0
      %v8116 = vmax.f32 %v7988, 0.0
      %v8117 = vmax.f32 %v7989, 0.0
      %v8118 = vmax.f32 %v7990, 0.0
      %v8119 = vmax.f32 %v7991, 0.0
      %v8120 = vmax.f32 %v7992, 0.0
      %v8121 = vmax.f32 %v7993, 0.0
      %v8122 = vmax.f32 %v7994, 0.0
      %v8123 = vmax.f32 %v7995, 0.0
      %v8124 = vmax.f32 %v7996, 0.0
      %v8125 = vmax.f32 %v7997, 0.0
      %v8126 = vmax.f32 %v7998, 0.0
      %v8127 = vmax.f32 %v7999, 0.0
      %v8128 = vmax.f32 %v8000, 0.0
      %v8129 = vmax.f32 %v8001, 0.0
      %v8130 = vmax.f32 %v8002, 0.0
      %v8131 = vmax.f32 %v8003, 0.0
      %v8132 = vmax.f32 %v8004, 0.0
      %v8133 = vmax.f32 %v8005, 0.0
      %v8134 = vmax.f32 %v8006, 0.0
      %v8135 = vmax.f32 %v8007, 0.0
      %v8136 = vmax.f32 %v8008, 0.0
      %v8137 = vmax.f32 %v8009, 0.0
      %v8138 = vmax.f32 %v8010, 0.0
      %v8139 = vmax.f32 %v8011, 0.0
      %v8140 = vmax.f32 %v8012, 0.0
      %v8141 = vmax.f32 %v8013, 0.0
      %v8142 = vmax.f32 %v8014, 0.0
      %v8143 = vmax.f32 %v8015, 0.0
      %v8144 = vmax.f32 %v8016, 0.0
      %v8145 = vmax.f32 %v8017, 0.0
      %v8146 = vmax.f32 %v8018, 0.0
      %v8147 = vmax.f32 %v8019, 0.0
      %v8148 = vmax.f32 %v8020, 0.0
      %v8149 = vmax.f32 %v8021, 0.0
      %v8150 = vmax.f32 %v8022, 0.0
      %v8151 = vmax.f32 %v8023, 0.0
      %v8152 = vmax.f32 %v8024, 0.0
      %v8153 = vmax.f32 %v8025, 0.0
      %v8154 = vmax.f32 %v8026, 0.0
      %v8155 = vmax.f32 %v8027, 0.0
      %v8156 = vmax.f32 %v8028, 0.0
      %v8157 = vmax.f32 %v8029, 0.0
      %v8158 = vmax.f32 %v8030, 0.0
      %v8159 = vmax.f32 %v8031, 0.0
      %v8160 = vmax.f32 %v8032, 0.0
      %v8161 = vmax.f32 %v8033, 0.0
      %v8162 = vmax.f32 %v8034, 0.0
      %v8163 = vmax.f32 %v8035, 0.0
      %v8164 = vmax.f32 %v8036, 0.0
      %v8165 = vmax.f32 %v8037, 0.0
      %v8166 = vmax.f32 %v8038, 0.0
      %v8167 = vmax.f32 %v8039, 0.0
      %v8168 = vmax.f32 %v8040, 0.0
      %v8169 = vmax.f32 %v8041, 0.0
      %v8170 = vmax.f32 %v8042, 0.0
      %v8171 = vmax.f32 %v8043, 0.0
      %v8172 = vmax.f32 %v8044, 0.0
      %v8173 = vmax.f32 %v8045, 0.0
      %v8174 = vmax.f32 %v8046, 0.0
      %v8175 = vmax.f32 %v8047, 0.0
      %v8176 = vmax.f32 %v8048, 0.0
      %v8177 = vmax.f32 %v8049, 0.0
      %v8178 = vmax.f32 %v8050, 0.0
      %v8179 = vmax.f32 %v8051, 0.0
      %v8180 = vmax.f32 %v8052, 0.0
      %v8181 = vmax.f32 %v8053, 0.0
      %v8182 = vmax.f32 %v8054, 0.0
      %v8183 = vmax.f32 %v8055, 0.0
      %v8184 = vmax.f32 %v8056, 0.0
      %v8185 = vmax.f32 %v8057, 0.0
      %v8186 = vmax.f32 %v8058, 0.0
      %v8187 = vmax.f32 %v8059, 0.0
      %v8188 = vmax.f32 %v8060, 0.0
      %v8189 = vmax.f32 %v8061, 0.0
      %v8190 = vmax.f32 %v8062, 0.0
      %v8191 = vmax.f32 %v8063, 0.0
      %v8192 = vmax.f32 %v8064, 0.0
      %v8193 = vmax.f32 %v8065, 0.0
      %v8194 = vmax.f32 %v8066, 0.0
      %v8195 = vmax.f32 %v8067, 0.0
      %v8196 = vmax.f32 %v8068, 0.0
      %v8197 = vmax.f32 %v8069, 0.0
      %v8198 = vmax.f32 %v8070, 0.0
      %v8199 = vmax.f32 %v8071, 0.0
      %v8200 = vmax.f32 %v8072, 0.0
      %v8201 = vmax.f32 %v8073, 0.0
      %v8202 = vmax.f32 %v8074, 0.0
      %v8203 = vmax.f32 %v8075, 0.0
      %v8204 = vmax.f32 %v8076, 0.0
      %v8205 = vmax.f32 %v8077, 0.0
      %v8206 = vmax.f32 %v8078, 0.0
      %v8207 = vmax.f32 %v8079, 0.0
      %v8208 = vmax.f32 %v8080, 0.0
      %v8209 = vmax.f32 %v8081, 0.0
      %v8210 = vmax.f32 %v8082, 0.0
      %v8211 = vmax.f32 %v8083, 0.0
      %v8212 = vmax.f32 %v8084, 0.0
      %v8213 = vmax.f32 %v8085, 0.0
      %v8214 = vmax.f32 %v8086, 0.0
      %v8215 = vmax.f32 %v8087, 0.0
      %v8216 = vmax.f32 %v8088, 0.0
      %v8217 = vmax.f32 %v8089, 0.0
      %v8218 = vmax.f32 %v8090, 0.0
      %v8219 = vmax.f32 %v8091, 0.0
      %v8220 = vmax.f32 %v8092, 0.0
      %v8221 = vmax.f32 %v8093, 0.0
      %v8222 = vmax.f32 %v8094, 0.0
      %v8223 = vmax.f32 %v8095, 0.0
      %v8224 = vmax.f32 %v8096, 0.0
      %v8225 = vmax.f32 %v8097, 0.0
      %v8226 = vmax.f32 %v8098, 0.0
      %v8227 = vmax.f32 %v8099, 0.0
      %v8228 = vmax.f32 %v8100, 0.0
      %v8229 = vmax.f32 %v8101, 0.0
      %v8230 = vmax.f32 %v8102, 0.0
      %v8231 = vmax.f32 %v8103, 0.0
      %v8232 = vmax.f32 %v8104, 0.0
      %v8233 = vmax.f32 %v8105, 0.0
      %v8234 = vmax.f32 %v8106, 0.0
      %v8235 = vmax.f32 %v8107, 0.0
      %v8236 = vmax.f32 %v8108, 0.0
      %v8237 = vmax.f32 %v8109, 0.0
      %v8238 = vand.u32 2147483647, %v7982
      %v8239 = vand.u32 2147483647, %v7983
      %v8240 = vand.u32 2147483647, %v7984
      %v8241 = vand.u32 2147483647, %v7985
      %v8242 = vand.u32 2147483647, %v7986
      %v8243 = vand.u32 2147483647, %v7987
      %v8244 = vand.u32 2147483647, %v7988
      %v8245 = vand.u32 2147483647, %v7989
      %v8246 = vand.u32 2147483647, %v7990
      %v8247 = vand.u32 2147483647, %v7991
      %v8248 = vand.u32 2147483647, %v7992
      %v8249 = vand.u32 2147483647, %v7993
      %v8250 = vand.u32 2147483647, %v7994
      %v8251 = vand.u32 2147483647, %v7995
      %v8252 = vand.u32 2147483647, %v7996
      %v8253 = vand.u32 2147483647, %v7997
      %v8254 = vand.u32 2147483647, %v7998
      %v8255 = vand.u32 2147483647, %v7999
      %v8256 = vand.u32 2147483647, %v8000
      %v8257 = vand.u32 2147483647, %v8001
      %v8258 = vand.u32 2147483647, %v8002
      %v8259 = vand.u32 2147483647, %v8003
      %v8260 = vand.u32 2147483647, %v8004
      %v8261 = vand.u32 2147483647, %v8005
      %v8262 = vand.u32 2147483647, %v8006
      %v8263 = vand.u32 2147483647, %v8007
      %v8264 = vand.u32 2147483647, %v8008
      %v8265 = vand.u32 2147483647, %v8009
      %v8266 = vand.u32 2147483647, %v8010
      %v8267 = vand.u32 2147483647, %v8011
      %v8268 = vand.u32 2147483647, %v8012
      %v8269 = vand.u32 2147483647, %v8013
      %v8270 = vand.u32 2147483647, %v8014
      %v8271 = vand.u32 2147483647, %v8015
      %v8272 = vand.u32 2147483647, %v8016
      %v8273 = vand.u32 2147483647, %v8017
      %v8274 = vand.u32 2147483647, %v8018
      %v8275 = vand.u32 2147483647, %v8019
      %v8276 = vand.u32 2147483647, %v8020
      %v8277 = vand.u32 2147483647, %v8021
      %v8278 = vand.u32 2147483647, %v8022
      %v8279 = vand.u32 2147483647, %v8023
      %v8280 = vand.u32 2147483647, %v8024
      %v8281 = vand.u32 2147483647, %v8025
      %v8282 = vand.u32 2147483647, %v8026
      %v8283 = vand.u32 2147483647, %v8027
      %v8284 = vand.u32 2147483647, %v8028
      %v8285 = vand.u32 2147483647, %v8029
      %v8286 = vand.u32 2147483647, %v8030
      %v8287 = vand.u32 2147483647, %v8031
      %v8288 = vand.u32 2147483647, %v8032
      %v8289 = vand.u32 2147483647, %v8033
      %v8290 = vand.u32 2147483647, %v8034
      %v8291 = vand.u32 2147483647, %v8035
      %v8292 = vand.u32 2147483647, %v8036
      %v8293 = vand.u32 2147483647, %v8037
      %v8294 = vand.u32 2147483647, %v8038
      %v8295 = vand.u32 2147483647, %v8039
      %v8296 = vand.u32 2147483647, %v8040
      %v8297 = vand.u32 2147483647, %v8041
      %v8298 = vand.u32 2147483647, %v8042
      %v8299 = vand.u32 2147483647, %v8043
      %v8300 = vand.u32 2147483647, %v8044
      %v8301 = vand.u32 2147483647, %v8045
      %v8302 = vand.u32 2147483647, %v8046
      %v8303 = vand.u32 2147483647, %v8047
      %v8304 = vand.u32 2147483647, %v8048
      %v8305 = vand.u32 2147483647, %v8049
      %v8306 = vand.u32 2147483647, %v8050
      %v8307 = vand.u32 2147483647, %v8051
      %v8308 = vand.u32 2147483647, %v8052
      %v8309 = vand.u32 2147483647, %v8053
      %v8310 = vand.u32 2147483647, %v8054
      %v8311 = vand.u32 2147483647, %v8055
      %v8312 = vand.u32 2147483647, %v8056
      %v8313 = vand.u32 2147483647, %v8057
      %v8314 = vand.u32 2147483647, %v8058
      %v8315 = vand.u32 2147483647, %v8059
      %v8316 = vand.u32 2147483647, %v8060
      %v8317 = vand.u32 2147483647, %v8061
      %v8318 = vand.u32 2147483647, %v8062
      %v8319 = vand.u32 2147483647, %v8063
      %v8320 = vand.u32 2147483647, %v8064
      %v8321 = vand.u32 2147483647, %v8065
      %v8322 = vand.u32 2147483647, %v8066
      %v8323 = vand.u32 2147483647, %v8067
      %v8324 = vand.u32 2147483647, %v8068
      %v8325 = vand.u32 2147483647, %v8069
      %v8326 = vand.u32 2147483647, %v8070
      %v8327 = vand.u32 2147483647, %v8071
      %v8328 = vand.u32 2147483647, %v8072
      %v8329 = vand.u32 2147483647, %v8073
      %v8330 = vand.u32 2147483647, %v8074
      %v8331 = vand.u32 2147483647, %v8075
      %v8332 = vand.u32 2147483647, %v8076
      %v8333 = vand.u32 2147483647, %v8077
      %v8334 = vand.u32 2147483647, %v8078
      %v8335 = vand.u32 2147483647, %v8079
      %v8336 = vand.u32 2147483647, %v8080
      %v8337 = vand.u32 2147483647, %v8081
      %v8338 = vand.u32 2147483647, %v8082
      %v8339 = vand.u32 2147483647, %v8083
      %v8340 = vand.u32 2147483647, %v8084
      %v8341 = vand.u32 2147483647, %v8085
      %v8342 = vand.u32 2147483647, %v8086
      %v8343 = vand.u32 2147483647, %v8087
      %v8344 = vand.u32 2147483647, %v8088
      %v8345 = vand.u32 2147483647, %v8089
      %v8346 = vand.u32 2147483647, %v8090
      %v8347 = vand.u32 2147483647, %v8091
      %v8348 = vand.u32 2147483647, %v8092
      %v8349 = vand.u32 2147483647, %v8093
      %v8350 = vand.u32 2147483647, %v8094
      %v8351 = vand.u32 2147483647, %v8095
      %v8352 = vand.u32 2147483647, %v8096
      %v8353 = vand.u32 2147483647, %v8097
      %v8354 = vand.u32 2147483647, %v8098
      %v8355 = vand.u32 2147483647, %v8099
      %v8356 = vand.u32 2147483647, %v8100
      %v8357 = vand.u32 2147483647, %v8101
      %v8358 = vand.u32 2147483647, %v8102
      %v8359 = vand.u32 2147483647, %v8103
      %v8360 = vand.u32 2147483647, %v8104
      %v8361 = vand.u32 2147483647, %v8105
      %v8362 = vand.u32 2147483647, %v8106
      %v8363 = vand.u32 2147483647, %v8107
      %v8364 = vand.u32 2147483647, %v8108
      %v8365 = vand.u32 2147483647, %v8109
      %v8366 = vsub.f32 0.0, %v8238
      %v8367 = vsub.f32 0.0, %v8239
      %v8368 = vsub.f32 0.0, %v8240
      %v8369 = vsub.f32 0.0, %v8241
      %v8370 = vsub.f32 0.0, %v8242
      %v8371 = vsub.f32 0.0, %v8243
      %v8372 = vsub.f32 0.0, %v8244
      %v8373 = vsub.f32 0.0, %v8245
      %v8374 = vsub.f32 0.0, %v8246
      %v8375 = vsub.f32 0.0, %v8247
      %v8376 = vsub.f32 0.0, %v8248
      %v8377 = vsub.f32 0.0, %v8249
      %v8378 = vsub.f32 0.0, %v8250
      %v8379 = vsub.f32 0.0, %v8251
      %v8380 = vsub.f32 0.0, %v8252
      %v8381 = vsub.f32 0.0, %v8253
      %v8382 = vsub.f32 0.0, %v8254
      %v8383 = vsub.f32 0.0, %v8255
      %v8384 = vsub.f32 0.0, %v8256
      %v8385 = vsub.f32 0.0, %v8257
      %v8386 = vsub.f32 0.0, %v8258
      %v8387 = vsub.f32 0.0, %v8259
      %v8388 = vsub.f32 0.0, %v8260
      %v8389 = vsub.f32 0.0, %v8261
      %v8390 = vsub.f32 0.0, %v8262
      %v8391 = vsub.f32 0.0, %v8263
      %v8392 = vsub.f32 0.0, %v8264
      %v8393 = vsub.f32 0.0, %v8265
      %v8394 = vsub.f32 0.0, %v8266
      %v8395 = vsub.f32 0.0, %v8267
      %v8396 = vsub.f32 0.0, %v8268
      %v8397 = vsub.f32 0.0, %v8269
      %v8398 = vsub.f32 0.0, %v8270
      %v8399 = vsub.f32 0.0, %v8271
      %v8400 = vsub.f32 0.0, %v8272
      %v8401 = vsub.f32 0.0, %v8273
      %v8402 = vsub.f32 0.0, %v8274
      %v8403 = vsub.f32 0.0, %v8275
      %v8404 = vsub.f32 0.0, %v8276
      %v8405 = vsub.f32 0.0, %v8277
      %v8406 = vsub.f32 0.0, %v8278
      %v8407 = vsub.f32 0.0, %v8279
      %v8408 = vsub.f32 0.0, %v8280
      %v8409 = vsub.f32 0.0, %v8281
      %v8410 = vsub.f32 0.0, %v8282
      %v8411 = vsub.f32 0.0, %v8283
      %v8412 = vsub.f32 0.0, %v8284
      %v8413 = vsub.f32 0.0, %v8285
      %v8414 = vsub.f32 0.0, %v8286
      %v8415 = vsub.f32 0.0, %v8287
      %v8416 = vsub.f32 0.0, %v8288
      %v8417 = vsub.f32 0.0, %v8289
      %v8418 = vsub.f32 0.0, %v8290
      %v8419 = vsub.f32 0.0, %v8291
      %v8420 = vsub.f32 0.0, %v8292
      %v8421 = vsub.f32 0.0, %v8293
      %v8422 = vsub.f32 0.0, %v8294
      %v8423 = vsub.f32 0.0, %v8295
      %v8424 = vsub.f32 0.0, %v8296
      %v8425 = vsub.f32 0.0, %v8297
      %v8426 = vsub.f32 0.0, %v8298
      %v8427 = vsub.f32 0.0, %v8299
      %v8428 = vsub.f32 0.0, %v8300
      %v8429 = vsub.f32 0.0, %v8301
      %v8430 = vsub.f32 0.0, %v8302
      %v8431 = vsub.f32 0.0, %v8303
      %v8432 = vsub.f32 0.0, %v8304
      %v8433 = vsub.f32 0.0, %v8305
      %v8434 = vsub.f32 0.0, %v8306
      %v8435 = vsub.f32 0.0, %v8307
      %v8436 = vsub.f32 0.0, %v8308
      %v8437 = vsub.f32 0.0, %v8309
      %v8438 = vsub.f32 0.0, %v8310
      %v8439 = vsub.f32 0.0, %v8311
      %v8440 = vsub.f32 0.0, %v8312
      %v8441 = vsub.f32 0.0, %v8313
      %v8442 = vsub.f32 0.0, %v8314
      %v8443 = vsub.f32 0.0, %v8315
      %v8444 = vsub.f32 0.0, %v8316
      %v8445 = vsub.f32 0.0, %v8317
      %v8446 = vsub.f32 0.0, %v8318
      %v8447 = vsub.f32 0.0, %v8319
      %v8448 = vsub.f32 0.0, %v8320
      %v8449 = vsub.f32 0.0, %v8321
      %v8450 = vsub.f32 0.0, %v8322
      %v8451 = vsub.f32 0.0, %v8323
      %v8452 = vsub.f32 0.0, %v8324
      %v8453 = vsub.f32 0.0, %v8325
      %v8454 = vsub.f32 0.0, %v8326
      %v8455 = vsub.f32 0.0, %v8327
      %v8456 = vsub.f32 0.0, %v8328
      %v8457 = vsub.f32 0.0, %v8329
      %v8458 = vsub.f32 0.0, %v8330
      %v8459 = vsub.f32 0.0, %v8331
      %v8460 = vsub.f32 0.0, %v8332
      %v8461 = vsub.f32 0.0, %v8333
      %v8462 = vsub.f32 0.0, %v8334
      %v8463 = vsub.f32 0.0, %v8335
      %v8464 = vsub.f32 0.0, %v8336
      %v8465 = vsub.f32 0.0, %v8337
      %v8466 = vsub.f32 0.0, %v8338
      %v8467 = vsub.f32 0.0, %v8339
      %v8468 = vsub.f32 0.0, %v8340
      %v8469 = vsub.f32 0.0, %v8341
      %v8470 = vsub.f32 0.0, %v8342
      %v8471 = vsub.f32 0.0, %v8343
      %v8472 = vsub.f32 0.0, %v8344
      %v8473 = vsub.f32 0.0, %v8345
      %v8474 = vsub.f32 0.0, %v8346
      %v8475 = vsub.f32 0.0, %v8347
      %v8476 = vsub.f32 0.0, %v8348
      %v8477 = vsub.f32 0.0, %v8349
      %v8478 = vsub.f32 0.0, %v8350
      %v8479 = vsub.f32 0.0, %v8351
      %v8480 = vsub.f32 0.0, %v8352
      %v8481 = vsub.f32 0.0, %v8353
      %v8482 = vsub.f32 0.0, %v8354
      %v8483 = vsub.f32 0.0, %v8355
      %v8484 = vsub.f32 0.0, %v8356
      %v8485 = vsub.f32 0.0, %v8357
      %v8486 = vsub.f32 0.0, %v8358
      %v8487 = vsub.f32 0.0, %v8359
      %v8488 = vsub.f32 0.0, %v8360
      %v8489 = vsub.f32 0.0, %v8361
      %v8490 = vsub.f32 0.0, %v8362
      %v8491 = vsub.f32 0.0, %v8363
      %v8492 = vsub.f32 0.0, %v8364
      %v8493 = vsub.f32 0.0, %v8365
      %v8494 = vmul.f32 %v8366, 1.442695
      %v8495 = vpow.pop %v8494
      %v8496 = vmul.f32 %v8367, 1.442695
      %v8497 = vpow.pop %v8496
      %v8498 = vmul.f32 %v8368, 1.442695
      %v8499 = vpow.pop %v8498
      %v8500 = vmul.f32 %v8369, 1.442695
      %v8501 = vpow.pop %v8500
      %v8502 = vmul.f32 %v8370, 1.442695
      %v8503 = vpow.pop %v8502
      %v8504 = vmul.f32 %v8371, 1.442695
      %v8505 = vpow.pop %v8504
      %v8506 = vmul.f32 %v8372, 1.442695
      %v8507 = vpow.pop %v8506
      %v8508 = vmul.f32 %v8373, 1.442695
      %v8509 = vpow.pop %v8508
      %v8510 = vmul.f32 %v8374, 1.442695
      %v8511 = vpow.pop %v8510
      %v8512 = vmul.f32 %v8375, 1.442695
      %v8513 = vpow.pop %v8512
      %v8514 = vmul.f32 %v8376, 1.442695
      %v8515 = vpow.pop %v8514
      %v8516 = vmul.f32 %v8377, 1.442695
      %v8517 = vpow.pop %v8516
      %v8518 = vmul.f32 %v8378, 1.442695
      %v8519 = vpow.pop %v8518
      %v8520 = vmul.f32 %v8379, 1.442695
      %v8521 = vpow.pop %v8520
      %v8522 = vmul.f32 %v8380, 1.442695
      %v8523 = vpow.pop %v8522
      %v8524 = vmul.f32 %v8381, 1.442695
      %v8525 = vpow.pop %v8524
      %v8526 = vmul.f32 %v8382, 1.442695
      %v8527 = vpow.pop %v8526
      %v8528 = vmul.f32 %v8383, 1.442695
      %v8529 = vpow.pop %v8528
      %v8530 = vmul.f32 %v8384, 1.442695
      %v8531 = vpow.pop %v8530
      %v8532 = vmul.f32 %v8385, 1.442695
      %v8533 = vpow.pop %v8532
      %v8534 = vmul.f32 %v8386, 1.442695
      %v8535 = vpow.pop %v8534
      %v8536 = vmul.f32 %v8387, 1.442695
      %v8537 = vpow.pop %v8536
      %v8538 = vmul.f32 %v8388, 1.442695
      %v8539 = vpow.pop %v8538
      %v8540 = vmul.f32 %v8389, 1.442695
      %v8541 = vpow.pop %v8540
      %v8542 = vmul.f32 %v8390, 1.442695
      %v8543 = vpow.pop %v8542
      %v8544 = vmul.f32 %v8391, 1.442695
      %v8545 = vpow.pop %v8544
      %v8546 = vmul.f32 %v8392, 1.442695
      %v8547 = vpow.pop %v8546
      %v8548 = vmul.f32 %v8393, 1.442695
      %v8549 = vpow.pop %v8548
      %v8550 = vmul.f32 %v8394, 1.442695
      %v8551 = vpow.pop %v8550
      %v8552 = vmul.f32 %v8395, 1.442695
      %v8553 = vpow.pop %v8552
      %v8554 = vmul.f32 %v8396, 1.442695
      %v8555 = vpow.pop %v8554
      %v8556 = vmul.f32 %v8397, 1.442695
      %v8557 = vpow.pop %v8556
      %v8558 = vmul.f32 %v8398, 1.442695
      %v8559 = vpow.pop %v8558
      %v8560 = vmul.f32 %v8399, 1.442695
      %v8561 = vpow.pop %v8560
      %v8562 = vmul.f32 %v8400, 1.442695
      %v8563 = vpow.pop %v8562
      %v8564 = vmul.f32 %v8401, 1.442695
      %v8565 = vpow.pop %v8564
      %v8566 = vmul.f32 %v8402, 1.442695
      %v8567 = vpow.pop %v8566
      %v8568 = vmul.f32 %v8403, 1.442695
      %v8569 = vpow.pop %v8568
      %v8570 = vmul.f32 %v8404, 1.442695
      %v8571 = vpow.pop %v8570
      %v8572 = vmul.f32 %v8405, 1.442695
      %v8573 = vpow.pop %v8572
      %v8574 = vmul.f32 %v8406, 1.442695
      %v8575 = vpow.pop %v8574
      %v8576 = vmul.f32 %v8407, 1.442695
      %v8577 = vpow.pop %v8576
      %v8578 = vmul.f32 %v8408, 1.442695
      %v8579 = vpow.pop %v8578
      %v8580 = vmul.f32 %v8409, 1.442695
      %v8581 = vpow.pop %v8580
      %v8582 = vmul.f32 %v8410, 1.442695
      %v8583 = vpow.pop %v8582
      %v8584 = vmul.f32 %v8411, 1.442695
      %v8585 = vpow.pop %v8584
      %v8586 = vmul.f32 %v8412, 1.442695
      %v8587 = vpow.pop %v8586
      %v8588 = vmul.f32 %v8413, 1.442695
      %v8589 = vpow.pop %v8588
      %v8590 = vmul.f32 %v8414, 1.442695
      %v8591 = vpow.pop %v8590
      %v8592 = vmul.f32 %v8415, 1.442695
      %v8593 = vpow.pop %v8592
      %v8594 = vmul.f32 %v8416, 1.442695
      %v8595 = vpow.pop %v8594
      %v8596 = vmul.f32 %v8417, 1.442695
      %v8597 = vpow.pop %v8596
      %v8598 = vmul.f32 %v8418, 1.442695
      %v8599 = vpow.pop %v8598
      %v8600 = vmul.f32 %v8419, 1.442695
      %v8601 = vpow.pop %v8600
      %v8602 = vmul.f32 %v8420, 1.442695
      %v8603 = vpow.pop %v8602
      %v8604 = vmul.f32 %v8421, 1.442695
      %v8605 = vpow.pop %v8604
      %v8606 = vmul.f32 %v8422, 1.442695
      %v8607 = vpow.pop %v8606
      %v8608 = vmul.f32 %v8423, 1.442695
      %v8609 = vpow.pop %v8608
      %v8610 = vmul.f32 %v8424, 1.442695
      %v8611 = vpow.pop %v8610
      %v8612 = vmul.f32 %v8425, 1.442695
      %v8613 = vpow.pop %v8612
      %v8614 = vmul.f32 %v8426, 1.442695
      %v8615 = vpow.pop %v8614
      %v8616 = vmul.f32 %v8427, 1.442695
      %v8617 = vpow.pop %v8616
      %v8618 = vmul.f32 %v8428, 1.442695
      %v8619 = vpow.pop %v8618
      %v8620 = vmul.f32 %v8429, 1.442695
      %v8621 = vpow.pop %v8620
      %v8622 = vmul.f32 %v8430, 1.442695
      %v8623 = vpow.pop %v8622
      %v8624 = vmul.f32 %v8431, 1.442695
      %v8625 = vpow.pop %v8624
      %v8626 = vmul.f32 %v8432, 1.442695
      %v8627 = vpow.pop %v8626
      %v8628 = vmul.f32 %v8433, 1.442695
      %v8629 = vpow.pop %v8628
      %v8630 = vmul.f32 %v8434, 1.442695
      %v8631 = vpow.pop %v8630
      %v8632 = vmul.f32 %v8435, 1.442695
      %v8633 = vpow.pop %v8632
      %v8634 = vmul.f32 %v8436, 1.442695
      %v8635 = vpow.pop %v8634
      %v8636 = vmul.f32 %v8437, 1.442695
      %v8637 = vpow.pop %v8636
      %v8638 = vmul.f32 %v8438, 1.442695
      %v8639 = vpow.pop %v8638
      %v8640 = vmul.f32 %v8439, 1.442695
      %v8641 = vpow.pop %v8640
      %v8642 = vmul.f32 %v8440, 1.442695
      %v8643 = vpow.pop %v8642
      %v8644 = vmul.f32 %v8441, 1.442695
      %v8645 = vpow.pop %v8644
      %v8646 = vmul.f32 %v8442, 1.442695
      %v8647 = vpow.pop %v8646
      %v8648 = vmul.f32 %v8443, 1.442695
      %v8649 = vpow.pop %v8648
      %v8650 = vmul.f32 %v8444, 1.442695
      %v8651 = vpow.pop %v8650
      %v8652 = vmul.f32 %v8445, 1.442695
      %v8653 = vpow.pop %v8652
      %v8654 = vmul.f32 %v8446, 1.442695
      %v8655 = vpow.pop %v8654
      %v8656 = vmul.f32 %v8447, 1.442695
      %v8657 = vpow.pop %v8656
      %v8658 = vmul.f32 %v8448, 1.442695
      %v8659 = vpow.pop %v8658
      %v8660 = vmul.f32 %v8449, 1.442695
      %v8661 = vpow.pop %v8660
      %v8662 = vmul.f32 %v8450, 1.442695
      %v8663 = vpow.pop %v8662
      %v8664 = vmul.f32 %v8451, 1.442695
      %v8665 = vpow.pop %v8664
      %v8666 = vmul.f32 %v8452, 1.442695
      %v8667 = vpow.pop %v8666
      %v8668 = vmul.f32 %v8453, 1.442695
      %v8669 = vpow.pop %v8668
      %v8670 = vmul.f32 %v8454, 1.442695
      %v8671 = vpow.pop %v8670
      %v8672 = vmul.f32 %v8455, 1.442695
      %v8673 = vpow.pop %v8672
      %v8674 = vmul.f32 %v8456, 1.442695
      %v8675 = vpow.pop %v8674
      %v8676 = vmul.f32 %v8457, 1.442695
      %v8677 = vpow.pop %v8676
      %v8678 = vmul.f32 %v8458, 1.442695
      %v8679 = vpow.pop %v8678
      %v8680 = vmul.f32 %v8459, 1.442695
      %v8681 = vpow.pop %v8680
      %v8682 = vmul.f32 %v8460, 1.442695
      %v8683 = vpow.pop %v8682
      %v8684 = vmul.f32 %v8461, 1.442695
      %v8685 = vpow.pop %v8684
      %v8686 = vmul.f32 %v8462, 1.442695
      %v8687 = vpow.pop %v8686
      %v8688 = vmul.f32 %v8463, 1.442695
      %v8689 = vpow.pop %v8688
      %v8690 = vmul.f32 %v8464, 1.442695
      %v8691 = vpow.pop %v8690
      %v8692 = vmul.f32 %v8465, 1.442695
      %v8693 = vpow.pop %v8692
      %v8694 = vmul.f32 %v8466, 1.442695
      %v8695 = vpow.pop %v8694
      %v8696 = vmul.f32 %v8467, 1.442695
      %v8697 = vpow.pop %v8696
      %v8698 = vmul.f32 %v8468, 1.442695
      %v8699 = vpow.pop %v8698
      %v8700 = vmul.f32 %v8469, 1.442695
      %v8701 = vpow.pop %v8700
      %v8702 = vmul.f32 %v8470, 1.442695
      %v8703 = vpow.pop %v8702
      %v8704 = vmul.f32 %v8471, 1.442695
      %v8705 = vpow.pop %v8704
      %v8706 = vmul.f32 %v8472, 1.442695
      %v8707 = vpow.pop %v8706
      %v8708 = vmul.f32 %v8473, 1.442695
      %v8709 = vpow.pop %v8708
      %v8710 = vmul.f32 %v8474, 1.442695
      %v8711 = vpow.pop %v8710
      %v8712 = vmul.f32 %v8475, 1.442695
      %v8713 = vpow.pop %v8712
      %v8714 = vmul.f32 %v8476, 1.442695
      %v8715 = vpow.pop %v8714
      %v8716 = vmul.f32 %v8477, 1.442695
      %v8717 = vpow.pop %v8716
      %v8718 = vmul.f32 %v8478, 1.442695
      %v8719 = vpow.pop %v8718
      %v8720 = vmul.f32 %v8479, 1.442695
      %v8721 = vpow.pop %v8720
      %v8722 = vmul.f32 %v8480, 1.442695
      %v8723 = vpow.pop %v8722
      %v8724 = vmul.f32 %v8481, 1.442695
      %v8725 = vpow.pop %v8724
      %v8726 = vmul.f32 %v8482, 1.442695
      %v8727 = vpow.pop %v8726
      %v8728 = vmul.f32 %v8483, 1.442695
      %v8729 = vpow.pop %v8728
      %v8730 = vmul.f32 %v8484, 1.442695
      %v8731 = vpow.pop %v8730
      %v8732 = vmul.f32 %v8485, 1.442695
      %v8733 = vpow.pop %v8732
      %v8734 = vmul.f32 %v8486, 1.442695
      %v8735 = vpow.pop %v8734
      %v8736 = vmul.f32 %v8487, 1.442695
      %v8737 = vpow.pop %v8736
      %v8738 = vmul.f32 %v8488, 1.442695
      %v8739 = vpow.pop %v8738
      %v8740 = vmul.f32 %v8489, 1.442695
      %v8741 = vpow.pop %v8740
      %v8742 = vmul.f32 %v8490, 1.442695
      %v8743 = vpow.pop %v8742
      %v8744 = vmul.f32 %v8491, 1.442695
      %v8745 = vpow.pop %v8744
      %v8746 = vmul.f32 %v8492, 1.442695
      %v8747 = vpow.pop %v8746
      %v8748 = vmul.f32 %v8493, 1.442695
      %v8749 = vpow.pop %v8748
      %v8750 = vadd.f32 %v8495, 1.0
      %v8751 = vadd.f32 %v8497, 1.0
      %v8752 = vadd.f32 %v8499, 1.0
      %v8753 = vadd.f32 %v8501, 1.0
      %v8754 = vadd.f32 %v8503, 1.0
      %v8755 = vadd.f32 %v8505, 1.0
      %v8756 = vadd.f32 %v8507, 1.0
      %v8757 = vadd.f32 %v8509, 1.0
      %v8758 = vadd.f32 %v8511, 1.0
      %v8759 = vadd.f32 %v8513, 1.0
      %v8760 = vadd.f32 %v8515, 1.0
      %v8761 = vadd.f32 %v8517, 1.0
      %v8762 = vadd.f32 %v8519, 1.0
      %v8763 = vadd.f32 %v8521, 1.0
      %v8764 = vadd.f32 %v8523, 1.0
      %v8765 = vadd.f32 %v8525, 1.0
      %v8766 = vadd.f32 %v8527, 1.0
      %v8767 = vadd.f32 %v8529, 1.0
      %v8768 = vadd.f32 %v8531, 1.0
      %v8769 = vadd.f32 %v8533, 1.0
      %v8770 = vadd.f32 %v8535, 1.0
      %v8771 = vadd.f32 %v8537, 1.0
      %v8772 = vadd.f32 %v8539, 1.0
      %v8773 = vadd.f32 %v8541, 1.0
      %v8774 = vadd.f32 %v8543, 1.0
      %v8775 = vadd.f32 %v8545, 1.0
      %v8776 = vadd.f32 %v8547, 1.0
      %v8777 = vadd.f32 %v8549, 1.0
      %v8778 = vadd.f32 %v8551, 1.0
      %v8779 = vadd.f32 %v8553, 1.0
      %v8780 = vadd.f32 %v8555, 1.0
      %v8781 = vadd.f32 %v8557, 1.0
      %v8782 = vadd.f32 %v8559, 1.0
      %v8783 = vadd.f32 %v8561, 1.0
      %v8784 = vadd.f32 %v8563, 1.0
      %v8785 = vadd.f32 %v8565, 1.0
      %v8786 = vadd.f32 %v8567, 1.0
      %v8787 = vadd.f32 %v8569, 1.0
      %v8788 = vadd.f32 %v8571, 1.0
      %v8789 = vadd.f32 %v8573, 1.0
      %v8790 = vadd.f32 %v8575, 1.0
      %v8791 = vadd.f32 %v8577, 1.0
      %v8792 = vadd.f32 %v8579, 1.0
      %v8793 = vadd.f32 %v8581, 1.0
      %v8794 = vadd.f32 %v8583, 1.0
      %v8795 = vadd.f32 %v8585, 1.0
      %v8796 = vadd.f32 %v8587, 1.0
      %v8797 = vadd.f32 %v8589, 1.0
      %v8798 = vadd.f32 %v8591, 1.0
      %v8799 = vadd.f32 %v8593, 1.0
      %v8800 = vadd.f32 %v8595, 1.0
      %v8801 = vadd.f32 %v8597, 1.0
      %v8802 = vadd.f32 %v8599, 1.0
      %v8803 = vadd.f32 %v8601, 1.0
      %v8804 = vadd.f32 %v8603, 1.0
      %v8805 = vadd.f32 %v8605, 1.0
      %v8806 = vadd.f32 %v8607, 1.0
      %v8807 = vadd.f32 %v8609, 1.0
      %v8808 = vadd.f32 %v8611, 1.0
      %v8809 = vadd.f32 %v8613, 1.0
      %v8810 = vadd.f32 %v8615, 1.0
      %v8811 = vadd.f32 %v8617, 1.0
      %v8812 = vadd.f32 %v8619, 1.0
      %v8813 = vadd.f32 %v8621, 1.0
      %v8814 = vadd.f32 %v8623, 1.0
      %v8815 = vadd.f32 %v8625, 1.0
      %v8816 = vadd.f32 %v8627, 1.0
      %v8817 = vadd.f32 %v8629, 1.0
      %v8818 = vadd.f32 %v8631, 1.0
      %v8819 = vadd.f32 %v8633, 1.0
      %v8820 = vadd.f32 %v8635, 1.0
      %v8821 = vadd.f32 %v8637, 1.0
      %v8822 = vadd.f32 %v8639, 1.0
      %v8823 = vadd.f32 %v8641, 1.0
      %v8824 = vadd.f32 %v8643, 1.0
      %v8825 = vadd.f32 %v8645, 1.0
      %v8826 = vadd.f32 %v8647, 1.0
      %v8827 = vadd.f32 %v8649, 1.0
      %v8828 = vadd.f32 %v8651, 1.0
      %v8829 = vadd.f32 %v8653, 1.0
      %v8830 = vadd.f32 %v8655, 1.0
      %v8831 = vadd.f32 %v8657, 1.0
      %v8832 = vadd.f32 %v8659, 1.0
      %v8833 = vadd.f32 %v8661, 1.0
      %v8834 = vadd.f32 %v8663, 1.0
      %v8835 = vadd.f32 %v8665, 1.0
      %v8836 = vadd.f32 %v8667, 1.0
      %v8837 = vadd.f32 %v8669, 1.0
      %v8838 = vadd.f32 %v8671, 1.0
      %v8839 = vadd.f32 %v8673, 1.0
      %v8840 = vadd.f32 %v8675, 1.0
      %v8841 = vadd.f32 %v8677, 1.0
      %v8842 = vadd.f32 %v8679, 1.0
      %v8843 = vadd.f32 %v8681, 1.0
      %v8844 = vadd.f32 %v8683, 1.0
      %v8845 = vadd.f32 %v8685, 1.0
      %v8846 = vadd.f32 %v8687, 1.0
      %v8847 = vadd.f32 %v8689, 1.0
      %v8848 = vadd.f32 %v8691, 1.0
      %v8849 = vadd.f32 %v8693, 1.0
      %v8850 = vadd.f32 %v8695, 1.0
      %v8851 = vadd.f32 %v8697, 1.0
      %v8852 = vadd.f32 %v8699, 1.0
      %v8853 = vadd.f32 %v8701, 1.0
      %v8854 = vadd.f32 %v8703, 1.0
      %v8855 = vadd.f32 %v8705, 1.0
      %v8856 = vadd.f32 %v8707, 1.0
      %v8857 = vadd.f32 %v8709, 1.0
      %v8858 = vadd.f32 %v8711, 1.0
      %v8859 = vadd.f32 %v8713, 1.0
      %v8860 = vadd.f32 %v8715, 1.0
      %v8861 = vadd.f32 %v8717, 1.0
      %v8862 = vadd.f32 %v8719, 1.0
      %v8863 = vadd.f32 %v8721, 1.0
      %v8864 = vadd.f32 %v8723, 1.0
      %v8865 = vadd.f32 %v8725, 1.0
      %v8866 = vadd.f32 %v8727, 1.0
      %v8867 = vadd.f32 %v8729, 1.0
      %v8868 = vadd.f32 %v8731, 1.0
      %v8869 = vadd.f32 %v8733, 1.0
      %v8870 = vadd.f32 %v8735, 1.0
      %v8871 = vadd.f32 %v8737, 1.0
      %v8872 = vadd.f32 %v8739, 1.0
      %v8873 = vadd.f32 %v8741, 1.0
      %v8874 = vadd.f32 %v8743, 1.0
      %v8875 = vadd.f32 %v8745, 1.0
      %v8876 = vadd.f32 %v8747, 1.0
      %v8877 = vadd.f32 %v8749, 1.0
      %v8878 = vlog2.pop %v8750
      %v8879 = vmul.f32 %v8878, 0.6931472
      %v8880 = vlog2.pop %v8751
      %v8881 = vmul.f32 %v8880, 0.6931472
      %v8882 = vlog2.pop %v8752
      %v8883 = vmul.f32 %v8882, 0.6931472
      %v8884 = vlog2.pop %v8753
      %v8885 = vmul.f32 %v8884, 0.6931472
      %v8886 = vlog2.pop %v8754
      %v8887 = vmul.f32 %v8886, 0.6931472
      %v8888 = vlog2.pop %v8755
      %v8889 = vmul.f32 %v8888, 0.6931472
      %v8890 = vlog2.pop %v8756
      %v8891 = vmul.f32 %v8890, 0.6931472
      %v8892 = vlog2.pop %v8757
      %v8893 = vmul.f32 %v8892, 0.6931472
      %v8894 = vlog2.pop %v8758
      %v8895 = vmul.f32 %v8894, 0.6931472
      %v8896 = vlog2.pop %v8759
      %v8897 = vmul.f32 %v8896, 0.6931472
      %v8898 = vlog2.pop %v8760
      %v8899 = vmul.f32 %v8898, 0.6931472
      %v8900 = vlog2.pop %v8761
      %v8901 = vmul.f32 %v8900, 0.6931472
      %v8902 = vlog2.pop %v8762
      %v8903 = vmul.f32 %v8902, 0.6931472
      %v8904 = vlog2.pop %v8763
      %v8905 = vmul.f32 %v8904, 0.6931472
      %v8906 = vlog2.pop %v8764
      %v8907 = vmul.f32 %v8906, 0.6931472
      %v8908 = vlog2.pop %v8765
      %v8909 = vmul.f32 %v8908, 0.6931472
      %v8910 = vlog2.pop %v8766
      %v8911 = vmul.f32 %v8910, 0.6931472
      %v8912 = vlog2.pop %v8767
      %v8913 = vmul.f32 %v8912, 0.6931472
      %v8914 = vlog2.pop %v8768
      %v8915 = vmul.f32 %v8914, 0.6931472
      %v8916 = vlog2.pop %v8769
      %v8917 = vmul.f32 %v8916, 0.6931472
      %v8918 = vlog2.pop %v8770
      %v8919 = vmul.f32 %v8918, 0.6931472
      %v8920 = vlog2.pop %v8771
      %v8921 = vmul.f32 %v8920, 0.6931472
      %v8922 = vlog2.pop %v8772
      %v8923 = vmul.f32 %v8922, 0.6931472
      %v8924 = vlog2.pop %v8773
      %v8925 = vmul.f32 %v8924, 0.6931472
      %v8926 = vlog2.pop %v8774
      %v8927 = vmul.f32 %v8926, 0.6931472
      %v8928 = vlog2.pop %v8775
      %v8929 = vmul.f32 %v8928, 0.6931472
      %v8930 = vlog2.pop %v8776
      %v8931 = vmul.f32 %v8930, 0.6931472
      %v8932 = vlog2.pop %v8777
      %v8933 = vmul.f32 %v8932, 0.6931472
      %v8934 = vlog2.pop %v8778
      %v8935 = vmul.f32 %v8934, 0.6931472
      %v8936 = vlog2.pop %v8779
      %v8937 = vmul.f32 %v8936, 0.6931472
      %v8938 = vlog2.pop %v8780
      %v8939 = vmul.f32 %v8938, 0.6931472
      %v8940 = vlog2.pop %v8781
      %v8941 = vmul.f32 %v8940, 0.6931472
      %v8942 = vlog2.pop %v8782
      %v8943 = vmul.f32 %v8942, 0.6931472
      %v8944 = vlog2.pop %v8783
      %v8945 = vmul.f32 %v8944, 0.6931472
      %v8946 = vlog2.pop %v8784
      %v8947 = vmul.f32 %v8946, 0.6931472
      %v8948 = vlog2.pop %v8785
      %v8949 = vmul.f32 %v8948, 0.6931472
      %v8950 = vlog2.pop %v8786
      %v8951 = vmul.f32 %v8950, 0.6931472
      %v8952 = vlog2.pop %v8787
      %v8953 = vmul.f32 %v8952, 0.6931472
      %v8954 = vlog2.pop %v8788
      %v8955 = vmul.f32 %v8954, 0.6931472
      %v8956 = vlog2.pop %v8789
      %v8957 = vmul.f32 %v8956, 0.6931472
      %v8958 = vlog2.pop %v8790
      %v8959 = vmul.f32 %v8958, 0.6931472
      %v8960 = vlog2.pop %v8791
      %v8961 = vmul.f32 %v8960, 0.6931472
      %v8962 = vlog2.pop %v8792
      %v8963 = vmul.f32 %v8962, 0.6931472
      %v8964 = vlog2.pop %v8793
      %v8965 = vmul.f32 %v8964, 0.6931472
      %v8966 = vlog2.pop %v8794
      %v8967 = vmul.f32 %v8966, 0.6931472
      %v8968 = vlog2.pop %v8795
      %v8969 = vmul.f32 %v8968, 0.6931472
      %v8970 = vlog2.pop %v8796
      %v8971 = vmul.f32 %v8970, 0.6931472
      %v8972 = vlog2.pop %v8797
      %v8973 = vmul.f32 %v8972, 0.6931472
      %v8974 = vlog2.pop %v8798
      %v8975 = vmul.f32 %v8974, 0.6931472
      %v8976 = vlog2.pop %v8799
      %v8977 = vmul.f32 %v8976, 0.6931472
      %v8978 = vlog2.pop %v8800
      %v8979 = vmul.f32 %v8978, 0.6931472
      %v8980 = vlog2.pop %v8801
      %v8981 = vmul.f32 %v8980, 0.6931472
      %v8982 = vlog2.pop %v8802
      %v8983 = vmul.f32 %v8982, 0.6931472
      %v8984 = vlog2.pop %v8803
      %v8985 = vmul.f32 %v8984, 0.6931472
      %v8986 = vlog2.pop %v8804
      %v8987 = vmul.f32 %v8986, 0.6931472
      %v8988 = vlog2.pop %v8805
      %v8989 = vmul.f32 %v8988, 0.6931472
      %v8990 = vlog2.pop %v8806
      %v8991 = vmul.f32 %v8990, 0.6931472
      %v8992 = vlog2.pop %v8807
      %v8993 = vmul.f32 %v8992, 0.6931472
      %v8994 = vlog2.pop %v8808
      %v8995 = vmul.f32 %v8994, 0.6931472
      %v8996 = vlog2.pop %v8809
      %v8997 = vmul.f32 %v8996, 0.6931472
      %v8998 = vlog2.pop %v8810
      %v8999 = vmul.f32 %v8998, 0.6931472
      %v9000 = vlog2.pop %v8811
      %v9001 = vmul.f32 %v9000, 0.6931472
      %v9002 = vlog2.pop %v8812
      %v9003 = vmul.f32 %v9002, 0.6931472
      %v9004 = vlog2.pop %v8813
      %v9005 = vmul.f32 %v9004, 0.6931472
      %v9006 = vlog2.pop %v8814
      %v9007 = vmul.f32 %v9006, 0.6931472
      %v9008 = vlog2.pop %v8815
      %v9009 = vmul.f32 %v9008, 0.6931472
      %v9010 = vlog2.pop %v8816
      %v9011 = vmul.f32 %v9010, 0.6931472
      %v9012 = vlog2.pop %v8817
      %v9013 = vmul.f32 %v9012, 0.6931472
      %v9014 = vlog2.pop %v8818
      %v9015 = vmul.f32 %v9014, 0.6931472
      %v9016 = vlog2.pop %v8819
      %v9017 = vmul.f32 %v9016, 0.6931472
      %v9018 = vlog2.pop %v8820
      %v9019 = vmul.f32 %v9018, 0.6931472
      %v9020 = vlog2.pop %v8821
      %v9021 = vmul.f32 %v9020, 0.6931472
      %v9022 = vlog2.pop %v8822
      %v9023 = vmul.f32 %v9022, 0.6931472
      %v9024 = vlog2.pop %v8823
      %v9025 = vmul.f32 %v9024, 0.6931472
      %v9026 = vlog2.pop %v8824
      %v9027 = vmul.f32 %v9026, 0.6931472
      %v9028 = vlog2.pop %v8825
      %v9029 = vmul.f32 %v9028, 0.6931472
      %v9030 = vlog2.pop %v8826
      %v9031 = vmul.f32 %v9030, 0.6931472
      %v9032 = vlog2.pop %v8827
      %v9033 = vmul.f32 %v9032, 0.6931472
      %v9034 = vlog2.pop %v8828
      %v9035 = vmul.f32 %v9034, 0.6931472
      %v9036 = vlog2.pop %v8829
      %v9037 = vmul.f32 %v9036, 0.6931472
      %v9038 = vlog2.pop %v8830
      %v9039 = vmul.f32 %v9038, 0.6931472
      %v9040 = vlog2.pop %v8831
      %v9041 = vmul.f32 %v9040, 0.6931472
      %v9042 = vlog2.pop %v8832
      %v9043 = vmul.f32 %v9042, 0.6931472
      %v9044 = vlog2.pop %v8833
      %v9045 = vmul.f32 %v9044, 0.6931472
      %v9046 = vlog2.pop %v8834
      %v9047 = vmul.f32 %v9046, 0.6931472
      %v9048 = vlog2.pop %v8835
      %v9049 = vmul.f32 %v9048, 0.6931472
      %v9050 = vlog2.pop %v8836
      %v9051 = vmul.f32 %v9050, 0.6931472
      %v9052 = vlog2.pop %v8837
      %v9053 = vmul.f32 %v9052, 0.6931472
      %v9054 = vlog2.pop %v8838
      %v9055 = vmul.f32 %v9054, 0.6931472
      %v9056 = vlog2.pop %v8839
      %v9057 = vmul.f32 %v9056, 0.6931472
      %v9058 = vlog2.pop %v8840
      %v9059 = vmul.f32 %v9058, 0.6931472
      %v9060 = vlog2.pop %v8841
      %v9061 = vmul.f32 %v9060, 0.6931472
      %v9062 = vlog2.pop %v8842
      %v9063 = vmul.f32 %v9062, 0.6931472
      %v9064 = vlog2.pop %v8843
      %v9065 = vmul.f32 %v9064, 0.6931472
      %v9066 = vlog2.pop %v8844
      %v9067 = vmul.f32 %v9066, 0.6931472
      %v9068 = vlog2.pop %v8845
      %v9069 = vmul.f32 %v9068, 0.6931472
      %v9070 = vlog2.pop %v8846
      %v9071 = vmul.f32 %v9070, 0.6931472
      %v9072 = vlog2.pop %v8847
      %v9073 = vmul.f32 %v9072, 0.6931472
      %v9074 = vlog2.pop %v8848
      %v9075 = vmul.f32 %v9074, 0.6931472
      %v9076 = vlog2.pop %v8849
      %v9077 = vmul.f32 %v9076, 0.6931472
      %v9078 = vlog2.pop %v8850
      %v9079 = vmul.f32 %v9078, 0.6931472
      %v9080 = vlog2.pop %v8851
      %v9081 = vmul.f32 %v9080, 0.6931472
      %v9082 = vlog2.pop %v8852
      %v9083 = vmul.f32 %v9082, 0.6931472
      %v9084 = vlog2.pop %v8853
      %v9085 = vmul.f32 %v9084, 0.6931472
      %v9086 = vlog2.pop %v8854
      %v9087 = vmul.f32 %v9086, 0.6931472
      %v9088 = vlog2.pop %v8855
      %v9089 = vmul.f32 %v9088, 0.6931472
      %v9090 = vlog2.pop %v8856
      %v9091 = vmul.f32 %v9090, 0.6931472
      %v9092 = vlog2.pop %v8857
      %v9093 = vmul.f32 %v9092, 0.6931472
      %v9094 = vlog2.pop %v8858
      %v9095 = vmul.f32 %v9094, 0.6931472
      %v9096 = vlog2.pop %v8859
      %v9097 = vmul.f32 %v9096, 0.6931472
      %v9098 = vlog2.pop %v8860
      %v9099 = vmul.f32 %v9098, 0.6931472
      %v9100 = vlog2.pop %v8861
      %v9101 = vmul.f32 %v9100, 0.6931472
      %v9102 = vlog2.pop %v8862
      %v9103 = vmul.f32 %v9102, 0.6931472
      %v9104 = vlog2.pop %v8863
      %v9105 = vmul.f32 %v9104, 0.6931472
      %v9106 = vlog2.pop %v8864
      %v9107 = vmul.f32 %v9106, 0.6931472
      %v9108 = vlog2.pop %v8865
      %v9109 = vmul.f32 %v9108, 0.6931472
      %v9110 = vlog2.pop %v8866
      %v9111 = vmul.f32 %v9110, 0.6931472
      %v9112 = vlog2.pop %v8867
      %v9113 = vmul.f32 %v9112, 0.6931472
      %v9114 = vlog2.pop %v8868
      %v9115 = vmul.f32 %v9114, 0.6931472
      %v9116 = vlog2.pop %v8869
      %v9117 = vmul.f32 %v9116, 0.6931472
      %v9118 = vlog2.pop %v8870
      %v9119 = vmul.f32 %v9118, 0.6931472
      %v9120 = vlog2.pop %v8871
      %v9121 = vmul.f32 %v9120, 0.6931472
      %v9122 = vlog2.pop %v8872
      %v9123 = vmul.f32 %v9122, 0.6931472
      %v9124 = vlog2.pop %v8873
      %v9125 = vmul.f32 %v9124, 0.6931472
      %v9126 = vlog2.pop %v8874
      %v9127 = vmul.f32 %v9126, 0.6931472
      %v9128 = vlog2.pop %v8875
      %v9129 = vmul.f32 %v9128, 0.6931472
      %v9130 = vlog2.pop %v8876
      %v9131 = vmul.f32 %v9130, 0.6931472
      %v9132 = vlog2.pop %v8877
      %v9133 = vmul.f32 %v9132, 0.6931472
      %v9134 = vadd.f32 %v8110, %v8879
      %v9135 = vadd.f32 %v8111, %v8881
      %v9136 = vadd.f32 %v8112, %v8883
      %v9137 = vadd.f32 %v8113, %v8885
      %v9138 = vadd.f32 %v8114, %v8887
      %v9139 = vadd.f32 %v8115, %v8889
      %v9140 = vadd.f32 %v8116, %v8891
      %v9141 = vadd.f32 %v8117, %v8893
      %v9142 = vadd.f32 %v8118, %v8895
      %v9143 = vadd.f32 %v8119, %v8897
      %v9144 = vadd.f32 %v8120, %v8899
      %v9145 = vadd.f32 %v8121, %v8901
      %v9146 = vadd.f32 %v8122, %v8903
      %v9147 = vadd.f32 %v8123, %v8905
      %v9148 = vadd.f32 %v8124, %v8907
      %v9149 = vadd.f32 %v8125, %v8909
      %v9150 = vadd.f32 %v8126, %v8911
      %v9151 = vadd.f32 %v8127, %v8913
      %v9152 = vadd.f32 %v8128, %v8915
      %v9153 = vadd.f32 %v8129, %v8917
      %v9154 = vadd.f32 %v8130, %v8919
      %v9155 = vadd.f32 %v8131, %v8921
      %v9156 = vadd.f32 %v8132, %v8923
      %v9157 = vadd.f32 %v8133, %v8925
      %v9158 = vadd.f32 %v8134, %v8927
      %v9159 = vadd.f32 %v8135, %v8929
      %v9160 = vadd.f32 %v8136, %v8931
      %v9161 = vadd.f32 %v8137, %v8933
      %v9162 = vadd.f32 %v8138, %v8935
      %v9163 = vadd.f32 %v8139, %v8937
      %v9164 = vadd.f32 %v8140, %v8939
      %v9165 = vadd.f32 %v8141, %v8941
      %v9166 = vadd.f32 %v8142, %v8943
      %v9167 = vadd.f32 %v8143, %v8945
      %v9168 = vadd.f32 %v8144, %v8947
      %v9169 = vadd.f32 %v8145, %v8949
      %v9170 = vadd.f32 %v8146, %v8951
      %v9171 = vadd.f32 %v8147, %v8953
      %v9172 = vadd.f32 %v8148, %v8955
      %v9173 = vadd.f32 %v8149, %v8957
      %v9174 = vadd.f32 %v8150, %v8959
      %v9175 = vadd.f32 %v8151, %v8961
      %v9176 = vadd.f32 %v8152, %v8963
      %v9177 = vadd.f32 %v8153, %v8965
      %v9178 = vadd.f32 %v8154, %v8967
      %v9179 = vadd.f32 %v8155, %v8969
      %v9180 = vadd.f32 %v8156, %v8971
      %v9181 = vadd.f32 %v8157, %v8973
      %v9182 = vadd.f32 %v8158, %v8975
      %v9183 = vadd.f32 %v8159, %v8977
      %v9184 = vadd.f32 %v8160, %v8979
      %v9185 = vadd.f32 %v8161, %v8981
      %v9186 = vadd.f32 %v8162, %v8983
      %v9187 = vadd.f32 %v8163, %v8985
      %v9188 = vadd.f32 %v8164, %v8987
      %v9189 = vadd.f32 %v8165, %v8989
      %v9190 = vadd.f32 %v8166, %v8991
      %v9191 = vadd.f32 %v8167, %v8993
      %v9192 = vadd.f32 %v8168, %v8995
      %v9193 = vadd.f32 %v8169, %v8997
      %v9194 = vadd.f32 %v8170, %v8999
      %v9195 = vadd.f32 %v8171, %v9001
      %v9196 = vadd.f32 %v8172, %v9003
      %v9197 = vadd.f32 %v8173, %v9005
      %v9198 = vadd.f32 %v8174, %v9007
      %v9199 = vadd.f32 %v8175, %v9009
      %v9200 = vadd.f32 %v8176, %v9011
      %v9201 = vadd.f32 %v8177, %v9013
      %v9202 = vadd.f32 %v8178, %v9015
      %v9203 = vadd.f32 %v8179, %v9017
      %v9204 = vadd.f32 %v8180, %v9019
      %v9205 = vadd.f32 %v8181, %v9021
      %v9206 = vadd.f32 %v8182, %v9023
      %v9207 = vadd.f32 %v8183, %v9025
      %v9208 = vadd.f32 %v8184, %v9027
      %v9209 = vadd.f32 %v8185, %v9029
      %v9210 = vadd.f32 %v8186, %v9031
      %v9211 = vadd.f32 %v8187, %v9033
      %v9212 = vadd.f32 %v8188, %v9035
      %v9213 = vadd.f32 %v8189, %v9037
      %v9214 = vadd.f32 %v8190, %v9039
      %v9215 = vadd.f32 %v8191, %v9041
      %v9216 = vadd.f32 %v8192, %v9043
      %v9217 = vadd.f32 %v8193, %v9045
      %v9218 = vadd.f32 %v8194, %v9047
      %v9219 = vadd.f32 %v8195, %v9049
      %v9220 = vadd.f32 %v8196, %v9051
      %v9221 = vadd.f32 %v8197, %v9053
      %v9222 = vadd.f32 %v8198, %v9055
      %v9223 = vadd.f32 %v8199, %v9057
      %v9224 = vadd.f32 %v8200, %v9059
      %v9225 = vadd.f32 %v8201, %v9061
      %v9226 = vadd.f32 %v8202, %v9063
      %v9227 = vadd.f32 %v8203, %v9065
      %v9228 = vadd.f32 %v8204, %v9067
      %v9229 = vadd.f32 %v8205, %v9069
      %v9230 = vadd.f32 %v8206, %v9071
      %v9231 = vadd.f32 %v8207, %v9073
      %v9232 = vadd.f32 %v8208, %v9075
      %v9233 = vadd.f32 %v8209, %v9077
      %v9234 = vadd.f32 %v8210, %v9079
      %v9235 = vadd.f32 %v8211, %v9081
      %v9236 = vadd.f32 %v8212, %v9083
      %v9237 = vadd.f32 %v8213, %v9085
      %v9238 = vadd.f32 %v8214, %v9087
      %v9239 = vadd.f32 %v8215, %v9089
      %v9240 = vadd.f32 %v8216, %v9091
      %v9241 = vadd.f32 %v8217, %v9093
      %v9242 = vadd.f32 %v8218, %v9095
      %v9243 = vadd.f32 %v8219, %v9097
      %v9244 = vadd.f32 %v8220, %v9099
      %v9245 = vadd.f32 %v8221, %v9101
      %v9246 = vadd.f32 %v8222, %v9103
      %v9247 = vadd.f32 %v8223, %v9105
      %v9248 = vadd.f32 %v8224, %v9107
      %v9249 = vadd.f32 %v8225, %v9109
      %v9250 = vadd.f32 %v8226, %v9111
      %v9251 = vadd.f32 %v8227, %v9113
      %v9252 = vadd.f32 %v8228, %v9115
      %v9253 = vadd.f32 %v8229, %v9117
      %v9254 = vadd.f32 %v8230, %v9119
      %v9255 = vadd.f32 %v8231, %v9121
      %v9256 = vadd.f32 %v8232, %v9123
      %v9257 = vadd.f32 %v8233, %v9125
      %v9258 = vadd.f32 %v8234, %v9127
      %v9259 = vadd.f32 %v8235, %v9129
      %v9260 = vadd.f32 %v8236, %v9131
      %v9261 = vadd.f32 %v8237, %v9133
      %v9262 = vmul.f32 %v9134, 0.01
      %v9263 = vmul.f32 %v9135, 0.01
      %v9264 = vmul.f32 %v9136, 0.01
      %v9265 = vmul.f32 %v9137, 0.01
      %v9266 = vmul.f32 %v9138, 0.01
      %v9267 = vmul.f32 %v9139, 0.01
      %v9268 = vmul.f32 %v9140, 0.01
      %v9269 = vmul.f32 %v9141, 0.01
      %v9270 = vmul.f32 %v9142, 0.01
      %v9271 = vmul.f32 %v9143, 0.01
      %v9272 = vmul.f32 %v9144, 0.01
      %v9273 = vmul.f32 %v9145, 0.01
      %v9274 = vmul.f32 %v9146, 0.01
      %v9275 = vmul.f32 %v9147, 0.01
      %v9276 = vmul.f32 %v9148, 0.01
      %v9277 = vmul.f32 %v9149, 0.01
      %v9278 = vmul.f32 %v9150, 0.01
      %v9279 = vmul.f32 %v9151, 0.01
      %v9280 = vmul.f32 %v9152, 0.01
      %v9281 = vmul.f32 %v9153, 0.01
      %v9282 = vmul.f32 %v9154, 0.01
      %v9283 = vmul.f32 %v9155, 0.01
      %v9284 = vmul.f32 %v9156, 0.01
      %v9285 = vmul.f32 %v9157, 0.01
      %v9286 = vmul.f32 %v9158, 0.01
      %v9287 = vmul.f32 %v9159, 0.01
      %v9288 = vmul.f32 %v9160, 0.01
      %v9289 = vmul.f32 %v9161, 0.01
      %v9290 = vmul.f32 %v9162, 0.01
      %v9291 = vmul.f32 %v9163, 0.01
      %v9292 = vmul.f32 %v9164, 0.01
      %v9293 = vmul.f32 %v9165, 0.01
      %v9294 = vmul.f32 %v9166, 0.01
      %v9295 = vmul.f32 %v9167, 0.01
      %v9296 = vmul.f32 %v9168, 0.01
      %v9297 = vmul.f32 %v9169, 0.01
      %v9298 = vmul.f32 %v9170, 0.01
      %v9299 = vmul.f32 %v9171, 0.01
      %v9300 = vmul.f32 %v9172, 0.01
      %v9301 = vmul.f32 %v9173, 0.01
      %v9302 = vmul.f32 %v9174, 0.01
      %v9303 = vmul.f32 %v9175, 0.01
      %v9304 = vmul.f32 %v9176, 0.01
      %v9305 = vmul.f32 %v9177, 0.01
      %v9306 = vmul.f32 %v9178, 0.01
      %v9307 = vmul.f32 %v9179, 0.01
      %v9308 = vmul.f32 %v9180, 0.01
      %v9309 = vmul.f32 %v9181, 0.01
      %v9310 = vmul.f32 %v9182, 0.01
      %v9311 = vmul.f32 %v9183, 0.01
      %v9312 = vmul.f32 %v9184, 0.01
      %v9313 = vmul.f32 %v9185, 0.01
      %v9314 = vmul.f32 %v9186, 0.01
      %v9315 = vmul.f32 %v9187, 0.01
      %v9316 = vmul.f32 %v9188, 0.01
      %v9317 = vmul.f32 %v9189, 0.01
      %v9318 = vmul.f32 %v9190, 0.01
      %v9319 = vmul.f32 %v9191, 0.01
      %v9320 = vmul.f32 %v9192, 0.01
      %v9321 = vmul.f32 %v9193, 0.01
      %v9322 = vmul.f32 %v9194, 0.01
      %v9323 = vmul.f32 %v9195, 0.01
      %v9324 = vmul.f32 %v9196, 0.01
      %v9325 = vmul.f32 %v9197, 0.01
      %v9326 = vmul.f32 %v9198, 0.01
      %v9327 = vmul.f32 %v9199, 0.01
      %v9328 = vmul.f32 %v9200, 0.01
      %v9329 = vmul.f32 %v9201, 0.01
      %v9330 = vmul.f32 %v9202, 0.01
      %v9331 = vmul.f32 %v9203, 0.01
      %v9332 = vmul.f32 %v9204, 0.01
      %v9333 = vmul.f32 %v9205, 0.01
      %v9334 = vmul.f32 %v9206, 0.01
      %v9335 = vmul.f32 %v9207, 0.01
      %v9336 = vmul.f32 %v9208, 0.01
      %v9337 = vmul.f32 %v9209, 0.01
      %v9338 = vmul.f32 %v9210, 0.01
      %v9339 = vmul.f32 %v9211, 0.01
      %v9340 = vmul.f32 %v9212, 0.01
      %v9341 = vmul.f32 %v9213, 0.01
      %v9342 = vmul.f32 %v9214, 0.01
      %v9343 = vmul.f32 %v9215, 0.01
      %v9344 = vmul.f32 %v9216, 0.01
      %v9345 = vmul.f32 %v9217, 0.01
      %v9346 = vmul.f32 %v9218, 0.01
      %v9347 = vmul.f32 %v9219, 0.01
      %v9348 = vmul.f32 %v9220, 0.01
      %v9349 = vmul.f32 %v9221, 0.01
      %v9350 = vmul.f32 %v9222, 0.01
      %v9351 = vmul.f32 %v9223, 0.01
      %v9352 = vmul.f32 %v9224, 0.01
      %v9353 = vmul.f32 %v9225, 0.01
      %v9354 = vmul.f32 %v9226, 0.01
      %v9355 = vmul.f32 %v9227, 0.01
      %v9356 = vmul.f32 %v9228, 0.01
      %v9357 = vmul.f32 %v9229, 0.01
      %v9358 = vmul.f32 %v9230, 0.01
      %v9359 = vmul.f32 %v9231, 0.01
      %v9360 = vmul.f32 %v9232, 0.01
      %v9361 = vmul.f32 %v9233, 0.01
      %v9362 = vmul.f32 %v9234, 0.01
      %v9363 = vmul.f32 %v9235, 0.01
      %v9364 = vmul.f32 %v9236, 0.01
      %v9365 = vmul.f32 %v9237, 0.01
      %v9366 = vmul.f32 %v9238, 0.01
      %v9367 = vmul.f32 %v9239, 0.01
      %v9368 = vmul.f32 %v9240, 0.01
      %v9369 = vmul.f32 %v9241, 0.01
      %v9370 = vmul.f32 %v9242, 0.01
      %v9371 = vmul.f32 %v9243, 0.01
      %v9372 = vmul.f32 %v9244, 0.01
      %v9373 = vmul.f32 %v9245, 0.01
      %v9374 = vmul.f32 %v9246, 0.01
      %v9375 = vmul.f32 %v9247, 0.01
      %v9376 = vmul.f32 %v9248, 0.01
      %v9377 = vmul.f32 %v9249, 0.01
      %v9378 = vmul.f32 %v9250, 0.01
      %v9379 = vmul.f32 %v9251, 0.01
      %v9380 = vmul.f32 %v9252, 0.01
      %v9381 = vmul.f32 %v9253, 0.01
      %v9382 = vmul.f32 %v9254, 0.01
      %v9383 = vmul.f32 %v9255, 0.01
      %v9384 = vmul.f32 %v9256, 0.01
      %v9385 = vmul.f32 %v9257, 0.01
      %v9386 = vmul.f32 %v9258, 0.01
      %v9387 = vmul.f32 %v9259, 0.01
      %v9388 = vmul.f32 %v9260, 0.01
      %v9389 = vmul.f32 %v9261, 0.01
      %s9390 = scalar_lea.vmem %s2, 256
      %v9391 = vld [vmem:[%s9390] sm:$0xff]
      %v9392 = vld [vmem:[%s9390 + $0x8] sm:$0xff]
      %v9393 = vld [vmem:[%s9390 + $0x10] sm:$0xff]
      %v9394 = vld [vmem:[%s9390 + $0x18] sm:$0xff]
      %v9395 = vld [vmem:[%s9390 + $0x20] sm:$0xff]
      %v9396 = vld [vmem:[%s9390 + $0x28] sm:$0xff]
      %v9397 = vld [vmem:[%s9390 + $0x30] sm:$0xff]
      %v9398 = vld [vmem:[%s9390 + $0x38] sm:$0xff]
      %v9399 = vld [vmem:[%s9390 + $0x40] sm:$0xff]
      %v9400 = vld [vmem:[%s9390 + $0x48] sm:$0xff]
      %v9401 = vld [vmem:[%s9390 + $0x50] sm:$0xff]
      %v9402 = vld [vmem:[%s9390 + $0x58] sm:$0xff]
      %v9403 = vld [vmem:[%s9390 + $0x60] sm:$0xff]
      %v9404 = vld [vmem:[%s9390 + $0x68] sm:$0xff]
      %v9405 = vld [vmem:[%s9390 + $0x70] sm:$0xff]
      %v9406 = vld [vmem:[%s9390 + $0x78] sm:$0xff]
      %v9407 = vlaneseq
      %v9408 = vshrl.u32 %v9407, 7
      %v9409 = vsub.s32 3, %v9408
      %v9410 = vrot.slane %v356, %v9409
      %9411 = vmatprep.subr.mxu0 0.0
      %9412 = vmatpush1.msra.mxu0 %v9391
      %9413 = vmatprep.subr.mxu0 0.0
      %9414 = vmatpush1.msra.mxu0 %v9392
      %9415 = vmatprep.subr.mxu0 0.0
      %9416 = vmatpush1.msra.mxu0 %v9393
      %9417 = vmatprep.subr.mxu0 0.0
      %9418 = vmatpush1.msra.mxu0 %v9394
      %9419 = vmatprep.subr.mxu0 0.0
      %9420 = vmatpush1.msra.mxu0 %v9395
      %9421 = vmatprep.subr.mxu0 0.0
      %9422 = vmatpush1.msra.mxu0 %v9396
      %9423 = vmatprep.subr.mxu0 0.0
      %9424 = vmatpush1.msra.mxu0 %v9397
      %9425 = vmatprep.subr.mxu0 0.0
      %9426 = vmatpush1.msra.mxu0 %v9398
      %9427 = vmatprep.subr.mxu0 0.0
      %9428 = vmatpush1.msra.mxu0 %v9399
      %9429 = vmatprep.subr.mxu0 0.0
      %9430 = vmatpush1.msra.mxu0 %v9400
      %9431 = vmatprep.subr.mxu0 0.0
      %9432 = vmatpush1.msra.mxu0 %v9401
      %9433 = vmatprep.subr.mxu0 0.0
      %9434 = vmatpush1.msra.mxu0 %v9402
      %9435 = vmatprep.subr.mxu0 0.0
      %9436 = vmatpush1.msra.mxu0 %v9403
      %9437 = vmatprep.subr.mxu0 0.0
      %9438 = vmatpush1.msra.mxu0 %v9404
      %9439 = vmatprep.subr.mxu0 0.0
      %9440 = vmatpush1.msra.mxu0 %v9405
      %9441 = vmatprep.subr.mxu0 0.0
      %9442 = vmatpush1.msra.mxu0 %v9406
      %9443 = vmatprep.subr.mxu0 0.0
      %9444 = vmatpush1.msra.mxu0 0.0
      %9445 = vmatprep.subr.mxu0 0.0
      %9446 = vmatpush1.msra.mxu0 0.0
      %9447 = vmatprep.subr.mxu0 0.0
      %9448 = vmatpush1.msra.mxu0 0.0
      %9449 = vmatprep.subr.mxu0 0.0
      %9450 = vmatpush1.msra.mxu0 0.0
      %9451 = vmatprep.subr.mxu0 0.0
      %9452 = vmatpush1.msra.mxu0 0.0
      %9453 = vmatprep.subr.mxu0 0.0
      %9454 = vmatpush1.msra.mxu0 0.0
      %9455 = vmatprep.subr.mxu0 0.0
      %9456 = vmatpush1.msra.mxu0 0.0
      %9457 = vmatprep.subr.mxu0 0.0
      %9458 = vmatpush1.msra.mxu0 0.0
      %9459 = vmatprep.subr.mxu0 0.0
      %9460 = vmatpush1.msra.mxu0 0.0
      %9461 = vmatprep.subr.mxu0 0.0
      %9462 = vmatpush1.msra.mxu0 0.0
      %9463 = vmatprep.subr.mxu0 0.0
      %9464 = vmatpush1.msra.mxu0 0.0
      %9465 = vmatprep.subr.mxu0 0.0
      %9466 = vmatpush1.msra.mxu0 0.0
      %9467 = vmatprep.subr.mxu0 0.0
      %9468 = vmatpush1.msra.mxu0 0.0
      %9469 = vmatprep.subr.mxu0 0.0
      %9470 = vmatpush1.msra.mxu0 0.0
      %9471 = vmatprep.subr.mxu0 0.0
      %9472 = vmatpush1.msra.mxu0 0.0
      %9473 = vmatprep.subr.mxu0 0.0
      %9474 = vmatpush1.msra.mxu0 0.0
      %9475 = vmatprep.mubr.f32.mxu0 0.0
      %9476 = vmatmul.mubr.f32.gmra.mrb[0].mxu0 %v9262
      %v9477 = vpop.f32.mrb[0].mxu0
      %v9478 = vadd.f32 %v9410, %v9477
      %v9479 = vpop.f32.mrb[0].mxu0
      %9480 = vmatprep.mubr.f32.mxu0 0.0
      %9481 = vmatmul.mubr.f32.gmra.mrb[0].mxu0 %v9263
      %v9482 = vpop.f32.mrb[0].mxu0
      %v9483 = vadd.f32 %v9410, %v9482
      %v9484 = vpop.f32.mrb[0].mxu0
      %9485 = vmatprep.mubr.f32.mxu0 0.0
      %9486 = vmatmul.mubr.f32.gmra.mrb[0].mxu0 %v9264
      %v9487 = vpop.f32.mrb[0].mxu0
      %v9488 = vadd.f32 %v9410, %v9487
      %v9489 = vpop.f32.mrb[0].mxu0
      %9490 = vmatprep.mubr.f32.mxu0 0.0
      %9491 = vmatmul.mubr.f32.gmra.mrb[0].mxu0 %v9265
      %v9492 = vpop.f32.mrb[0].mxu0
      %v9493 = vadd.f32 %v9410, %v9492
      %v9494 = vpop.f32.mrb[0].mxu0
      %9495 = vmatprep.mubr.f32.mxu0 0.0
      %9496 = vmatmul.mubr.f32.gmra.mrb[0].mxu0 %v9266
      %v9497 = vpop.f32.mrb[0].mxu0
      %v9498 = vadd.f32 %v9410, %v9497
      %v9499 = vpop.f32.mrb[0].mxu0
      %9500 = vmatprep.mubr.f32.mxu0 0.0
      %9501 = vmatmul.mubr.f32.gmra.mrb[0].mxu0 %v9267
      %v9502 = vpop.f32.mrb[0].mxu0
      %v9503 = vadd.f32 %v9410, %v9502
      %v9504 = vpop.f32.mrb[0].mxu0
      %9505 = vmatprep.mubr.f32.mxu0 0.0
      %9506 = vmatmul.mubr.f32.gmra.mrb[0].mxu0 %v9268
      %v9507 = vpop.f32.mrb[0].mxu0
      %v9508 = vadd.f32 %v9410, %v9507
      %v9509 = vpop.f32.mrb[0].mxu0
      %9510 = vmatprep.mubr.f32.mxu0 0.0
      %9511 = vmatmul.mubr.f32.gmra.mrb[0].mxu0 %v9269
      %v9512 = vpop.f32.mrb[0].mxu0
      %v9513 = vadd.f32 %v9410, %v9512
      %v9514 = vpop.f32.mrb[0].mxu0
      %9515 = vmatprep.mubr.f32.mxu0 0.0
      %9516 = vmatmul.mubr.f32.gmra.mrb[0].mxu0 %v9270
      %v9517 = vpop.f32.mrb[0].mxu0
      %v9518 = vadd.f32 %v9410, %v9517
      %v9519 = vpop.f32.mrb[0].mxu0
      %9520 = vmatprep.mubr.f32.mxu0 0.0
      %9521 = vmatmul.mubr.f32.gmra.mrb[0].mxu0 %v9271
      %v9522 = vpop.f32.mrb[0].mxu0
      %v9523 = vadd.f32 %v9410, %v9522
      %v9524 = vpop.f32.mrb[0].mxu0
      %9525 = vmatprep.mubr.f32.mxu0 0.0
      %9526 = vmatmul.mubr.f32.gmra.mrb[0].mxu0 %v9272
      %v9527 = vpop.f32.mrb[0].mxu0
      %v9528 = vadd.f32 %v9410, %v9527
      %v9529 = vpop.f32.mrb[0].mxu0
      %9530 = vmatprep.mubr.f32.mxu0 0.0
      %9531 = vmatmul.mubr.f32.gmra.mrb[0].mxu0 %v9273
      %v9532 = vpop.f32.mrb[0].mxu0
      %v9533 = vadd.f32 %v9410, %v9532
      %v9534 = vpop.f32.mrb[0].mxu0
      %9535 = vmatprep.mubr.f32.mxu0 0.0
      %9536 = vmatmul.mubr.f32.gmra.mrb[0].mxu0 %v9274
      %v9537 = vpop.f32.mrb[0].mxu0
      %v9538 = vadd.f32 %v9410, %v9537
      %v9539 = vpop.f32.mrb[0].mxu0
      %9540 = vmatprep.mubr.f32.mxu0 0.0
      %9541 = vmatmul.mubr.f32.gmra.mrb[0].mxu0 %v9275
      %v9542 = vpop.f32.mrb[0].mxu0
      %v9543 = vadd.f32 %v9410, %v9542
      %v9544 = vpop.f32.mrb[0].mxu0
      %9545 = vmatprep.mubr.f32.mxu0 0.0
      %9546 = vmatmul.mubr.f32.gmra.mrb[0].mxu0 %v9276
      %v9547 = vpop.f32.mrb[0].mxu0
      %v9548 = vadd.f32 %v9410, %v9547
      %v9549 = vpop.f32.mrb[0].mxu0
      %9550 = vmatprep.mubr.f32.mxu0 0.0
      %9551 = vmatmul.mubr.f32.gmra.mrb[0].mxu0 %v9277
      %v9552 = vpop.f32.mrb[0].mxu0
      %v9553 = vadd.f32 %v9410, %v9552
      %v9554 = vpop.f32.mrb[0].mxu0
      %9555 = vmatprep.mubr.f32.mxu0 0.0
      %9556 = vmatmul.mubr.f32.gmra.mrb[0].mxu0 %v9278
      %v9557 = vpop.f32.mrb[0].mxu0
      %v9558 = vadd.f32 %v9410, %v9557
      %v9559 = vpop.f32.mrb[0].mxu0
      %9560 = vmatprep.mubr.f32.mxu0 0.0
      %9561 = vmatmul.mubr.f32.gmra.mrb[0].mxu0 %v9279
      %v9562 = vpop.f32.mrb[0].mxu0
      %v9563 = vadd.f32 %v9410, %v9562
      %v9564 = vpop.f32.mrb[0].mxu0
      %9565 = vmatprep.mubr.f32.mxu0 0.0
      %9566 = vmatmul.mubr.f32.gmra.mrb[0].mxu0 %v9280
      %v9567 = vpop.f32.mrb[0].mxu0
      %v9568 = vadd.f32 %v9410, %v9567
      %v9569 = vpop.f32.mrb[0].mxu0
      %9570 = vmatprep.mubr.f32.mxu0 0.0
      %9571 = vmatmul.mubr.f32.gmra.mrb[0].mxu0 %v9281
      %v9572 = vpop.f32.mrb[0].mxu0
      %v9573 = vadd.f32 %v9410, %v9572
      %v9574 = vpop.f32.mrb[0].mxu0
      %9575 = vmatprep.mubr.f32.mxu0 0.0
      %9576 = vmatmul.mubr.f32.gmra.mrb[0].mxu0 %v9282
      %v9577 = vpop.f32.mrb[0].mxu0
      %v9578 = vadd.f32 %v9410, %v9577
      %v9579 = vpop.f32.mrb[0].mxu0
      %9580 = vmatprep.mubr.f32.mxu0 0.0
      %9581 = vmatmul.mubr.f32.gmra.mrb[0].mxu0 %v9283
      %v9582 = vpop.f32.mrb[0].mxu0
      %v9583 = vadd.f32 %v9410, %v9582
      %v9584 = vpop.f32.mrb[0].mxu0
      %9585 = vmatprep.mubr.f32.mxu0 0.0
      %9586 = vmatmul.mubr.f32.gmra.mrb[0].mxu0 %v9284
      %v9587 = vpop.f32.mrb[0].mxu0
      %v9588 = vadd.f32 %v9410, %v9587
      %v9589 = vpop.f32.mrb[0].mxu0
      %9590 = vmatprep.mubr.f32.mxu0 0.0
      %9591 = vmatmul.mubr.f32.gmra.mrb[0].mxu0 %v9285
      %v9592 = vpop.f32.mrb[0].mxu0
      %v9593 = vadd.f32 %v9410, %v9592
      %v9594 = vpop.f32.mrb[0].mxu0
      %9595 = vmatprep.mubr.f32.mxu0 0.0
      %9596 = vmatmul.mubr.f32.gmra.mrb[0].mxu0 %v9286
      %v9597 = vpop.f32.mrb[0].mxu0
      %v9598 = vadd.f32 %v9410, %v9597
      %v9599 = vpop.f32.mrb[0].mxu0
      %9600 = vmatprep.mubr.f32.mxu0 0.0
      %9601 = vmatmul.mubr.f32.gmra.mrb[0].mxu0 %v9287
      %v9602 = vpop.f32.mrb[0].mxu0
      %v9603 = vadd.f32 %v9410, %v9602
      %v9604 = vpop.f32.mrb[0].mxu0
      %9605 = vmatprep.mubr.f32.mxu0 0.0
      %9606 = vmatmul.mubr.f32.gmra.mrb[0].mxu0 %v9288
      %v9607 = vpop.f32.mrb[0].mxu0
      %v9608 = vadd.f32 %v9410, %v9607
      %v9609 = vpop.f32.mrb[0].mxu0
      %9610 = vmatprep.mubr.f32.mxu0 0.0
      %9611 = vmatmul.mubr.f32.gmra.mrb[0].mxu0 %v9289
      %v9612 = vpop.f32.mrb[0].mxu0
      %v9613 = vadd.f32 %v9410, %v9612
      %v9614 = vpop.f32.mrb[0].mxu0
      %9615 = vmatprep.mubr.f32.mxu0 0.0
      %9616 = vmatmul.mubr.f32.gmra.mrb[0].mxu0 %v9290
      %v9617 = vpop.f32.mrb[0].mxu0
      %v9618 = vadd.f32 %v9410, %v9617
      %v9619 = vpop.f32.mrb[0].mxu0
      %9620 = vmatprep.mubr.f32.mxu0 0.0
      %9621 = vmatmul.mubr.f32.gmra.mrb[0].mxu0 %v9291
      %v9622 = vpop.f32.mrb[0].mxu0
      %v9623 = vadd.f32 %v9410, %v9622
      %v9624 = vpop.f32.mrb[0].mxu0
      %9625 = vmatprep.mubr.f32.mxu0 0.0
      %9626 = vmatmul.mubr.f32.gmra.mrb[0].mxu0 %v9292
      %v9627 = vpop.f32.mrb[0].mxu0
      %v9628 = vadd.f32 %v9410, %v9627
      %v9629 = vpop.f32.mrb[0].mxu0
      %9630 = vmatprep.mubr.f32.mxu0 0.0
      %9631 = vmatmul.mubr.f32.gmra.mrb[0].mxu0 %v9293
      %v9632 = vpop.f32.mrb[0].mxu0
      %v9633 = vadd.f32 %v9410, %v9632
      %v9634 = vpop.f32.mrb[0].mxu0
      %9635 = vmatprep.mubr.f32.mxu0 0.0
      %9636 = vmatmul.mubr.f32.gmra.mrb[0].mxu0 %v9294
      %v9637 = vpop.f32.mrb[0].mxu0
      %v9638 = vadd.f32 %v9410, %v9637
      %v9639 = vpop.f32.mrb[0].mxu0
      %9640 = vmatprep.mubr.f32.mxu0 0.0
      %9641 = vmatmul.mubr.f32.gmra.mrb[0].mxu0 %v9295
      %v9642 = vpop.f32.mrb[0].mxu0
      %v9643 = vadd.f32 %v9410, %v9642
      %v9644 = vpop.f32.mrb[0].mxu0
      %9645 = vmatprep.mubr.f32.mxu0 0.0
      %9646 = vmatmul.mubr.f32.gmra.mrb[0].mxu0 %v9296
      %v9647 = vpop.f32.mrb[0].mxu0
      %v9648 = vadd.f32 %v9410, %v9647
      %v9649 = vpop.f32.mrb[0].mxu0
      %9650 = vmatprep.mubr.f32.mxu0 0.0
      %9651 = vmatmul.mubr.f32.gmra.mrb[0].mxu0 %v9297
      %v9652 = vpop.f32.mrb[0].mxu0
      %v9653 = vadd.f32 %v9410, %v9652
      %v9654 = vpop.f32.mrb[0].mxu0
      %9655 = vmatprep.mubr.f32.mxu0 0.0
      %9656 = vmatmul.mubr.f32.gmra.mrb[0].mxu0 %v9298
      %v9657 = vpop.f32.mrb[0].mxu0
      %v9658 = vadd.f32 %v9410, %v9657
      %v9659 = vpop.f32.mrb[0].mxu0
      %9660 = vmatprep.mubr.f32.mxu0 0.0
      %9661 = vmatmul.mubr.f32.gmra.mrb[0].mxu0 %v9299
      %v9662 = vpop.f32.mrb[0].mxu0
      %v9663 = vadd.f32 %v9410, %v9662
      %v9664 = vpop.f32.mrb[0].mxu0
      %9665 = vmatprep.mubr.f32.mxu0 0.0
      %9666 = vmatmul.mubr.f32.gmra.mrb[0].mxu0 %v9300
      %v9667 = vpop.f32.mrb[0].mxu0
      %v9668 = vadd.f32 %v9410, %v9667
      %v9669 = vpop.f32.mrb[0].mxu0
      %9670 = vmatprep.mubr.f32.mxu0 0.0
      %9671 = vmatmul.mubr.f32.gmra.mrb[0].mxu0 %v9301
      %v9672 = vpop.f32.mrb[0].mxu0
      %v9673 = vadd.f32 %v9410, %v9672
      %v9674 = vpop.f32.mrb[0].mxu0
      %9675 = vmatprep.mubr.f32.mxu0 0.0
      %9676 = vmatmul.mubr.f32.gmra.mrb[0].mxu0 %v9302
      %v9677 = vpop.f32.mrb[0].mxu0
      %v9678 = vadd.f32 %v9410, %v9677
      %v9679 = vpop.f32.mrb[0].mxu0
      %9680 = vmatprep.mubr.f32.mxu0 0.0
      %9681 = vmatmul.mubr.f32.gmra.mrb[0].mxu0 %v9303
      %v9682 = vpop.f32.mrb[0].mxu0
      %v9683 = vadd.f32 %v9410, %v9682
      %v9684 = vpop.f32.mrb[0].mxu0
      %9685 = vmatprep.mubr.f32.mxu0 0.0
      %9686 = vmatmul.mubr.f32.gmra.mrb[0].mxu0 %v9304
      %v9687 = vpop.f32.mrb[0].mxu0
      %v9688 = vadd.f32 %v9410, %v9687
      %v9689 = vpop.f32.mrb[0].mxu0
      %9690 = vmatprep.mubr.f32.mxu0 0.0
      %9691 = vmatmul.mubr.f32.gmra.mrb[0].mxu0 %v9305
      %v9692 = vpop.f32.mrb[0].mxu0
      %v9693 = vadd.f32 %v9410, %v9692
      %v9694 = vpop.f32.mrb[0].mxu0
      %9695 = vmatprep.mubr.f32.mxu0 0.0
      %9696 = vmatmul.mubr.f32.gmra.mrb[0].mxu0 %v9306
      %v9697 = vpop.f32.mrb[0].mxu0
      %v9698 = vadd.f32 %v9410, %v9697
      %v9699 = vpop.f32.mrb[0].mxu0
      %9700 = vmatprep.mubr.f32.mxu0 0.0
      %9701 = vmatmul.mubr.f32.gmra.mrb[0].mxu0 %v9307
      %v9702 = vpop.f32.mrb[0].mxu0
      %v9703 = vadd.f32 %v9410, %v9702
      %v9704 = vpop.f32.mrb[0].mxu0
      %9705 = vmatprep.mubr.f32.mxu0 0.0
      %9706 = vmatmul.mubr.f32.gmra.mrb[0].mxu0 %v9308
      %v9707 = vpop.f32.mrb[0].mxu0
      %v9708 = vadd.f32 %v9410, %v9707
      %v9709 = vpop.f32.mrb[0].mxu0
      %9710 = vmatprep.mubr.f32.mxu0 0.0
      %9711 = vmatmul.mubr.f32.gmra.mrb[0].mxu0 %v9309
      %v9712 = vpop.f32.mrb[0].mxu0
      %v9713 = vadd.f32 %v9410, %v9712
      %v9714 = vpop.f32.mrb[0].mxu0
      %9715 = vmatprep.mubr.f32.mxu0 0.0
      %9716 = vmatmul.mubr.f32.gmra.mrb[0].mxu0 %v9310
      %v9717 = vpop.f32.mrb[0].mxu0
      %v9718 = vadd.f32 %v9410, %v9717
      %v9719 = vpop.f32.mrb[0].mxu0
      %9720 = vmatprep.mubr.f32.mxu0 0.0
      %9721 = vmatmul.mubr.f32.gmra.mrb[0].mxu0 %v9311
      %v9722 = vpop.f32.mrb[0].mxu0
      %v9723 = vadd.f32 %v9410, %v9722
      %v9724 = vpop.f32.mrb[0].mxu0
      %9725 = vmatprep.mubr.f32.mxu0 0.0
      %9726 = vmatmul.mubr.f32.gmra.mrb[0].mxu0 %v9312
      %v9727 = vpop.f32.mrb[0].mxu0
      %v9728 = vadd.f32 %v9410, %v9727
      %v9729 = vpop.f32.mrb[0].mxu0
      %9730 = vmatprep.mubr.f32.mxu0 0.0
      %9731 = vmatmul.mubr.f32.gmra.mrb[0].mxu0 %v9313
      %v9732 = vpop.f32.mrb[0].mxu0
      %v9733 = vadd.f32 %v9410, %v9732
      %v9734 = vpop.f32.mrb[0].mxu0
      %9735 = vmatprep.mubr.f32.mxu0 0.0
      %9736 = vmatmul.mubr.f32.gmra.mrb[0].mxu0 %v9314
      %v9737 = vpop.f32.mrb[0].mxu0
      %v9738 = vadd.f32 %v9410, %v9737
      %v9739 = vpop.f32.mrb[0].mxu0
      %9740 = vmatprep.mubr.f32.mxu0 0.0
      %9741 = vmatmul.mubr.f32.gmra.mrb[0].mxu0 %v9315
      %v9742 = vpop.f32.mrb[0].mxu0
      %v9743 = vadd.f32 %v9410, %v9742
      %v9744 = vpop.f32.mrb[0].mxu0
      %9745 = vmatprep.mubr.f32.mxu0 0.0
      %9746 = vmatmul.mubr.f32.gmra.mrb[0].mxu0 %v9316
      %v9747 = vpop.f32.mrb[0].mxu0
      %v9748 = vadd.f32 %v9410, %v9747
      %v9749 = vpop.f32.mrb[0].mxu0
      %9750 = vmatprep.mubr.f32.mxu0 0.0
      %9751 = vmatmul.mubr.f32.gmra.mrb[0].mxu0 %v9317
      %v9752 = vpop.f32.mrb[0].mxu0
      %v9753 = vadd.f32 %v9410, %v9752
      %v9754 = vpop.f32.mrb[0].mxu0
      %9755 = vmatprep.mubr.f32.mxu0 0.0
      %9756 = vmatmul.mubr.f32.gmra.mrb[0].mxu0 %v9318
      %v9757 = vpop.f32.mrb[0].mxu0
      %v9758 = vadd.f32 %v9410, %v9757
      %v9759 = vpop.f32.mrb[0].mxu0
      %9760 = vmatprep.mubr.f32.mxu0 0.0
      %9761 = vmatmul.mubr.f32.gmra.mrb[0].mxu0 %v9319
      %v9762 = vpop.f32.mrb[0].mxu0
      %v9763 = vadd.f32 %v9410, %v9762
      %v9764 = vpop.f32.mrb[0].mxu0
      %9765 = vmatprep.mubr.f32.mxu0 0.0
      %9766 = vmatmul.mubr.f32.gmra.mrb[0].mxu0 %v9320
      %v9767 = vpop.f32.mrb[0].mxu0
      %v9768 = vadd.f32 %v9410, %v9767
      %v9769 = vpop.f32.mrb[0].mxu0
      %9770 = vmatprep.mubr.f32.mxu0 0.0
      %9771 = vmatmul.mubr.f32.gmra.mrb[0].mxu0 %v9321
      %v9772 = vpop.f32.mrb[0].mxu0
      %v9773 = vadd.f32 %v9410, %v9772
      %v9774 = vpop.f32.mrb[0].mxu0
      %9775 = vmatprep.mubr.f32.mxu0 0.0
      %9776 = vmatmul.mubr.f32.gmra.mrb[0].mxu0 %v9322
      %v9777 = vpop.f32.mrb[0].mxu0
      %v9778 = vadd.f32 %v9410, %v9777
      %v9779 = vpop.f32.mrb[0].mxu0
      %9780 = vmatprep.mubr.f32.mxu0 0.0
      %9781 = vmatmul.mubr.f32.gmra.mrb[0].mxu0 %v9323
      %v9782 = vpop.f32.mrb[0].mxu0
      %v9783 = vadd.f32 %v9410, %v9782
      %v9784 = vpop.f32.mrb[0].mxu0
      %9785 = vmatprep.mubr.f32.mxu0 0.0
      %9786 = vmatmul.mubr.f32.gmra.mrb[0].mxu0 %v9324
      %v9787 = vpop.f32.mrb[0].mxu0
      %v9788 = vadd.f32 %v9410, %v9787
      %v9789 = vpop.f32.mrb[0].mxu0
      %9790 = vmatprep.mubr.f32.mxu0 0.0
      %9791 = vmatmul.mubr.f32.gmra.mrb[0].mxu0 %v9325
      %v9792 = vpop.f32.mrb[0].mxu0
      %v9793 = vadd.f32 %v9410, %v9792
      %v9794 = vpop.f32.mrb[0].mxu0
      %9795 = vmatprep.mubr.f32.mxu0 0.0
      %9796 = vmatmul.mubr.f32.gmra.mrb[0].mxu0 %v9326
      %v9797 = vpop.f32.mrb[0].mxu0
      %v9798 = vadd.f32 %v9410, %v9797
      %v9799 = vpop.f32.mrb[0].mxu0
      %9800 = vmatprep.mubr.f32.mxu0 0.0
      %9801 = vmatmul.mubr.f32.gmra.mrb[0].mxu0 %v9327
      %v9802 = vpop.f32.mrb[0].mxu0
      %v9803 = vadd.f32 %v9410, %v9802
      %v9804 = vpop.f32.mrb[0].mxu0
      %9805 = vmatprep.mubr.f32.mxu0 0.0
      %9806 = vmatmul.mubr.f32.gmra.mrb[0].mxu0 %v9328
      %v9807 = vpop.f32.mrb[0].mxu0
      %v9808 = vadd.f32 %v9410, %v9807
      %v9809 = vpop.f32.mrb[0].mxu0
      %9810 = vmatprep.mubr.f32.mxu0 0.0
      %9811 = vmatmul.mubr.f32.gmra.mrb[0].mxu0 %v9329
      %v9812 = vpop.f32.mrb[0].mxu0
      %v9813 = vadd.f32 %v9410, %v9812
      %v9814 = vpop.f32.mrb[0].mxu0
      %9815 = vmatprep.mubr.f32.mxu0 0.0
      %9816 = vmatmul.mubr.f32.gmra.mrb[0].mxu0 %v9330
      %v9817 = vpop.f32.mrb[0].mxu0
      %v9818 = vadd.f32 %v9410, %v9817
      %v9819 = vpop.f32.mrb[0].mxu0
      %9820 = vmatprep.mubr.f32.mxu0 0.0
      %9821 = vmatmul.mubr.f32.gmra.mrb[0].mxu0 %v9331
      %v9822 = vpop.f32.mrb[0].mxu0
      %v9823 = vadd.f32 %v9410, %v9822
      %v9824 = vpop.f32.mrb[0].mxu0
      %9825 = vmatprep.mubr.f32.mxu0 0.0
      %9826 = vmatmul.mubr.f32.gmra.mrb[0].mxu0 %v9332
      %v9827 = vpop.f32.mrb[0].mxu0
      %v9828 = vadd.f32 %v9410, %v9827
      %v9829 = vpop.f32.mrb[0].mxu0
      %9830 = vmatprep.mubr.f32.mxu0 0.0
      %9831 = vmatmul.mubr.f32.gmra.mrb[0].mxu0 %v9333
      %v9832 = vpop.f32.mrb[0].mxu0
      %v9833 = vadd.f32 %v9410, %v9832
      %v9834 = vpop.f32.mrb[0].mxu0
      %9835 = vmatprep.mubr.f32.mxu0 0.0
      %9836 = vmatmul.mubr.f32.gmra.mrb[0].mxu0 %v9334
      %v9837 = vpop.f32.mrb[0].mxu0
      %v9838 = vadd.f32 %v9410, %v9837
      %v9839 = vpop.f32.mrb[0].mxu0
      %9840 = vmatprep.mubr.f32.mxu0 0.0
      %9841 = vmatmul.mubr.f32.gmra.mrb[0].mxu0 %v9335
      %v9842 = vpop.f32.mrb[0].mxu0
      %v9843 = vadd.f32 %v9410, %v9842
      %v9844 = vpop.f32.mrb[0].mxu0
      %9845 = vmatprep.mubr.f32.mxu0 0.0
      %9846 = vmatmul.mubr.f32.gmra.mrb[0].mxu0 %v9336
      %v9847 = vpop.f32.mrb[0].mxu0
      %v9848 = vadd.f32 %v9410, %v9847
      %v9849 = vpop.f32.mrb[0].mxu0
      %9850 = vmatprep.mubr.f32.mxu0 0.0
      %9851 = vmatmul.mubr.f32.gmra.mrb[0].mxu0 %v9337
      %v9852 = vpop.f32.mrb[0].mxu0
      %v9853 = vadd.f32 %v9410, %v9852
      %v9854 = vpop.f32.mrb[0].mxu0
      %9855 = vmatprep.mubr.f32.mxu0 0.0
      %9856 = vmatmul.mubr.f32.gmra.mrb[0].mxu0 %v9338
      %v9857 = vpop.f32.mrb[0].mxu0
      %v9858 = vadd.f32 %v9410, %v9857
      %v9859 = vpop.f32.mrb[0].mxu0
      %9860 = vmatprep.mubr.f32.mxu0 0.0
      %9861 = vmatmul.mubr.f32.gmra.mrb[0].mxu0 %v9339
      %v9862 = vpop.f32.mrb[0].mxu0
      %v9863 = vadd.f32 %v9410, %v9862
      %v9864 = vpop.f32.mrb[0].mxu0
      %9865 = vmatprep.mubr.f32.mxu0 0.0
      %9866 = vmatmul.mubr.f32.gmra.mrb[0].mxu0 %v9340
      %v9867 = vpop.f32.mrb[0].mxu0
      %v9868 = vadd.f32 %v9410, %v9867
      %v9869 = vpop.f32.mrb[0].mxu0
      %9870 = vmatprep.mubr.f32.mxu0 0.0
      %9871 = vmatmul.mubr.f32.gmra.mrb[0].mxu0 %v9341
      %v9872 = vpop.f32.mrb[0].mxu0
      %v9873 = vadd.f32 %v9410, %v9872
      %v9874 = vpop.f32.mrb[0].mxu0
      %9875 = vmatprep.mubr.f32.mxu0 0.0
      %9876 = vmatmul.mubr.f32.gmra.mrb[0].mxu0 %v9342
      %v9877 = vpop.f32.mrb[0].mxu0
      %v9878 = vadd.f32 %v9410, %v9877
      %v9879 = vpop.f32.mrb[0].mxu0
      %9880 = vmatprep.mubr.f32.mxu0 0.0
      %9881 = vmatmul.mubr.f32.gmra.mrb[0].mxu0 %v9343
      %v9882 = vpop.f32.mrb[0].mxu0
      %v9883 = vadd.f32 %v9410, %v9882
      %v9884 = vpop.f32.mrb[0].mxu0
      %9885 = vmatprep.mubr.f32.mxu0 0.0
      %9886 = vmatmul.mubr.f32.gmra.mrb[0].mxu0 %v9344
      %v9887 = vpop.f32.mrb[0].mxu0
      %v9888 = vadd.f32 %v9410, %v9887
      %v9889 = vpop.f32.mrb[0].mxu0
      %9890 = vmatprep.mubr.f32.mxu0 0.0
      %9891 = vmatmul.mubr.f32.gmra.mrb[0].mxu0 %v9345
      %v9892 = vpop.f32.mrb[0].mxu0
      %v9893 = vadd.f32 %v9410, %v9892
      %v9894 = vpop.f32.mrb[0].mxu0
      %9895 = vmatprep.mubr.f32.mxu0 0.0
      %9896 = vmatmul.mubr.f32.gmra.mrb[0].mxu0 %v9346
      %v9897 = vpop.f32.mrb[0].mxu0
      %v9898 = vadd.f32 %v9410, %v9897
      %v9899 = vpop.f32.mrb[0].mxu0
      %9900 = vmatprep.mubr.f32.mxu0 0.0
      %9901 = vmatmul.mubr.f32.gmra.mrb[0].mxu0 %v9347
      %v9902 = vpop.f32.mrb[0].mxu0
      %v9903 = vadd.f32 %v9410, %v9902
      %v9904 = vpop.f32.mrb[0].mxu0
      %9905 = vmatprep.mubr.f32.mxu0 0.0
      %9906 = vmatmul.mubr.f32.gmra.mrb[0].mxu0 %v9348
      %v9907 = vpop.f32.mrb[0].mxu0
      %v9908 = vadd.f32 %v9410, %v9907
      %v9909 = vpop.f32.mrb[0].mxu0
      %9910 = vmatprep.mubr.f32.mxu0 0.0
      %9911 = vmatmul.mubr.f32.gmra.mrb[0].mxu0 %v9349
      %v9912 = vpop.f32.mrb[0].mxu0
      %v9913 = vadd.f32 %v9410, %v9912
      %v9914 = vpop.f32.mrb[0].mxu0
      %9915 = vmatprep.mubr.f32.mxu0 0.0
      %9916 = vmatmul.mubr.f32.gmra.mrb[0].mxu0 %v9350
      %v9917 = vpop.f32.mrb[0].mxu0
      %v9918 = vadd.f32 %v9410, %v9917
      %v9919 = vpop.f32.mrb[0].mxu0
      %9920 = vmatprep.mubr.f32.mxu0 0.0
      %9921 = vmatmul.mubr.f32.gmra.mrb[0].mxu0 %v9351
      %v9922 = vpop.f32.mrb[0].mxu0
      %v9923 = vadd.f32 %v9410, %v9922
      %v9924 = vpop.f32.mrb[0].mxu0
      %9925 = vmatprep.mubr.f32.mxu0 0.0
      %9926 = vmatmul.mubr.f32.gmra.mrb[0].mxu0 %v9352
      %v9927 = vpop.f32.mrb[0].mxu0
      %v9928 = vadd.f32 %v9410, %v9927
      %v9929 = vpop.f32.mrb[0].mxu0
      %9930 = vmatprep.mubr.f32.mxu0 0.0
      %9931 = vmatmul.mubr.f32.gmra.mrb[0].mxu0 %v9353
      %v9932 = vpop.f32.mrb[0].mxu0
      %v9933 = vadd.f32 %v9410, %v9932
      %v9934 = vpop.f32.mrb[0].mxu0
      %9935 = vmatprep.mubr.f32.mxu0 0.0
      %9936 = vmatmul.mubr.f32.gmra.mrb[0].mxu0 %v9354
      %v9937 = vpop.f32.mrb[0].mxu0
      %v9938 = vadd.f32 %v9410, %v9937
      %v9939 = vpop.f32.mrb[0].mxu0
      %9940 = vmatprep.mubr.f32.mxu0 0.0
      %9941 = vmatmul.mubr.f32.gmra.mrb[0].mxu0 %v9355
      %v9942 = vpop.f32.mrb[0].mxu0
      %v9943 = vadd.f32 %v9410, %v9942
      %v9944 = vpop.f32.mrb[0].mxu0
      %9945 = vmatprep.mubr.f32.mxu0 0.0
      %9946 = vmatmul.mubr.f32.gmra.mrb[0].mxu0 %v9356
      %v9947 = vpop.f32.mrb[0].mxu0
      %v9948 = vadd.f32 %v9410, %v9947
      %v9949 = vpop.f32.mrb[0].mxu0
      %9950 = vmatprep.mubr.f32.mxu0 0.0
      %9951 = vmatmul.mubr.f32.gmra.mrb[0].mxu0 %v9357
      %v9952 = vpop.f32.mrb[0].mxu0
      %v9953 = vadd.f32 %v9410, %v9952
      %v9954 = vpop.f32.mrb[0].mxu0
      %9955 = vmatprep.mubr.f32.mxu0 0.0
      %9956 = vmatmul.mubr.f32.gmra.mrb[0].mxu0 %v9358
      %v9957 = vpop.f32.mrb[0].mxu0
      %v9958 = vadd.f32 %v9410, %v9957
      %v9959 = vpop.f32.mrb[0].mxu0
      %9960 = vmatprep.mubr.f32.mxu0 0.0
      %9961 = vmatmul.mubr.f32.gmra.mrb[0].mxu0 %v9359
      %v9962 = vpop.f32.mrb[0].mxu0
      %v9963 = vadd.f32 %v9410, %v9962
      %v9964 = vpop.f32.mrb[0].mxu0
      %9965 = vmatprep.mubr.f32.mxu0 0.0
      %9966 = vmatmul.mubr.f32.gmra.mrb[0].mxu0 %v9360
      %v9967 = vpop.f32.mrb[0].mxu0
      %v9968 = vadd.f32 %v9410, %v9967
      %v9969 = vpop.f32.mrb[0].mxu0
      %9970 = vmatprep.mubr.f32.mxu0 0.0
      %9971 = vmatmul.mubr.f32.gmra.mrb[0].mxu0 %v9361
      %v9972 = vpop.f32.mrb[0].mxu0
      %v9973 = vadd.f32 %v9410, %v9972
      %v9974 = vpop.f32.mrb[0].mxu0
      %9975 = vmatprep.mubr.f32.mxu0 0.0
      %9976 = vmatmul.mubr.f32.gmra.mrb[0].mxu0 %v9362
      %v9977 = vpop.f32.mrb[0].mxu0
      %v9978 = vadd.f32 %v9410, %v9977
      %v9979 = vpop.f32.mrb[0].mxu0
      %9980 = vmatprep.mubr.f32.mxu0 0.0
      %9981 = vmatmul.mubr.f32.gmra.mrb[0].mxu0 %v9363
      %v9982 = vpop.f32.mrb[0].mxu0
      %v9983 = vadd.f32 %v9410, %v9982
      %v9984 = vpop.f32.mrb[0].mxu0
      %9985 = vmatprep.mubr.f32.mxu0 0.0
      %9986 = vmatmul.mubr.f32.gmra.mrb[0].mxu0 %v9364
      %v9987 = vpop.f32.mrb[0].mxu0
      %v9988 = vadd.f32 %v9410, %v9987
      %v9989 = vpop.f32.mrb[0].mxu0
      %9990 = vmatprep.mubr.f32.mxu0 0.0
      %9991 = vmatmul.mubr.f32.gmra.mrb[0].mxu0 %v9365
      %v9992 = vpop.f32.mrb[0].mxu0
      %v9993 = vadd.f32 %v9410, %v9992
      %v9994 = vpop.f32.mrb[0].mxu0
      %9995 = vmatprep.mubr.f32.mxu0 0.0
      %9996 = vmatmul.mubr.f32.gmra.mrb[0].mxu0 %v9366
      %v9997 = vpop.f32.mrb[0].mxu0
      %v9998 = vadd.f32 %v9410, %v9997
      %v9999 = vpop.f32.mrb[0].mxu0
      %10000 = vmatprep.mubr.f32.mxu0 0.0
      %10001 = vmatmul.mubr.f32.gmra.mrb[0].mxu0 %v9367
      %v10002 = vpop.f32.mrb[0].mxu0
      %v10003 = vadd.f32 %v9410, %v10002
      %v10004 = vpop.f32.mrb[0].mxu0
      %10005 = vmatprep.mubr.f32.mxu0 0.0
      %10006 = vmatmul.mubr.f32.gmra.mrb[0].mxu0 %v9368
      %v10007 = vpop.f32.mrb[0].mxu0
      %v10008 = vadd.f32 %v9410, %v10007
      %v10009 = vpop.f32.mrb[0].mxu0
      %10010 = vmatprep.mubr.f32.mxu0 0.0
      %10011 = vmatmul.mubr.f32.gmra.mrb[0].mxu0 %v9369
      %v10012 = vpop.f32.mrb[0].mxu0
      %v10013 = vadd.f32 %v9410, %v10012
      %v10014 = vpop.f32.mrb[0].mxu0
      %10015 = vmatprep.mubr.f32.mxu0 0.0
      %10016 = vmatmul.mubr.f32.gmra.mrb[0].mxu0 %v9370
      %v10017 = vpop.f32.mrb[0].mxu0
      %v10018 = vadd.f32 %v9410, %v10017
      %v10019 = vpop.f32.mrb[0].mxu0
      %10020 = vmatprep.mubr.f32.mxu0 0.0
      %10021 = vmatmul.mubr.f32.gmra.mrb[0].mxu0 %v9371
      %v10022 = vpop.f32.mrb[0].mxu0
      %v10023 = vadd.f32 %v9410, %v10022
      %v10024 = vpop.f32.mrb[0].mxu0
      %10025 = vmatprep.mubr.f32.mxu0 0.0
      %10026 = vmatmul.mubr.f32.gmra.mrb[0].mxu0 %v9372
      %v10027 = vpop.f32.mrb[0].mxu0
      %v10028 = vadd.f32 %v9410, %v10027
      %v10029 = vpop.f32.mrb[0].mxu0
      %10030 = vmatprep.mubr.f32.mxu0 0.0
      %10031 = vmatmul.mubr.f32.gmra.mrb[0].mxu0 %v9373
      %v10032 = vpop.f32.mrb[0].mxu0
      %v10033 = vadd.f32 %v9410, %v10032
      %v10034 = vpop.f32.mrb[0].mxu0
      %10035 = vmatprep.mubr.f32.mxu0 0.0
      %10036 = vmatmul.mubr.f32.gmra.mrb[0].mxu0 %v9374
      %v10037 = vpop.f32.mrb[0].mxu0
      %v10038 = vadd.f32 %v9410, %v10037
      %v10039 = vpop.f32.mrb[0].mxu0
      %10040 = vmatprep.mubr.f32.mxu0 0.0
      %10041 = vmatmul.mubr.f32.gmra.mrb[0].mxu0 %v9375
      %v10042 = vpop.f32.mrb[0].mxu0
      %v10043 = vadd.f32 %v9410, %v10042
      %v10044 = vpop.f32.mrb[0].mxu0
      %10045 = vmatprep.mubr.f32.mxu0 0.0
      %10046 = vmatmul.mubr.f32.gmra.mrb[0].mxu0 %v9376
      %v10047 = vpop.f32.mrb[0].mxu0
      %v10048 = vadd.f32 %v9410, %v10047
      %v10049 = vpop.f32.mrb[0].mxu0
      %10050 = vmatprep.mubr.f32.mxu0 0.0
      %10051 = vmatmul.mubr.f32.gmra.mrb[0].mxu0 %v9377
      %v10052 = vpop.f32.mrb[0].mxu0
      %v10053 = vadd.f32 %v9410, %v10052
      %v10054 = vpop.f32.mrb[0].mxu0
      %10055 = vmatprep.mubr.f32.mxu0 0.0
      %10056 = vmatmul.mubr.f32.gmra.mrb[0].mxu0 %v9378
      %v10057 = vpop.f32.mrb[0].mxu0
      %v10058 = vadd.f32 %v9410, %v10057
      %v10059 = vpop.f32.mrb[0].mxu0
      %10060 = vmatprep.mubr.f32.mxu0 0.0
      %10061 = vmatmul.mubr.f32.gmra.mrb[0].mxu0 %v9379
      %v10062 = vpop.f32.mrb[0].mxu0
      %v10063 = vadd.f32 %v9410, %v10062
      %v10064 = vpop.f32.mrb[0].mxu0
      %10065 = vmatprep.mubr.f32.mxu0 0.0
      %10066 = vmatmul.mubr.f32.gmra.mrb[0].mxu0 %v9380
      %v10067 = vpop.f32.mrb[0].mxu0
      %v10068 = vadd.f32 %v9410, %v10067
      %v10069 = vpop.f32.mrb[0].mxu0
      %10070 = vmatprep.mubr.f32.mxu0 0.0
      %10071 = vmatmul.mubr.f32.gmra.mrb[0].mxu0 %v9381
      %v10072 = vpop.f32.mrb[0].mxu0
      %v10073 = vadd.f32 %v9410, %v10072
      %v10074 = vpop.f32.mrb[0].mxu0
      %10075 = vmatprep.mubr.f32.mxu0 0.0
      %10076 = vmatmul.mubr.f32.gmra.mrb[0].mxu0 %v9382
      %v10077 = vpop.f32.mrb[0].mxu0
      %v10078 = vadd.f32 %v9410, %v10077
      %v10079 = vpop.f32.mrb[0].mxu0
      %10080 = vmatprep.mubr.f32.mxu0 0.0
      %10081 = vmatmul.mubr.f32.gmra.mrb[0].mxu0 %v9383
      %v10082 = vpop.f32.mrb[0].mxu0
      %v10083 = vadd.f32 %v9410, %v10082
      %v10084 = vpop.f32.mrb[0].mxu0
      %10085 = vmatprep.mubr.f32.mxu0 0.0
      %10086 = vmatmul.mubr.f32.gmra.mrb[0].mxu0 %v9384
      %v10087 = vpop.f32.mrb[0].mxu0
      %v10088 = vadd.f32 %v9410, %v10087
      %v10089 = vpop.f32.mrb[0].mxu0
      %10090 = vmatprep.mubr.f32.mxu0 0.0
      %10091 = vmatmul.mubr.f32.gmra.mrb[0].mxu0 %v9385
      %v10092 = vpop.f32.mrb[0].mxu0
      %v10093 = vadd.f32 %v9410, %v10092
      %v10094 = vpop.f32.mrb[0].mxu0
      %10095 = vmatprep.mubr.f32.mxu0 0.0
      %10096 = vmatmul.mubr.f32.gmra.mrb[0].mxu0 %v9386
      %v10097 = vpop.f32.mrb[0].mxu0
      %v10098 = vadd.f32 %v9410, %v10097
      %v10099 = vpop.f32.mrb[0].mxu0
      %10100 = vmatprep.mubr.f32.mxu0 0.0
      %10101 = vmatmul.mubr.f32.gmra.mrb[0].mxu0 %v9387
      %v10102 = vpop.f32.mrb[0].mxu0
      %v10103 = vadd.f32 %v9410, %v10102
      %v10104 = vpop.f32.mrb[0].mxu0
      %10105 = vmatprep.mubr.f32.mxu0 0.0
      %10106 = vmatmul.mubr.f32.gmra.mrb[0].mxu0 %v9388
      %v10107 = vpop.f32.mrb[0].mxu0
      %v10108 = vadd.f32 %v9410, %v10107
      %v10109 = vpop.f32.mrb[0].mxu0
      %10110 = vmatprep.mubr.f32.mxu0 0.0
      %10111 = vmatmul.mubr.f32.gmra.mrb[0].mxu0 %v9389
      %v10112 = vpop.f32.mrb[0].mxu0
      %v10113 = vadd.f32 %v9410, %v10112
      %v10114 = vpop.f32.mrb[0].mxu0
      %10115 = vdwg.mxu0
      %10116 = vst [vmem:[%s226] sm:$0xff] %v9478
      %10117 = vst [vmem:[%s226 + $0x8] sm:$0xff] %v9483
      %10118 = vst [vmem:[%s226 + $0x10] sm:$0xff] %v9488
      %10119 = vst [vmem:[%s226 + $0x18] sm:$0xff] %v9493
      %10120 = vst [vmem:[%s226 + $0x20] sm:$0xff] %v9498
      %10121 = vst [vmem:[%s226 + $0x28] sm:$0xff] %v9503
      %10122 = vst [vmem:[%s226 + $0x30] sm:$0xff] %v9508
      %10123 = vst [vmem:[%s226 + $0x38] sm:$0xff] %v9513
      %10124 = vst [vmem:[%s226 + $0x40] sm:$0xff] %v9518
      %10125 = vst [vmem:[%s226 + $0x48] sm:$0xff] %v9523
      %10126 = vst [vmem:[%s226 + $0x50] sm:$0xff] %v9528
      %10127 = vst [vmem:[%s226 + $0x58] sm:$0xff] %v9533
      %10128 = vst [vmem:[%s226 + $0x60] sm:$0xff] %v9538
      %10129 = vst [vmem:[%s226 + $0x68] sm:$0xff] %v9543
      %10130 = vst [vmem:[%s226 + $0x70] sm:$0xff] %v9548
      %10131 = vst [vmem:[%s226 + $0x78] sm:$0xff] %v9553
      %10132 = vst [vmem:[%s226 + $0x80] sm:$0xff] %v9558
      %10133 = vst [vmem:[%s226 + $0x88] sm:$0xff] %v9563
      %10134 = vst [vmem:[%s226 + $0x90] sm:$0xff] %v9568
      %10135 = vst [vmem:[%s226 + $0x98] sm:$0xff] %v9573
      %10136 = vst [vmem:[%s226 + $0xa0] sm:$0xff] %v9578
      %10137 = vst [vmem:[%s226 + $0xa8] sm:$0xff] %v9583
      %10138 = vst [vmem:[%s226 + $0xb0] sm:$0xff] %v9588
      %10139 = vst [vmem:[%s226 + $0xb8] sm:$0xff] %v9593
      %10140 = vst [vmem:[%s226 + $0xc0] sm:$0xff] %v9598
      %10141 = vst [vmem:[%s226 + $0xc8] sm:$0xff] %v9603
      %10142 = vst [vmem:[%s226 + $0xd0] sm:$0xff] %v9608
      %10143 = vst [vmem:[%s226 + $0xd8] sm:$0xff] %v9613
      %10144 = vst [vmem:[%s226 + $0xe0] sm:$0xff] %v9618
      %10145 = vst [vmem:[%s226 + $0xe8] sm:$0xff] %v9623
      %10146 = vst [vmem:[%s226 + $0xf0] sm:$0xff] %v9628
      %10147 = vst [vmem:[%s226 + $0xf8] sm:$0xff] %v9633
      %10148 = vst [vmem:[%s226 + $0x100] sm:$0xff] %v9638
      %10149 = vst [vmem:[%s226 + $0x108] sm:$0xff] %v9643
      %10150 = vst [vmem:[%s226 + $0x110] sm:$0xff] %v9648
      %10151 = vst [vmem:[%s226 + $0x118] sm:$0xff] %v9653
      %10152 = vst [vmem:[%s226 + $0x120] sm:$0xff] %v9658
      %10153 = vst [vmem:[%s226 + $0x128] sm:$0xff] %v9663
      %10154 = vst [vmem:[%s226 + $0x130] sm:$0xff] %v9668
      %10155 = vst [vmem:[%s226 + $0x138] sm:$0xff] %v9673
      %10156 = vst [vmem:[%s226 + $0x140] sm:$0xff] %v9678
      %10157 = vst [vmem:[%s226 + $0x148] sm:$0xff] %v9683
      %10158 = vst [vmem:[%s226 + $0x150] sm:$0xff] %v9688
      %10159 = vst [vmem:[%s226 + $0x158] sm:$0xff] %v9693
      %10160 = vst [vmem:[%s226 + $0x160] sm:$0xff] %v9698
      %10161 = vst [vmem:[%s226 + $0x168] sm:$0xff] %v9703
      %10162 = vst [vmem:[%s226 + $0x170] sm:$0xff] %v9708
      %10163 = vst [vmem:[%s226 + $0x178] sm:$0xff] %v9713
      %10164 = vst [vmem:[%s226 + $0x180] sm:$0xff] %v9718
      %10165 = vst [vmem:[%s226 + $0x188] sm:$0xff] %v9723
      %10166 = vst [vmem:[%s226 + $0x190] sm:$0xff] %v9728
      %10167 = vst [vmem:[%s226 + $0x198] sm:$0xff] %v9733
      %10168 = vst [vmem:[%s226 + $0x1a0] sm:$0xff] %v9738
      %10169 = vst [vmem:[%s226 + $0x1a8] sm:$0xff] %v9743
      %10170 = vst [vmem:[%s226 + $0x1b0] sm:$0xff] %v9748
      %10171 = vst [vmem:[%s226 + $0x1b8] sm:$0xff] %v9753
      %10172 = vst [vmem:[%s226 + $0x1c0] sm:$0xff] %v9758
      %10173 = vst [vmem:[%s226 + $0x1c8] sm:$0xff] %v9763
      %10174 = vst [vmem:[%s226 + $0x1d0] sm:$0xff] %v9768
      %10175 = vst [vmem:[%s226 + $0x1d8] sm:$0xff] %v9773
      %10176 = vst [vmem:[%s226 + $0x1e0] sm:$0xff] %v9778
      %10177 = vst [vmem:[%s226 + $0x1e8] sm:$0xff] %v9783
      %10178 = vst [vmem:[%s226 + $0x1f0] sm:$0xff] %v9788
      %10179 = vst [vmem:[%s226 + $0x1f8] sm:$0xff] %v9793
      %10180 = vst [vmem:[%s226 + $0x200] sm:$0xff] %v9798
      %10181 = vst [vmem:[%s226 + $0x208] sm:$0xff] %v9803
      %10182 = vst [vmem:[%s226 + $0x210] sm:$0xff] %v9808
      %10183 = vst [vmem:[%s226 + $0x218] sm:$0xff] %v9813
      %10184 = vst [vmem:[%s226 + $0x220] sm:$0xff] %v9818
      %10185 = vst [vmem:[%s226 + $0x228] sm:$0xff] %v9823
      %10186 = vst [vmem:[%s226 + $0x230] sm:$0xff] %v9828
      %10187 = vst [vmem:[%s226 + $0x238] sm:$0xff] %v9833
      %10188 = vst [vmem:[%s226 + $0x240] sm:$0xff] %v9838
      %10189 = vst [vmem:[%s226 + $0x248] sm:$0xff] %v9843
      %10190 = vst [vmem:[%s226 + $0x250] sm:$0xff] %v9848
      %10191 = vst [vmem:[%s226 + $0x258] sm:$0xff] %v9853
      %10192 = vst [vmem:[%s226 + $0x260] sm:$0xff] %v9858
      %10193 = vst [vmem:[%s226 + $0x268] sm:$0xff] %v9863
      %10194 = vst [vmem:[%s226 + $0x270] sm:$0xff] %v9868
      %10195 = vst [vmem:[%s226 + $0x278] sm:$0xff] %v9873
      %10196 = vst [vmem:[%s226 + $0x280] sm:$0xff] %v9878
      %10197 = vst [vmem:[%s226 + $0x288] sm:$0xff] %v9883
      %10198 = vst [vmem:[%s226 + $0x290] sm:$0xff] %v9888
      %10199 = vst [vmem:[%s226 + $0x298] sm:$0xff] %v9893
      %10200 = vst [vmem:[%s226 + $0x2a0] sm:$0xff] %v9898
      %10201 = vst [vmem:[%s226 + $0x2a8] sm:$0xff] %v9903
      %10202 = vst [vmem:[%s226 + $0x2b0] sm:$0xff] %v9908
      %10203 = vst [vmem:[%s226 + $0x2b8] sm:$0xff] %v9913
      %10204 = vst [vmem:[%s226 + $0x2c0] sm:$0xff] %v9918
      %10205 = vst [vmem:[%s226 + $0x2c8] sm:$0xff] %v9923
      %10206 = vst [vmem:[%s226 + $0x2d0] sm:$0xff] %v9928
      %10207 = vst [vmem:[%s226 + $0x2d8] sm:$0xff] %v9933
      %10208 = vst [vmem:[%s226 + $0x2e0] sm:$0xff] %v9938
      %10209 = vst [vmem:[%s226 + $0x2e8] sm:$0xff] %v9943
      %10210 = vst [vmem:[%s226 + $0x2f0] sm:$0xff] %v9948
      %10211 = vst [vmem:[%s226 + $0x2f8] sm:$0xff] %v9953
      %10212 = vst [vmem:[%s226 + $0x300] sm:$0xff] %v9958
      %10213 = vst [vmem:[%s226 + $0x308] sm:$0xff] %v9963
      %10214 = vst [vmem:[%s226 + $0x310] sm:$0xff] %v9968
      %10215 = vst [vmem:[%s226 + $0x318] sm:$0xff] %v9973
      %10216 = vst [vmem:[%s226 + $0x320] sm:$0xff] %v9978
      %10217 = vst [vmem:[%s226 + $0x328] sm:$0xff] %v9983
      %10218 = vst [vmem:[%s226 + $0x330] sm:$0xff] %v9988
      %10219 = vst [vmem:[%s226 + $0x338] sm:$0xff] %v9993
      %10220 = vst [vmem:[%s226 + $0x340] sm:$0xff] %v9998
      %10221 = vst [vmem:[%s226 + $0x348] sm:$0xff] %v10003
      %10222 = vst [vmem:[%s226 + $0x350] sm:$0xff] %v10008
      %10223 = vst [vmem:[%s226 + $0x358] sm:$0xff] %v10013
      %10224 = vst [vmem:[%s226 + $0x360] sm:$0xff] %v10018
      %10225 = vst [vmem:[%s226 + $0x368] sm:$0xff] %v10023
      %10226 = vst [vmem:[%s226 + $0x370] sm:$0xff] %v10028
      %10227 = vst [vmem:[%s226 + $0x378] sm:$0xff] %v10033
      %10228 = vst [vmem:[%s226 + $0x380] sm:$0xff] %v10038
      %10229 = vst [vmem:[%s226 + $0x388] sm:$0xff] %v10043
      %10230 = vst [vmem:[%s226 + $0x390] sm:$0xff] %v10048
      %10231 = vst [vmem:[%s226 + $0x398] sm:$0xff] %v10053
      %10232 = vst [vmem:[%s226 + $0x3a0] sm:$0xff] %v10058
      %10233 = vst [vmem:[%s226 + $0x3a8] sm:$0xff] %v10063
      %10234 = vst [vmem:[%s226 + $0x3b0] sm:$0xff] %v10068
      %10235 = vst [vmem:[%s226 + $0x3b8] sm:$0xff] %v10073
      %10236 = vst [vmem:[%s226 + $0x3c0] sm:$0xff] %v10078
      %10237 = vst [vmem:[%s226 + $0x3c8] sm:$0xff] %v10083
      %10238 = vst [vmem:[%s226 + $0x3d0] sm:$0xff] %v10088
      %10239 = vst [vmem:[%s226 + $0x3d8] sm:$0xff] %v10093
      %10240 = vst [vmem:[%s226 + $0x3e0] sm:$0xff] %v10098
      %10241 = vst [vmem:[%s226 + $0x3e8] sm:$0xff] %v10103
      %10242 = vst [vmem:[%s226 + $0x3f0] sm:$0xff] %v10108
      %10243 = vst [vmem:[%s226 + $0x3f8] sm:$0xff] %v10113
      %s10244 = smul.u32 128, %s16
      %p10245 = scmp.lt.s32.totalorder %s10244, 255
      %s10246 = scalar_select %p10245, %s10244, 255
      %s10247 = smul.addr %s10246, 8
      %s10248 = scalar_lea.vmem %s5, %s10247
      // Predicated region
      $region41: #{implicit_net_forward.1} parent=39 // pred_check
        %p10249 = pneg %p144
      $region42: #{implicit_net_forward.1} parent=39 // pred_check_branch
        %10251 = sbr.rel (%p10249) target = $region44
      $region43: #{implicit_net_forward.1} parent=39 // pred_region
        %s10252 = smul.u32 128, %s16
      $region44: #{implicit_net_forward.1} parent=39 // pred_fallthru
        _
    $region40: #{implicit_net_forward.1} parent=5 // pred_fallthru
      _
    %p10253 = scmp.le.s32.totalorder 2, %s11
    // Predicated region
    $region45: #{implicit_net_forward.1} parent=5 // pred_check
      %p10254 = pneg %p10253
    $region46: #{implicit_net_forward.1} parent=5 // pred_check_branch
      %10256 = sbr.rel (%p10254) target = $region48
    $region47: #{implicit_net_forward.1} parent=5 // pred_region
      %s10257 = ssub.s32 %s11, 2
      // Predicated region
      $region49: #{implicit_net_forward.1} parent=47 // pred_check
        %p10258 = pneg %p150
      $region50: #{implicit_net_forward.1} parent=47 // pred_check_branch
        %10260 = sbr.rel (%p10258) target = $region52
      $region51: #{implicit_net_forward.1} parent=47 // pred_region
        %s10261 = smul.u32 128, %s17
        %p10262 = scmp.lt.s32.totalorder %s10261, 255
        %s10263 = scalar_select %p10262, %s10261, 255
        %s10264 = smul.addr %s10263, 8
        %s10265 = scalar_lea.vmem %s5, %s10264
      $region52: #{implicit_net_forward.1} parent=47 // pred_fallthru
        _
    $region48: #{implicit_net_forward.1} parent=5 // pred_fallthru
      _
  $region6: #{implicit_net_forward.1} parent=0 // loop_footer
    %s15 = sadd.s32 1, %s11
  $region7: #{implicit_net_forward.1} parent=0 // loop_footer_branch
    %10 = sbr.rel target = $region3
  $region8: #{implicit_net_forward.1} parent=0 // loop_exit
    _

</llo_original>
